<compile_context>
chip_gen: v7x
topology: tpu7x:2x2x1
jax: 0.10.0
libtpu: 0.0.40
codegen_flags: <defaults>
</compile_context>

<pallas_src>
import functools

import jax
import jax.numpy as jnp
from jax.experimental import pallas as pl
from jax.experimental.pallas import tpu as pltpu


def _round_up(v, m):
    return (v + m - 1) // m * m


_VMEM_LIMIT = 32 * 1024 * 1024     # well above actual use; valid on v5e/v6e/v7x
_NEG_INF = -1e9                    # softmax pad logit


# ----------------------------- Pallas kernels ------------------------------

def _conv_tap_kernel(x_ref, w_ref, b_ref, o_ref, *, kh, kw, tap_k, oh, ow):
    """Fused (space-to-depth'd, stride-1) conv + bias + ReLU for one image.

    x_ref: [1, Hz, Wz, tap_k]     bf16, channels already lane-padded
    w_ref: [kh*kw*tap_k, OC_pad]  bf16, taps stacked along K
    b_ref: [1, OC_pad]            f32
    o_ref: [1, oh, ow, OC_pad]    bf16
    """
    bias = b_ref[...]                                        # [1, OC_pad] f32
    for oy in range(oh):                                     # static unroll
        acc = None
        for p in range(kh):
            for q in range(kw):
                t = p * kw + q
                lhs = x_ref[0, oy + p, q:q + ow, :]          # [ow, tap_k] bf16
                rhs = w_ref[t * tap_k:(t + 1) * tap_k, :]    # [tap_k, OC_pad]
                d = jnp.dot(lhs, rhs, preferred_element_type=jnp.float32)
                acc = d if acc is None else acc + d
        row = jnp.maximum(acc + bias, 0.0)                   # [ow, OC_pad] f32
        o_ref[0, oy, :, :] = row.astype(o_ref.dtype)


def _fc_head_kernel(x_ref, w1_ref, b1_ref, w2_ref, b2_ref, o_ref, *, actions):
    """Fused fc1 + ReLU + fc2 + per-action softmax over 128-lane atom groups."""
    h = jnp.dot(x_ref[...], w1_ref[...], preferred_element_type=jnp.float32)
    h = jnp.maximum(h + b1_ref[...], 0.0).astype(jnp.bfloat16)
    logits = jnp.dot(h, w2_ref[...], preferred_element_type=jnp.float32)
    logits = logits + b2_ref[...]                            # pads hold -1e9
    for a in range(actions):                                 # 128-aligned slices
        seg = logits[:, a * 128:(a + 1) * 128]
        m = jnp.max(seg, axis=-1, keepdims=True)
        e = jnp.exp(seg - m)
        o_ref[:, a * 128:(a + 1) * 128] = e / jnp.sum(e, axis=-1, keepdims=True)


# ------------------------------ Pallas wrappers -----------------------------

def _space_to_depth(x, s):
    """[B, H, W, C] -> [B, ceil(H/s), ceil(W/s), s*s*C] (zero spatial pad)."""
    if s == 1:
        return x
    B, H, W, C = x.shape
    Hp, Wp = _round_up(H, s), _round_up(W, s)
    if (Hp, Wp) != (H, W):
        x = jnp.pad(x, ((0, 0), (0, Hp - H), (0, Wp - W), (0, 0)))
    x = x.reshape(B, Hp // s, s, Wp // s, s, C)
    x = jnp.transpose(x, (0, 1, 3, 2, 4, 5))
    return x.reshape(B, Hp // s, Wp // s, s * s * C)


def conv2d_relu(x_nhwc, w2d, b2d, *, ksize, stride):
    """Conv2d (valid) + ReLU.  Input/output bf16 NHWC, channels lane-padded."""
    # TODO(synk): emit the output directly in the next layer's space-to-depth
    # layout from inside the kernel so the tiny inter-layer rearrange vanishes.
    assert ksize % stride == 0, "kernel assumes stride divides kernel size"
    B, H, W, _ = x_nhwc.shape
    oh = (H - ksize) // stride + 1
    ow = (W - ksize) // stride + 1
    kh = kw = ksize // stride

    z = _space_to_depth(x_nhwc, stride)
    cz = z.shape[-1]
    tap_k = _round_up(cz, 128)
    if tap_k != cz:                       # only conv1 (4 raw channels) hits this
        z = jnp.pad(z, ((0, 0), (0, 0), (0, 0), (0, tap_k - cz)))
    Hz, Wz = z.shape[1], z.shape[2]
    oc_pad = w2d.shape[1]
    assert w2d.shape[0] == kh * kw * tap_k

    kernel = functools.partial(_conv_tap_kernel, kh=kh, kw=kw,
                               tap_k=tap_k, oh=oh, ow=ow)
    return pl.pallas_call(
        kernel,
        out_shape=jax.ShapeDtypeStruct((B, oh, ow, oc_pad), jnp.bfloat16),
        grid_spec=pltpu.PrefetchScalarGridSpec(
            num_scalar_prefetch=0,
            grid=(B,),
            in_specs=[
                pl.BlockSpec((1, Hz, Wz, tap_k), lambda b: (b, 0, 0, 0)),
                pl.BlockSpec((kh * kw * tap_k, oc_pad), lambda b: (0, 0)),
                pl.BlockSpec((1, oc_pad), lambda b: (0, 0)),
            ],
            out_specs=pl.BlockSpec((1, oh, ow, oc_pad), lambda b: (b, 0, 0, 0)),
        ),
        compiler_params=pltpu.CompilerParams(
            dimension_semantics=("parallel",),
            vmem_limit_bytes=_VMEM_LIMIT,
        ),
    )(z, w2d, b2d)


def pallas_fc_head(feats, w1, b1, w2, b2, *, actions, atoms):
    """Fused fc1+ReLU+fc2+softmax; gridded over batch tiles, lane-dense output."""
    B, feat_pad = feats.shape
    assert w1.shape[0] == feat_pad
    B_pad = _round_up(B, 16)
    TB = min(256, B_pad)
    B_pad = _round_up(B_pad, TB)
    if B_pad != B:
        feats = jnp.pad(feats, ((0, B_pad - B), (0, 0)))
    n_out = actions * 128

    out = pl.pallas_call(
        functools.partial(_fc_head_kernel, actions=actions),
        out_shape=jax.ShapeDtypeStruct((B_pad, n_out), jnp.float32),
        grid_spec=pltpu.PrefetchScalarGridSpec(
            num_scalar_prefetch=0,
            grid=(B_pad // TB,),
            in_specs=[
                pl.BlockSpec((TB, feat_pad), lambda i: (i, 0)),
                pl.BlockSpec(w1.shape, lambda i: (0, 0)),
                pl.BlockSpec(b1.shape, lambda i: (0, 0)),
                pl.BlockSpec(w2.shape, lambda i: (0, 0)),
                pl.BlockSpec(b2.shape, lambda i: (0, 0)),
            ],
            out_specs=pl.BlockSpec((TB, n_out), lambda i: (i, 0)),
        ),
        compiler_params=pltpu.CompilerParams(
            dimension_semantics=("parallel",),
            vmem_limit_bytes=_VMEM_LIMIT,
        ),
    )(feats, w1, b1, w2, b2)
    return out[:B].reshape(B, actions, 128)[:, :, :atoms]


# ------------------------------ Model setup --------------------------------

def _conv_out(h, k, s):
    return (h - k) // s + 1


def init_params(key, input_shape, actions, atoms):
    """Parameters in PyTorch layout (conv [OC,IC,KH,KW], fc [out,in])."""
    C, H, W = input_shape
    h1, w1 = _conv_out(H, 8, 4), _conv_out(W, 8, 4)
    h2, w2 = _conv_out(h1, 4, 2), _conv_out(w1, 4, 2)
    h3, w3 = _conv_out(h2, 3, 1), _conv_out(w2, 3, 1)
    feat = 64 * h3 * w3

    ks = jax.random.split(key, 10)

    def init(k, shape, fan_in):
        bound = 1.0 / jnp.sqrt(jnp.float32(fan_in))
        return jax.random.uniform(k, shape, jnp.float32, -bound, bound)

    return {
        "conv1_w": init(ks[0], (32, C, 8, 8), C * 8 * 8),
        "conv1_b": init(ks[1], (32,), C * 8 * 8),
        "conv2_w": init(ks[2], (64, 32, 4, 4), 32 * 4 * 4),
        "conv2_b": init(ks[3], (64,), 32 * 4 * 4),
        "conv3_w": init(ks[4], (64, 64, 3, 3), 64 * 3 * 3),
        "conv3_b": init(ks[5], (64,), 64 * 3 * 3),
        "fc1_w": init(ks[6], (512, feat), feat),
        "fc1_b": init(ks[7], (512,), feat),
        "fc2_w": init(ks[8], (actions * atoms, 512), 512),
        "fc2_b": init(ks[9], (actions * atoms,), 512),
    }


def _prep_conv(w_oihw, b, *, stride, in_ch_delivered):
    """PyTorch conv weight -> [n_taps*tapK_pad, OC_pad] for the s2d tap kernel."""
    OC, IC, KH, KW = w_oihw.shape
    s = stride
    assert KH % s == 0 and KW % s == 0
    kh, kw = KH // s, KW // s
    Cp = in_ch_delivered                                  # channels as delivered
    w = jnp.pad(w_oihw, ((0, 0), (0, Cp - IC), (0, 0), (0, 0)))
    w = jnp.transpose(w, (2, 3, 1, 0))                    # [KH, KW, Cp, OC]
    # KH = s*p + r, KW = s*q + t  ->  [p, q, r, t, Cp, OC]
    w = w.reshape(kh, s, kw, s, Cp, OC).transpose(0, 2, 1, 3, 4, 5)
    tap_k = s * s * Cp
    tap_k_pad = _round_up(tap_k, 128)
    w = w.reshape(kh * kw, tap_k, OC)
    w = jnp.pad(w, ((0, 0), (0, tap_k_pad - tap_k), (0, 0)))
    oc_pad = _round_up(OC, 128)
    w = jnp.pad(w, ((0, 0), (0, 0), (0, oc_pad - OC)))
    w2d = w.reshape(kh * kw * tap_k_pad, oc_pad).astype(jnp.bfloat16)
    b2d = jnp.pad(b, (0, oc_pad - OC)).astype(jnp.float32).reshape(1, -1)
    return w2d, b2d


def _prep_fc1(fc1_w, fc1_b, h3, w3, oc_real, oc_delivered):
    """Permute fc1 columns from NCHW-flatten to our padded-NHWC flatten."""
    out_dim, feat = fc1_w.shape
    assert feat == oc_real * h3 * w3
    w = fc1_w.reshape(out_dim, oc_real, h3, w3)
    w = jnp.transpose(w, (0, 2, 3, 1))                    # (out, y, x, c)
    w = jnp.pad(w, ((0, 0), (0, 0), (0, 0), (0, oc_delivered - oc_real)))
    w = w.reshape(out_dim, h3 * w3 * oc_delivered).T      # [feat_pad, 512]
    return w.astype(jnp.bfloat16), fc1_b.astype(jnp.float32).reshape(1, -1)


def _prep_fc2(fc2_w, fc2_b, actions, atoms):
    """Group fc2 columns per action, padded to 128 lanes (bias pad = -1e9)."""
    assert atoms <= 128  # TODO(synk): tile atom groups if atoms ever exceeds 128
    in_dim = fc2_w.shape[1]
    w = fc2_w.reshape(actions, atoms, in_dim)
    w = jnp.pad(w, ((0, 0), (0, 128 - atoms), (0, 0)))
    w = jnp.transpose(w, (2, 0, 1)).reshape(in_dim, actions * 128)
    b = fc2_b.reshape(actions, atoms).astype(jnp.float32)
    b = jnp.pad(b, ((0, 0), (0, 128 - atoms)), constant_values=_NEG_INF)
    return w.astype(jnp.bfloat16), b.reshape(1, actions * 128)


def prepare_params(params, input_shape, actions, atoms):
    """One-time conversion of PyTorch-layout params into kernel-ready tensors."""
    C, H, W = input_shape
    h1, w1 = _conv_out(H, 8, 4), _conv_out(W, 8, 4)
    h2, w2 = _conv_out(h1, 4, 2), _conv_out(w1, 4, 2)
    h3, w3 = _conv_out(h2, 3, 1), _conv_out(w2, 3, 1)

    c1w, c1b = _prep_conv(params["conv1_w"], params["conv1_b"],
                          stride=4, in_ch_delivered=C)
    c2w, c2b = _prep_conv(params["conv2_w"], params["conv2_b"],
                          stride=2, in_ch_delivered=_round_up(32, 128))
    c3w, c3b = _prep_conv(params["conv3_w"], params["conv3_b"],
                          stride=1, in_ch_delivered=_round_up(64, 128))
    f1w, f1b = _prep_fc1(params["fc1_w"], params["fc1_b"], h3, w3,
                         oc_real=64, oc_delivered=_round_up(64, 128))
    f2w, f2b = _prep_fc2(params["fc2_w"], params["fc2_b"], actions, atoms)

    return {
        "conv1_w": c1w, "conv1_b": c1b,
        "conv2_w": c2w, "conv2_b": c2b,
        "conv3_w": c3w, "conv3_b": c3b,
        "fc1_w": f1w, "fc1_b": f1b,
        "fc2_w": f2w, "fc2_b": f2b,
    }


def dqn_distributional_forward(prep, x_nchw, *, actions, atoms):
    """x: NCHW float32.  Returns [B, actions, atoms] softmax-over-atoms."""
    B = x_nchw.shape[0]
    x = jnp.transpose(x_nchw, (0, 2, 3, 1)).astype(jnp.bfloat16)  # once, bf16 NHWC
    x = conv2d_relu(x, prep["conv1_w"], prep["conv1_b"], ksize=8, stride=4)
    x = conv2d_relu(x, prep["conv2_w"], prep["conv2_b"], ksize=4, stride=2)
    x = conv2d_relu(x, prep["conv3_w"], prep["conv3_b"], ksize=3, stride=1)
    feats = x.reshape(B, -1)            # contiguous NHWC flatten: free reshape
    return pallas_fc_head(feats, prep["fc1_w"], prep["fc1_b"],
                          prep["fc2_w"], prep["fc2_b"],
                          actions=actions, atoms=atoms)


# ----------------------------- Pure-JAX reference ---------------------------

def reference_forward(params, x, actions, atoms):
    def conv(y, w, b, s):
        y = jax.lax.conv_general_dilated(
            y, w, window_strides=(s, s), padding="VALID",
            dimension_numbers=("NCHW", "OIHW", "NCHW"))
        return jax.nn.relu(y + b.reshape(1, -1, 1, 1))
    y = conv(x, params["conv1_w"], params["conv1_b"], 4)
    y = conv(y, params["conv2_w"], params["conv2_b"], 2)
    y = conv(y, params["conv3_w"], params["conv3_b"], 1)
    y = y.reshape(y.shape[0], -1)
    y = jax.nn.relu(y @ params["fc1_w"].T + params["fc1_b"])
    y = y @ params["fc2_w"].T + params["fc2_b"]
    return jax.nn.softmax(y.reshape(-1, actions, atoms), axis=2)


if __name__ == "__main__":
    # Smallest valid shapes for this conv stack: (4, 36, 36) -> 8x8 -> 3x3 -> 1x1.
    batch, channels, height, width = 2, 4, 36, 36
    actions, atoms = 3, 8

    key = jax.random.PRNGKey(0)
    pkey, xkey = jax.random.split(key)
    params = init_params(pkey, (channels, height, width), actions, atoms)
    prep = prepare_params(params, (channels, height, width), actions, atoms)
    x = jax.random.normal(xkey, (batch, channels, height, width), jnp.float32)

    fwd = jax.jit(functools.partial(dqn_distributional_forward,
                                    actions=actions, atoms=atoms))
    out = jax.block_until_ready(fwd(prep, x))

    assert out.shape == (batch, actions, atoms)
    # Softmax rows must sum to 1 (padded atom lanes contribute exp(-1e9) == 0).
    sums = jnp.sum(out, axis=-1)
    assert bool(jnp.all(jnp.abs(sums - 1.0) < 1e-4))
    # bf16 matmuls with f32 accumulation: loose tolerance vs. the f32 reference.
    ref = reference_forward(params, x, actions, atoms)
    assert bool(jnp.max(jnp.abs(out.astype(jnp.float32) - ref)) < 3e-2)
    print("KERNEL_OK")
</pallas_src>

<mosaic_0001>
module attributes {stable_mosaic.version = 11 : i64} {
  func.func @_conv_tap_kernel(%arg0: i32, %arg1: memref<1x9x9x128xbf16, #tpu.memory_space<vmem>>, %arg2: memref<512x128xbf16, #tpu.memory_space<vmem>>, %arg3: memref<1x128xf32, #tpu.memory_space<vmem>>, %arg4: memref<1x8x8x128xbf16, #tpu.memory_space<vmem>>) attributes {dimension_semantics = [#tpu.dimension_semantics<parallel>], iteration_bounds = array<i64: 2>, scalar_prefetch = 0 : i64, scratch_operands = 0 : i64, tpu.core_type = #tpu.core_type<tc>, window_params = [{transform_indices = @transform_0, window_bounds = array<i64: 1, 9, 9, 128>}, {pipeline_mode = #tpu.pipeline_mode<synchronous>, transform_indices = @transform_1, window_bounds = array<i64: 512, 128>}, {pipeline_mode = #tpu.pipeline_mode<synchronous>, transform_indices = @transform_2, window_bounds = array<i64: 1, 128>}, {transform_indices = @transform_3, window_bounds = array<i64: 1, 8, 8, 128>}]} {
    %c0 = arith.constant 0 : index
    %c0_0 = arith.constant 0 : index
    %0 = vector.load %arg3[%c0, %c0_0] : memref<1x128xf32, #tpu.memory_space<vmem>>, vector<1x128xf32>
    %c0_1 = arith.constant 0 : index
    %c0_2 = arith.constant 0 : index
    %c0_3 = arith.constant 0 : index
    %c0_4 = arith.constant 0 : index
    %1 = vector.load %arg1[%c0_1, %c0_2, %c0_3, %c0_4] : memref<1x9x9x128xbf16, #tpu.memory_space<vmem>>, vector<1x1x8x128xbf16>
    %2 = vector.shape_cast %1 : vector<1x1x8x128xbf16> to vector<8x128xbf16>
    %c0_5 = arith.constant 0 : index
    %c0_6 = arith.constant 0 : index
    %3 = vector.load %arg2[%c0_5, %c0_6] : memref<512x128xbf16, #tpu.memory_space<vmem>>, vector<128x128xbf16>
    %cst = arith.constant dense<0.000000e+00> : vector<8x128xf32>
    %4 = tpu.matmul %2, %3, %cst {dimension_numbers = #tpu.dot_dimension_numbers<[1], [0], [0], [1], [0, 0, 1, 1], [], []>} : vector<8x128xbf16>, vector<128x128xbf16>, vector<8x128xf32> -> vector<8x128xf32>
    %c0_7 = arith.constant 0 : index
    %c0_8 = arith.constant 0 : index
    %c1 = arith.constant 1 : index
    %c0_9 = arith.constant 0 : index
    %5 = vector.load %arg1[%c0_7, %c0_8, %c1, %c0_9] : memref<1x9x9x128xbf16, #tpu.memory_space<vmem>>, vector<1x1x8x128xbf16>
    %6 = vector.shape_cast %5 : vector<1x1x8x128xbf16> to vector<8x128xbf16>
    %c128 = arith.constant 128 : index
    %c0_10 = arith.constant 0 : index
    %7 = vector.load %arg2[%c128, %c0_10] : memref<512x128xbf16, #tpu.memory_space<vmem>>, vector<128x128xbf16>
    %cst_11 = arith.constant dense<0.000000e+00> : vector<8x128xf32>
    %8 = tpu.matmul %6, %7, %cst_11 {dimension_numbers = #tpu.dot_dimension_numbers<[1], [0], [0], [1], [0, 0, 1, 1], [], []>} : vector<8x128xbf16>, vector<128x128xbf16>, vector<8x128xf32> -> vector<8x128xf32>
    %9 = arith.addf %4, %8 : vector<8x128xf32>
    %c0_12 = arith.constant 0 : index
    %c1_13 = arith.constant 1 : index
    %c0_14 = arith.constant 0 : index
    %c0_15 = arith.constant 0 : index
    %10 = vector.load %arg1[%c0_12, %c1_13, %c0_14, %c0_15] : memref<1x9x9x128xbf16, #tpu.memory_space<vmem>>, vector<1x1x8x128xbf16>
    %11 = vector.shape_cast %10 : vector<1x1x8x128xbf16> to vector<8x128xbf16>
    %c256 = arith.constant 256 : index
    %c0_16 = arith.constant 0 : index
    %12 = vector.load %arg2[%c256, %c0_16] : memref<512x128xbf16, #tpu.memory_space<vmem>>, vector<128x128xbf16>
    %cst_17 = arith.constant dense<0.000000e+00> : vector<8x128xf32>
    %13 = tpu.matmul %11, %12, %cst_17 {dimension_numbers = #tpu.dot_dimension_numbers<[1], [0], [0], [1], [0, 0, 1, 1], [], []>} : vector<8x128xbf16>, vector<128x128xbf16>, vector<8x128xf32> -> vector<8x128xf32>
    %14 = arith.addf %9, %13 : vector<8x128xf32>
    %c0_18 = arith.constant 0 : index
    %c1_19 = arith.constant 1 : index
    %c1_20 = arith.constant 1 : index
    %c0_21 = arith.constant 0 : index
    %15 = vector.load %arg1[%c0_18, %c1_19, %c1_20, %c0_21] : memref<1x9x9x128xbf16, #tpu.memory_space<vmem>>, vector<1x1x8x128xbf16>
    %16 = vector.shape_cast %15 : vector<1x1x8x128xbf16> to vector<8x128xbf16>
    %c384 = arith.constant 384 : index
    %c0_22 = arith.constant 0 : index
    %17 = vector.load %arg2[%c384, %c0_22] : memref<512x128xbf16, #tpu.memory_space<vmem>>, vector<128x128xbf16>
    %cst_23 = arith.constant dense<0.000000e+00> : vector<8x128xf32>
    %18 = tpu.matmul %16, %17, %cst_23 {dimension_numbers = #tpu.dot_dimension_numbers<[1], [0], [0], [1], [0, 0, 1, 1], [], []>} : vector<8x128xbf16>, vector<128x128xbf16>, vector<8x128xf32> -> vector<8x128xf32>
    %19 = arith.addf %14, %18 : vector<8x128xf32>
    %20 = vector.broadcast %0 : vector<1x128xf32> to vector<8x128xf32>
    %21 = arith.addf %19, %20 : vector<8x128xf32>
    %cst_24 = arith.constant 0.000000e+00 : f32
    %22 = vector.broadcast %cst_24 : f32 to vector<8x128xf32>
    %23 = arith.maximumf %21, %22 : vector<8x128xf32>
    %24 = arith.truncf %23 : vector<8x128xf32> to vector<8x128xbf16>
    %c0_25 = arith.constant 0 : index
    %c0_26 = arith.constant 0 : index
    %c0_27 = arith.constant 0 : index
    %c0_28 = arith.constant 0 : index
    %25 = vector.load %arg4[%c0_25, %c0_26, %c0_27, %c0_28] : memref<1x8x8x128xbf16, #tpu.memory_space<vmem>>, vector<1x1x8x128xbf16>
    %26 = vector.shape_cast %25 : vector<1x1x8x128xbf16> to vector<8x128xbf16>
    %27 = vector.shape_cast %24 : vector<8x128xbf16> to vector<1x1x8x128xbf16>
    tpu.vector_store %arg4[%c0_25, %c0_26, %c0_27, %c0_28], %27 {strides = array<i32>} : memref<1x8x8x128xbf16, #tpu.memory_space<vmem>>, vector<1x1x8x128xbf16>,
    %c0_29 = arith.constant 0 : index
    %c1_30 = arith.constant 1 : index
    %c0_31 = arith.constant 0 : index
    %c0_32 = arith.constant 0 : index
    %28 = vector.load %arg1[%c0_29, %c1_30, %c0_31, %c0_32] : memref<1x9x9x128xbf16, #tpu.memory_space<vmem>>, vector<1x1x8x128xbf16>
    %29 = vector.shape_cast %28 : vector<1x1x8x128xbf16> to vector<8x128xbf16>
    %c0_33 = arith.constant 0 : index
    %c0_34 = arith.constant 0 : index
    %30 = vector.load %arg2[%c0_33, %c0_34] : memref<512x128xbf16, #tpu.memory_space<vmem>>, vector<128x128xbf16>
    %cst_35 = arith.constant dense<0.000000e+00> : vector<8x128xf32>
    %31 = tpu.matmul %29, %30, %cst_35 {dimension_numbers = #tpu.dot_dimension_numbers<[1], [0], [0], [1], [0, 0, 1, 1], [], []>} : vector<8x128xbf16>, vector<128x128xbf16>, vector<8x128xf32> -> vector<8x128xf32>
    %c0_36 = arith.constant 0 : index
    %c1_37 = arith.constant 1 : index
    %c1_38 = arith.constant 1 : index
    %c0_39 = arith.constant 0 : index
    %32 = vector.load %arg1[%c0_36, %c1_37, %c1_38, %c0_39] : memref<1x9x9x128xbf16, #tpu.memory_space<vmem>>, vector<1x1x8x128xbf16>
    %33 = vector.shape_cast %32 : vector<1x1x8x128xbf16> to vector<8x128xbf16>
    %c128_40 = arith.constant 128 : index
    %c0_41 = arith.constant 0 : index
    %34 = vector.load %arg2[%c128_40, %c0_41] : memref<512x128xbf16, #tpu.memory_space<vmem>>, vector<128x128xbf16>
    %cst_42 = arith.constant dense<0.000000e+00> : vector<8x128xf32>
    %35 = tpu.matmul %33, %34, %cst_42 {dimension_numbers = #tpu.dot_dimension_numbers<[1], [0], [0], [1], [0, 0, 1, 1], [], []>} : vector<8x128xbf16>, vector<128x128xbf16>, vector<8x128xf32> -> vector<8x128xf32>
    %36 = arith.addf %31, %35 : vector<8x128xf32>
    %c0_43 = arith.constant 0 : index
    %c2 = arith.constant 2 : index
    %c0_44 = arith.constant 0 : index
    %c0_45 = arith.constant 0 : index
    %37 = vector.load %arg1[%c0_43, %c2, %c0_44, %c0_45] : memref<1x9x9x128xbf16, #tpu.memory_space<vmem>>, vector<1x1x8x128xbf16>
    %38 = vector.shape_cast %37 : vector<1x1x8x128xbf16> to vector<8x128xbf16>
    %c256_46 = arith.constant 256 : index
    %c0_47 = arith.constant 0 : index
    %39 = vector.load %arg2[%c256_46, %c0_47] : memref<512x128xbf16, #tpu.memory_space<vmem>>, vector<128x128xbf16>
    %cst_48 = arith.constant dense<0.000000e+00> : vector<8x128xf32>
    %40 = tpu.matmul %38, %39, %cst_48 {dimension_numbers = #tpu.dot_dimension_numbers<[1], [0], [0], [1], [0, 0, 1, 1], [], []>} : vector<8x128xbf16>, vector<128x128xbf16>, vector<8x128xf32> -> vector<8x128xf32>
    %41 = arith.addf %36, %40 : vector<8x128xf32>
    %c0_49 = arith.constant 0 : index
    %c2_50 = arith.constant 2 : index
    %c1_51 = arith.constant 1 : index
    %c0_52 = arith.constant 0 : index
    %42 = vector.load %arg1[%c0_49, %c2_50, %c1_51, %c0_52] : memref<1x9x9x128xbf16, #tpu.memory_space<vmem>>, vector<1x1x8x128xbf16>
    %43 = vector.shape_cast %42 : vector<1x1x8x128xbf16> to vector<8x128xbf16>
    %c384_53 = arith.constant 384 : index
    %c0_54 = arith.constant 0 : index
    %44 = vector.load %arg2[%c384_53, %c0_54] : memref<512x128xbf16, #tpu.memory_space<vmem>>, vector<128x128xbf16>
    %cst_55 = arith.constant dense<0.000000e+00> : vector<8x128xf32>
    %45 = tpu.matmul %43, %44, %cst_55 {dimension_numbers = #tpu.dot_dimension_numbers<[1], [0], [0], [1], [0, 0, 1, 1], [], []>} : vector<8x128xbf16>, vector<128x128xbf16>, vector<8x128xf32> -> vector<8x128xf32>
    %46 = arith.addf %41, %45 : vector<8x128xf32>
    %47 = vector.broadcast %0 : vector<1x128xf32> to vector<8x128xf32>
    %48 = arith.addf %46, %47 : vector<8x128xf32>
    %cst_56 = arith.constant 0.000000e+00 : f32
    %49 = vector.broadcast %cst_56 : f32 to vector<8x128xf32>
    %50 = arith.maximumf %48, %49 : vector<8x128xf32>
    %51 = arith.truncf %50 : vector<8x128xf32> to vector<8x128xbf16>
    %c0_57 = arith.constant 0 : index
    %c1_58 = arith.constant 1 : index
    %c0_59 = arith.constant 0 : index
    %c0_60 = arith.constant 0 : index
    %52 = vector.load %arg4[%c0_57, %c1_58, %c0_59, %c0_60] : memref<1x8x8x128xbf16, #tpu.memory_space<vmem>>, vector<1x1x8x128xbf16>
    %53 = vector.shape_cast %52 : vector<1x1x8x128xbf16> to vector<8x128xbf16>
    %54 = vector.shape_cast %51 : vector<8x128xbf16> to vector<1x1x8x128xbf16>
    tpu.vector_store %arg4[%c0_57, %c1_58, %c0_59, %c0_60], %54 {strides = array<i32>} : memref<1x8x8x128xbf16, #tpu.memory_space<vmem>>, vector<1x1x8x128xbf16>,
    %c0_61 = arith.constant 0 : index
    %c2_62 = arith.constant 2 : index
    %c0_63 = arith.constant 0 : index
    %c0_64 = arith.constant 0 : index
    %55 = vector.load %arg1[%c0_61, %c2_62, %c0_63, %c0_64] : memref<1x9x9x128xbf16, #tpu.memory_space<vmem>>, vector<1x1x8x128xbf16>
    %56 = vector.shape_cast %55 : vector<1x1x8x128xbf16> to vector<8x128xbf16>
    %c0_65 = arith.constant 0 : index
    %c0_66 = arith.constant 0 : index
    %57 = vector.load %arg2[%c0_65, %c0_66] : memref<512x128xbf16, #tpu.memory_space<vmem>>, vector<128x128xbf16>
    %cst_67 = arith.constant dense<0.000000e+00> : vector<8x128xf32>
    %58 = tpu.matmul %56, %57, %cst_67 {dimension_numbers = #tpu.dot_dimension_numbers<[1], [0], [0], [1], [0, 0, 1, 1], [], []>} : vector<8x128xbf16>, vector<128x128xbf16>, vector<8x128xf32> -> vector<8x128xf32>
    %c0_68 = arith.constant 0 : index
    %c2_69 = arith.constant 2 : index
    %c1_70 = arith.constant 1 : index
    %c0_71 = arith.constant 0 : index
    %59 = vector.load %arg1[%c0_68, %c2_69, %c1_70, %c0_71] : memref<1x9x9x128xbf16, #tpu.memory_space<vmem>>, vector<1x1x8x128xbf16>
    %60 = vector.shape_cast %59 : vector<1x1x8x128xbf16> to vector<8x128xbf16>
    %c128_72 = arith.constant 128 : index
    %c0_73 = arith.constant 0 : index
    %61 = vector.load %arg2[%c128_72, %c0_73] : memref<512x128xbf16, #tpu.memory_space<vmem>>, vector<128x128xbf16>
    %cst_74 = arith.constant dense<0.000000e+00> : vector<8x128xf32>
    %62 = tpu.matmul %60, %61, %cst_74 {dimension_numbers = #tpu.dot_dimension_numbers<[1], [0], [0], [1], [0, 0, 1, 1], [], []>} : vector<8x128xbf16>, vector<128x128xbf16>, vector<8x128xf32> -> vector<8x128xf32>
    %63 = arith.addf %58, %62 : vector<8x128xf32>
    %c0_75 = arith.constant 0 : index
    %c3 = arith.constant 3 : index
    %c0_76 = arith.constant 0 : index
    %c0_77 = arith.constant 0 : index
    %64 = vector.load %arg1[%c0_75, %c3, %c0_76, %c0_77] : memref<1x9x9x128xbf16, #tpu.memory_space<vmem>>, vector<1x1x8x128xbf16>
    %65 = vector.shape_cast %64 : vector<1x1x8x128xbf16> to vector<8x128xbf16>
    %c256_78 = arith.constant 256 : index
    %c0_79 = arith.constant 0 : index
    %66 = vector.load %arg2[%c256_78, %c0_79] : memref<512x128xbf16, #tpu.memory_space<vmem>>, vector<128x128xbf16>
    %cst_80 = arith.constant dense<0.000000e+00> : vector<8x128xf32>
    %67 = tpu.matmul %65, %66, %cst_80 {dimension_numbers = #tpu.dot_dimension_numbers<[1], [0], [0], [1], [0, 0, 1, 1], [], []>} : vector<8x128xbf16>, vector<128x128xbf16>, vector<8x128xf32> -> vector<8x128xf32>
    %68 = arith.addf %63, %67 : vector<8x128xf32>
    %c0_81 = arith.constant 0 : index
    %c3_82 = arith.constant 3 : index
    %c1_83 = arith.constant 1 : index
    %c0_84 = arith.constant 0 : index
    %69 = vector.load %arg1[%c0_81, %c3_82, %c1_83, %c0_84] : memref<1x9x9x128xbf16, #tpu.memory_space<vmem>>, vector<1x1x8x128xbf16>
    %70 = vector.shape_cast %69 : vector<1x1x8x128xbf16> to vector<8x128xbf16>
    %c384_85 = arith.constant 384 : index
    %c0_86 = arith.constant 0 : index
    %71 = vector.load %arg2[%c384_85, %c0_86] : memref<512x128xbf16, #tpu.memory_space<vmem>>, vector<128x128xbf16>
    %cst_87 = arith.constant dense<0.000000e+00> : vector<8x128xf32>
    %72 = tpu.matmul %70, %71, %cst_87 {dimension_numbers = #tpu.dot_dimension_numbers<[1], [0], [0], [1], [0, 0, 1, 1], [], []>} : vector<8x128xbf16>, vector<128x128xbf16>, vector<8x128xf32> -> vector<8x128xf32>
    %73 = arith.addf %68, %72 : vector<8x128xf32>
    %74 = vector.broadcast %0 : vector<1x128xf32> to vector<8x128xf32>
    %75 = arith.addf %73, %74 : vector<8x128xf32>
    %cst_88 = arith.constant 0.000000e+00 : f32
    %76 = vector.broadcast %cst_88 : f32 to vector<8x128xf32>
    %77 = arith.maximumf %75, %76 : vector<8x128xf32>
    %78 = arith.truncf %77 : vector<8x128xf32> to vector<8x128xbf16>
    %c0_89 = arith.constant 0 : index
    %c2_90 = arith.constant 2 : index
    %c0_91 = arith.constant 0 : index
    %c0_92 = arith.constant 0 : index
    %79 = vector.load %arg4[%c0_89, %c2_90, %c0_91, %c0_92] : memref<1x8x8x128xbf16, #tpu.memory_space<vmem>>, vector<1x1x8x128xbf16>
    %80 = vector.shape_cast %79 : vector<1x1x8x128xbf16> to vector<8x128xbf16>
    %81 = vector.shape_cast %78 : vector<8x128xbf16> to vector<1x1x8x128xbf16>
    tpu.vector_store %arg4[%c0_89, %c2_90, %c0_91, %c0_92], %81 {strides = array<i32>} : memref<1x8x8x128xbf16, #tpu.memory_space<vmem>>, vector<1x1x8x128xbf16>,
    %c0_93 = arith.constant 0 : index
    %c3_94 = arith.constant 3 : index
    %c0_95 = arith.constant 0 : index
    %c0_96 = arith.constant 0 : index
    %82 = vector.load %arg1[%c0_93, %c3_94, %c0_95, %c0_96] : memref<1x9x9x128xbf16, #tpu.memory_space<vmem>>, vector<1x1x8x128xbf16>
    %83 = vector.shape_cast %82 : vector<1x1x8x128xbf16> to vector<8x128xbf16>
    %c0_97 = arith.constant 0 : index
    %c0_98 = arith.constant 0 : index
    %84 = vector.load %arg2[%c0_97, %c0_98] : memref<512x128xbf16, #tpu.memory_space<vmem>>, vector<128x128xbf16>
    %cst_99 = arith.constant dense<0.000000e+00> : vector<8x128xf32>
    %85 = tpu.matmul %83, %84, %cst_99 {dimension_numbers = #tpu.dot_dimension_numbers<[1], [0], [0], [1], [0, 0, 1, 1], [], []>} : vector<8x128xbf16>, vector<128x128xbf16>, vector<8x128xf32> -> vector<8x128xf32>
    %c0_100 = arith.constant 0 : index
    %c3_101 = arith.constant 3 : index
    %c1_102 = arith.constant 1 : index
    %c0_103 = arith.constant 0 : index
    %86 = vector.load %arg1[%c0_100, %c3_101, %c1_102, %c0_103] : memref<1x9x9x128xbf16, #tpu.memory_space<vmem>>, vector<1x1x8x128xbf16>
    %87 = vector.shape_cast %86 : vector<1x1x8x128xbf16> to vector<8x128xbf16>
    %c128_104 = arith.constant 128 : index
    %c0_105 = arith.constant 0 : index
    %88 = vector.load %arg2[%c128_104, %c0_105] : memref<512x128xbf16, #tpu.memory_space<vmem>>, vector<128x128xbf16>
    %cst_106 = arith.constant dense<0.000000e+00> : vector<8x128xf32>
    %89 = tpu.matmul %87, %88, %cst_106 {dimension_numbers = #tpu.dot_dimension_numbers<[1], [0], [0], [1], [0, 0, 1, 1], [], []>} : vector<8x128xbf16>, vector<128x128xbf16>, vector<8x128xf32> -> vector<8x128xf32>
    %90 = arith.addf %85, %89 : vector<8x128xf32>
    %c0_107 = arith.constant 0 : index
    %c4 = arith.constant 4 : index
    %c0_108 = arith.constant 0 : index
    %c0_109 = arith.constant 0 : index
    %91 = vector.load %arg1[%c0_107, %c4, %c0_108, %c0_109] : memref<1x9x9x128xbf16, #tpu.memory_space<vmem>>, vector<1x1x8x128xbf16>
    %92 = vector.shape_cast %91 : vector<1x1x8x128xbf16> to vector<8x128xbf16>
    %c256_110 = arith.constant 256 : index
    %c0_111 = arith.constant 0 : index
    %93 = vector.load %arg2[%c256_110, %c0_111] : memref<512x128xbf16, #tpu.memory_space<vmem>>, vector<128x128xbf16>
    %cst_112 = arith.constant dense<0.000000e+00> : vector<8x128xf32>
    %94 = tpu.matmul %92, %93, %cst_112 {dimension_numbers = #tpu.dot_dimension_numbers<[1], [0], [0], [1], [0, 0, 1, 1], [], []>} : vector<8x128xbf16>, vector<128x128xbf16>, vector<8x128xf32> -> vector<8x128xf32>
    %95 = arith.addf %90, %94 : vector<8x128xf32>
    %c0_113 = arith.constant 0 : index
    %c4_114 = arith.constant 4 : index
    %c1_115 = arith.constant 1 : index
    %c0_116 = arith.constant 0 : index
    %96 = vector.load %arg1[%c0_113, %c4_114, %c1_115, %c0_116] : memref<1x9x9x128xbf16, #tpu.memory_space<vmem>>, vector<1x1x8x128xbf16>
    %97 = vector.shape_cast %96 : vector<1x1x8x128xbf16> to vector<8x128xbf16>
    %c384_117 = arith.constant 384 : index
    %c0_118 = arith.constant 0 : index
    %98 = vector.load %arg2[%c384_117, %c0_118] : memref<512x128xbf16, #tpu.memory_space<vmem>>, vector<128x128xbf16>
    %cst_119 = arith.constant dense<0.000000e+00> : vector<8x128xf32>
    %99 = tpu.matmul %97, %98, %cst_119 {dimension_numbers = #tpu.dot_dimension_numbers<[1], [0], [0], [1], [0, 0, 1, 1], [], []>} : vector<8x128xbf16>, vector<128x128xbf16>, vector<8x128xf32> -> vector<8x128xf32>
    %100 = arith.addf %95, %99 : vector<8x128xf32>
    %101 = vector.broadcast %0 : vector<1x128xf32> to vector<8x128xf32>
    %102 = arith.addf %100, %101 : vector<8x128xf32>
    %cst_120 = arith.constant 0.000000e+00 : f32
    %103 = vector.broadcast %cst_120 : f32 to vector<8x128xf32>
    %104 = arith.maximumf %102, %103 : vector<8x128xf32>
    %105 = arith.truncf %104 : vector<8x128xf32> to vector<8x128xbf16>
    %c0_121 = arith.constant 0 : index
    %c3_122 = arith.constant 3 : index
    %c0_123 = arith.constant 0 : index
    %c0_124 = arith.constant 0 : index
    %106 = vector.load %arg4[%c0_121, %c3_122, %c0_123, %c0_124] : memref<1x8x8x128xbf16, #tpu.memory_space<vmem>>, vector<1x1x8x128xbf16>
    %107 = vector.shape_cast %106 : vector<1x1x8x128xbf16> to vector<8x128xbf16>
    %108 = vector.shape_cast %105 : vector<8x128xbf16> to vector<1x1x8x128xbf16>
    tpu.vector_store %arg4[%c0_121, %c3_122, %c0_123, %c0_124], %108 {strides = array<i32>} : memref<1x8x8x128xbf16, #tpu.memory_space<vmem>>, vector<1x1x8x128xbf16>,
    %c0_125 = arith.constant 0 : index
    %c4_126 = arith.constant 4 : index
    %c0_127 = arith.constant 0 : index
    %c0_128 = arith.constant 0 : index
    %109 = vector.load %arg1[%c0_125, %c4_126, %c0_127, %c0_128] : memref<1x9x9x128xbf16, #tpu.memory_space<vmem>>, vector<1x1x8x128xbf16>
    %110 = vector.shape_cast %109 : vector<1x1x8x128xbf16> to vector<8x128xbf16>
    %c0_129 = arith.constant 0 : index
    %c0_130 = arith.constant 0 : index
    %111 = vector.load %arg2[%c0_129, %c0_130] : memref<512x128xbf16, #tpu.memory_space<vmem>>, vector<128x128xbf16>
    %cst_131 = arith.constant dense<0.000000e+00> : vector<8x128xf32>
    %112 = tpu.matmul %110, %111, %cst_131 {dimension_numbers = #tpu.dot_dimension_numbers<[1], [0], [0], [1], [0, 0, 1, 1], [], []>} : vector<8x128xbf16>, vector<128x128xbf16>, vector<8x128xf32> -> vector<8x128xf32>
    %c0_132 = arith.constant 0 : index
    %c4_133 = arith.constant 4 : index
    %c1_134 = arith.constant 1 : index
    %c0_135 = arith.constant 0 : index
    %113 = vector.load %arg1[%c0_132, %c4_133, %c1_134, %c0_135] : memref<1x9x9x128xbf16, #tpu.memory_space<vmem>>, vector<1x1x8x128xbf16>
    %114 = vector.shape_cast %113 : vector<1x1x8x128xbf16> to vector<8x128xbf16>
    %c128_136 = arith.constant 128 : index
    %c0_137 = arith.constant 0 : index
    %115 = vector.load %arg2[%c128_136, %c0_137] : memref<512x128xbf16, #tpu.memory_space<vmem>>, vector<128x128xbf16>
    %cst_138 = arith.constant dense<0.000000e+00> : vector<8x128xf32>
    %116 = tpu.matmul %114, %115, %cst_138 {dimension_numbers = #tpu.dot_dimension_numbers<[1], [0], [0], [1], [0, 0, 1, 1], [], []>} : vector<8x128xbf16>, vector<128x128xbf16>, vector<8x128xf32> -> vector<8x128xf32>
    %117 = arith.addf %112, %116 : vector<8x128xf32>
    %c0_139 = arith.constant 0 : index
    %c5 = arith.constant 5 : index
    %c0_140 = arith.constant 0 : index
    %c0_141 = arith.constant 0 : index
    %118 = vector.load %arg1[%c0_139, %c5, %c0_140, %c0_141] : memref<1x9x9x128xbf16, #tpu.memory_space<vmem>>, vector<1x1x8x128xbf16>
    %119 = vector.shape_cast %118 : vector<1x1x8x128xbf16> to vector<8x128xbf16>
    %c256_142 = arith.constant 256 : index
    %c0_143 = arith.constant 0 : index
    %120 = vector.load %arg2[%c256_142, %c0_143] : memref<512x128xbf16, #tpu.memory_space<vmem>>, vector<128x128xbf16>
    %cst_144 = arith.constant dense<0.000000e+00> : vector<8x128xf32>
    %121 = tpu.matmul %119, %120, %cst_144 {dimension_numbers = #tpu.dot_dimension_numbers<[1], [0], [0], [1], [0, 0, 1, 1], [], []>} : vector<8x128xbf16>, vector<128x128xbf16>, vector<8x128xf32> -> vector<8x128xf32>
    %122 = arith.addf %117, %121 : vector<8x128xf32>
    %c0_145 = arith.constant 0 : index
    %c5_146 = arith.constant 5 : index
    %c1_147 = arith.constant 1 : index
    %c0_148 = arith.constant 0 : index
    %123 = vector.load %arg1[%c0_145, %c5_146, %c1_147, %c0_148] : memref<1x9x9x128xbf16, #tpu.memory_space<vmem>>, vector<1x1x8x128xbf16>
    %124 = vector.shape_cast %123 : vector<1x1x8x128xbf16> to vector<8x128xbf16>
    %c384_149 = arith.constant 384 : index
    %c0_150 = arith.constant 0 : index
    %125 = vector.load %arg2[%c384_149, %c0_150] : memref<512x128xbf16, #tpu.memory_space<vmem>>, vector<128x128xbf16>
    %cst_151 = arith.constant dense<0.000000e+00> : vector<8x128xf32>
    %126 = tpu.matmul %124, %125, %cst_151 {dimension_numbers = #tpu.dot_dimension_numbers<[1], [0], [0], [1], [0, 0, 1, 1], [], []>} : vector<8x128xbf16>, vector<128x128xbf16>, vector<8x128xf32> -> vector<8x128xf32>
    %127 = arith.addf %122, %126 : vector<8x128xf32>
    %128 = vector.broadcast %0 : vector<1x128xf32> to vector<8x128xf32>
    %129 = arith.addf %127, %128 : vector<8x128xf32>
    %cst_152 = arith.constant 0.000000e+00 : f32
    %130 = vector.broadcast %cst_152 : f32 to vector<8x128xf32>
    %131 = arith.maximumf %129, %130 : vector<8x128xf32>
    %132 = arith.truncf %131 : vector<8x128xf32> to vector<8x128xbf16>
    %c0_153 = arith.constant 0 : index
    %c4_154 = arith.constant 4 : index
    %c0_155 = arith.constant 0 : index
    %c0_156 = arith.constant 0 : index
    %133 = vector.load %arg4[%c0_153, %c4_154, %c0_155, %c0_156] : memref<1x8x8x128xbf16, #tpu.memory_space<vmem>>, vector<1x1x8x128xbf16>
    %134 = vector.shape_cast %133 : vector<1x1x8x128xbf16> to vector<8x128xbf16>
    %135 = vector.shape_cast %132 : vector<8x128xbf16> to vector<1x1x8x128xbf16>
    tpu.vector_store %arg4[%c0_153, %c4_154, %c0_155, %c0_156], %135 {strides = array<i32>} : memref<1x8x8x128xbf16, #tpu.memory_space<vmem>>, vector<1x1x8x128xbf16>,
    %c0_157 = arith.constant 0 : index
    %c5_158 = arith.constant 5 : index
    %c0_159 = arith.constant 0 : index
    %c0_160 = arith.constant 0 : index
    %136 = vector.load %arg1[%c0_157, %c5_158, %c0_159, %c0_160] : memref<1x9x9x128xbf16, #tpu.memory_space<vmem>>, vector<1x1x8x128xbf16>
    %137 = vector.shape_cast %136 : vector<1x1x8x128xbf16> to vector<8x128xbf16>
    %c0_161 = arith.constant 0 : index
    %c0_162 = arith.constant 0 : index
    %138 = vector.load %arg2[%c0_161, %c0_162] : memref<512x128xbf16, #tpu.memory_space<vmem>>, vector<128x128xbf16>
    %cst_163 = arith.constant dense<0.000000e+00> : vector<8x128xf32>
    %139 = tpu.matmul %137, %138, %cst_163 {dimension_numbers = #tpu.dot_dimension_numbers<[1], [0], [0], [1], [0, 0, 1, 1], [], []>} : vector<8x128xbf16>, vector<128x128xbf16>, vector<8x128xf32> -> vector<8x128xf32>
    %c0_164 = arith.constant 0 : index
    %c5_165 = arith.constant 5 : index
    %c1_166 = arith.constant 1 : index
    %c0_167 = arith.constant 0 : index
    %140 = vector.load %arg1[%c0_164, %c5_165, %c1_166, %c0_167] : memref<1x9x9x128xbf16, #tpu.memory_space<vmem>>, vector<1x1x8x128xbf16>
    %141 = vector.shape_cast %140 : vector<1x1x8x128xbf16> to vector<8x128xbf16>
    %c128_168 = arith.constant 128 : index
    %c0_169 = arith.constant 0 : index
    %142 = vector.load %arg2[%c128_168, %c0_169] : memref<512x128xbf16, #tpu.memory_space<vmem>>, vector<128x128xbf16>
    %cst_170 = arith.constant dense<0.000000e+00> : vector<8x128xf32>
    %143 = tpu.matmul %141, %142, %cst_170 {dimension_numbers = #tpu.dot_dimension_numbers<[1], [0], [0], [1], [0, 0, 1, 1], [], []>} : vector<8x128xbf16>, vector<128x128xbf16>, vector<8x128xf32> -> vector<8x128xf32>
    %144 = arith.addf %139, %143 : vector<8x128xf32>
    %c0_171 = arith.constant 0 : index
    %c6 = arith.constant 6 : index
    %c0_172 = arith.constant 0 : index
    %c0_173 = arith.constant 0 : index
    %145 = vector.load %arg1[%c0_171, %c6, %c0_172, %c0_173] : memref<1x9x9x128xbf16, #tpu.memory_space<vmem>>, vector<1x1x8x128xbf16>
    %146 = vector.shape_cast %145 : vector<1x1x8x128xbf16> to vector<8x128xbf16>
    %c256_174 = arith.constant 256 : index
    %c0_175 = arith.constant 0 : index
    %147 = vector.load %arg2[%c256_174, %c0_175] : memref<512x128xbf16, #tpu.memory_space<vmem>>, vector<128x128xbf16>
    %cst_176 = arith.constant dense<0.000000e+00> : vector<8x128xf32>
    %148 = tpu.matmul %146, %147, %cst_176 {dimension_numbers = #tpu.dot_dimension_numbers<[1], [0], [0], [1], [0, 0, 1, 1], [], []>} : vector<8x128xbf16>, vector<128x128xbf16>, vector<8x128xf32> -> vector<8x128xf32>
    %149 = arith.addf %144, %148 : vector<8x128xf32>
    %c0_177 = arith.constant 0 : index
    %c6_178 = arith.constant 6 : index
    %c1_179 = arith.constant 1 : index
    %c0_180 = arith.constant 0 : index
    %150 = vector.load %arg1[%c0_177, %c6_178, %c1_179, %c0_180] : memref<1x9x9x128xbf16, #tpu.memory_space<vmem>>, vector<1x1x8x128xbf16>
    %151 = vector.shape_cast %150 : vector<1x1x8x128xbf16> to vector<8x128xbf16>
    %c384_181 = arith.constant 384 : index
    %c0_182 = arith.constant 0 : index
    %152 = vector.load %arg2[%c384_181, %c0_182] : memref<512x128xbf16, #tpu.memory_space<vmem>>, vector<128x128xbf16>
    %cst_183 = arith.constant dense<0.000000e+00> : vector<8x128xf32>
    %153 = tpu.matmul %151, %152, %cst_183 {dimension_numbers = #tpu.dot_dimension_numbers<[1], [0], [0], [1], [0, 0, 1, 1], [], []>} : vector<8x128xbf16>, vector<128x128xbf16>, vector<8x128xf32> -> vector<8x128xf32>
    %154 = arith.addf %149, %153 : vector<8x128xf32>
    %155 = vector.broadcast %0 : vector<1x128xf32> to vector<8x128xf32>
    %156 = arith.addf %154, %155 : vector<8x128xf32>
    %cst_184 = arith.constant 0.000000e+00 : f32
    %157 = vector.broadcast %cst_184 : f32 to vector<8x128xf32>
    %158 = arith.maximumf %156, %157 : vector<8x128xf32>
    %159 = arith.truncf %158 : vector<8x128xf32> to vector<8x128xbf16>
    %c0_185 = arith.constant 0 : index
    %c5_186 = arith.constant 5 : index
    %c0_187 = arith.constant 0 : index
    %c0_188 = arith.constant 0 : index
    %160 = vector.load %arg4[%c0_185, %c5_186, %c0_187, %c0_188] : memref<1x8x8x128xbf16, #tpu.memory_space<vmem>>, vector<1x1x8x128xbf16>
    %161 = vector.shape_cast %160 : vector<1x1x8x128xbf16> to vector<8x128xbf16>
    %162 = vector.shape_cast %159 : vector<8x128xbf16> to vector<1x1x8x128xbf16>
    tpu.vector_store %arg4[%c0_185, %c5_186, %c0_187, %c0_188], %162 {strides = array<i32>} : memref<1x8x8x128xbf16, #tpu.memory_space<vmem>>, vector<1x1x8x128xbf16>,
    %c0_189 = arith.constant 0 : index
    %c6_190 = arith.constant 6 : index
    %c0_191 = arith.constant 0 : index
    %c0_192 = arith.constant 0 : index
    %163 = vector.load %arg1[%c0_189, %c6_190, %c0_191, %c0_192] : memref<1x9x9x128xbf16, #tpu.memory_space<vmem>>, vector<1x1x8x128xbf16>
    %164 = vector.shape_cast %163 : vector<1x1x8x128xbf16> to vector<8x128xbf16>
    %c0_193 = arith.constant 0 : index
    %c0_194 = arith.constant 0 : index
    %165 = vector.load %arg2[%c0_193, %c0_194] : memref<512x128xbf16, #tpu.memory_space<vmem>>, vector<128x128xbf16>
    %cst_195 = arith.constant dense<0.000000e+00> : vector<8x128xf32>
    %166 = tpu.matmul %164, %165, %cst_195 {dimension_numbers = #tpu.dot_dimension_numbers<[1], [0], [0], [1], [0, 0, 1, 1], [], []>} : vector<8x128xbf16>, vector<128x128xbf16>, vector<8x128xf32> -> vector<8x128xf32>
    %c0_196 = arith.constant 0 : index
    %c6_197 = arith.constant 6 : index
    %c1_198 = arith.constant 1 : index
    %c0_199 = arith.constant 0 : index
    %167 = vector.load %arg1[%c0_196, %c6_197, %c1_198, %c0_199] : memref<1x9x9x128xbf16, #tpu.memory_space<vmem>>, vector<1x1x8x128xbf16>
    %168 = vector.shape_cast %167 : vector<1x1x8x128xbf16> to vector<8x128xbf16>
    %c128_200 = arith.constant 128 : index
    %c0_201 = arith.constant 0 : index
    %169 = vector.load %arg2[%c128_200, %c0_201] : memref<512x128xbf16, #tpu.memory_space<vmem>>, vector<128x128xbf16>
    %cst_202 = arith.constant dense<0.000000e+00> : vector<8x128xf32>
    %170 = tpu.matmul %168, %169, %cst_202 {dimension_numbers = #tpu.dot_dimension_numbers<[1], [0], [0], [1], [0, 0, 1, 1], [], []>} : vector<8x128xbf16>, vector<128x128xbf16>, vector<8x128xf32> -> vector<8x128xf32>
    %171 = arith.addf %166, %170 : vector<8x128xf32>
    %c0_203 = arith.constant 0 : index
    %c7 = arith.constant 7 : index
    %c0_204 = arith.constant 0 : index
    %c0_205 = arith.constant 0 : index
    %172 = vector.load %arg1[%c0_203, %c7, %c0_204, %c0_205] : memref<1x9x9x128xbf16, #tpu.memory_space<vmem>>, vector<1x1x8x128xbf16>
    %173 = vector.shape_cast %172 : vector<1x1x8x128xbf16> to vector<8x128xbf16>
    %c256_206 = arith.constant 256 : index
    %c0_207 = arith.constant 0 : index
    %174 = vector.load %arg2[%c256_206, %c0_207] : memref<512x128xbf16, #tpu.memory_space<vmem>>, vector<128x128xbf16>
    %cst_208 = arith.constant dense<0.000000e+00> : vector<8x128xf32>
    %175 = tpu.matmul %173, %174, %cst_208 {dimension_numbers = #tpu.dot_dimension_numbers<[1], [0], [0], [1], [0, 0, 1, 1], [], []>} : vector<8x128xbf16>, vector<128x128xbf16>, vector<8x128xf32> -> vector<8x128xf32>
    %176 = arith.addf %171, %175 : vector<8x128xf32>
    %c0_209 = arith.constant 0 : index
    %c7_210 = arith.constant 7 : index
    %c1_211 = arith.constant 1 : index
    %c0_212 = arith.constant 0 : index
    %177 = vector.load %arg1[%c0_209, %c7_210, %c1_211, %c0_212] : memref<1x9x9x128xbf16, #tpu.memory_space<vmem>>, vector<1x1x8x128xbf16>
    %178 = vector.shape_cast %177 : vector<1x1x8x128xbf16> to vector<8x128xbf16>
    %c384_213 = arith.constant 384 : index
    %c0_214 = arith.constant 0 : index
    %179 = vector.load %arg2[%c384_213, %c0_214] : memref<512x128xbf16, #tpu.memory_space<vmem>>, vector<128x128xbf16>
    %cst_215 = arith.constant dense<0.000000e+00> : vector<8x128xf32>
    %180 = tpu.matmul %178, %179, %cst_215 {dimension_numbers = #tpu.dot_dimension_numbers<[1], [0], [0], [1], [0, 0, 1, 1], [], []>} : vector<8x128xbf16>, vector<128x128xbf16>, vector<8x128xf32> -> vector<8x128xf32>
    %181 = arith.addf %176, %180 : vector<8x128xf32>
    %182 = vector.broadcast %0 : vector<1x128xf32> to vector<8x128xf32>
    %183 = arith.addf %181, %182 : vector<8x128xf32>
    %cst_216 = arith.constant 0.000000e+00 : f32
    %184 = vector.broadcast %cst_216 : f32 to vector<8x128xf32>
    %185 = arith.maximumf %183, %184 : vector<8x128xf32>
    %186 = arith.truncf %185 : vector<8x128xf32> to vector<8x128xbf16>
    %c0_217 = arith.constant 0 : index
    %c6_218 = arith.constant 6 : index
    %c0_219 = arith.constant 0 : index
    %c0_220 = arith.constant 0 : index
    %187 = vector.load %arg4[%c0_217, %c6_218, %c0_219, %c0_220] : memref<1x8x8x128xbf16, #tpu.memory_space<vmem>>, vector<1x1x8x128xbf16>
    %188 = vector.shape_cast %187 : vector<1x1x8x128xbf16> to vector<8x128xbf16>
    %189 = vector.shape_cast %186 : vector<8x128xbf16> to vector<1x1x8x128xbf16>
    tpu.vector_store %arg4[%c0_217, %c6_218, %c0_219, %c0_220], %189 {strides = array<i32>} : memref<1x8x8x128xbf16, #tpu.memory_space<vmem>>, vector<1x1x8x128xbf16>,
    %c0_221 = arith.constant 0 : index
    %c7_222 = arith.constant 7 : index
    %c0_223 = arith.constant 0 : index
    %c0_224 = arith.constant 0 : index
    %190 = vector.load %arg1[%c0_221, %c7_222, %c0_223, %c0_224] : memref<1x9x9x128xbf16, #tpu.memory_space<vmem>>, vector<1x1x8x128xbf16>
    %191 = vector.shape_cast %190 : vector<1x1x8x128xbf16> to vector<8x128xbf16>
    %c0_225 = arith.constant 0 : index
    %c0_226 = arith.constant 0 : index
    %192 = vector.load %arg2[%c0_225, %c0_226] : memref<512x128xbf16, #tpu.memory_space<vmem>>, vector<128x128xbf16>
    %cst_227 = arith.constant dense<0.000000e+00> : vector<8x128xf32>
    %193 = tpu.matmul %191, %192, %cst_227 {dimension_numbers = #tpu.dot_dimension_numbers<[1], [0], [0], [1], [0, 0, 1, 1], [], []>} : vector<8x128xbf16>, vector<128x128xbf16>, vector<8x128xf32> -> vector<8x128xf32>
    %c0_228 = arith.constant 0 : index
    %c7_229 = arith.constant 7 : index
    %c1_230 = arith.constant 1 : index
    %c0_231 = arith.constant 0 : index
    %194 = vector.load %arg1[%c0_228, %c7_229, %c1_230, %c0_231] : memref<1x9x9x128xbf16, #tpu.memory_space<vmem>>, vector<1x1x8x128xbf16>
    %195 = vector.shape_cast %194 : vector<1x1x8x128xbf16> to vector<8x128xbf16>
    %c128_232 = arith.constant 128 : index
    %c0_233 = arith.constant 0 : index
    %196 = vector.load %arg2[%c128_232, %c0_233] : memref<512x128xbf16, #tpu.memory_space<vmem>>, vector<128x128xbf16>
    %cst_234 = arith.constant dense<0.000000e+00> : vector<8x128xf32>
    %197 = tpu.matmul %195, %196, %cst_234 {dimension_numbers = #tpu.dot_dimension_numbers<[1], [0], [0], [1], [0, 0, 1, 1], [], []>} : vector<8x128xbf16>, vector<128x128xbf16>, vector<8x128xf32> -> vector<8x128xf32>
    %198 = arith.addf %193, %197 : vector<8x128xf32>
    %c0_235 = arith.constant 0 : index
    %c8 = arith.constant 8 : index
    %c0_236 = arith.constant 0 : index
    %c0_237 = arith.constant 0 : index
    %199 = vector.load %arg1[%c0_235, %c8, %c0_236, %c0_237] : memref<1x9x9x128xbf16, #tpu.memory_space<vmem>>, vector<1x1x8x128xbf16>
    %200 = vector.shape_cast %199 : vector<1x1x8x128xbf16> to vector<8x128xbf16>
    %c256_238 = arith.constant 256 : index
    %c0_239 = arith.constant 0 : index
    %201 = vector.load %arg2[%c256_238, %c0_239] : memref<512x128xbf16, #tpu.memory_space<vmem>>, vector<128x128xbf16>
    %cst_240 = arith.constant dense<0.000000e+00> : vector<8x128xf32>
    %202 = tpu.matmul %200, %201, %cst_240 {dimension_numbers = #tpu.dot_dimension_numbers<[1], [0], [0], [1], [0, 0, 1, 1], [], []>} : vector<8x128xbf16>, vector<128x128xbf16>, vector<8x128xf32> -> vector<8x128xf32>
    %203 = arith.addf %198, %202 : vector<8x128xf32>
    %c0_241 = arith.constant 0 : index
    %c8_242 = arith.constant 8 : index
    %c1_243 = arith.constant 1 : index
    %c0_244 = arith.constant 0 : index
    %204 = vector.load %arg1[%c0_241, %c8_242, %c1_243, %c0_244] : memref<1x9x9x128xbf16, #tpu.memory_space<vmem>>, vector<1x1x8x128xbf16>
    %205 = vector.shape_cast %204 : vector<1x1x8x128xbf16> to vector<8x128xbf16>
    %c384_245 = arith.constant 384 : index
    %c0_246 = arith.constant 0 : index
    %206 = vector.load %arg2[%c384_245, %c0_246] : memref<512x128xbf16, #tpu.memory_space<vmem>>, vector<128x128xbf16>
    %cst_247 = arith.constant dense<0.000000e+00> : vector<8x128xf32>
    %207 = tpu.matmul %205, %206, %cst_247 {dimension_numbers = #tpu.dot_dimension_numbers<[1], [0], [0], [1], [0, 0, 1, 1], [], []>} : vector<8x128xbf16>, vector<128x128xbf16>, vector<8x128xf32> -> vector<8x128xf32>
    %208 = arith.addf %203, %207 : vector<8x128xf32>
    %209 = vector.broadcast %0 : vector<1x128xf32> to vector<8x128xf32>
    %210 = arith.addf %208, %209 : vector<8x128xf32>
    %cst_248 = arith.constant 0.000000e+00 : f32
    %211 = vector.broadcast %cst_248 : f32 to vector<8x128xf32>
    %212 = arith.maximumf %210, %211 : vector<8x128xf32>
    %213 = arith.truncf %212 : vector<8x128xf32> to vector<8x128xbf16>
    %c0_249 = arith.constant 0 : index
    %c7_250 = arith.constant 7 : index
    %c0_251 = arith.constant 0 : index
    %c0_252 = arith.constant 0 : index
    %214 = vector.load %arg4[%c0_249, %c7_250, %c0_251, %c0_252] : memref<1x8x8x128xbf16, #tpu.memory_space<vmem>>, vector<1x1x8x128xbf16>
    %215 = vector.shape_cast %214 : vector<1x1x8x128xbf16> to vector<8x128xbf16>
    %216 = vector.shape_cast %213 : vector<8x128xbf16> to vector<1x1x8x128xbf16>
    tpu.vector_store %arg4[%c0_249, %c7_250, %c0_251, %c0_252], %216 {strides = array<i32>} : memref<1x8x8x128xbf16, #tpu.memory_space<vmem>>, vector<1x1x8x128xbf16>,
    return
  }
  func.func @transform_0(%arg0: i32) -> (i32, i32, i32, i32) {
    %c0_i32 = arith.constant 0 : i32
    %c0_i32_0 = arith.constant 0 : i32
    %c0_i32_1 = arith.constant 0 : i32
    %c0_i32_2 = arith.constant 0 : i32
    return %arg0, %c0_i32, %c0_i32_0, %c0_i32_1 : i32, i32, i32, i32
  }
  func.func @transform_1(%arg0: i32) -> (i32, i32) {
    %c0_i32 = arith.constant 0 : i32
    %c0_i32_0 = arith.constant 0 : i32
    %c0_i32_1 = arith.constant 0 : i32
    return %c0_i32, %c0_i32_0 : i32, i32
  }
  func.func @transform_2(%arg0: i32) -> (i32, i32) {
    %c0_i32 = arith.constant 0 : i32
    %c0_i32_0 = arith.constant 0 : i32
    %c0_i32_1 = arith.constant 0 : i32
    return %c0_i32, %c0_i32_0 : i32, i32
  }
  func.func @transform_3(%arg0: i32) -> (i32, i32, i32, i32) {
    %c0_i32 = arith.constant 0 : i32
    %c0_i32_0 = arith.constant 0 : i32
    %c0_i32_1 = arith.constant 0 : i32
    %c0_i32_2 = arith.constant 0 : i32
    return %arg0, %c0_i32, %c0_i32_0, %c0_i32_1 : i32, i32, i32, i32
  }
}

module attributes {stable_mosaic.version = 11 : i64} {
  func.func @_conv_tap_kernel(%arg0: i32, %arg1: memref<1x4x4x512xbf16, #tpu.memory_space<vmem>>, %arg2: memref<2048x128xbf16, #tpu.memory_space<vmem>>, %arg3: memref<1x128xf32, #tpu.memory_space<vmem>>, %arg4: memref<1x3x3x128xbf16, #tpu.memory_space<vmem>>) attributes {dimension_semantics = [#tpu.dimension_semantics<parallel>], iteration_bounds = array<i64: 2>, scalar_prefetch = 0 : i64, scratch_operands = 0 : i64, tpu.core_type = #tpu.core_type<tc>, window_params = [{transform_indices = @transform_0, window_bounds = array<i64: 1, 4, 4, 512>}, {pipeline_mode = #tpu.pipeline_mode<synchronous>, transform_indices = @transform_1, window_bounds = array<i64: 2048, 128>}, {pipeline_mode = #tpu.pipeline_mode<synchronous>, transform_indices = @transform_2, window_bounds = array<i64: 1, 128>}, {transform_indices = @transform_3, window_bounds = array<i64: 1, 3, 3, 128>}]} {
    %c0 = arith.constant 0 : index
    %c0_0 = arith.constant 0 : index
    %0 = vector.load %arg3[%c0, %c0_0] : memref<1x128xf32, #tpu.memory_space<vmem>>, vector<1x128xf32>
    %c0_1 = arith.constant 0 : index
    %c0_2 = arith.constant 0 : index
    %c0_3 = arith.constant 0 : index
    %c0_4 = arith.constant 0 : index
    %1 = vector.load %arg1[%c0_1, %c0_2, %c0_3, %c0_4] : memref<1x4x4x512xbf16, #tpu.memory_space<vmem>>, vector<1x1x3x512xbf16>
    %2 = vector.shape_cast %1 : vector<1x1x3x512xbf16> to vector<3x512xbf16>
    %c0_5 = arith.constant 0 : index
    %c0_6 = arith.constant 0 : index
    %3 = vector.load %arg2[%c0_5, %c0_6] : memref<2048x128xbf16, #tpu.memory_space<vmem>>, vector<512x128xbf16>
    %cst = arith.constant dense<0.000000e+00> : vector<3x128xf32>
    %4 = tpu.matmul %2, %3, %cst {dimension_numbers = #tpu.dot_dimension_numbers<[1], [0], [0], [1], [0, 0, 1, 1], [], []>} : vector<3x512xbf16>, vector<512x128xbf16>, vector<3x128xf32> -> vector<3x128xf32>
    %c0_7 = arith.constant 0 : index
    %c0_8 = arith.constant 0 : index
    %c1 = arith.constant 1 : index
    %c0_9 = arith.constant 0 : index
    %5 = vector.load %arg1[%c0_7, %c0_8, %c1, %c0_9] : memref<1x4x4x512xbf16, #tpu.memory_space<vmem>>, vector<1x1x3x512xbf16>
    %6 = vector.shape_cast %5 : vector<1x1x3x512xbf16> to vector<3x512xbf16>
    %c512 = arith.constant 512 : index
    %c0_10 = arith.constant 0 : index
    %7 = vector.load %arg2[%c512, %c0_10] : memref<2048x128xbf16, #tpu.memory_space<vmem>>, vector<512x128xbf16>
    %cst_11 = arith.constant dense<0.000000e+00> : vector<3x128xf32>
    %8 = tpu.matmul %6, %7, %cst_11 {dimension_numbers = #tpu.dot_dimension_numbers<[1], [0], [0], [1], [0, 0, 1, 1], [], []>} : vector<3x512xbf16>, vector<512x128xbf16>, vector<3x128xf32> -> vector<3x128xf32>
    %9 = arith.addf %4, %8 : vector<3x128xf32>
    %c0_12 = arith.constant 0 : index
    %c1_13 = arith.constant 1 : index
    %c0_14 = arith.constant 0 : index
    %c0_15 = arith.constant 0 : index
    %10 = vector.load %arg1[%c0_12, %c1_13, %c0_14, %c0_15] : memref<1x4x4x512xbf16, #tpu.memory_space<vmem>>, vector<1x1x3x512xbf16>
    %11 = vector.shape_cast %10 : vector<1x1x3x512xbf16> to vector<3x512xbf16>
    %c1024 = arith.constant 1024 : index
    %c0_16 = arith.constant 0 : index
    %12 = vector.load %arg2[%c1024, %c0_16] : memref<2048x128xbf16, #tpu.memory_space<vmem>>, vector<512x128xbf16>
    %cst_17 = arith.constant dense<0.000000e+00> : vector<3x128xf32>
    %13 = tpu.matmul %11, %12, %cst_17 {dimension_numbers = #tpu.dot_dimension_numbers<[1], [0], [0], [1], [0, 0, 1, 1], [], []>} : vector<3x512xbf16>, vector<512x128xbf16>, vector<3x128xf32> -> vector<3x128xf32>
    %14 = arith.addf %9, %13 : vector<3x128xf32>
    %c0_18 = arith.constant 0 : index
    %c1_19 = arith.constant 1 : index
    %c1_20 = arith.constant 1 : index
    %c0_21 = arith.constant 0 : index
    %15 = vector.load %arg1[%c0_18, %c1_19, %c1_20, %c0_21] : memref<1x4x4x512xbf16, #tpu.memory_space<vmem>>, vector<1x1x3x512xbf16>
    %16 = vector.shape_cast %15 : vector<1x1x3x512xbf16> to vector<3x512xbf16>
    %c1536 = arith.constant 1536 : index
    %c0_22 = arith.constant 0 : index
    %17 = vector.load %arg2[%c1536, %c0_22] : memref<2048x128xbf16, #tpu.memory_space<vmem>>, vector<512x128xbf16>
    %cst_23 = arith.constant dense<0.000000e+00> : vector<3x128xf32>
    %18 = tpu.matmul %16, %17, %cst_23 {dimension_numbers = #tpu.dot_dimension_numbers<[1], [0], [0], [1], [0, 0, 1, 1], [], []>} : vector<3x512xbf16>, vector<512x128xbf16>, vector<3x128xf32> -> vector<3x128xf32>
    %19 = arith.addf %14, %18 : vector<3x128xf32>
    %20 = vector.broadcast %0 : vector<1x128xf32> to vector<3x128xf32>
    %21 = arith.addf %19, %20 : vector<3x128xf32>
    %cst_24 = arith.constant 0.000000e+00 : f32
    %22 = vector.broadcast %cst_24 : f32 to vector<3x128xf32>
    %23 = arith.maximumf %21, %22 : vector<3x128xf32>
    %24 = arith.truncf %23 : vector<3x128xf32> to vector<3x128xbf16>
    %c0_25 = arith.constant 0 : index
    %c0_26 = arith.constant 0 : index
    %c0_27 = arith.constant 0 : index
    %c0_28 = arith.constant 0 : index
    %25 = vector.load %arg4[%c0_25, %c0_26, %c0_27, %c0_28] : memref<1x3x3x128xbf16, #tpu.memory_space<vmem>>, vector<1x1x3x128xbf16>
    %26 = vector.shape_cast %25 : vector<1x1x3x128xbf16> to vector<3x128xbf16>
    %27 = vector.shape_cast %24 : vector<3x128xbf16> to vector<1x1x3x128xbf16>
    tpu.vector_store %arg4[%c0_25, %c0_26, %c0_27, %c0_28], %27 {strides = array<i32>} : memref<1x3x3x128xbf16, #tpu.memory_space<vmem>>, vector<1x1x3x128xbf16>,
    %c0_29 = arith.constant 0 : index
    %c1_30 = arith.constant 1 : index
    %c0_31 = arith.constant 0 : index
    %c0_32 = arith.constant 0 : index
    %28 = vector.load %arg1[%c0_29, %c1_30, %c0_31, %c0_32] : memref<1x4x4x512xbf16, #tpu.memory_space<vmem>>, vector<1x1x3x512xbf16>
    %29 = vector.shape_cast %28 : vector<1x1x3x512xbf16> to vector<3x512xbf16>
    %c0_33 = arith.constant 0 : index
    %c0_34 = arith.constant 0 : index
    %30 = vector.load %arg2[%c0_33, %c0_34] : memref<2048x128xbf16, #tpu.memory_space<vmem>>, vector<512x128xbf16>
    %cst_35 = arith.constant dense<0.000000e+00> : vector<3x128xf32>
    %31 = tpu.matmul %29, %30, %cst_35 {dimension_numbers = #tpu.dot_dimension_numbers<[1], [0], [0], [1], [0, 0, 1, 1], [], []>} : vector<3x512xbf16>, vector<512x128xbf16>, vector<3x128xf32> -> vector<3x128xf32>
    %c0_36 = arith.constant 0 : index
    %c1_37 = arith.constant 1 : index
    %c1_38 = arith.constant 1 : index
    %c0_39 = arith.constant 0 : index
    %32 = vector.load %arg1[%c0_36, %c1_37, %c1_38, %c0_39] : memref<1x4x4x512xbf16, #tpu.memory_space<vmem>>, vector<1x1x3x512xbf16>
    %33 = vector.shape_cast %32 : vector<1x1x3x512xbf16> to vector<3x512xbf16>
    %c512_40 = arith.constant 512 : index
    %c0_41 = arith.constant 0 : index
    %34 = vector.load %arg2[%c512_40, %c0_41] : memref<2048x128xbf16, #tpu.memory_space<vmem>>, vector<512x128xbf16>
    %cst_42 = arith.constant dense<0.000000e+00> : vector<3x128xf32>
    %35 = tpu.matmul %33, %34, %cst_42 {dimension_numbers = #tpu.dot_dimension_numbers<[1], [0], [0], [1], [0, 0, 1, 1], [], []>} : vector<3x512xbf16>, vector<512x128xbf16>, vector<3x128xf32> -> vector<3x128xf32>
    %36 = arith.addf %31, %35 : vector<3x128xf32>
    %c0_43 = arith.constant 0 : index
    %c2 = arith.constant 2 : index
    %c0_44 = arith.constant 0 : index
    %c0_45 = arith.constant 0 : index
    %37 = vector.load %arg1[%c0_43, %c2, %c0_44, %c0_45] : memref<1x4x4x512xbf16, #tpu.memory_space<vmem>>, vector<1x1x3x512xbf16>
    %38 = vector.shape_cast %37 : vector<1x1x3x512xbf16> to vector<3x512xbf16>
    %c1024_46 = arith.constant 1024 : index
    %c0_47 = arith.constant 0 : index
    %39 = vector.load %arg2[%c1024_46, %c0_47] : memref<2048x128xbf16, #tpu.memory_space<vmem>>, vector<512x128xbf16>
    %cst_48 = arith.constant dense<0.000000e+00> : vector<3x128xf32>
    %40 = tpu.matmul %38, %39, %cst_48 {dimension_numbers = #tpu.dot_dimension_numbers<[1], [0], [0], [1], [0, 0, 1, 1], [], []>} : vector<3x512xbf16>, vector<512x128xbf16>, vector<3x128xf32> -> vector<3x128xf32>
    %41 = arith.addf %36, %40 : vector<3x128xf32>
    %c0_49 = arith.constant 0 : index
    %c2_50 = arith.constant 2 : index
    %c1_51 = arith.constant 1 : index
    %c0_52 = arith.constant 0 : index
    %42 = vector.load %arg1[%c0_49, %c2_50, %c1_51, %c0_52] : memref<1x4x4x512xbf16, #tpu.memory_space<vmem>>, vector<1x1x3x512xbf16>
    %43 = vector.shape_cast %42 : vector<1x1x3x512xbf16> to vector<3x512xbf16>
    %c1536_53 = arith.constant 1536 : index
    %c0_54 = arith.constant 0 : index
    %44 = vector.load %arg2[%c1536_53, %c0_54] : memref<2048x128xbf16, #tpu.memory_space<vmem>>, vector<512x128xbf16>
    %cst_55 = arith.constant dense<0.000000e+00> : vector<3x128xf32>
    %45 = tpu.matmul %43, %44, %cst_55 {dimension_numbers = #tpu.dot_dimension_numbers<[1], [0], [0], [1], [0, 0, 1, 1], [], []>} : vector<3x512xbf16>, vector<512x128xbf16>, vector<3x128xf32> -> vector<3x128xf32>
    %46 = arith.addf %41, %45 : vector<3x128xf32>
    %47 = vector.broadcast %0 : vector<1x128xf32> to vector<3x128xf32>
    %48 = arith.addf %46, %47 : vector<3x128xf32>
    %cst_56 = arith.constant 0.000000e+00 : f32
    %49 = vector.broadcast %cst_56 : f32 to vector<3x128xf32>
    %50 = arith.maximumf %48, %49 : vector<3x128xf32>
    %51 = arith.truncf %50 : vector<3x128xf32> to vector<3x128xbf16>
    %c0_57 = arith.constant 0 : index
    %c1_58 = arith.constant 1 : index
    %c0_59 = arith.constant 0 : index
    %c0_60 = arith.constant 0 : index
    %52 = vector.load %arg4[%c0_57, %c1_58, %c0_59, %c0_60] : memref<1x3x3x128xbf16, #tpu.memory_space<vmem>>, vector<1x1x3x128xbf16>
    %53 = vector.shape_cast %52 : vector<1x1x3x128xbf16> to vector<3x128xbf16>
    %54 = vector.shape_cast %51 : vector<3x128xbf16> to vector<1x1x3x128xbf16>
    tpu.vector_store %arg4[%c0_57, %c1_58, %c0_59, %c0_60], %54 {strides = array<i32>} : memref<1x3x3x128xbf16, #tpu.memory_space<vmem>>, vector<1x1x3x128xbf16>,
    %c0_61 = arith.constant 0 : index
    %c2_62 = arith.constant 2 : index
    %c0_63 = arith.constant 0 : index
    %c0_64 = arith.constant 0 : index
    %55 = vector.load %arg1[%c0_61, %c2_62, %c0_63, %c0_64] : memref<1x4x4x512xbf16, #tpu.memory_space<vmem>>, vector<1x1x3x512xbf16>
    %56 = vector.shape_cast %55 : vector<1x1x3x512xbf16> to vector<3x512xbf16>
    %c0_65 = arith.constant 0 : index
    %c0_66 = arith.constant 0 : index
    %57 = vector.load %arg2[%c0_65, %c0_66] : memref<2048x128xbf16, #tpu.memory_space<vmem>>, vector<512x128xbf16>
    %cst_67 = arith.constant dense<0.000000e+00> : vector<3x128xf32>
    %58 = tpu.matmul %56, %57, %cst_67 {dimension_numbers = #tpu.dot_dimension_numbers<[1], [0], [0], [1], [0, 0, 1, 1], [], []>} : vector<3x512xbf16>, vector<512x128xbf16>, vector<3x128xf32> -> vector<3x128xf32>
    %c0_68 = arith.constant 0 : index
    %c2_69 = arith.constant 2 : index
    %c1_70 = arith.constant 1 : index
    %c0_71 = arith.constant 0 : index
    %59 = vector.load %arg1[%c0_68, %c2_69, %c1_70, %c0_71] : memref<1x4x4x512xbf16, #tpu.memory_space<vmem>>, vector<1x1x3x512xbf16>
    %60 = vector.shape_cast %59 : vector<1x1x3x512xbf16> to vector<3x512xbf16>
    %c512_72 = arith.constant 512 : index
    %c0_73 = arith.constant 0 : index
    %61 = vector.load %arg2[%c512_72, %c0_73] : memref<2048x128xbf16, #tpu.memory_space<vmem>>, vector<512x128xbf16>
    %cst_74 = arith.constant dense<0.000000e+00> : vector<3x128xf32>
    %62 = tpu.matmul %60, %61, %cst_74 {dimension_numbers = #tpu.dot_dimension_numbers<[1], [0], [0], [1], [0, 0, 1, 1], [], []>} : vector<3x512xbf16>, vector<512x128xbf16>, vector<3x128xf32> -> vector<3x128xf32>
    %63 = arith.addf %58, %62 : vector<3x128xf32>
    %c0_75 = arith.constant 0 : index
    %c3 = arith.constant 3 : index
    %c0_76 = arith.constant 0 : index
    %c0_77 = arith.constant 0 : index
    %64 = vector.load %arg1[%c0_75, %c3, %c0_76, %c0_77] : memref<1x4x4x512xbf16, #tpu.memory_space<vmem>>, vector<1x1x3x512xbf16>
    %65 = vector.shape_cast %64 : vector<1x1x3x512xbf16> to vector<3x512xbf16>
    %c1024_78 = arith.constant 1024 : index
    %c0_79 = arith.constant 0 : index
    %66 = vector.load %arg2[%c1024_78, %c0_79] : memref<2048x128xbf16, #tpu.memory_space<vmem>>, vector<512x128xbf16>
    %cst_80 = arith.constant dense<0.000000e+00> : vector<3x128xf32>
    %67 = tpu.matmul %65, %66, %cst_80 {dimension_numbers = #tpu.dot_dimension_numbers<[1], [0], [0], [1], [0, 0, 1, 1], [], []>} : vector<3x512xbf16>, vector<512x128xbf16>, vector<3x128xf32> -> vector<3x128xf32>
    %68 = arith.addf %63, %67 : vector<3x128xf32>
    %c0_81 = arith.constant 0 : index
    %c3_82 = arith.constant 3 : index
    %c1_83 = arith.constant 1 : index
    %c0_84 = arith.constant 0 : index
    %69 = vector.load %arg1[%c0_81, %c3_82, %c1_83, %c0_84] : memref<1x4x4x512xbf16, #tpu.memory_space<vmem>>, vector<1x1x3x512xbf16>
    %70 = vector.shape_cast %69 : vector<1x1x3x512xbf16> to vector<3x512xbf16>
    %c1536_85 = arith.constant 1536 : index
    %c0_86 = arith.constant 0 : index
    %71 = vector.load %arg2[%c1536_85, %c0_86] : memref<2048x128xbf16, #tpu.memory_space<vmem>>, vector<512x128xbf16>
    %cst_87 = arith.constant dense<0.000000e+00> : vector<3x128xf32>
    %72 = tpu.matmul %70, %71, %cst_87 {dimension_numbers = #tpu.dot_dimension_numbers<[1], [0], [0], [1], [0, 0, 1, 1], [], []>} : vector<3x512xbf16>, vector<512x128xbf16>, vector<3x128xf32> -> vector<3x128xf32>
    %73 = arith.addf %68, %72 : vector<3x128xf32>
    %74 = vector.broadcast %0 : vector<1x128xf32> to vector<3x128xf32>
    %75 = arith.addf %73, %74 : vector<3x128xf32>
    %cst_88 = arith.constant 0.000000e+00 : f32
    %76 = vector.broadcast %cst_88 : f32 to vector<3x128xf32>
    %77 = arith.maximumf %75, %76 : vector<3x128xf32>
    %78 = arith.truncf %77 : vector<3x128xf32> to vector<3x128xbf16>
    %c0_89 = arith.constant 0 : index
    %c2_90 = arith.constant 2 : index
    %c0_91 = arith.constant 0 : index
    %c0_92 = arith.constant 0 : index
    %79 = vector.load %arg4[%c0_89, %c2_90, %c0_91, %c0_92] : memref<1x3x3x128xbf16, #tpu.memory_space<vmem>>, vector<1x1x3x128xbf16>
    %80 = vector.shape_cast %79 : vector<1x1x3x128xbf16> to vector<3x128xbf16>
    %81 = vector.shape_cast %78 : vector<3x128xbf16> to vector<1x1x3x128xbf16>
    tpu.vector_store %arg4[%c0_89, %c2_90, %c0_91, %c0_92], %81 {strides = array<i32>} : memref<1x3x3x128xbf16, #tpu.memory_space<vmem>>, vector<1x1x3x128xbf16>,
    return
  }
  func.func @transform_0(%arg0: i32) -> (i32, i32, i32, i32) {
    %c0_i32 = arith.constant 0 : i32
    %c0_i32_0 = arith.constant 0 : i32
    %c0_i32_1 = arith.constant 0 : i32
    %c0_i32_2 = arith.constant 0 : i32
    return %arg0, %c0_i32, %c0_i32_0, %c0_i32_1 : i32, i32, i32, i32
  }
  func.func @transform_1(%arg0: i32) -> (i32, i32) {
    %c0_i32 = arith.constant 0 : i32
    %c0_i32_0 = arith.constant 0 : i32
    %c0_i32_1 = arith.constant 0 : i32
    return %c0_i32, %c0_i32_0 : i32, i32
  }
  func.func @transform_2(%arg0: i32) -> (i32, i32) {
    %c0_i32 = arith.constant 0 : i32
    %c0_i32_0 = arith.constant 0 : i32
    %c0_i32_1 = arith.constant 0 : i32
    return %c0_i32, %c0_i32_0 : i32, i32
  }
  func.func @transform_3(%arg0: i32) -> (i32, i32, i32, i32) {
    %c0_i32 = arith.constant 0 : i32
    %c0_i32_0 = arith.constant 0 : i32
    %c0_i32_1 = arith.constant 0 : i32
    %c0_i32_2 = arith.constant 0 : i32
    return %arg0, %c0_i32, %c0_i32_0, %c0_i32_1 : i32, i32, i32, i32
  }
}

module attributes {stable_mosaic.version = 11 : i64} {
  func.func @_conv_tap_kernel(%arg0: i32, %arg1: memref<1x3x3x128xbf16, #tpu.memory_space<vmem>>, %arg2: memref<1152x128xbf16, #tpu.memory_space<vmem>>, %arg3: memref<1x128xf32, #tpu.memory_space<vmem>>, %arg4: memref<1x1x1x128xbf16, #tpu.memory_space<vmem>>) attributes {dimension_semantics = [#tpu.dimension_semantics<parallel>], iteration_bounds = array<i64: 2>, scalar_prefetch = 0 : i64, scratch_operands = 0 : i64, tpu.core_type = #tpu.core_type<tc>, window_params = [{transform_indices = @transform_0, window_bounds = array<i64: 1, 3, 3, 128>}, {pipeline_mode = #tpu.pipeline_mode<synchronous>, transform_indices = @transform_1, window_bounds = array<i64: 1152, 128>}, {pipeline_mode = #tpu.pipeline_mode<synchronous>, transform_indices = @transform_2, window_bounds = array<i64: 1, 128>}, {transform_indices = @transform_3, window_bounds = array<i64: 1, 1, 1, 128>}]} {
    %c0 = arith.constant 0 : index
    %c0_0 = arith.constant 0 : index
    %0 = vector.load %arg3[%c0, %c0_0] : memref<1x128xf32, #tpu.memory_space<vmem>>, vector<1x128xf32>
    %c0_1 = arith.constant 0 : index
    %c0_2 = arith.constant 0 : index
    %c0_3 = arith.constant 0 : index
    %c0_4 = arith.constant 0 : index
    %1 = vector.load %arg1[%c0_1, %c0_2, %c0_3, %c0_4] : memref<1x3x3x128xbf16, #tpu.memory_space<vmem>>, vector<1x1x1x128xbf16>
    %2 = vector.shape_cast %1 : vector<1x1x1x128xbf16> to vector<1x128xbf16>
    %c0_5 = arith.constant 0 : index
    %c0_6 = arith.constant 0 : index
    %3 = vector.load %arg2[%c0_5, %c0_6] : memref<1152x128xbf16, #tpu.memory_space<vmem>>, vector<128x128xbf16>
    %cst = arith.constant dense<0.000000e+00> : vector<1x128xf32>
    %4 = tpu.matmul %2, %3, %cst {dimension_numbers = #tpu.dot_dimension_numbers<[1], [0], [0], [1], [0, 0, 1, 1], [], []>} : vector<1x128xbf16>, vector<128x128xbf16>, vector<1x128xf32> -> vector<1x128xf32>
    %c0_7 = arith.constant 0 : index
    %c0_8 = arith.constant 0 : index
    %c1 = arith.constant 1 : index
    %c0_9 = arith.constant 0 : index
    %5 = vector.load %arg1[%c0_7, %c0_8, %c1, %c0_9] : memref<1x3x3x128xbf16, #tpu.memory_space<vmem>>, vector<1x1x1x128xbf16>
    %6 = vector.shape_cast %5 : vector<1x1x1x128xbf16> to vector<1x128xbf16>
    %c128 = arith.constant 128 : index
    %c0_10 = arith.constant 0 : index
    %7 = vector.load %arg2[%c128, %c0_10] : memref<1152x128xbf16, #tpu.memory_space<vmem>>, vector<128x128xbf16>
    %cst_11 = arith.constant dense<0.000000e+00> : vector<1x128xf32>
    %8 = tpu.matmul %6, %7, %cst_11 {dimension_numbers = #tpu.dot_dimension_numbers<[1], [0], [0], [1], [0, 0, 1, 1], [], []>} : vector<1x128xbf16>, vector<128x128xbf16>, vector<1x128xf32> -> vector<1x128xf32>
    %9 = arith.addf %4, %8 : vector<1x128xf32>
    %c0_12 = arith.constant 0 : index
    %c0_13 = arith.constant 0 : index
    %c2 = arith.constant 2 : index
    %c0_14 = arith.constant 0 : index
    %10 = vector.load %arg1[%c0_12, %c0_13, %c2, %c0_14] : memref<1x3x3x128xbf16, #tpu.memory_space<vmem>>, vector<1x1x1x128xbf16>
    %11 = vector.shape_cast %10 : vector<1x1x1x128xbf16> to vector<1x128xbf16>
    %c256 = arith.constant 256 : index
    %c0_15 = arith.constant 0 : index
    %12 = vector.load %arg2[%c256, %c0_15] : memref<1152x128xbf16, #tpu.memory_space<vmem>>, vector<128x128xbf16>
    %cst_16 = arith.constant dense<0.000000e+00> : vector<1x128xf32>
    %13 = tpu.matmul %11, %12, %cst_16 {dimension_numbers = #tpu.dot_dimension_numbers<[1], [0], [0], [1], [0, 0, 1, 1], [], []>} : vector<1x128xbf16>, vector<128x128xbf16>, vector<1x128xf32> -> vector<1x128xf32>
    %14 = arith.addf %9, %13 : vector<1x128xf32>
    %c0_17 = arith.constant 0 : index
    %c1_18 = arith.constant 1 : index
    %c0_19 = arith.constant 0 : index
    %c0_20 = arith.constant 0 : index
    %15 = vector.load %arg1[%c0_17, %c1_18, %c0_19, %c0_20] : memref<1x3x3x128xbf16, #tpu.memory_space<vmem>>, vector<1x1x1x128xbf16>
    %16 = vector.shape_cast %15 : vector<1x1x1x128xbf16> to vector<1x128xbf16>
    %c384 = arith.constant 384 : index
    %c0_21 = arith.constant 0 : index
    %17 = vector.load %arg2[%c384, %c0_21] : memref<1152x128xbf16, #tpu.memory_space<vmem>>, vector<128x128xbf16>
    %cst_22 = arith.constant dense<0.000000e+00> : vector<1x128xf32>
    %18 = tpu.matmul %16, %17, %cst_22 {dimension_numbers = #tpu.dot_dimension_numbers<[1], [0], [0], [1], [0, 0, 1, 1], [], []>} : vector<1x128xbf16>, vector<128x128xbf16>, vector<1x128xf32> -> vector<1x128xf32>
    %19 = arith.addf %14, %18 : vector<1x128xf32>
    %c0_23 = arith.constant 0 : index
    %c1_24 = arith.constant 1 : index
    %c1_25 = arith.constant 1 : index
    %c0_26 = arith.constant 0 : index
    %20 = vector.load %arg1[%c0_23, %c1_24, %c1_25, %c0_26] : memref<1x3x3x128xbf16, #tpu.memory_space<vmem>>, vector<1x1x1x128xbf16>
    %21 = vector.shape_cast %20 : vector<1x1x1x128xbf16> to vector<1x128xbf16>
    %c512 = arith.constant 512 : index
    %c0_27 = arith.constant 0 : index
    %22 = vector.load %arg2[%c512, %c0_27] : memref<1152x128xbf16, #tpu.memory_space<vmem>>, vector<128x128xbf16>
    %cst_28 = arith.constant dense<0.000000e+00> : vector<1x128xf32>
    %23 = tpu.matmul %21, %22, %cst_28 {dimension_numbers = #tpu.dot_dimension_numbers<[1], [0], [0], [1], [0, 0, 1, 1], [], []>} : vector<1x128xbf16>, vector<128x128xbf16>, vector<1x128xf32> -> vector<1x128xf32>
    %24 = arith.addf %19, %23 : vector<1x128xf32>
    %c0_29 = arith.constant 0 : index
    %c1_30 = arith.constant 1 : index
    %c2_31 = arith.constant 2 : index
    %c0_32 = arith.constant 0 : index
    %25 = vector.load %arg1[%c0_29, %c1_30, %c2_31, %c0_32] : memref<1x3x3x128xbf16, #tpu.memory_space<vmem>>, vector<1x1x1x128xbf16>
    %26 = vector.shape_cast %25 : vector<1x1x1x128xbf16> to vector<1x128xbf16>
    %c640 = arith.constant 640 : index
    %c0_33 = arith.constant 0 : index
    %27 = vector.load %arg2[%c640, %c0_33] : memref<1152x128xbf16, #tpu.memory_space<vmem>>, vector<128x128xbf16>
    %cst_34 = arith.constant dense<0.000000e+00> : vector<1x128xf32>
    %28 = tpu.matmul %26, %27, %cst_34 {dimension_numbers = #tpu.dot_dimension_numbers<[1], [0], [0], [1], [0, 0, 1, 1], [], []>} : vector<1x128xbf16>, vector<128x128xbf16>, vector<1x128xf32> -> vector<1x128xf32>
    %29 = arith.addf %24, %28 : vector<1x128xf32>
    %c0_35 = arith.constant 0 : index
    %c2_36 = arith.constant 2 : index
    %c0_37 = arith.constant 0 : index
    %c0_38 = arith.constant 0 : index
    %30 = vector.load %arg1[%c0_35, %c2_36, %c0_37, %c0_38] : memref<1x3x3x128xbf16, #tpu.memory_space<vmem>>, vector<1x1x1x128xbf16>
    %31 = vector.shape_cast %30 : vector<1x1x1x128xbf16> to vector<1x128xbf16>
    %c768 = arith.constant 768 : index
    %c0_39 = arith.constant 0 : index
    %32 = vector.load %arg2[%c768, %c0_39] : memref<1152x128xbf16, #tpu.memory_space<vmem>>, vector<128x128xbf16>
    %cst_40 = arith.constant dense<0.000000e+00> : vector<1x128xf32>
    %33 = tpu.matmul %31, %32, %cst_40 {dimension_numbers = #tpu.dot_dimension_numbers<[1], [0], [0], [1], [0, 0, 1, 1], [], []>} : vector<1x128xbf16>, vector<128x128xbf16>, vector<1x128xf32> -> vector<1x128xf32>
    %34 = arith.addf %29, %33 : vector<1x128xf32>
    %c0_41 = arith.constant 0 : index
    %c2_42 = arith.constant 2 : index
    %c1_43 = arith.constant 1 : index
    %c0_44 = arith.constant 0 : index
    %35 = vector.load %arg1[%c0_41, %c2_42, %c1_43, %c0_44] : memref<1x3x3x128xbf16, #tpu.memory_space<vmem>>, vector<1x1x1x128xbf16>
    %36 = vector.shape_cast %35 : vector<1x1x1x128xbf16> to vector<1x128xbf16>
    %c896 = arith.constant 896 : index
    %c0_45 = arith.constant 0 : index
    %37 = vector.load %arg2[%c896, %c0_45] : memref<1152x128xbf16, #tpu.memory_space<vmem>>, vector<128x128xbf16>
    %cst_46 = arith.constant dense<0.000000e+00> : vector<1x128xf32>
    %38 = tpu.matmul %36, %37, %cst_46 {dimension_numbers = #tpu.dot_dimension_numbers<[1], [0], [0], [1], [0, 0, 1, 1], [], []>} : vector<1x128xbf16>, vector<128x128xbf16>, vector<1x128xf32> -> vector<1x128xf32>
    %39 = arith.addf %34, %38 : vector<1x128xf32>
    %c0_47 = arith.constant 0 : index
    %c2_48 = arith.constant 2 : index
    %c2_49 = arith.constant 2 : index
    %c0_50 = arith.constant 0 : index
    %40 = vector.load %arg1[%c0_47, %c2_48, %c2_49, %c0_50] : memref<1x3x3x128xbf16, #tpu.memory_space<vmem>>, vector<1x1x1x128xbf16>
    %41 = vector.shape_cast %40 : vector<1x1x1x128xbf16> to vector<1x128xbf16>
    %c1024 = arith.constant 1024 : index
    %c0_51 = arith.constant 0 : index
    %42 = vector.load %arg2[%c1024, %c0_51] : memref<1152x128xbf16, #tpu.memory_space<vmem>>, vector<128x128xbf16>
    %cst_52 = arith.constant dense<0.000000e+00> : vector<1x128xf32>
    %43 = tpu.matmul %41, %42, %cst_52 {dimension_numbers = #tpu.dot_dimension_numbers<[1], [0], [0], [1], [0, 0, 1, 1], [], []>} : vector<1x128xbf16>, vector<128x128xbf16>, vector<1x128xf32> -> vector<1x128xf32>
    %44 = arith.addf %39, %43 : vector<1x128xf32>
    %45 = arith.addf %44, %0 : vector<1x128xf32>
    %cst_53 = arith.constant 0.000000e+00 : f32
    %46 = vector.broadcast %cst_53 : f32 to vector<1x128xf32>
    %47 = arith.maximumf %45, %46 : vector<1x128xf32>
    %48 = arith.truncf %47 : vector<1x128xf32> to vector<1x128xbf16>
    %c0_54 = arith.constant 0 : index
    %c0_55 = arith.constant 0 : index
    %c0_56 = arith.constant 0 : index
    %c0_57 = arith.constant 0 : index
    %49 = vector.load %arg4[%c0_54, %c0_55, %c0_56, %c0_57] : memref<1x1x1x128xbf16, #tpu.memory_space<vmem>>, vector<1x1x1x128xbf16>
    %50 = vector.shape_cast %49 : vector<1x1x1x128xbf16> to vector<1x128xbf16>
    %51 = vector.shape_cast %48 : vector<1x128xbf16> to vector<1x1x1x128xbf16>
    tpu.vector_store %arg4[%c0_54, %c0_55, %c0_56, %c0_57], %51 {strides = array<i32>} : memref<1x1x1x128xbf16, #tpu.memory_space<vmem>>, vector<1x1x1x128xbf16>,
    return
  }
  func.func @transform_0(%arg0: i32) -> (i32, i32, i32, i32) {
    %c0_i32 = arith.constant 0 : i32
    %c0_i32_0 = arith.constant 0 : i32
    %c0_i32_1 = arith.constant 0 : i32
    %c0_i32_2 = arith.constant 0 : i32
    return %arg0, %c0_i32, %c0_i32_0, %c0_i32_1 : i32, i32, i32, i32
  }
  func.func @transform_1(%arg0: i32) -> (i32, i32) {
    %c0_i32 = arith.constant 0 : i32
    %c0_i32_0 = arith.constant 0 : i32
    %c0_i32_1 = arith.constant 0 : i32
    return %c0_i32, %c0_i32_0 : i32, i32
  }
  func.func @transform_2(%arg0: i32) -> (i32, i32) {
    %c0_i32 = arith.constant 0 : i32
    %c0_i32_0 = arith.constant 0 : i32
    %c0_i32_1 = arith.constant 0 : i32
    return %c0_i32, %c0_i32_0 : i32, i32
  }
  func.func @transform_3(%arg0: i32) -> (i32, i32, i32, i32) {
    %c0_i32 = arith.constant 0 : i32
    %c0_i32_0 = arith.constant 0 : i32
    %c0_i32_1 = arith.constant 0 : i32
    %c0_i32_2 = arith.constant 0 : i32
    return %arg0, %c0_i32, %c0_i32_0, %c0_i32_1 : i32, i32, i32, i32
  }
}

module attributes {stable_mosaic.version = 11 : i64} {
  func.func @_fc_head_kernel(%arg0: i32, %arg1: memref<16x128xbf16, #tpu.memory_space<vmem>>, %arg2: memref<128x512xbf16, #tpu.memory_space<vmem>>, %arg3: memref<1x512xf32, #tpu.memory_space<vmem>>, %arg4: memref<512x384xbf16, #tpu.memory_space<vmem>>, %arg5: memref<1x384xf32, #tpu.memory_space<vmem>>, %arg6: memref<16x384xf32, #tpu.memory_space<vmem>>) attributes {dimension_semantics = [#tpu.dimension_semantics<parallel>], iteration_bounds = array<i64: 1>, scalar_prefetch = 0 : i64, scratch_operands = 0 : i64, tpu.core_type = #tpu.core_type<tc>, window_params = [{transform_indices = @transform_0, window_bounds = array<i64: 16, 128>}, {pipeline_mode = #tpu.pipeline_mode<synchronous>, transform_indices = @transform_1, window_bounds = array<i64: 128, 512>}, {pipeline_mode = #tpu.pipeline_mode<synchronous>, transform_indices = @transform_2, window_bounds = array<i64: 1, 512>}, {pipeline_mode = #tpu.pipeline_mode<synchronous>, transform_indices = @transform_3, window_bounds = array<i64: 512, 384>}, {pipeline_mode = #tpu.pipeline_mode<synchronous>, transform_indices = @transform_4, window_bounds = array<i64: 1, 384>}, {transform_indices = @transform_5, window_bounds = array<i64: 16, 384>}]} {
    %c0 = arith.constant 0 : index
    %c0_0 = arith.constant 0 : index
    %0 = vector.load %arg1[%c0, %c0_0] : memref<16x128xbf16, #tpu.memory_space<vmem>>, vector<16x128xbf16>
    %c0_1 = arith.constant 0 : index
    %c0_2 = arith.constant 0 : index
    %1 = vector.load %arg2[%c0_1, %c0_2] : memref<128x512xbf16, #tpu.memory_space<vmem>>, vector<128x512xbf16>
    %cst = arith.constant dense<0.000000e+00> : vector<16x512xf32>
    %2 = tpu.matmul %0, %1, %cst {dimension_numbers = #tpu.dot_dimension_numbers<[1], [0], [0], [1], [0, 0, 1, 1], [], []>} : vector<16x128xbf16>, vector<128x512xbf16>, vector<16x512xf32> -> vector<16x512xf32>
    %c0_3 = arith.constant 0 : index
    %c0_4 = arith.constant 0 : index
    %3 = vector.load %arg3[%c0_3, %c0_4] : memref<1x512xf32, #tpu.memory_space<vmem>>, vector<1x512xf32>
    %4 = vector.broadcast %3 : vector<1x512xf32> to vector<16x512xf32>
    %5 = arith.addf %2, %4 : vector<16x512xf32>
    %cst_5 = arith.constant 0.000000e+00 : f32
    %6 = vector.broadcast %cst_5 : f32 to vector<16x512xf32>
    %7 = arith.maximumf %5, %6 : vector<16x512xf32>
    %8 = arith.truncf %7 : vector<16x512xf32> to vector<16x512xbf16>
    %c0_6 = arith.constant 0 : index
    %c0_7 = arith.constant 0 : index
    %9 = vector.load %arg4[%c0_6, %c0_7] : memref<512x384xbf16, #tpu.memory_space<vmem>>, vector<512x384xbf16>
    %cst_8 = arith.constant dense<0.000000e+00> : vector<16x384xf32>
    %10 = tpu.matmul %8, %9, %cst_8 {dimension_numbers = #tpu.dot_dimension_numbers<[1], [0], [0], [1], [0, 0, 1, 1], [], []>} : vector<16x512xbf16>, vector<512x384xbf16>, vector<16x384xf32> -> vector<16x384xf32>
    %c0_9 = arith.constant 0 : index
    %c0_10 = arith.constant 0 : index
    %11 = vector.load %arg5[%c0_9, %c0_10] : memref<1x384xf32, #tpu.memory_space<vmem>>, vector<1x384xf32>
    %12 = vector.broadcast %11 : vector<1x384xf32> to vector<16x384xf32>
    %13 = arith.addf %10, %12 : vector<16x384xf32>
    %14 = vector.extract_strided_slice %13 {offsets = [0, 0], sizes = [16, 128], strides = [1, 1]} : vector<16x384xf32> to vector<16x128xf32>
    %cst_11 = arith.constant dense<0xFF800000> : vector<16xf32>
    %15 = vector.multi_reduction <maximumf>, %14, %cst_11 [1] : vector<16x128xf32> to vector<16xf32>
    %16 = vector.shape_cast %15 : vector<16xf32> to vector<16x1xf32>
    %17 = vector.broadcast %16 : vector<16x1xf32> to vector<16x128xf32>
    %18 = arith.subf %14, %17 : vector<16x128xf32>
    %19 = math.exp %18 : vector<16x128xf32>
    %cst_12 = arith.constant dense<0.000000e+00> : vector<16xf32>
    %20 = vector.multi_reduction <add>, %19, %cst_12 [1] : vector<16x128xf32> to vector<16xf32>
    %21 = vector.shape_cast %20 : vector<16xf32> to vector<16x1xf32>
    %22 = vector.broadcast %21 : vector<16x1xf32> to vector<16x128xf32>
    %23 = arith.divf %19, %22 : vector<16x128xf32>
    %c0_13 = arith.constant 0 : index
    %c0_14 = arith.constant 0 : index
    %24 = vector.load %arg6[%c0_13, %c0_14] : memref<16x384xf32, #tpu.memory_space<vmem>>, vector<16x128xf32>
    tpu.vector_store %arg6[%c0_13, %c0_14], %23 {strides = array<i32>} : memref<16x384xf32, #tpu.memory_space<vmem>>, vector<16x128xf32>,
    %25 = vector.extract_strided_slice %13 {offsets = [0, 128], sizes = [16, 128], strides = [1, 1]} : vector<16x384xf32> to vector<16x128xf32>
    %cst_15 = arith.constant dense<0xFF800000> : vector<16xf32>
    %26 = vector.multi_reduction <maximumf>, %25, %cst_15 [1] : vector<16x128xf32> to vector<16xf32>
    %27 = vector.shape_cast %26 : vector<16xf32> to vector<16x1xf32>
    %28 = vector.broadcast %27 : vector<16x1xf32> to vector<16x128xf32>
    %29 = arith.subf %25, %28 : vector<16x128xf32>
    %30 = math.exp %29 : vector<16x128xf32>
    %cst_16 = arith.constant dense<0.000000e+00> : vector<16xf32>
    %31 = vector.multi_reduction <add>, %30, %cst_16 [1] : vector<16x128xf32> to vector<16xf32>
    %32 = vector.shape_cast %31 : vector<16xf32> to vector<16x1xf32>
    %33 = vector.broadcast %32 : vector<16x1xf32> to vector<16x128xf32>
    %34 = arith.divf %30, %33 : vector<16x128xf32>
    %c0_17 = arith.constant 0 : index
    %c128 = arith.constant 128 : index
    %35 = vector.load %arg6[%c0_17, %c128] : memref<16x384xf32, #tpu.memory_space<vmem>>, vector<16x128xf32>
    tpu.vector_store %arg6[%c0_17, %c128], %34 {strides = array<i32>} : memref<16x384xf32, #tpu.memory_space<vmem>>, vector<16x128xf32>,
    %36 = vector.extract_strided_slice %13 {offsets = [0, 256], sizes = [16, 128], strides = [1, 1]} : vector<16x384xf32> to vector<16x128xf32>
    %cst_18 = arith.constant dense<0xFF800000> : vector<16xf32>
    %37 = vector.multi_reduction <maximumf>, %36, %cst_18 [1] : vector<16x128xf32> to vector<16xf32>
    %38 = vector.shape_cast %37 : vector<16xf32> to vector<16x1xf32>
    %39 = vector.broadcast %38 : vector<16x1xf32> to vector<16x128xf32>
    %40 = arith.subf %36, %39 : vector<16x128xf32>
    %41 = math.exp %40 : vector<16x128xf32>
    %cst_19 = arith.constant dense<0.000000e+00> : vector<16xf32>
    %42 = vector.multi_reduction <add>, %41, %cst_19 [1] : vector<16x128xf32> to vector<16xf32>
    %43 = vector.shape_cast %42 : vector<16xf32> to vector<16x1xf32>
    %44 = vector.broadcast %43 : vector<16x1xf32> to vector<16x128xf32>
    %45 = arith.divf %41, %44 : vector<16x128xf32>
    %c0_20 = arith.constant 0 : index
    %c256 = arith.constant 256 : index
    %46 = vector.load %arg6[%c0_20, %c256] : memref<16x384xf32, #tpu.memory_space<vmem>>, vector<16x128xf32>
    tpu.vector_store %arg6[%c0_20, %c256], %45 {strides = array<i32>} : memref<16x384xf32, #tpu.memory_space<vmem>>, vector<16x128xf32>,
    return
  }
  func.func @transform_0(%arg0: i32) -> (i32, i32) {
    %c0_i32 = arith.constant 0 : i32
    %c0_i32_0 = arith.constant 0 : i32
    return %arg0, %c0_i32 : i32, i32
  }
  func.func @transform_1(%arg0: i32) -> (i32, i32) {
    %c0_i32 = arith.constant 0 : i32
    %c0_i32_0 = arith.constant 0 : i32
    %c0_i32_1 = arith.constant 0 : i32
    return %c0_i32, %c0_i32_0 : i32, i32
  }
  func.func @transform_2(%arg0: i32) -> (i32, i32) {
    %c0_i32 = arith.constant 0 : i32
    %c0_i32_0 = arith.constant 0 : i32
    %c0_i32_1 = arith.constant 0 : i32
    return %c0_i32, %c0_i32_0 : i32, i32
  }
  func.func @transform_3(%arg0: i32) -> (i32, i32) {
    %c0_i32 = arith.constant 0 : i32
    %c0_i32_0 = arith.constant 0 : i32
    %c0_i32_1 = arith.constant 0 : i32
    return %c0_i32, %c0_i32_0 : i32, i32
  }
  func.func @transform_4(%arg0: i32) -> (i32, i32) {
    %c0_i32 = arith.constant 0 : i32
    %c0_i32_0 = arith.constant 0 : i32
    %c0_i32_1 = arith.constant 0 : i32
    return %c0_i32, %c0_i32_0 : i32, i32
  }
  func.func @transform_5(%arg0: i32) -> (i32, i32) {
    %c0_i32 = arith.constant 0 : i32
    %c0_i32_0 = arith.constant 0 : i32
    return %arg0, %c0_i32 : i32, i32
  }
}

</mosaic_0001>

<llo_original>
// kernel: dqn_distributional_forward.4
$region0: #{dqn_distributional_forward.4}
  #allocation0 [shape = 'u32[]', space=smem, size = 0x4, offset = 0x4, fixed_abs, tag = 'smem constant byte address 0x4 - core index']
  #allocation1 [shape = 'u32[144,128]{1,0:T(1,128)}', space=vmem, size = 0x12000, scoped, tag = 'internal scratch']
  %s0 = inlined_call_operand.vmem [shape: bf16[2,9,9,128], index: 0, kind: input, shape index: {}]
  %s1 = inlined_call_operand.vmem [shape: bf16[512,128], index: 1, kind: input, shape index: {}]
  %s2 = inlined_call_operand.vmem [shape: f32[1,128], index: 2, kind: input, shape index: {}]
  %s3 = inlined_call_operand.vmem [shape: bf16[2,8,8,128], index: 3, kind: output, shape index: {}]
  %s4 = sld [smem:[#allocation0]]
  $region45: #{dqn_distributional_forward.4} parent=0
    _
  %s6 = ssub.s32 1, %s4
  %s7 = scalar_select 0, %s6, %s4
  loop: start=0, step=1, limit=4
  $region2: #{dqn_distributional_forward.4} parent=0 // loop_pre_header
    _
  $region3: #{dqn_distributional_forward.4} parent=0 // loop_header
    %s9 = sphi 0, %s13
    %p10 = scmp.ge.s32.totalorder %s9, 4
    %s19 = sphi 0, %s21
    %s22 = sphi 0, %s19
    %s23 = sphi 0, %s22
    %s39 = sphi 0, %s23
    %s43 = sphi 0, %s43
    %s45 = sphi 0, %s43
    %s46 = sphi 0, %s45
    %s60 = sphi 0, %s46
    %s64 = sphi 0, %s64
    %s66 = sphi 0, %s64
    %s67 = sphi 0, %s66
    %s81 = sphi 0, %s67
    %s87 = sphi 0, %s89
    %s90 = sphi 0, %s87
    %s91 = sphi 0, %s90
    %s107 = sphi 0, %s91
  $region4: #{dqn_distributional_forward.4} parent=0 // loop_header_branch
    %12 = sbr.rel (%p10) target = $region8
  $region5: #{dqn_distributional_forward.4} parent=0 // loop_body
    %s14 = ssub.s32 %s9, 1
    %s15 = ssub.s32 %s9, 2
    %s16 = sadd.s32 %s9, 1
    %s17 = ssub.s32 %s9, %s16
    %p18 = scmp.eq.s32.totalorder %s17, 0
    %s20 = sadd.s32 %s19, 1
    %s21 = scalar_select %p18, %s19, %s20
    %p24 = pneg %p18
    %p25 = scmp.eq.s32.totalorder %s9, 1
    %p26 = por %p24, %p25
    %p27 = scmp.ne.s32.totalorder %s19, %s22
    %p28 = scmp.eq.s32.totalorder %s9, 0
    %p29 = por %p27, %p28
    %p30 = scmp.ne.s32.totalorder %s19, %s22
    %p31 = scmp.eq.s32.totalorder %s14, 1
    %p32 = por %p30, %p31
    %p33 = scmp.ne.s32.totalorder %s22, %s23
    %p34 = scmp.eq.s32.totalorder %s14, 0
    %p35 = por %p33, %p34
    %p36 = scmp.ne.s32.totalorder %s22, %s23
    %p37 = scmp.eq.s32.totalorder %s15, 1
    %p38 = por %p36, %p37
    %p40 = scmp.ne.s32.totalorder %s23, %s39
    %p41 = scmp.eq.s32.totalorder %s15, 0
    %p42 = por %p40, %p41
    %s44 = sadd.s32 %s43, 1
    %p47 = scmp.eq.s32.totalorder %s9, 1
    %p48 = scmp.ne.s32.totalorder %s43, %s45
    %p49 = scmp.eq.s32.totalorder %s9, 0
    %p50 = por %p48, %p49
    %p51 = scmp.ne.s32.totalorder %s43, %s45
    %p52 = scmp.eq.s32.totalorder %s14, 1
    %p53 = por %p51, %p52
    %p54 = scmp.ne.s32.totalorder %s45, %s46
    %p55 = scmp.eq.s32.totalorder %s14, 0
    %p56 = por %p54, %p55
    %p57 = scmp.ne.s32.totalorder %s45, %s46
    %p58 = scmp.eq.s32.totalorder %s15, 1
    %p59 = por %p57, %p58
    %p61 = scmp.ne.s32.totalorder %s46, %s60
    %p62 = scmp.eq.s32.totalorder %s15, 0
    %p63 = por %p61, %p62
    %s65 = sadd.s32 %s64, 1
    %p68 = scmp.eq.s32.totalorder %s9, 1
    %p69 = scmp.ne.s32.totalorder %s64, %s66
    %p70 = scmp.eq.s32.totalorder %s9, 0
    %p71 = por %p69, %p70
    %p72 = scmp.ne.s32.totalorder %s64, %s66
    %p73 = scmp.eq.s32.totalorder %s14, 1
    %p74 = por %p72, %p73
    %p75 = scmp.ne.s32.totalorder %s66, %s67
    %p76 = scmp.eq.s32.totalorder %s14, 0
    %p77 = por %p75, %p76
    %p78 = scmp.ne.s32.totalorder %s66, %s67
    %p79 = scmp.eq.s32.totalorder %s15, 1
    %p80 = por %p78, %p79
    %p82 = scmp.ne.s32.totalorder %s67, %s81
    %p83 = scmp.eq.s32.totalorder %s15, 0
    %p84 = por %p82, %p83
    %s85 = ssub.s32 %s9, %s16
    %p86 = scmp.eq.s32.totalorder %s85, 0
    %s88 = sadd.s32 %s87, 1
    %s89 = scalar_select %p86, %s87, %s88
    %p92 = pneg %p86
    %p93 = scmp.eq.s32.totalorder %s9, 1
    %p94 = por %p92, %p93
    %p95 = scmp.ne.s32.totalorder %s87, %s90
    %p96 = scmp.eq.s32.totalorder %s9, 0
    %p97 = por %p95, %p96
    %p98 = scmp.ne.s32.totalorder %s87, %s90
    %p99 = scmp.eq.s32.totalorder %s14, 1
    %p100 = por %p98, %p99
    %p101 = scmp.ne.s32.totalorder %s90, %s91
    %p102 = scmp.eq.s32.totalorder %s14, 0
    %p103 = por %p101, %p102
    %p104 = scmp.ne.s32.totalorder %s90, %s91
    %p105 = scmp.eq.s32.totalorder %s15, 1
    %p106 = por %p104, %p105
    %p108 = scmp.ne.s32.totalorder %s91, %s107
    %p109 = scmp.eq.s32.totalorder %s15, 0
    %p110 = por %p108, %p109
    %p111 = scmp.le.s32.totalorder 1, %s9
    %p112 = scmp.lt.s32.totalorder %s9, 3
    %p113 = pnand %p111, %p112
    %p114 = pneg %p113
    // Predicated region
    $region9: #{dqn_distributional_forward.4} parent=5 // pred_check
      _
    $region10: #{dqn_distributional_forward.4} parent=5 // pred_check_branch
      %116 = sbr.rel (%p113) target = $region12
    $region11: #{dqn_distributional_forward.4} parent=5 // pred_region
      %s117 = ssub.s32 %s9, 1
      // Predicated region
      $region13: #{dqn_distributional_forward.4} parent=11 // pred_check
        %p118 = pneg %p56
      $region14: #{dqn_distributional_forward.4} parent=11 // pred_check_branch
        %120 = sbr.rel (%p118) target = $region16
      $region15: #{dqn_distributional_forward.4} parent=11 // pred_region
        _
      $region16: #{dqn_distributional_forward.4} parent=11 // pred_fallthru
        _
      // Predicated region
      $region17: #{dqn_distributional_forward.4} parent=11 // pred_check
        %p121 = pneg %p77
      $region18: #{dqn_distributional_forward.4} parent=11 // pred_check_branch
        %123 = sbr.rel (%p121) target = $region20
      $region19: #{dqn_distributional_forward.4} parent=11 // pred_region
        _
      $region20: #{dqn_distributional_forward.4} parent=11 // pred_fallthru
        _
    $region12: #{dqn_distributional_forward.4} parent=5 // pred_fallthru
      _
    %p124 = scmp.lt.s32.totalorder %s9, 2
    // Predicated region
    $region21: #{dqn_distributional_forward.4} parent=5 // pred_check
      %p125 = pneg %p124
    $region22: #{dqn_distributional_forward.4} parent=5 // pred_check_branch
      %127 = sbr.rel (%p125) target = $region24
    $region23: #{dqn_distributional_forward.4} parent=5 // pred_region
      // Predicated region
      $region25: #{dqn_distributional_forward.4} parent=23 // pred_check
        %p128 = pneg %p29
      $region26: #{dqn_distributional_forward.4} parent=23 // pred_check_branch
        %130 = sbr.rel (%p128) target = $region28
      $region27: #{dqn_distributional_forward.4} parent=23 // pred_region
        %p131 = scmp.lt.s32.totalorder %s9, 1
        %s132 = scalar_select %p131, %s9, 1
        %s133 = smul.addr %s132, 18
        %s134 = smul.addr %s133, 4
        %s135 = scalar_lea.vmem %s0, %s134
      $region28: #{dqn_distributional_forward.4} parent=23 // pred_fallthru
        _
    $region24: #{dqn_distributional_forward.4} parent=5 // pred_fallthru
      _
    %p136 = scmp.le.s32.totalorder 1, %s9
    %p137 = scmp.lt.s32.totalorder %s9, 3
    %p138 = pnand %p136, %p137
    %p139 = pneg %p138
    // Predicated region
    $region29: #{dqn_distributional_forward.4} parent=5 // pred_check
      _
    $region30: #{dqn_distributional_forward.4} parent=5 // pred_check_branch
      %141 = sbr.rel (%p138) target = $region32
    $region31: #{dqn_distributional_forward.4} parent=5 // pred_region
      %s142 = ssub.s32 %s9, 1
      %p143 = scmp.lt.s32.totalorder %s14, 1
      %s144 = scalar_select %p143, %s14, 1
      %s145 = smul.addr %s144, 18
      %s146 = smul.addr %s145, 4
      %s147 = scalar_lea.vmem %s0, %s146
      %p148 = pneg %p35
      %p149 = pneg %p32
      %p150 = pneg %p56
      %p151 = pneg %p53
      %p152 = pneg %p77
      %p153 = pneg %p74
      %p154 = pneg %p103
      %p155 = pneg %p100
      %p156 = scmp.lt.s32.totalorder %s14, 1
      %s157 = scalar_select %p156, %s14, 1
      %s158 = smul.addr %s157, 8
      %s159 = smul.addr %s158, 4
      %s160 = scalar_lea.vmem %s3, %s159
      %p161 = scmp.lt.s32.totalorder %s14, 1
      %s162 = scalar_select %p161, %s14, 1
      %s163 = smul.addr %s162, 18
      %s164 = smul.addr %s163, 4
      %s165 = scalar_lea.vmem %s0, %s164
      %p166 = scmp.lt.s32.totalorder %s14, 1
      %s167 = scalar_select %p166, %s14, 1
      %s168 = smul.addr %s167, 8
      %s169 = smul.addr %s168, 4
      %s170 = scalar_lea.vmem %s3, %s169
      %v172 = vld [vmem:[%s2] sm:$0x1]
      %v173 = vld [vmem:[%s165] sm:$0xf]
      %v174 = vld [vmem:[%s1] sm:$0xf]
      %v175 = vld [vmem:[%s1 + $0x4] sm:$0xf]
      %v176 = vld [vmem:[%s1 + $0x8] sm:$0xf]
      %v177 = vld [vmem:[%s1 + $0xc] sm:$0xf]
      %v178 = vld [vmem:[%s1 + $0x10] sm:$0xf]
      %v179 = vld [vmem:[%s1 + $0x14] sm:$0xf]
      %v180 = vld [vmem:[%s1 + $0x18] sm:$0xf]
      %v181 = vld [vmem:[%s1 + $0x1c] sm:$0xf]
      %v182 = vld [vmem:[%s1 + $0x20] sm:$0xf]
      %v183 = vld [vmem:[%s1 + $0x24] sm:$0xf]
      %v184 = vld [vmem:[%s1 + $0x28] sm:$0xf]
      %v185 = vld [vmem:[%s1 + $0x2c] sm:$0xf]
      %v186 = vld [vmem:[%s1 + $0x30] sm:$0xf]
      %v187 = vld [vmem:[%s1 + $0x34] sm:$0xf]
      %v188 = vld [vmem:[%s1 + $0x38] sm:$0xf]
      %v189 = vld [vmem:[%s1 + $0x3c] sm:$0xf]
      %v190 = vld [vmem:[%s165 + $0x4] sm:$0x1]
      %v191 = vld [vmem:[%s1 + $0x40] sm:$0xf]
      %v192 = vld [vmem:[%s1 + $0x44] sm:$0xf]
      %v193 = vld [vmem:[%s1 + $0x48] sm:$0xf]
      %v194 = vld [vmem:[%s1 + $0x4c] sm:$0xf]
      %v195 = vld [vmem:[%s1 + $0x50] sm:$0xf]
      %v196 = vld [vmem:[%s1 + $0x54] sm:$0xf]
      %v197 = vld [vmem:[%s1 + $0x58] sm:$0xf]
      %v198 = vld [vmem:[%s1 + $0x5c] sm:$0xf]
      %v199 = vld [vmem:[%s1 + $0x60] sm:$0xf]
      %v200 = vld [vmem:[%s1 + $0x64] sm:$0xf]
      %v201 = vld [vmem:[%s1 + $0x68] sm:$0xf]
      %v202 = vld [vmem:[%s1 + $0x6c] sm:$0xf]
      %v203 = vld [vmem:[%s1 + $0x70] sm:$0xf]
      %v204 = vld [vmem:[%s1 + $0x74] sm:$0xf]
      %v205 = vld [vmem:[%s1 + $0x78] sm:$0xf]
      %v206 = vld [vmem:[%s1 + $0x7c] sm:$0xf]
      %v209 = vunpack.c.l.b16 %v173
      %v210 = vunpack.c.l.b16 %v190
      %v211 = vpack.c.b16 %v210, %v209
      %v213 = vshrl.u32 %v211, 16
      %v215 = vshll.u32 %v211, 16
      %v217 = vrot.slane %v215, 1
      %v218 = vor.u32 %v213, %v217
      %v236 = vunpack.c.l.b16 %v191
      %v237 = vunpack.c.l.b16 %v192
      %v238 = vunpack.c.l.b16 %v193
      %v239 = vunpack.c.l.b16 %v194
      %v240 = vunpack.c.l.b16 %v195
      %v241 = vunpack.c.l.b16 %v196
      %v242 = vunpack.c.l.b16 %v197
      %v243 = vunpack.c.l.b16 %v198
      %v244 = vunpack.c.l.b16 %v199
      %v245 = vunpack.c.l.b16 %v200
      %v246 = vunpack.c.l.b16 %v201
      %v247 = vunpack.c.l.b16 %v202
      %v248 = vunpack.c.l.b16 %v203
      %v249 = vunpack.c.l.b16 %v204
      %v250 = vunpack.c.l.b16 %v205
      %v251 = vunpack.c.l.b16 %v206
      %v252 = vpack.c.b16 %v237, %v236
      %v253 = vpack.c.b16 %v239, %v238
      %v254 = vpack.c.b16 %v241, %v240
      %v255 = vpack.c.b16 %v243, %v242
      %v256 = vpack.c.b16 %v245, %v244
      %v257 = vpack.c.b16 %v247, %v246
      %v258 = vpack.c.b16 %v249, %v248
      %v259 = vpack.c.b16 %v251, %v250
      %268 = vmatprep.subr.bf16.mxu0 0
      %269 = vmatpush1.bf16.msra.mxu0 %v252
      %270 = vmatprep.subr.bf16.mxu0 0
      %271 = vmatpush1.bf16.msra.mxu0 %v253
      %272 = vmatprep.subr.bf16.mxu0 0
      %273 = vmatpush1.bf16.msra.mxu0 %v254
      %274 = vmatprep.subr.bf16.mxu0 0
      %275 = vmatpush1.bf16.msra.mxu0 %v255
      %276 = vmatprep.subr.bf16.mxu0 0
      %277 = vmatpush1.bf16.msra.mxu0 %v256
      %278 = vmatprep.subr.bf16.mxu0 0
      %279 = vmatpush1.bf16.msra.mxu0 %v257
      %280 = vmatprep.subr.bf16.mxu0 0
      %281 = vmatpush1.bf16.msra.mxu0 %v258
      %282 = vmatprep.subr.bf16.mxu0 0
      %283 = vmatpush1.bf16.msra.mxu0 %v259
      %284 = vmatprep.subr.bf16.mxu0 0
      %285 = vmatpush1.bf16.msra.mxu0 0
      %286 = vmatprep.subr.bf16.mxu0 0
      %287 = vmatpush1.bf16.msra.mxu0 0
      %288 = vmatprep.subr.bf16.mxu0 0
      %289 = vmatpush1.bf16.msra.mxu0 0
      %290 = vmatprep.subr.bf16.mxu0 0
      %291 = vmatpush1.bf16.msra.mxu0 0
      %292 = vmatprep.subr.bf16.mxu0 0
      %293 = vmatpush1.bf16.msra.mxu0 0
      %294 = vmatprep.subr.bf16.mxu0 0
      %295 = vmatpush1.bf16.msra.mxu0 0
      %296 = vmatprep.subr.bf16.mxu0 0
      %297 = vmatpush1.bf16.msra.mxu0 0
      %298 = vmatprep.subr.bf16.mxu0 0
      %299 = vmatpush1.bf16.msra.mxu0 0
      %300 = vmatprep.mubr.bf16.mxu0 0
      %301 = vmatmul.mubr.bf16.gmra.mrb[0].mxu0 %v218
      %v302 = vpop.f32.mrb[0].mxu0
      %v303 = vadd.f32 0.0, %v302
      %v304 = vpop.f32.mrb[0].mxu0
      %v305 = vpop.f32.mrb[0].mxu0
      %v306 = vpop.f32.mrb[0].mxu0
      %307 = vdwg.mxu0
      %v324 = vunpack.c.l.b16 %v174
      %v325 = vunpack.c.l.b16 %v175
      %v326 = vunpack.c.l.b16 %v176
      %v327 = vunpack.c.l.b16 %v177
      %v328 = vunpack.c.l.b16 %v178
      %v329 = vunpack.c.l.b16 %v179
      %v330 = vunpack.c.l.b16 %v180
      %v331 = vunpack.c.l.b16 %v181
      %v332 = vunpack.c.l.b16 %v182
      %v333 = vunpack.c.l.b16 %v183
      %v334 = vunpack.c.l.b16 %v184
      %v335 = vunpack.c.l.b16 %v185
      %v336 = vunpack.c.l.b16 %v186
      %v337 = vunpack.c.l.b16 %v187
      %v338 = vunpack.c.l.b16 %v188
      %v339 = vunpack.c.l.b16 %v189
      %v340 = vpack.c.b16 %v325, %v324
      %v341 = vpack.c.b16 %v327, %v326
      %v342 = vpack.c.b16 %v329, %v328
      %v343 = vpack.c.b16 %v331, %v330
      %v344 = vpack.c.b16 %v333, %v332
      %v345 = vpack.c.b16 %v335, %v334
      %v346 = vpack.c.b16 %v337, %v336
      %v347 = vpack.c.b16 %v339, %v338
      %356 = vmatprep.subr.bf16.mxu0 0
      %357 = vmatpush1.bf16.msra.mxu0 %v340
      %358 = vmatprep.subr.bf16.mxu0 0
      %359 = vmatpush1.bf16.msra.mxu0 %v341
      %360 = vmatprep.subr.bf16.mxu0 0
      %361 = vmatpush1.bf16.msra.mxu0 %v342
      %362 = vmatprep.subr.bf16.mxu0 0
      %363 = vmatpush1.bf16.msra.mxu0 %v343
      %364 = vmatprep.subr.bf16.mxu0 0
      %365 = vmatpush1.bf16.msra.mxu0 %v344
      %366 = vmatprep.subr.bf16.mxu0 0
      %367 = vmatpush1.bf16.msra.mxu0 %v345
      %368 = vmatprep.subr.bf16.mxu0 0
      %369 = vmatpush1.bf16.msra.mxu0 %v346
      %370 = vmatprep.subr.bf16.mxu0 0
      %371 = vmatpush1.bf16.msra.mxu0 %v347
      %372 = vmatprep.subr.bf16.mxu0 0
      %373 = vmatpush1.bf16.msra.mxu0 0
      %374 = vmatprep.subr.bf16.mxu0 0
      %375 = vmatpush1.bf16.msra.mxu0 0
      %376 = vmatprep.subr.bf16.mxu0 0
      %377 = vmatpush1.bf16.msra.mxu0 0
      %378 = vmatprep.subr.bf16.mxu0 0
      %379 = vmatpush1.bf16.msra.mxu0 0
      %380 = vmatprep.subr.bf16.mxu0 0
      %381 = vmatpush1.bf16.msra.mxu0 0
      %382 = vmatprep.subr.bf16.mxu0 0
      %383 = vmatpush1.bf16.msra.mxu0 0
      %384 = vmatprep.subr.bf16.mxu0 0
      %385 = vmatpush1.bf16.msra.mxu0 0
      %386 = vmatprep.subr.bf16.mxu0 0
      %387 = vmatpush1.bf16.msra.mxu0 0
      %388 = vmatprep.mubr.bf16.mxu0 0
      %389 = vmatmul.mubr.bf16.gmra.mrb[0].mxu0 %v173
      %v390 = vpop.f32.mrb[0].mxu0
      %v391 = vadd.f32 %v303, %v390
      %v392 = vpop.f32.mrb[0].mxu0
      %v393 = vpop.f32.mrb[0].mxu0
      %v394 = vpop.f32.mrb[0].mxu0
      %395 = vdwg.mxu0
      %s396 = scalar_lea.vmem %s165, 8
      %v397 = vld [vmem:[%s396] sm:$0xf]
      %v398 = vld [vmem:[%s1 + $0x80] sm:$0xf]
      %v399 = vld [vmem:[%s1 + $0x84] sm:$0xf]
      %v400 = vld [vmem:[%s1 + $0x88] sm:$0xf]
      %v401 = vld [vmem:[%s1 + $0x8c] sm:$0xf]
      %v402 = vld [vmem:[%s1 + $0x90] sm:$0xf]
      %v403 = vld [vmem:[%s1 + $0x94] sm:$0xf]
      %v404 = vld [vmem:[%s1 + $0x98] sm:$0xf]
      %v405 = vld [vmem:[%s1 + $0x9c] sm:$0xf]
      %v406 = vld [vmem:[%s1 + $0xa0] sm:$0xf]
      %v407 = vld [vmem:[%s1 + $0xa4] sm:$0xf]
      %v408 = vld [vmem:[%s1 + $0xa8] sm:$0xf]
      %v409 = vld [vmem:[%s1 + $0xac] sm:$0xf]
      %v410 = vld [vmem:[%s1 + $0xb0] sm:$0xf]
      %v411 = vld [vmem:[%s1 + $0xb4] sm:$0xf]
      %v412 = vld [vmem:[%s1 + $0xb8] sm:$0xf]
      %v413 = vld [vmem:[%s1 + $0xbc] sm:$0xf]
      %v430 = vunpack.c.l.b16 %v398
      %v431 = vunpack.c.l.b16 %v399
      %v432 = vunpack.c.l.b16 %v400
      %v433 = vunpack.c.l.b16 %v401
      %v434 = vunpack.c.l.b16 %v402
      %v435 = vunpack.c.l.b16 %v403
      %v436 = vunpack.c.l.b16 %v404
      %v437 = vunpack.c.l.b16 %v405
      %v438 = vunpack.c.l.b16 %v406
      %v439 = vunpack.c.l.b16 %v407
      %v440 = vunpack.c.l.b16 %v408
      %v441 = vunpack.c.l.b16 %v409
      %v442 = vunpack.c.l.b16 %v410
      %v443 = vunpack.c.l.b16 %v411
      %v444 = vunpack.c.l.b16 %v412
      %v445 = vunpack.c.l.b16 %v413
      %v446 = vpack.c.b16 %v431, %v430
      %v447 = vpack.c.b16 %v433, %v432
      %v448 = vpack.c.b16 %v435, %v434
      %v449 = vpack.c.b16 %v437, %v436
      %v450 = vpack.c.b16 %v439, %v438
      %v451 = vpack.c.b16 %v441, %v440
      %v452 = vpack.c.b16 %v443, %v442
      %v453 = vpack.c.b16 %v445, %v444
      %462 = vmatprep.subr.bf16.mxu0 0
      %463 = vmatpush1.bf16.msra.mxu0 %v446
      %464 = vmatprep.subr.bf16.mxu0 0
      %465 = vmatpush1.bf16.msra.mxu0 %v447
      %466 = vmatprep.subr.bf16.mxu0 0
      %467 = vmatpush1.bf16.msra.mxu0 %v448
      %468 = vmatprep.subr.bf16.mxu0 0
      %469 = vmatpush1.bf16.msra.mxu0 %v449
      %470 = vmatprep.subr.bf16.mxu0 0
      %471 = vmatpush1.bf16.msra.mxu0 %v450
      %472 = vmatprep.subr.bf16.mxu0 0
      %473 = vmatpush1.bf16.msra.mxu0 %v451
      %474 = vmatprep.subr.bf16.mxu0 0
      %475 = vmatpush1.bf16.msra.mxu0 %v452
      %476 = vmatprep.subr.bf16.mxu0 0
      %477 = vmatpush1.bf16.msra.mxu0 %v453
      %478 = vmatprep.subr.bf16.mxu0 0
      %479 = vmatpush1.bf16.msra.mxu0 0
      %480 = vmatprep.subr.bf16.mxu0 0
      %481 = vmatpush1.bf16.msra.mxu0 0
      %482 = vmatprep.subr.bf16.mxu0 0
      %483 = vmatpush1.bf16.msra.mxu0 0
      %484 = vmatprep.subr.bf16.mxu0 0
      %485 = vmatpush1.bf16.msra.mxu0 0
      %486 = vmatprep.subr.bf16.mxu0 0
      %487 = vmatpush1.bf16.msra.mxu0 0
      %488 = vmatprep.subr.bf16.mxu0 0
      %489 = vmatpush1.bf16.msra.mxu0 0
      %490 = vmatprep.subr.bf16.mxu0 0
      %491 = vmatpush1.bf16.msra.mxu0 0
      %492 = vmatprep.subr.bf16.mxu0 0
      %493 = vmatpush1.bf16.msra.mxu0 0
      %494 = vmatprep.mubr.bf16.mxu0 0
      %495 = vmatmul.mubr.bf16.gmra.mrb[0].mxu0 %v397
      %v496 = vpop.f32.mrb[0].mxu0
      %v497 = vadd.f32 0.0, %v496
      %v498 = vpop.f32.mrb[0].mxu0
      %v499 = vpop.f32.mrb[0].mxu0
      %v500 = vpop.f32.mrb[0].mxu0
      %501 = vdwg.mxu0
      %v502 = vadd.f32 %v391, %v497
      %v503 = vld [vmem:[%s396] sm:$0xf]
      %v504 = vld [vmem:[%s396 + $0x4] sm:$0x1]
      %v505 = vld [vmem:[%s1 + $0xc0] sm:$0xf]
      %v506 = vld [vmem:[%s1 + $0xc4] sm:$0xf]
      %v507 = vld [vmem:[%s1 + $0xc8] sm:$0xf]
      %v508 = vld [vmem:[%s1 + $0xcc] sm:$0xf]
      %v509 = vld [vmem:[%s1 + $0xd0] sm:$0xf]
      %v510 = vld [vmem:[%s1 + $0xd4] sm:$0xf]
      %v511 = vld [vmem:[%s1 + $0xd8] sm:$0xf]
      %v512 = vld [vmem:[%s1 + $0xdc] sm:$0xf]
      %v513 = vld [vmem:[%s1 + $0xe0] sm:$0xf]
      %v514 = vld [vmem:[%s1 + $0xe4] sm:$0xf]
      %v515 = vld [vmem:[%s1 + $0xe8] sm:$0xf]
      %v516 = vld [vmem:[%s1 + $0xec] sm:$0xf]
      %v517 = vld [vmem:[%s1 + $0xf0] sm:$0xf]
      %v518 = vld [vmem:[%s1 + $0xf4] sm:$0xf]
      %v519 = vld [vmem:[%s1 + $0xf8] sm:$0xf]
      %v520 = vld [vmem:[%s1 + $0xfc] sm:$0xf]
      %v523 = vunpack.c.l.b16 %v503
      %v524 = vunpack.c.l.b16 %v504
      %v525 = vpack.c.b16 %v524, %v523
      %v527 = vshrl.u32 %v525, 16
      %v529 = vshll.u32 %v525, 16
      %v531 = vrot.slane %v529, 1
      %v532 = vor.u32 %v527, %v531
      %v550 = vunpack.c.l.b16 %v505
      %v551 = vunpack.c.l.b16 %v506
      %v552 = vunpack.c.l.b16 %v507
      %v553 = vunpack.c.l.b16 %v508
      %v554 = vunpack.c.l.b16 %v509
      %v555 = vunpack.c.l.b16 %v510
      %v556 = vunpack.c.l.b16 %v511
      %v557 = vunpack.c.l.b16 %v512
      %v558 = vunpack.c.l.b16 %v513
      %v559 = vunpack.c.l.b16 %v514
      %v560 = vunpack.c.l.b16 %v515
      %v561 = vunpack.c.l.b16 %v516
      %v562 = vunpack.c.l.b16 %v517
      %v563 = vunpack.c.l.b16 %v518
      %v564 = vunpack.c.l.b16 %v519
      %v565 = vunpack.c.l.b16 %v520
      %v566 = vpack.c.b16 %v551, %v550
      %v567 = vpack.c.b16 %v553, %v552
      %v568 = vpack.c.b16 %v555, %v554
      %v569 = vpack.c.b16 %v557, %v556
      %v570 = vpack.c.b16 %v559, %v558
      %v571 = vpack.c.b16 %v561, %v560
      %v572 = vpack.c.b16 %v563, %v562
      %v573 = vpack.c.b16 %v565, %v564
      %582 = vmatprep.subr.bf16.mxu0 0
      %583 = vmatpush1.bf16.msra.mxu0 %v566
      %584 = vmatprep.subr.bf16.mxu0 0
      %585 = vmatpush1.bf16.msra.mxu0 %v567
      %586 = vmatprep.subr.bf16.mxu0 0
      %587 = vmatpush1.bf16.msra.mxu0 %v568
      %588 = vmatprep.subr.bf16.mxu0 0
      %589 = vmatpush1.bf16.msra.mxu0 %v569
      %590 = vmatprep.subr.bf16.mxu0 0
      %591 = vmatpush1.bf16.msra.mxu0 %v570
      %592 = vmatprep.subr.bf16.mxu0 0
      %593 = vmatpush1.bf16.msra.mxu0 %v571
      %594 = vmatprep.subr.bf16.mxu0 0
      %595 = vmatpush1.bf16.msra.mxu0 %v572
      %596 = vmatprep.subr.bf16.mxu0 0
      %597 = vmatpush1.bf16.msra.mxu0 %v573
      %598 = vmatprep.subr.bf16.mxu0 0
      %599 = vmatpush1.bf16.msra.mxu0 0
      %600 = vmatprep.subr.bf16.mxu0 0
      %601 = vmatpush1.bf16.msra.mxu0 0
      %602 = vmatprep.subr.bf16.mxu0 0
      %603 = vmatpush1.bf16.msra.mxu0 0
      %604 = vmatprep.subr.bf16.mxu0 0
      %605 = vmatpush1.bf16.msra.mxu0 0
      %606 = vmatprep.subr.bf16.mxu0 0
      %607 = vmatpush1.bf16.msra.mxu0 0
      %608 = vmatprep.subr.bf16.mxu0 0
      %609 = vmatpush1.bf16.msra.mxu0 0
      %610 = vmatprep.subr.bf16.mxu0 0
      %611 = vmatpush1.bf16.msra.mxu0 0
      %612 = vmatprep.subr.bf16.mxu0 0
      %613 = vmatpush1.bf16.msra.mxu0 0
      %614 = vmatprep.mubr.bf16.mxu0 0
      %615 = vmatmul.mubr.bf16.gmra.mrb[0].mxu0 %v532
      %v616 = vpop.f32.mrb[0].mxu0
      %v617 = vadd.f32 0.0, %v616
      %v618 = vpop.f32.mrb[0].mxu0
      %v619 = vpop.f32.mrb[0].mxu0
      %v620 = vpop.f32.mrb[0].mxu0
      %621 = vdwg.mxu0
      %v622 = vadd.f32 %v502, %v617
      %v624 = vlaneseq
      %v625 = vshrl.u32 %v624, 7
      %v626 = vsub.s32 0, %v625
      %v627 = vrot.slane %v172, %v626
      %v629 = vadd.f32 %v622, %v627
      %v630 = vmax.f32 %v629, 0.0
      %v631 = vpack.c.bf16 %v630, %v630
      %632 = vst [vmem:[%s170] sm:$0xf] %v631
      %v633 = vld [vmem:[%s396] sm:$0xf]
      %v634 = vld [vmem:[%s1] sm:$0xf]
      %v635 = vld [vmem:[%s1 + $0x4] sm:$0xf]
      %v636 = vld [vmem:[%s1 + $0x8] sm:$0xf]
      %v637 = vld [vmem:[%s1 + $0xc] sm:$0xf]
      %v638 = vld [vmem:[%s1 + $0x10] sm:$0xf]
      %v639 = vld [vmem:[%s1 + $0x14] sm:$0xf]
      %v640 = vld [vmem:[%s1 + $0x18] sm:$0xf]
      %v641 = vld [vmem:[%s1 + $0x1c] sm:$0xf]
      %v642 = vld [vmem:[%s1 + $0x20] sm:$0xf]
      %v643 = vld [vmem:[%s1 + $0x24] sm:$0xf]
      %v644 = vld [vmem:[%s1 + $0x28] sm:$0xf]
      %v645 = vld [vmem:[%s1 + $0x2c] sm:$0xf]
      %v646 = vld [vmem:[%s1 + $0x30] sm:$0xf]
      %v647 = vld [vmem:[%s1 + $0x34] sm:$0xf]
      %v648 = vld [vmem:[%s1 + $0x38] sm:$0xf]
      %v649 = vld [vmem:[%s1 + $0x3c] sm:$0xf]
      %v650 = vld [vmem:[%s396 + $0x4] sm:$0x1]
      %v651 = vld [vmem:[%s1 + $0x40] sm:$0xf]
      %v652 = vld [vmem:[%s1 + $0x44] sm:$0xf]
      %v653 = vld [vmem:[%s1 + $0x48] sm:$0xf]
      %v654 = vld [vmem:[%s1 + $0x4c] sm:$0xf]
      %v655 = vld [vmem:[%s1 + $0x50] sm:$0xf]
      %v656 = vld [vmem:[%s1 + $0x54] sm:$0xf]
      %v657 = vld [vmem:[%s1 + $0x58] sm:$0xf]
      %v658 = vld [vmem:[%s1 + $0x5c] sm:$0xf]
      %v659 = vld [vmem:[%s1 + $0x60] sm:$0xf]
      %v660 = vld [vmem:[%s1 + $0x64] sm:$0xf]
      %v661 = vld [vmem:[%s1 + $0x68] sm:$0xf]
      %v662 = vld [vmem:[%s1 + $0x6c] sm:$0xf]
      %v663 = vld [vmem:[%s1 + $0x70] sm:$0xf]
      %v664 = vld [vmem:[%s1 + $0x74] sm:$0xf]
      %v665 = vld [vmem:[%s1 + $0x78] sm:$0xf]
      %v666 = vld [vmem:[%s1 + $0x7c] sm:$0xf]
      %v669 = vunpack.c.l.b16 %v633
      %v670 = vunpack.c.l.b16 %v650
      %v671 = vpack.c.b16 %v670, %v669
      %v673 = vshrl.u32 %v671, 16
      %v675 = vshll.u32 %v671, 16
      %v677 = vrot.slane %v675, 1
      %v678 = vor.u32 %v673, %v677
      %v696 = vunpack.c.l.b16 %v651
      %v697 = vunpack.c.l.b16 %v652
      %v698 = vunpack.c.l.b16 %v653
      %v699 = vunpack.c.l.b16 %v654
      %v700 = vunpack.c.l.b16 %v655
      %v701 = vunpack.c.l.b16 %v656
      %v702 = vunpack.c.l.b16 %v657
      %v703 = vunpack.c.l.b16 %v658
      %v704 = vunpack.c.l.b16 %v659
      %v705 = vunpack.c.l.b16 %v660
      %v706 = vunpack.c.l.b16 %v661
      %v707 = vunpack.c.l.b16 %v662
      %v708 = vunpack.c.l.b16 %v663
      %v709 = vunpack.c.l.b16 %v664
      %v710 = vunpack.c.l.b16 %v665
      %v711 = vunpack.c.l.b16 %v666
      %v712 = vpack.c.b16 %v697, %v696
      %v713 = vpack.c.b16 %v699, %v698
      %v714 = vpack.c.b16 %v701, %v700
      %v715 = vpack.c.b16 %v703, %v702
      %v716 = vpack.c.b16 %v705, %v704
      %v717 = vpack.c.b16 %v707, %v706
      %v718 = vpack.c.b16 %v709, %v708
      %v719 = vpack.c.b16 %v711, %v710
      %728 = vmatprep.subr.bf16.mxu0 0
      %729 = vmatpush1.bf16.msra.mxu0 %v712
      %730 = vmatprep.subr.bf16.mxu0 0
      %731 = vmatpush1.bf16.msra.mxu0 %v713
      %732 = vmatprep.subr.bf16.mxu0 0
      %733 = vmatpush1.bf16.msra.mxu0 %v714
      %734 = vmatprep.subr.bf16.mxu0 0
      %735 = vmatpush1.bf16.msra.mxu0 %v715
      %736 = vmatprep.subr.bf16.mxu0 0
      %737 = vmatpush1.bf16.msra.mxu0 %v716
      %738 = vmatprep.subr.bf16.mxu0 0
      %739 = vmatpush1.bf16.msra.mxu0 %v717
      %740 = vmatprep.subr.bf16.mxu0 0
      %741 = vmatpush1.bf16.msra.mxu0 %v718
      %742 = vmatprep.subr.bf16.mxu0 0
      %743 = vmatpush1.bf16.msra.mxu0 %v719
      %744 = vmatprep.subr.bf16.mxu0 0
      %745 = vmatpush1.bf16.msra.mxu0 0
      %746 = vmatprep.subr.bf16.mxu0 0
      %747 = vmatpush1.bf16.msra.mxu0 0
      %748 = vmatprep.subr.bf16.mxu0 0
      %749 = vmatpush1.bf16.msra.mxu0 0
      %750 = vmatprep.subr.bf16.mxu0 0
      %751 = vmatpush1.bf16.msra.mxu0 0
      %752 = vmatprep.subr.bf16.mxu0 0
      %753 = vmatpush1.bf16.msra.mxu0 0
      %754 = vmatprep.subr.bf16.mxu0 0
      %755 = vmatpush1.bf16.msra.mxu0 0
      %756 = vmatprep.subr.bf16.mxu0 0
      %757 = vmatpush1.bf16.msra.mxu0 0
      %758 = vmatprep.subr.bf16.mxu0 0
      %759 = vmatpush1.bf16.msra.mxu0 0
      %760 = vmatprep.mubr.bf16.mxu0 0
      %761 = vmatmul.mubr.bf16.gmra.mrb[0].mxu0 %v678
      %v762 = vpop.f32.mrb[0].mxu0
      %v763 = vadd.f32 0.0, %v762
      %v764 = vpop.f32.mrb[0].mxu0
      %v765 = vpop.f32.mrb[0].mxu0
      %v766 = vpop.f32.mrb[0].mxu0
      %767 = vdwg.mxu0
      %v784 = vunpack.c.l.b16 %v634
      %v785 = vunpack.c.l.b16 %v635
      %v786 = vunpack.c.l.b16 %v636
      %v787 = vunpack.c.l.b16 %v637
      %v788 = vunpack.c.l.b16 %v638
      %v789 = vunpack.c.l.b16 %v639
      %v790 = vunpack.c.l.b16 %v640
      %v791 = vunpack.c.l.b16 %v641
      %v792 = vunpack.c.l.b16 %v642
      %v793 = vunpack.c.l.b16 %v643
      %v794 = vunpack.c.l.b16 %v644
      %v795 = vunpack.c.l.b16 %v645
      %v796 = vunpack.c.l.b16 %v646
      %v797 = vunpack.c.l.b16 %v647
      %v798 = vunpack.c.l.b16 %v648
      %v799 = vunpack.c.l.b16 %v649
      %v800 = vpack.c.b16 %v785, %v784
      %v801 = vpack.c.b16 %v787, %v786
      %v802 = vpack.c.b16 %v789, %v788
      %v803 = vpack.c.b16 %v791, %v790
      %v804 = vpack.c.b16 %v793, %v792
      %v805 = vpack.c.b16 %v795, %v794
      %v806 = vpack.c.b16 %v797, %v796
      %v807 = vpack.c.b16 %v799, %v798
      %816 = vmatprep.subr.bf16.mxu0 0
      %817 = vmatpush1.bf16.msra.mxu0 %v800
      %818 = vmatprep.subr.bf16.mxu0 0
      %819 = vmatpush1.bf16.msra.mxu0 %v801
      %820 = vmatprep.subr.bf16.mxu0 0
      %821 = vmatpush1.bf16.msra.mxu0 %v802
      %822 = vmatprep.subr.bf16.mxu0 0
      %823 = vmatpush1.bf16.msra.mxu0 %v803
      %824 = vmatprep.subr.bf16.mxu0 0
      %825 = vmatpush1.bf16.msra.mxu0 %v804
      %826 = vmatprep.subr.bf16.mxu0 0
      %827 = vmatpush1.bf16.msra.mxu0 %v805
      %828 = vmatprep.subr.bf16.mxu0 0
      %829 = vmatpush1.bf16.msra.mxu0 %v806
      %830 = vmatprep.subr.bf16.mxu0 0
      %831 = vmatpush1.bf16.msra.mxu0 %v807
      %832 = vmatprep.subr.bf16.mxu0 0
      %833 = vmatpush1.bf16.msra.mxu0 0
      %834 = vmatprep.subr.bf16.mxu0 0
      %835 = vmatpush1.bf16.msra.mxu0 0
      %836 = vmatprep.subr.bf16.mxu0 0
      %837 = vmatpush1.bf16.msra.mxu0 0
      %838 = vmatprep.subr.bf16.mxu0 0
      %839 = vmatpush1.bf16.msra.mxu0 0
      %840 = vmatprep.subr.bf16.mxu0 0
      %841 = vmatpush1.bf16.msra.mxu0 0
      %842 = vmatprep.subr.bf16.mxu0 0
      %843 = vmatpush1.bf16.msra.mxu0 0
      %844 = vmatprep.subr.bf16.mxu0 0
      %845 = vmatpush1.bf16.msra.mxu0 0
      %846 = vmatprep.subr.bf16.mxu0 0
      %847 = vmatpush1.bf16.msra.mxu0 0
      %848 = vmatprep.mubr.bf16.mxu0 0
      %849 = vmatmul.mubr.bf16.gmra.mrb[0].mxu0 %v633
      %v850 = vpop.f32.mrb[0].mxu0
      %v851 = vadd.f32 %v763, %v850
      %v852 = vpop.f32.mrb[0].mxu0
      %v853 = vpop.f32.mrb[0].mxu0
      %v854 = vpop.f32.mrb[0].mxu0
      %855 = vdwg.mxu0
      %s856 = scalar_lea.vmem %s165, 16
      %v857 = vld [vmem:[%s856] sm:$0xf]
      %v858 = vld [vmem:[%s1 + $0x80] sm:$0xf]
      %v859 = vld [vmem:[%s1 + $0x84] sm:$0xf]
      %v860 = vld [vmem:[%s1 + $0x88] sm:$0xf]
      %v861 = vld [vmem:[%s1 + $0x8c] sm:$0xf]
      %v862 = vld [vmem:[%s1 + $0x90] sm:$0xf]
      %v863 = vld [vmem:[%s1 + $0x94] sm:$0xf]
      %v864 = vld [vmem:[%s1 + $0x98] sm:$0xf]
      %v865 = vld [vmem:[%s1 + $0x9c] sm:$0xf]
      %v866 = vld [vmem:[%s1 + $0xa0] sm:$0xf]
      %v867 = vld [vmem:[%s1 + $0xa4] sm:$0xf]
      %v868 = vld [vmem:[%s1 + $0xa8] sm:$0xf]
      %v869 = vld [vmem:[%s1 + $0xac] sm:$0xf]
      %v870 = vld [vmem:[%s1 + $0xb0] sm:$0xf]
      %v871 = vld [vmem:[%s1 + $0xb4] sm:$0xf]
      %v872 = vld [vmem:[%s1 + $0xb8] sm:$0xf]
      %v873 = vld [vmem:[%s1 + $0xbc] sm:$0xf]
      %v890 = vunpack.c.l.b16 %v858
      %v891 = vunpack.c.l.b16 %v859
      %v892 = vunpack.c.l.b16 %v860
      %v893 = vunpack.c.l.b16 %v861
      %v894 = vunpack.c.l.b16 %v862
      %v895 = vunpack.c.l.b16 %v863
      %v896 = vunpack.c.l.b16 %v864
      %v897 = vunpack.c.l.b16 %v865
      %v898 = vunpack.c.l.b16 %v866
      %v899 = vunpack.c.l.b16 %v867
      %v900 = vunpack.c.l.b16 %v868
      %v901 = vunpack.c.l.b16 %v869
      %v902 = vunpack.c.l.b16 %v870
      %v903 = vunpack.c.l.b16 %v871
      %v904 = vunpack.c.l.b16 %v872
      %v905 = vunpack.c.l.b16 %v873
      %v906 = vpack.c.b16 %v891, %v890
      %v907 = vpack.c.b16 %v893, %v892
      %v908 = vpack.c.b16 %v895, %v894
      %v909 = vpack.c.b16 %v897, %v896
      %v910 = vpack.c.b16 %v899, %v898
      %v911 = vpack.c.b16 %v901, %v900
      %v912 = vpack.c.b16 %v903, %v902
      %v913 = vpack.c.b16 %v905, %v904
      %922 = vmatprep.subr.bf16.mxu0 0
      %923 = vmatpush1.bf16.msra.mxu0 %v906
      %924 = vmatprep.subr.bf16.mxu0 0
      %925 = vmatpush1.bf16.msra.mxu0 %v907
      %926 = vmatprep.subr.bf16.mxu0 0
      %927 = vmatpush1.bf16.msra.mxu0 %v908
      %928 = vmatprep.subr.bf16.mxu0 0
      %929 = vmatpush1.bf16.msra.mxu0 %v909
      %930 = vmatprep.subr.bf16.mxu0 0
      %931 = vmatpush1.bf16.msra.mxu0 %v910
      %932 = vmatprep.subr.bf16.mxu0 0
      %933 = vmatpush1.bf16.msra.mxu0 %v911
      %934 = vmatprep.subr.bf16.mxu0 0
      %935 = vmatpush1.bf16.msra.mxu0 %v912
      %936 = vmatprep.subr.bf16.mxu0 0
      %937 = vmatpush1.bf16.msra.mxu0 %v913
      %938 = vmatprep.subr.bf16.mxu0 0
      %939 = vmatpush1.bf16.msra.mxu0 0
      %940 = vmatprep.subr.bf16.mxu0 0
      %941 = vmatpush1.bf16.msra.mxu0 0
      %942 = vmatprep.subr.bf16.mxu0 0
      %943 = vmatpush1.bf16.msra.mxu0 0
      %944 = vmatprep.subr.bf16.mxu0 0
      %945 = vmatpush1.bf16.msra.mxu0 0
      %946 = vmatprep.subr.bf16.mxu0 0
      %947 = vmatpush1.bf16.msra.mxu0 0
      %948 = vmatprep.subr.bf16.mxu0 0
      %949 = vmatpush1.bf16.msra.mxu0 0
      %950 = vmatprep.subr.bf16.mxu0 0
      %951 = vmatpush1.bf16.msra.mxu0 0
      %952 = vmatprep.subr.bf16.mxu0 0
      %953 = vmatpush1.bf16.msra.mxu0 0
      %954 = vmatprep.mubr.bf16.mxu0 0
      %955 = vmatmul.mubr.bf16.gmra.mrb[0].mxu0 %v857
      %v956 = vpop.f32.mrb[0].mxu0
      %v957 = vadd.f32 0.0, %v956
      %v958 = vpop.f32.mrb[0].mxu0
      %v959 = vpop.f32.mrb[0].mxu0
      %v960 = vpop.f32.mrb[0].mxu0
      %961 = vdwg.mxu0
      %v962 = vadd.f32 %v851, %v957
      %v963 = vld [vmem:[%s856] sm:$0xf]
      %v964 = vld [vmem:[%s856 + $0x4] sm:$0x1]
      %v965 = vld [vmem:[%s1 + $0xc0] sm:$0xf]
      %v966 = vld [vmem:[%s1 + $0xc4] sm:$0xf]
      %v967 = vld [vmem:[%s1 + $0xc8] sm:$0xf]
      %v968 = vld [vmem:[%s1 + $0xcc] sm:$0xf]
      %v969 = vld [vmem:[%s1 + $0xd0] sm:$0xf]
      %v970 = vld [vmem:[%s1 + $0xd4] sm:$0xf]
      %v971 = vld [vmem:[%s1 + $0xd8] sm:$0xf]
      %v972 = vld [vmem:[%s1 + $0xdc] sm:$0xf]
      %v973 = vld [vmem:[%s1 + $0xe0] sm:$0xf]
      %v974 = vld [vmem:[%s1 + $0xe4] sm:$0xf]
      %v975 = vld [vmem:[%s1 + $0xe8] sm:$0xf]
      %v976 = vld [vmem:[%s1 + $0xec] sm:$0xf]
      %v977 = vld [vmem:[%s1 + $0xf0] sm:$0xf]
      %v978 = vld [vmem:[%s1 + $0xf4] sm:$0xf]
      %v979 = vld [vmem:[%s1 + $0xf8] sm:$0xf]
      %v980 = vld [vmem:[%s1 + $0xfc] sm:$0xf]
      %v983 = vunpack.c.l.b16 %v963
      %v984 = vunpack.c.l.b16 %v964
      %v985 = vpack.c.b16 %v984, %v983
      %v987 = vshrl.u32 %v985, 16
      %v989 = vshll.u32 %v985, 16
      %v991 = vrot.slane %v989, 1
      %v992 = vor.u32 %v987, %v991
      %v1010 = vunpack.c.l.b16 %v965
      %v1011 = vunpack.c.l.b16 %v966
      %v1012 = vunpack.c.l.b16 %v967
      %v1013 = vunpack.c.l.b16 %v968
      %v1014 = vunpack.c.l.b16 %v969
      %v1015 = vunpack.c.l.b16 %v970
      %v1016 = vunpack.c.l.b16 %v971
      %v1017 = vunpack.c.l.b16 %v972
      %v1018 = vunpack.c.l.b16 %v973
      %v1019 = vunpack.c.l.b16 %v974
      %v1020 = vunpack.c.l.b16 %v975
      %v1021 = vunpack.c.l.b16 %v976
      %v1022 = vunpack.c.l.b16 %v977
      %v1023 = vunpack.c.l.b16 %v978
      %v1024 = vunpack.c.l.b16 %v979
      %v1025 = vunpack.c.l.b16 %v980
      %v1026 = vpack.c.b16 %v1011, %v1010
      %v1027 = vpack.c.b16 %v1013, %v1012
      %v1028 = vpack.c.b16 %v1015, %v1014
      %v1029 = vpack.c.b16 %v1017, %v1016
      %v1030 = vpack.c.b16 %v1019, %v1018
      %v1031 = vpack.c.b16 %v1021, %v1020
      %v1032 = vpack.c.b16 %v1023, %v1022
      %v1033 = vpack.c.b16 %v1025, %v1024
      %1042 = vmatprep.subr.bf16.mxu0 0
      %1043 = vmatpush1.bf16.msra.mxu0 %v1026
      %1044 = vmatprep.subr.bf16.mxu0 0
      %1045 = vmatpush1.bf16.msra.mxu0 %v1027
      %1046 = vmatprep.subr.bf16.mxu0 0
      %1047 = vmatpush1.bf16.msra.mxu0 %v1028
      %1048 = vmatprep.subr.bf16.mxu0 0
      %1049 = vmatpush1.bf16.msra.mxu0 %v1029
      %1050 = vmatprep.subr.bf16.mxu0 0
      %1051 = vmatpush1.bf16.msra.mxu0 %v1030
      %1052 = vmatprep.subr.bf16.mxu0 0
      %1053 = vmatpush1.bf16.msra.mxu0 %v1031
      %1054 = vmatprep.subr.bf16.mxu0 0
      %1055 = vmatpush1.bf16.msra.mxu0 %v1032
      %1056 = vmatprep.subr.bf16.mxu0 0
      %1057 = vmatpush1.bf16.msra.mxu0 %v1033
      %1058 = vmatprep.subr.bf16.mxu0 0
      %1059 = vmatpush1.bf16.msra.mxu0 0
      %1060 = vmatprep.subr.bf16.mxu0 0
      %1061 = vmatpush1.bf16.msra.mxu0 0
      %1062 = vmatprep.subr.bf16.mxu0 0
      %1063 = vmatpush1.bf16.msra.mxu0 0
      %1064 = vmatprep.subr.bf16.mxu0 0
      %1065 = vmatpush1.bf16.msra.mxu0 0
      %1066 = vmatprep.subr.bf16.mxu0 0
      %1067 = vmatpush1.bf16.msra.mxu0 0
      %1068 = vmatprep.subr.bf16.mxu0 0
      %1069 = vmatpush1.bf16.msra.mxu0 0
      %1070 = vmatprep.subr.bf16.mxu0 0
      %1071 = vmatpush1.bf16.msra.mxu0 0
      %1072 = vmatprep.subr.bf16.mxu0 0
      %1073 = vmatpush1.bf16.msra.mxu0 0
      %1074 = vmatprep.mubr.bf16.mxu0 0
      %1075 = vmatmul.mubr.bf16.gmra.mrb[0].mxu0 %v992
      %v1076 = vpop.f32.mrb[0].mxu0
      %v1077 = vadd.f32 0.0, %v1076
      %v1078 = vpop.f32.mrb[0].mxu0
      %v1079 = vpop.f32.mrb[0].mxu0
      %v1080 = vpop.f32.mrb[0].mxu0
      %1081 = vdwg.mxu0
      %v1082 = vadd.f32 %v962, %v1077
      %v1083 = vadd.f32 %v1082, %v627
      %v1084 = vmax.f32 %v1083, 0.0
      %v1085 = vpack.c.bf16 %v1084, %v1084
      %s1086 = scalar_lea.vmem %s170, 4
      %1087 = vst [vmem:[%s1086] sm:$0xf] %v1085
      %v1088 = vld [vmem:[%s856] sm:$0xf]
      %v1089 = vld [vmem:[%s1] sm:$0xf]
      %v1090 = vld [vmem:[%s1 + $0x4] sm:$0xf]
      %v1091 = vld [vmem:[%s1 + $0x8] sm:$0xf]
      %v1092 = vld [vmem:[%s1 + $0xc] sm:$0xf]
      %v1093 = vld [vmem:[%s1 + $0x10] sm:$0xf]
      %v1094 = vld [vmem:[%s1 + $0x14] sm:$0xf]
      %v1095 = vld [vmem:[%s1 + $0x18] sm:$0xf]
      %v1096 = vld [vmem:[%s1 + $0x1c] sm:$0xf]
      %v1097 = vld [vmem:[%s1 + $0x20] sm:$0xf]
      %v1098 = vld [vmem:[%s1 + $0x24] sm:$0xf]
      %v1099 = vld [vmem:[%s1 + $0x28] sm:$0xf]
      %v1100 = vld [vmem:[%s1 + $0x2c] sm:$0xf]
      %v1101 = vld [vmem:[%s1 + $0x30] sm:$0xf]
      %v1102 = vld [vmem:[%s1 + $0x34] sm:$0xf]
      %v1103 = vld [vmem:[%s1 + $0x38] sm:$0xf]
      %v1104 = vld [vmem:[%s1 + $0x3c] sm:$0xf]
      %v1105 = vld [vmem:[%s856 + $0x4] sm:$0x1]
      %v1106 = vld [vmem:[%s1 + $0x40] sm:$0xf]
      %v1107 = vld [vmem:[%s1 + $0x44] sm:$0xf]
      %v1108 = vld [vmem:[%s1 + $0x48] sm:$0xf]
      %v1109 = vld [vmem:[%s1 + $0x4c] sm:$0xf]
      %v1110 = vld [vmem:[%s1 + $0x50] sm:$0xf]
      %v1111 = vld [vmem:[%s1 + $0x54] sm:$0xf]
      %v1112 = vld [vmem:[%s1 + $0x58] sm:$0xf]
      %v1113 = vld [vmem:[%s1 + $0x5c] sm:$0xf]
      %v1114 = vld [vmem:[%s1 + $0x60] sm:$0xf]
      %v1115 = vld [vmem:[%s1 + $0x64] sm:$0xf]
      %v1116 = vld [vmem:[%s1 + $0x68] sm:$0xf]
      %v1117 = vld [vmem:[%s1 + $0x6c] sm:$0xf]
      %v1118 = vld [vmem:[%s1 + $0x70] sm:$0xf]
      %v1119 = vld [vmem:[%s1 + $0x74] sm:$0xf]
      %v1120 = vld [vmem:[%s1 + $0x78] sm:$0xf]
      %v1121 = vld [vmem:[%s1 + $0x7c] sm:$0xf]
      %v1124 = vunpack.c.l.b16 %v1088
      %v1125 = vunpack.c.l.b16 %v1105
      %v1126 = vpack.c.b16 %v1125, %v1124
      %v1128 = vshrl.u32 %v1126, 16
      %v1130 = vshll.u32 %v1126, 16
      %v1132 = vrot.slane %v1130, 1
      %v1133 = vor.u32 %v1128, %v1132
      %v1151 = vunpack.c.l.b16 %v1106
      %v1152 = vunpack.c.l.b16 %v1107
      %v1153 = vunpack.c.l.b16 %v1108
      %v1154 = vunpack.c.l.b16 %v1109
      %v1155 = vunpack.c.l.b16 %v1110
      %v1156 = vunpack.c.l.b16 %v1111
      %v1157 = vunpack.c.l.b16 %v1112
      %v1158 = vunpack.c.l.b16 %v1113
      %v1159 = vunpack.c.l.b16 %v1114
      %v1160 = vunpack.c.l.b16 %v1115
      %v1161 = vunpack.c.l.b16 %v1116
      %v1162 = vunpack.c.l.b16 %v1117
      %v1163 = vunpack.c.l.b16 %v1118
      %v1164 = vunpack.c.l.b16 %v1119
      %v1165 = vunpack.c.l.b16 %v1120
      %v1166 = vunpack.c.l.b16 %v1121
      %v1167 = vpack.c.b16 %v1152, %v1151
      %v1168 = vpack.c.b16 %v1154, %v1153
      %v1169 = vpack.c.b16 %v1156, %v1155
      %v1170 = vpack.c.b16 %v1158, %v1157
      %v1171 = vpack.c.b16 %v1160, %v1159
      %v1172 = vpack.c.b16 %v1162, %v1161
      %v1173 = vpack.c.b16 %v1164, %v1163
      %v1174 = vpack.c.b16 %v1166, %v1165
      %1183 = vmatprep.subr.bf16.mxu0 0
      %1184 = vmatpush1.bf16.msra.mxu0 %v1167
      %1185 = vmatprep.subr.bf16.mxu0 0
      %1186 = vmatpush1.bf16.msra.mxu0 %v1168
      %1187 = vmatprep.subr.bf16.mxu0 0
      %1188 = vmatpush1.bf16.msra.mxu0 %v1169
      %1189 = vmatprep.subr.bf16.mxu0 0
      %1190 = vmatpush1.bf16.msra.mxu0 %v1170
      %1191 = vmatprep.subr.bf16.mxu0 0
      %1192 = vmatpush1.bf16.msra.mxu0 %v1171
      %1193 = vmatprep.subr.bf16.mxu0 0
      %1194 = vmatpush1.bf16.msra.mxu0 %v1172
      %1195 = vmatprep.subr.bf16.mxu0 0
      %1196 = vmatpush1.bf16.msra.mxu0 %v1173
      %1197 = vmatprep.subr.bf16.mxu0 0
      %1198 = vmatpush1.bf16.msra.mxu0 %v1174
      %1199 = vmatprep.subr.bf16.mxu0 0
      %1200 = vmatpush1.bf16.msra.mxu0 0
      %1201 = vmatprep.subr.bf16.mxu0 0
      %1202 = vmatpush1.bf16.msra.mxu0 0
      %1203 = vmatprep.subr.bf16.mxu0 0
      %1204 = vmatpush1.bf16.msra.mxu0 0
      %1205 = vmatprep.subr.bf16.mxu0 0
      %1206 = vmatpush1.bf16.msra.mxu0 0
      %1207 = vmatprep.subr.bf16.mxu0 0
      %1208 = vmatpush1.bf16.msra.mxu0 0
      %1209 = vmatprep.subr.bf16.mxu0 0
      %1210 = vmatpush1.bf16.msra.mxu0 0
      %1211 = vmatprep.subr.bf16.mxu0 0
      %1212 = vmatpush1.bf16.msra.mxu0 0
      %1213 = vmatprep.subr.bf16.mxu0 0
      %1214 = vmatpush1.bf16.msra.mxu0 0
      %1215 = vmatprep.mubr.bf16.mxu0 0
      %1216 = vmatmul.mubr.bf16.gmra.mrb[0].mxu0 %v1133
      %v1217 = vpop.f32.mrb[0].mxu0
      %v1218 = vadd.f32 0.0, %v1217
      %v1219 = vpop.f32.mrb[0].mxu0
      %v1220 = vpop.f32.mrb[0].mxu0
      %v1221 = vpop.f32.mrb[0].mxu0
      %1222 = vdwg.mxu0
      %v1239 = vunpack.c.l.b16 %v1089
      %v1240 = vunpack.c.l.b16 %v1090
      %v1241 = vunpack.c.l.b16 %v1091
      %v1242 = vunpack.c.l.b16 %v1092
      %v1243 = vunpack.c.l.b16 %v1093
      %v1244 = vunpack.c.l.b16 %v1094
      %v1245 = vunpack.c.l.b16 %v1095
      %v1246 = vunpack.c.l.b16 %v1096
      %v1247 = vunpack.c.l.b16 %v1097
      %v1248 = vunpack.c.l.b16 %v1098
      %v1249 = vunpack.c.l.b16 %v1099
      %v1250 = vunpack.c.l.b16 %v1100
      %v1251 = vunpack.c.l.b16 %v1101
      %v1252 = vunpack.c.l.b16 %v1102
      %v1253 = vunpack.c.l.b16 %v1103
      %v1254 = vunpack.c.l.b16 %v1104
      %v1255 = vpack.c.b16 %v1240, %v1239
      %v1256 = vpack.c.b16 %v1242, %v1241
      %v1257 = vpack.c.b16 %v1244, %v1243
      %v1258 = vpack.c.b16 %v1246, %v1245
      %v1259 = vpack.c.b16 %v1248, %v1247
      %v1260 = vpack.c.b16 %v1250, %v1249
      %v1261 = vpack.c.b16 %v1252, %v1251
      %v1262 = vpack.c.b16 %v1254, %v1253
      %1271 = vmatprep.subr.bf16.mxu0 0
      %1272 = vmatpush1.bf16.msra.mxu0 %v1255
      %1273 = vmatprep.subr.bf16.mxu0 0
      %1274 = vmatpush1.bf16.msra.mxu0 %v1256
      %1275 = vmatprep.subr.bf16.mxu0 0
      %1276 = vmatpush1.bf16.msra.mxu0 %v1257
      %1277 = vmatprep.subr.bf16.mxu0 0
      %1278 = vmatpush1.bf16.msra.mxu0 %v1258
      %1279 = vmatprep.subr.bf16.mxu0 0
      %1280 = vmatpush1.bf16.msra.mxu0 %v1259
      %1281 = vmatprep.subr.bf16.mxu0 0
      %1282 = vmatpush1.bf16.msra.mxu0 %v1260
      %1283 = vmatprep.subr.bf16.mxu0 0
      %1284 = vmatpush1.bf16.msra.mxu0 %v1261
      %1285 = vmatprep.subr.bf16.mxu0 0
      %1286 = vmatpush1.bf16.msra.mxu0 %v1262
      %1287 = vmatprep.subr.bf16.mxu0 0
      %1288 = vmatpush1.bf16.msra.mxu0 0
      %1289 = vmatprep.subr.bf16.mxu0 0
      %1290 = vmatpush1.bf16.msra.mxu0 0
      %1291 = vmatprep.subr.bf16.mxu0 0
      %1292 = vmatpush1.bf16.msra.mxu0 0
      %1293 = vmatprep.subr.bf16.mxu0 0
      %1294 = vmatpush1.bf16.msra.mxu0 0
      %1295 = vmatprep.subr.bf16.mxu0 0
      %1296 = vmatpush1.bf16.msra.mxu0 0
      %1297 = vmatprep.subr.bf16.mxu0 0
      %1298 = vmatpush1.bf16.msra.mxu0 0
      %1299 = vmatprep.subr.bf16.mxu0 0
      %1300 = vmatpush1.bf16.msra.mxu0 0
      %1301 = vmatprep.subr.bf16.mxu0 0
      %1302 = vmatpush1.bf16.msra.mxu0 0
      %1303 = vmatprep.mubr.bf16.mxu0 0
      %1304 = vmatmul.mubr.bf16.gmra.mrb[0].mxu0 %v1088
      %v1305 = vpop.f32.mrb[0].mxu0
      %v1306 = vadd.f32 %v1218, %v1305
      %v1307 = vpop.f32.mrb[0].mxu0
      %v1308 = vpop.f32.mrb[0].mxu0
      %v1309 = vpop.f32.mrb[0].mxu0
      %1310 = vdwg.mxu0
      %s1311 = scalar_lea.vmem %s165, 24
      %v1312 = vld [vmem:[%s1311] sm:$0xf]
      %v1313 = vld [vmem:[%s1 + $0x80] sm:$0xf]
      %v1314 = vld [vmem:[%s1 + $0x84] sm:$0xf]
      %v1315 = vld [vmem:[%s1 + $0x88] sm:$0xf]
      %v1316 = vld [vmem:[%s1 + $0x8c] sm:$0xf]
      %v1317 = vld [vmem:[%s1 + $0x90] sm:$0xf]
      %v1318 = vld [vmem:[%s1 + $0x94] sm:$0xf]
      %v1319 = vld [vmem:[%s1 + $0x98] sm:$0xf]
      %v1320 = vld [vmem:[%s1 + $0x9c] sm:$0xf]
      %v1321 = vld [vmem:[%s1 + $0xa0] sm:$0xf]
      %v1322 = vld [vmem:[%s1 + $0xa4] sm:$0xf]
      %v1323 = vld [vmem:[%s1 + $0xa8] sm:$0xf]
      %v1324 = vld [vmem:[%s1 + $0xac] sm:$0xf]
      %v1325 = vld [vmem:[%s1 + $0xb0] sm:$0xf]
      %v1326 = vld [vmem:[%s1 + $0xb4] sm:$0xf]
      %v1327 = vld [vmem:[%s1 + $0xb8] sm:$0xf]
      %v1328 = vld [vmem:[%s1 + $0xbc] sm:$0xf]
      %v1345 = vunpack.c.l.b16 %v1313
      %v1346 = vunpack.c.l.b16 %v1314
      %v1347 = vunpack.c.l.b16 %v1315
      %v1348 = vunpack.c.l.b16 %v1316
      %v1349 = vunpack.c.l.b16 %v1317
      %v1350 = vunpack.c.l.b16 %v1318
      %v1351 = vunpack.c.l.b16 %v1319
      %v1352 = vunpack.c.l.b16 %v1320
      %v1353 = vunpack.c.l.b16 %v1321
      %v1354 = vunpack.c.l.b16 %v1322
      %v1355 = vunpack.c.l.b16 %v1323
      %v1356 = vunpack.c.l.b16 %v1324
      %v1357 = vunpack.c.l.b16 %v1325
      %v1358 = vunpack.c.l.b16 %v1326
      %v1359 = vunpack.c.l.b16 %v1327
      %v1360 = vunpack.c.l.b16 %v1328
      %v1361 = vpack.c.b16 %v1346, %v1345
      %v1362 = vpack.c.b16 %v1348, %v1347
      %v1363 = vpack.c.b16 %v1350, %v1349
      %v1364 = vpack.c.b16 %v1352, %v1351
      %v1365 = vpack.c.b16 %v1354, %v1353
      %v1366 = vpack.c.b16 %v1356, %v1355
      %v1367 = vpack.c.b16 %v1358, %v1357
      %v1368 = vpack.c.b16 %v1360, %v1359
      %1377 = vmatprep.subr.bf16.mxu0 0
      %1378 = vmatpush1.bf16.msra.mxu0 %v1361
      %1379 = vmatprep.subr.bf16.mxu0 0
      %1380 = vmatpush1.bf16.msra.mxu0 %v1362
      %1381 = vmatprep.subr.bf16.mxu0 0
      %1382 = vmatpush1.bf16.msra.mxu0 %v1363
      %1383 = vmatprep.subr.bf16.mxu0 0
      %1384 = vmatpush1.bf16.msra.mxu0 %v1364
      %1385 = vmatprep.subr.bf16.mxu0 0
      %1386 = vmatpush1.bf16.msra.mxu0 %v1365
      %1387 = vmatprep.subr.bf16.mxu0 0
      %1388 = vmatpush1.bf16.msra.mxu0 %v1366
      %1389 = vmatprep.subr.bf16.mxu0 0
      %1390 = vmatpush1.bf16.msra.mxu0 %v1367
      %1391 = vmatprep.subr.bf16.mxu0 0
      %1392 = vmatpush1.bf16.msra.mxu0 %v1368
      %1393 = vmatprep.subr.bf16.mxu0 0
      %1394 = vmatpush1.bf16.msra.mxu0 0
      %1395 = vmatprep.subr.bf16.mxu0 0
      %1396 = vmatpush1.bf16.msra.mxu0 0
      %1397 = vmatprep.subr.bf16.mxu0 0
      %1398 = vmatpush1.bf16.msra.mxu0 0
      %1399 = vmatprep.subr.bf16.mxu0 0
      %1400 = vmatpush1.bf16.msra.mxu0 0
      %1401 = vmatprep.subr.bf16.mxu0 0
      %1402 = vmatpush1.bf16.msra.mxu0 0
      %1403 = vmatprep.subr.bf16.mxu0 0
      %1404 = vmatpush1.bf16.msra.mxu0 0
      %1405 = vmatprep.subr.bf16.mxu0 0
      %1406 = vmatpush1.bf16.msra.mxu0 0
      %1407 = vmatprep.subr.bf16.mxu0 0
      %1408 = vmatpush1.bf16.msra.mxu0 0
      %1409 = vmatprep.mubr.bf16.mxu0 0
      %1410 = vmatmul.mubr.bf16.gmra.mrb[0].mxu0 %v1312
      %v1411 = vpop.f32.mrb[0].mxu0
      %v1412 = vadd.f32 0.0, %v1411
      %v1413 = vpop.f32.mrb[0].mxu0
      %v1414 = vpop.f32.mrb[0].mxu0
      %v1415 = vpop.f32.mrb[0].mxu0
      %1416 = vdwg.mxu0
      %v1417 = vadd.f32 %v1306, %v1412
      %v1418 = vld [vmem:[%s1311] sm:$0xf]
      %v1419 = vld [vmem:[%s1311 + $0x4] sm:$0x1]
      %v1420 = vld [vmem:[%s1 + $0xc0] sm:$0xf]
      %v1421 = vld [vmem:[%s1 + $0xc4] sm:$0xf]
      %v1422 = vld [vmem:[%s1 + $0xc8] sm:$0xf]
      %v1423 = vld [vmem:[%s1 + $0xcc] sm:$0xf]
      %v1424 = vld [vmem:[%s1 + $0xd0] sm:$0xf]
      %v1425 = vld [vmem:[%s1 + $0xd4] sm:$0xf]
      %v1426 = vld [vmem:[%s1 + $0xd8] sm:$0xf]
      %v1427 = vld [vmem:[%s1 + $0xdc] sm:$0xf]
      %v1428 = vld [vmem:[%s1 + $0xe0] sm:$0xf]
      %v1429 = vld [vmem:[%s1 + $0xe4] sm:$0xf]
      %v1430 = vld [vmem:[%s1 + $0xe8] sm:$0xf]
      %v1431 = vld [vmem:[%s1 + $0xec] sm:$0xf]
      %v1432 = vld [vmem:[%s1 + $0xf0] sm:$0xf]
      %v1433 = vld [vmem:[%s1 + $0xf4] sm:$0xf]
      %v1434 = vld [vmem:[%s1 + $0xf8] sm:$0xf]
      %v1435 = vld [vmem:[%s1 + $0xfc] sm:$0xf]
      %v1438 = vunpack.c.l.b16 %v1418
      %v1439 = vunpack.c.l.b16 %v1419
      %v1440 = vpack.c.b16 %v1439, %v1438
      %v1442 = vshrl.u32 %v1440, 16
      %v1444 = vshll.u32 %v1440, 16
      %v1446 = vrot.slane %v1444, 1
      %v1447 = vor.u32 %v1442, %v1446
      %v1465 = vunpack.c.l.b16 %v1420
      %v1466 = vunpack.c.l.b16 %v1421
      %v1467 = vunpack.c.l.b16 %v1422
      %v1468 = vunpack.c.l.b16 %v1423
      %v1469 = vunpack.c.l.b16 %v1424
      %v1470 = vunpack.c.l.b16 %v1425
      %v1471 = vunpack.c.l.b16 %v1426
      %v1472 = vunpack.c.l.b16 %v1427
      %v1473 = vunpack.c.l.b16 %v1428
      %v1474 = vunpack.c.l.b16 %v1429
      %v1475 = vunpack.c.l.b16 %v1430
      %v1476 = vunpack.c.l.b16 %v1431
      %v1477 = vunpack.c.l.b16 %v1432
      %v1478 = vunpack.c.l.b16 %v1433
      %v1479 = vunpack.c.l.b16 %v1434
      %v1480 = vunpack.c.l.b16 %v1435
      %v1481 = vpack.c.b16 %v1466, %v1465
      %v1482 = vpack.c.b16 %v1468, %v1467
      %v1483 = vpack.c.b16 %v1470, %v1469
      %v1484 = vpack.c.b16 %v1472, %v1471
      %v1485 = vpack.c.b16 %v1474, %v1473
      %v1486 = vpack.c.b16 %v1476, %v1475
      %v1487 = vpack.c.b16 %v1478, %v1477
      %v1488 = vpack.c.b16 %v1480, %v1479
      %1497 = vmatprep.subr.bf16.mxu0 0
      %1498 = vmatpush1.bf16.msra.mxu0 %v1481
      %1499 = vmatprep.subr.bf16.mxu0 0
      %1500 = vmatpush1.bf16.msra.mxu0 %v1482
      %1501 = vmatprep.subr.bf16.mxu0 0
      %1502 = vmatpush1.bf16.msra.mxu0 %v1483
      %1503 = vmatprep.subr.bf16.mxu0 0
      %1504 = vmatpush1.bf16.msra.mxu0 %v1484
      %1505 = vmatprep.subr.bf16.mxu0 0
      %1506 = vmatpush1.bf16.msra.mxu0 %v1485
      %1507 = vmatprep.subr.bf16.mxu0 0
      %1508 = vmatpush1.bf16.msra.mxu0 %v1486
      %1509 = vmatprep.subr.bf16.mxu0 0
      %1510 = vmatpush1.bf16.msra.mxu0 %v1487
      %1511 = vmatprep.subr.bf16.mxu0 0
      %1512 = vmatpush1.bf16.msra.mxu0 %v1488
      %1513 = vmatprep.subr.bf16.mxu0 0
      %1514 = vmatpush1.bf16.msra.mxu0 0
      %1515 = vmatprep.subr.bf16.mxu0 0
      %1516 = vmatpush1.bf16.msra.mxu0 0
      %1517 = vmatprep.subr.bf16.mxu0 0
      %1518 = vmatpush1.bf16.msra.mxu0 0
      %1519 = vmatprep.subr.bf16.mxu0 0
      %1520 = vmatpush1.bf16.msra.mxu0 0
      %1521 = vmatprep.subr.bf16.mxu0 0
      %1522 = vmatpush1.bf16.msra.mxu0 0
      %1523 = vmatprep.subr.bf16.mxu0 0
      %1524 = vmatpush1.bf16.msra.mxu0 0
      %1525 = vmatprep.subr.bf16.mxu0 0
      %1526 = vmatpush1.bf16.msra.mxu0 0
      %1527 = vmatprep.subr.bf16.mxu0 0
      %1528 = vmatpush1.bf16.msra.mxu0 0
      %1529 = vmatprep.mubr.bf16.mxu0 0
      %1530 = vmatmul.mubr.bf16.gmra.mrb[0].mxu0 %v1447
      %v1531 = vpop.f32.mrb[0].mxu0
      %v1532 = vadd.f32 0.0, %v1531
      %v1533 = vpop.f32.mrb[0].mxu0
      %v1534 = vpop.f32.mrb[0].mxu0
      %v1535 = vpop.f32.mrb[0].mxu0
      %1536 = vdwg.mxu0
      %v1537 = vadd.f32 %v1417, %v1532
      %v1538 = vadd.f32 %v1537, %v627
      %v1539 = vmax.f32 %v1538, 0.0
      %v1540 = vpack.c.bf16 %v1539, %v1539
      %s1541 = scalar_lea.vmem %s170, 8
      %1542 = vst [vmem:[%s1541] sm:$0xf] %v1540
      %v1543 = vld [vmem:[%s1311] sm:$0xf]
      %v1544 = vld [vmem:[%s1] sm:$0xf]
      %v1545 = vld [vmem:[%s1 + $0x4] sm:$0xf]
      %v1546 = vld [vmem:[%s1 + $0x8] sm:$0xf]
      %v1547 = vld [vmem:[%s1 + $0xc] sm:$0xf]
      %v1548 = vld [vmem:[%s1 + $0x10] sm:$0xf]
      %v1549 = vld [vmem:[%s1 + $0x14] sm:$0xf]
      %v1550 = vld [vmem:[%s1 + $0x18] sm:$0xf]
      %v1551 = vld [vmem:[%s1 + $0x1c] sm:$0xf]
      %v1552 = vld [vmem:[%s1 + $0x20] sm:$0xf]
      %v1553 = vld [vmem:[%s1 + $0x24] sm:$0xf]
      %v1554 = vld [vmem:[%s1 + $0x28] sm:$0xf]
      %v1555 = vld [vmem:[%s1 + $0x2c] sm:$0xf]
      %v1556 = vld [vmem:[%s1 + $0x30] sm:$0xf]
      %v1557 = vld [vmem:[%s1 + $0x34] sm:$0xf]
      %v1558 = vld [vmem:[%s1 + $0x38] sm:$0xf]
      %v1559 = vld [vmem:[%s1 + $0x3c] sm:$0xf]
      %v1560 = vld [vmem:[%s1311 + $0x4] sm:$0x1]
      %v1561 = vld [vmem:[%s1 + $0x40] sm:$0xf]
      %v1562 = vld [vmem:[%s1 + $0x44] sm:$0xf]
      %v1563 = vld [vmem:[%s1 + $0x48] sm:$0xf]
      %v1564 = vld [vmem:[%s1 + $0x4c] sm:$0xf]
      %v1565 = vld [vmem:[%s1 + $0x50] sm:$0xf]
      %v1566 = vld [vmem:[%s1 + $0x54] sm:$0xf]
      %v1567 = vld [vmem:[%s1 + $0x58] sm:$0xf]
      %v1568 = vld [vmem:[%s1 + $0x5c] sm:$0xf]
      %v1569 = vld [vmem:[%s1 + $0x60] sm:$0xf]
      %v1570 = vld [vmem:[%s1 + $0x64] sm:$0xf]
      %v1571 = vld [vmem:[%s1 + $0x68] sm:$0xf]
      %v1572 = vld [vmem:[%s1 + $0x6c] sm:$0xf]
      %v1573 = vld [vmem:[%s1 + $0x70] sm:$0xf]
      %v1574 = vld [vmem:[%s1 + $0x74] sm:$0xf]
      %v1575 = vld [vmem:[%s1 + $0x78] sm:$0xf]
      %v1576 = vld [vmem:[%s1 + $0x7c] sm:$0xf]
      %v1579 = vunpack.c.l.b16 %v1543
      %v1580 = vunpack.c.l.b16 %v1560
      %v1581 = vpack.c.b16 %v1580, %v1579
      %v1583 = vshrl.u32 %v1581, 16
      %v1585 = vshll.u32 %v1581, 16
      %v1587 = vrot.slane %v1585, 1
      %v1588 = vor.u32 %v1583, %v1587
      %v1606 = vunpack.c.l.b16 %v1561
      %v1607 = vunpack.c.l.b16 %v1562
      %v1608 = vunpack.c.l.b16 %v1563
      %v1609 = vunpack.c.l.b16 %v1564
      %v1610 = vunpack.c.l.b16 %v1565
      %v1611 = vunpack.c.l.b16 %v1566
      %v1612 = vunpack.c.l.b16 %v1567
      %v1613 = vunpack.c.l.b16 %v1568
      %v1614 = vunpack.c.l.b16 %v1569
      %v1615 = vunpack.c.l.b16 %v1570
      %v1616 = vunpack.c.l.b16 %v1571
      %v1617 = vunpack.c.l.b16 %v1572
      %v1618 = vunpack.c.l.b16 %v1573
      %v1619 = vunpack.c.l.b16 %v1574
      %v1620 = vunpack.c.l.b16 %v1575
      %v1621 = vunpack.c.l.b16 %v1576
      %v1622 = vpack.c.b16 %v1607, %v1606
      %v1623 = vpack.c.b16 %v1609, %v1608
      %v1624 = vpack.c.b16 %v1611, %v1610
      %v1625 = vpack.c.b16 %v1613, %v1612
      %v1626 = vpack.c.b16 %v1615, %v1614
      %v1627 = vpack.c.b16 %v1617, %v1616
      %v1628 = vpack.c.b16 %v1619, %v1618
      %v1629 = vpack.c.b16 %v1621, %v1620
      %1638 = vmatprep.subr.bf16.mxu0 0
      %1639 = vmatpush1.bf16.msra.mxu0 %v1622
      %1640 = vmatprep.subr.bf16.mxu0 0
      %1641 = vmatpush1.bf16.msra.mxu0 %v1623
      %1642 = vmatprep.subr.bf16.mxu0 0
      %1643 = vmatpush1.bf16.msra.mxu0 %v1624
      %1644 = vmatprep.subr.bf16.mxu0 0
      %1645 = vmatpush1.bf16.msra.mxu0 %v1625
      %1646 = vmatprep.subr.bf16.mxu0 0
      %1647 = vmatpush1.bf16.msra.mxu0 %v1626
      %1648 = vmatprep.subr.bf16.mxu0 0
      %1649 = vmatpush1.bf16.msra.mxu0 %v1627
      %1650 = vmatprep.subr.bf16.mxu0 0
      %1651 = vmatpush1.bf16.msra.mxu0 %v1628
      %1652 = vmatprep.subr.bf16.mxu0 0
      %1653 = vmatpush1.bf16.msra.mxu0 %v1629
      %1654 = vmatprep.subr.bf16.mxu0 0
      %1655 = vmatpush1.bf16.msra.mxu0 0
      %1656 = vmatprep.subr.bf16.mxu0 0
      %1657 = vmatpush1.bf16.msra.mxu0 0
      %1658 = vmatprep.subr.bf16.mxu0 0
      %1659 = vmatpush1.bf16.msra.mxu0 0
      %1660 = vmatprep.subr.bf16.mxu0 0
      %1661 = vmatpush1.bf16.msra.mxu0 0
      %1662 = vmatprep.subr.bf16.mxu0 0
      %1663 = vmatpush1.bf16.msra.mxu0 0
      %1664 = vmatprep.subr.bf16.mxu0 0
      %1665 = vmatpush1.bf16.msra.mxu0 0
      %1666 = vmatprep.subr.bf16.mxu0 0
      %1667 = vmatpush1.bf16.msra.mxu0 0
      %1668 = vmatprep.subr.bf16.mxu0 0
      %1669 = vmatpush1.bf16.msra.mxu0 0
      %1670 = vmatprep.mubr.bf16.mxu0 0
      %1671 = vmatmul.mubr.bf16.gmra.mrb[0].mxu0 %v1588
      %v1672 = vpop.f32.mrb[0].mxu0
      %v1673 = vadd.f32 0.0, %v1672
      %v1674 = vpop.f32.mrb[0].mxu0
      %v1675 = vpop.f32.mrb[0].mxu0
      %v1676 = vpop.f32.mrb[0].mxu0
      %1677 = vdwg.mxu0
      %v1694 = vunpack.c.l.b16 %v1544
      %v1695 = vunpack.c.l.b16 %v1545
      %v1696 = vunpack.c.l.b16 %v1546
      %v1697 = vunpack.c.l.b16 %v1547
      %v1698 = vunpack.c.l.b16 %v1548
      %v1699 = vunpack.c.l.b16 %v1549
      %v1700 = vunpack.c.l.b16 %v1550
      %v1701 = vunpack.c.l.b16 %v1551
      %v1702 = vunpack.c.l.b16 %v1552
      %v1703 = vunpack.c.l.b16 %v1553
      %v1704 = vunpack.c.l.b16 %v1554
      %v1705 = vunpack.c.l.b16 %v1555
      %v1706 = vunpack.c.l.b16 %v1556
      %v1707 = vunpack.c.l.b16 %v1557
      %v1708 = vunpack.c.l.b16 %v1558
      %v1709 = vunpack.c.l.b16 %v1559
      %v1710 = vpack.c.b16 %v1695, %v1694
      %v1711 = vpack.c.b16 %v1697, %v1696
      %v1712 = vpack.c.b16 %v1699, %v1698
      %v1713 = vpack.c.b16 %v1701, %v1700
      %v1714 = vpack.c.b16 %v1703, %v1702
      %v1715 = vpack.c.b16 %v1705, %v1704
      %v1716 = vpack.c.b16 %v1707, %v1706
      %v1717 = vpack.c.b16 %v1709, %v1708
      %1726 = vmatprep.subr.bf16.mxu0 0
      %1727 = vmatpush1.bf16.msra.mxu0 %v1710
      %1728 = vmatprep.subr.bf16.mxu0 0
      %1729 = vmatpush1.bf16.msra.mxu0 %v1711
      %1730 = vmatprep.subr.bf16.mxu0 0
      %1731 = vmatpush1.bf16.msra.mxu0 %v1712
      %1732 = vmatprep.subr.bf16.mxu0 0
      %1733 = vmatpush1.bf16.msra.mxu0 %v1713
      %1734 = vmatprep.subr.bf16.mxu0 0
      %1735 = vmatpush1.bf16.msra.mxu0 %v1714
      %1736 = vmatprep.subr.bf16.mxu0 0
      %1737 = vmatpush1.bf16.msra.mxu0 %v1715
      %1738 = vmatprep.subr.bf16.mxu0 0
      %1739 = vmatpush1.bf16.msra.mxu0 %v1716
      %1740 = vmatprep.subr.bf16.mxu0 0
      %1741 = vmatpush1.bf16.msra.mxu0 %v1717
      %1742 = vmatprep.subr.bf16.mxu0 0
      %1743 = vmatpush1.bf16.msra.mxu0 0
      %1744 = vmatprep.subr.bf16.mxu0 0
      %1745 = vmatpush1.bf16.msra.mxu0 0
      %1746 = vmatprep.subr.bf16.mxu0 0
      %1747 = vmatpush1.bf16.msra.mxu0 0
      %1748 = vmatprep.subr.bf16.mxu0 0
      %1749 = vmatpush1.bf16.msra.mxu0 0
      %1750 = vmatprep.subr.bf16.mxu0 0
      %1751 = vmatpush1.bf16.msra.mxu0 0
      %1752 = vmatprep.subr.bf16.mxu0 0
      %1753 = vmatpush1.bf16.msra.mxu0 0
      %1754 = vmatprep.subr.bf16.mxu0 0
      %1755 = vmatpush1.bf16.msra.mxu0 0
      %1756 = vmatprep.subr.bf16.mxu0 0
      %1757 = vmatpush1.bf16.msra.mxu0 0
      %1758 = vmatprep.mubr.bf16.mxu0 0
      %1759 = vmatmul.mubr.bf16.gmra.mrb[0].mxu0 %v1543
      %v1760 = vpop.f32.mrb[0].mxu0
      %v1761 = vadd.f32 %v1673, %v1760
      %v1762 = vpop.f32.mrb[0].mxu0
      %v1763 = vpop.f32.mrb[0].mxu0
      %v1764 = vpop.f32.mrb[0].mxu0
      %1765 = vdwg.mxu0
      %s1766 = scalar_lea.vmem %s165, 32
      %v1767 = vld [vmem:[%s1766] sm:$0xf]
      %v1768 = vld [vmem:[%s1 + $0x80] sm:$0xf]
      %v1769 = vld [vmem:[%s1 + $0x84] sm:$0xf]
      %v1770 = vld [vmem:[%s1 + $0x88] sm:$0xf]
      %v1771 = vld [vmem:[%s1 + $0x8c] sm:$0xf]
      %v1772 = vld [vmem:[%s1 + $0x90] sm:$0xf]
      %v1773 = vld [vmem:[%s1 + $0x94] sm:$0xf]
      %v1774 = vld [vmem:[%s1 + $0x98] sm:$0xf]
      %v1775 = vld [vmem:[%s1 + $0x9c] sm:$0xf]
      %v1776 = vld [vmem:[%s1 + $0xa0] sm:$0xf]
      %v1777 = vld [vmem:[%s1 + $0xa4] sm:$0xf]
      %v1778 = vld [vmem:[%s1 + $0xa8] sm:$0xf]
      %v1779 = vld [vmem:[%s1 + $0xac] sm:$0xf]
      %v1780 = vld [vmem:[%s1 + $0xb0] sm:$0xf]
      %v1781 = vld [vmem:[%s1 + $0xb4] sm:$0xf]
      %v1782 = vld [vmem:[%s1 + $0xb8] sm:$0xf]
      %v1783 = vld [vmem:[%s1 + $0xbc] sm:$0xf]
      %v1800 = vunpack.c.l.b16 %v1768
      %v1801 = vunpack.c.l.b16 %v1769
      %v1802 = vunpack.c.l.b16 %v1770
      %v1803 = vunpack.c.l.b16 %v1771
      %v1804 = vunpack.c.l.b16 %v1772
      %v1805 = vunpack.c.l.b16 %v1773
      %v1806 = vunpack.c.l.b16 %v1774
      %v1807 = vunpack.c.l.b16 %v1775
      %v1808 = vunpack.c.l.b16 %v1776
      %v1809 = vunpack.c.l.b16 %v1777
      %v1810 = vunpack.c.l.b16 %v1778
      %v1811 = vunpack.c.l.b16 %v1779
      %v1812 = vunpack.c.l.b16 %v1780
      %v1813 = vunpack.c.l.b16 %v1781
      %v1814 = vunpack.c.l.b16 %v1782
      %v1815 = vunpack.c.l.b16 %v1783
      %v1816 = vpack.c.b16 %v1801, %v1800
      %v1817 = vpack.c.b16 %v1803, %v1802
      %v1818 = vpack.c.b16 %v1805, %v1804
      %v1819 = vpack.c.b16 %v1807, %v1806
      %v1820 = vpack.c.b16 %v1809, %v1808
      %v1821 = vpack.c.b16 %v1811, %v1810
      %v1822 = vpack.c.b16 %v1813, %v1812
      %v1823 = vpack.c.b16 %v1815, %v1814
      %1832 = vmatprep.subr.bf16.mxu0 0
      %1833 = vmatpush1.bf16.msra.mxu0 %v1816
      %1834 = vmatprep.subr.bf16.mxu0 0
      %1835 = vmatpush1.bf16.msra.mxu0 %v1817
      %1836 = vmatprep.subr.bf16.mxu0 0
      %1837 = vmatpush1.bf16.msra.mxu0 %v1818
      %1838 = vmatprep.subr.bf16.mxu0 0
      %1839 = vmatpush1.bf16.msra.mxu0 %v1819
      %1840 = vmatprep.subr.bf16.mxu0 0
      %1841 = vmatpush1.bf16.msra.mxu0 %v1820
      %1842 = vmatprep.subr.bf16.mxu0 0
      %1843 = vmatpush1.bf16.msra.mxu0 %v1821
      %1844 = vmatprep.subr.bf16.mxu0 0
      %1845 = vmatpush1.bf16.msra.mxu0 %v1822
      %1846 = vmatprep.subr.bf16.mxu0 0
      %1847 = vmatpush1.bf16.msra.mxu0 %v1823
      %1848 = vmatprep.subr.bf16.mxu0 0
      %1849 = vmatpush1.bf16.msra.mxu0 0
      %1850 = vmatprep.subr.bf16.mxu0 0
      %1851 = vmatpush1.bf16.msra.mxu0 0
      %1852 = vmatprep.subr.bf16.mxu0 0
      %1853 = vmatpush1.bf16.msra.mxu0 0
      %1854 = vmatprep.subr.bf16.mxu0 0
      %1855 = vmatpush1.bf16.msra.mxu0 0
      %1856 = vmatprep.subr.bf16.mxu0 0
      %1857 = vmatpush1.bf16.msra.mxu0 0
      %1858 = vmatprep.subr.bf16.mxu0 0
      %1859 = vmatpush1.bf16.msra.mxu0 0
      %1860 = vmatprep.subr.bf16.mxu0 0
      %1861 = vmatpush1.bf16.msra.mxu0 0
      %1862 = vmatprep.subr.bf16.mxu0 0
      %1863 = vmatpush1.bf16.msra.mxu0 0
      %1864 = vmatprep.mubr.bf16.mxu0 0
      %1865 = vmatmul.mubr.bf16.gmra.mrb[0].mxu0 %v1767
      %v1866 = vpop.f32.mrb[0].mxu0
      %v1867 = vadd.f32 0.0, %v1866
      %v1868 = vpop.f32.mrb[0].mxu0
      %v1869 = vpop.f32.mrb[0].mxu0
      %v1870 = vpop.f32.mrb[0].mxu0
      %1871 = vdwg.mxu0
      %v1872 = vadd.f32 %v1761, %v1867
      %v1873 = vld [vmem:[%s1766] sm:$0xf]
      %v1874 = vld [vmem:[%s1766 + $0x4] sm:$0x1]
      %v1875 = vld [vmem:[%s1 + $0xc0] sm:$0xf]
      %v1876 = vld [vmem:[%s1 + $0xc4] sm:$0xf]
      %v1877 = vld [vmem:[%s1 + $0xc8] sm:$0xf]
      %v1878 = vld [vmem:[%s1 + $0xcc] sm:$0xf]
      %v1879 = vld [vmem:[%s1 + $0xd0] sm:$0xf]
      %v1880 = vld [vmem:[%s1 + $0xd4] sm:$0xf]
      %v1881 = vld [vmem:[%s1 + $0xd8] sm:$0xf]
      %v1882 = vld [vmem:[%s1 + $0xdc] sm:$0xf]
      %v1883 = vld [vmem:[%s1 + $0xe0] sm:$0xf]
      %v1884 = vld [vmem:[%s1 + $0xe4] sm:$0xf]
      %v1885 = vld [vmem:[%s1 + $0xe8] sm:$0xf]
      %v1886 = vld [vmem:[%s1 + $0xec] sm:$0xf]
      %v1887 = vld [vmem:[%s1 + $0xf0] sm:$0xf]
      %v1888 = vld [vmem:[%s1 + $0xf4] sm:$0xf]
      %v1889 = vld [vmem:[%s1 + $0xf8] sm:$0xf]
      %v1890 = vld [vmem:[%s1 + $0xfc] sm:$0xf]
      %v1893 = vunpack.c.l.b16 %v1873
      %v1894 = vunpack.c.l.b16 %v1874
      %v1895 = vpack.c.b16 %v1894, %v1893
      %v1897 = vshrl.u32 %v1895, 16
      %v1899 = vshll.u32 %v1895, 16
      %v1901 = vrot.slane %v1899, 1
      %v1902 = vor.u32 %v1897, %v1901
      %v1920 = vunpack.c.l.b16 %v1875
      %v1921 = vunpack.c.l.b16 %v1876
      %v1922 = vunpack.c.l.b16 %v1877
      %v1923 = vunpack.c.l.b16 %v1878
      %v1924 = vunpack.c.l.b16 %v1879
      %v1925 = vunpack.c.l.b16 %v1880
      %v1926 = vunpack.c.l.b16 %v1881
      %v1927 = vunpack.c.l.b16 %v1882
      %v1928 = vunpack.c.l.b16 %v1883
      %v1929 = vunpack.c.l.b16 %v1884
      %v1930 = vunpack.c.l.b16 %v1885
      %v1931 = vunpack.c.l.b16 %v1886
      %v1932 = vunpack.c.l.b16 %v1887
      %v1933 = vunpack.c.l.b16 %v1888
      %v1934 = vunpack.c.l.b16 %v1889
      %v1935 = vunpack.c.l.b16 %v1890
      %v1936 = vpack.c.b16 %v1921, %v1920
      %v1937 = vpack.c.b16 %v1923, %v1922
      %v1938 = vpack.c.b16 %v1925, %v1924
      %v1939 = vpack.c.b16 %v1927, %v1926
      %v1940 = vpack.c.b16 %v1929, %v1928
      %v1941 = vpack.c.b16 %v1931, %v1930
      %v1942 = vpack.c.b16 %v1933, %v1932
      %v1943 = vpack.c.b16 %v1935, %v1934
      %1952 = vmatprep.subr.bf16.mxu0 0
      %1953 = vmatpush1.bf16.msra.mxu0 %v1936
      %1954 = vmatprep.subr.bf16.mxu0 0
      %1955 = vmatpush1.bf16.msra.mxu0 %v1937
      %1956 = vmatprep.subr.bf16.mxu0 0
      %1957 = vmatpush1.bf16.msra.mxu0 %v1938
      %1958 = vmatprep.subr.bf16.mxu0 0
      %1959 = vmatpush1.bf16.msra.mxu0 %v1939
      %1960 = vmatprep.subr.bf16.mxu0 0
      %1961 = vmatpush1.bf16.msra.mxu0 %v1940
      %1962 = vmatprep.subr.bf16.mxu0 0
      %1963 = vmatpush1.bf16.msra.mxu0 %v1941
      %1964 = vmatprep.subr.bf16.mxu0 0
      %1965 = vmatpush1.bf16.msra.mxu0 %v1942
      %1966 = vmatprep.subr.bf16.mxu0 0
      %1967 = vmatpush1.bf16.msra.mxu0 %v1943
      %1968 = vmatprep.subr.bf16.mxu0 0
      %1969 = vmatpush1.bf16.msra.mxu0 0
      %1970 = vmatprep.subr.bf16.mxu0 0
      %1971 = vmatpush1.bf16.msra.mxu0 0
      %1972 = vmatprep.subr.bf16.mxu0 0
      %1973 = vmatpush1.bf16.msra.mxu0 0
      %1974 = vmatprep.subr.bf16.mxu0 0
      %1975 = vmatpush1.bf16.msra.mxu0 0
      %1976 = vmatprep.subr.bf16.mxu0 0
      %1977 = vmatpush1.bf16.msra.mxu0 0
      %1978 = vmatprep.subr.bf16.mxu0 0
      %1979 = vmatpush1.bf16.msra.mxu0 0
      %1980 = vmatprep.subr.bf16.mxu0 0
      %1981 = vmatpush1.bf16.msra.mxu0 0
      %1982 = vmatprep.subr.bf16.mxu0 0
      %1983 = vmatpush1.bf16.msra.mxu0 0
      %1984 = vmatprep.mubr.bf16.mxu0 0
      %1985 = vmatmul.mubr.bf16.gmra.mrb[0].mxu0 %v1902
      %v1986 = vpop.f32.mrb[0].mxu0
      %v1987 = vadd.f32 0.0, %v1986
      %v1988 = vpop.f32.mrb[0].mxu0
      %v1989 = vpop.f32.mrb[0].mxu0
      %v1990 = vpop.f32.mrb[0].mxu0
      %1991 = vdwg.mxu0
      %v1992 = vadd.f32 %v1872, %v1987
      %v1993 = vadd.f32 %v1992, %v627
      %v1994 = vmax.f32 %v1993, 0.0
      %v1995 = vpack.c.bf16 %v1994, %v1994
      %s1996 = scalar_lea.vmem %s170, 12
      %1997 = vst [vmem:[%s1996] sm:$0xf] %v1995
      %v1998 = vld [vmem:[%s1766] sm:$0xf]
      %v1999 = vld [vmem:[%s1] sm:$0xf]
      %v2000 = vld [vmem:[%s1 + $0x4] sm:$0xf]
      %v2001 = vld [vmem:[%s1 + $0x8] sm:$0xf]
      %v2002 = vld [vmem:[%s1 + $0xc] sm:$0xf]
      %v2003 = vld [vmem:[%s1 + $0x10] sm:$0xf]
      %v2004 = vld [vmem:[%s1 + $0x14] sm:$0xf]
      %v2005 = vld [vmem:[%s1 + $0x18] sm:$0xf]
      %v2006 = vld [vmem:[%s1 + $0x1c] sm:$0xf]
      %v2007 = vld [vmem:[%s1 + $0x20] sm:$0xf]
      %v2008 = vld [vmem:[%s1 + $0x24] sm:$0xf]
      %v2009 = vld [vmem:[%s1 + $0x28] sm:$0xf]
      %v2010 = vld [vmem:[%s1 + $0x2c] sm:$0xf]
      %v2011 = vld [vmem:[%s1 + $0x30] sm:$0xf]
      %v2012 = vld [vmem:[%s1 + $0x34] sm:$0xf]
      %v2013 = vld [vmem:[%s1 + $0x38] sm:$0xf]
      %v2014 = vld [vmem:[%s1 + $0x3c] sm:$0xf]
      %v2015 = vld [vmem:[%s1766 + $0x4] sm:$0x1]
      %v2016 = vld [vmem:[%s1 + $0x40] sm:$0xf]
      %v2017 = vld [vmem:[%s1 + $0x44] sm:$0xf]
      %v2018 = vld [vmem:[%s1 + $0x48] sm:$0xf]
      %v2019 = vld [vmem:[%s1 + $0x4c] sm:$0xf]
      %v2020 = vld [vmem:[%s1 + $0x50] sm:$0xf]
      %v2021 = vld [vmem:[%s1 + $0x54] sm:$0xf]
      %v2022 = vld [vmem:[%s1 + $0x58] sm:$0xf]
      %v2023 = vld [vmem:[%s1 + $0x5c] sm:$0xf]
      %v2024 = vld [vmem:[%s1 + $0x60] sm:$0xf]
      %v2025 = vld [vmem:[%s1 + $0x64] sm:$0xf]
      %v2026 = vld [vmem:[%s1 + $0x68] sm:$0xf]
      %v2027 = vld [vmem:[%s1 + $0x6c] sm:$0xf]
      %v2028 = vld [vmem:[%s1 + $0x70] sm:$0xf]
      %v2029 = vld [vmem:[%s1 + $0x74] sm:$0xf]
      %v2030 = vld [vmem:[%s1 + $0x78] sm:$0xf]
      %v2031 = vld [vmem:[%s1 + $0x7c] sm:$0xf]
      %v2034 = vunpack.c.l.b16 %v1998
      %v2035 = vunpack.c.l.b16 %v2015
      %v2036 = vpack.c.b16 %v2035, %v2034
      %v2038 = vshrl.u32 %v2036, 16
      %v2040 = vshll.u32 %v2036, 16
      %v2042 = vrot.slane %v2040, 1
      %v2043 = vor.u32 %v2038, %v2042
      %v2061 = vunpack.c.l.b16 %v2016
      %v2062 = vunpack.c.l.b16 %v2017
      %v2063 = vunpack.c.l.b16 %v2018
      %v2064 = vunpack.c.l.b16 %v2019
      %v2065 = vunpack.c.l.b16 %v2020
      %v2066 = vunpack.c.l.b16 %v2021
      %v2067 = vunpack.c.l.b16 %v2022
      %v2068 = vunpack.c.l.b16 %v2023
      %v2069 = vunpack.c.l.b16 %v2024
      %v2070 = vunpack.c.l.b16 %v2025
      %v2071 = vunpack.c.l.b16 %v2026
      %v2072 = vunpack.c.l.b16 %v2027
      %v2073 = vunpack.c.l.b16 %v2028
      %v2074 = vunpack.c.l.b16 %v2029
      %v2075 = vunpack.c.l.b16 %v2030
      %v2076 = vunpack.c.l.b16 %v2031
      %v2077 = vpack.c.b16 %v2062, %v2061
      %v2078 = vpack.c.b16 %v2064, %v2063
      %v2079 = vpack.c.b16 %v2066, %v2065
      %v2080 = vpack.c.b16 %v2068, %v2067
      %v2081 = vpack.c.b16 %v2070, %v2069
      %v2082 = vpack.c.b16 %v2072, %v2071
      %v2083 = vpack.c.b16 %v2074, %v2073
      %v2084 = vpack.c.b16 %v2076, %v2075
      %2093 = vmatprep.subr.bf16.mxu0 0
      %2094 = vmatpush1.bf16.msra.mxu0 %v2077
      %2095 = vmatprep.subr.bf16.mxu0 0
      %2096 = vmatpush1.bf16.msra.mxu0 %v2078
      %2097 = vmatprep.subr.bf16.mxu0 0
      %2098 = vmatpush1.bf16.msra.mxu0 %v2079
      %2099 = vmatprep.subr.bf16.mxu0 0
      %2100 = vmatpush1.bf16.msra.mxu0 %v2080
      %2101 = vmatprep.subr.bf16.mxu0 0
      %2102 = vmatpush1.bf16.msra.mxu0 %v2081
      %2103 = vmatprep.subr.bf16.mxu0 0
      %2104 = vmatpush1.bf16.msra.mxu0 %v2082
      %2105 = vmatprep.subr.bf16.mxu0 0
      %2106 = vmatpush1.bf16.msra.mxu0 %v2083
      %2107 = vmatprep.subr.bf16.mxu0 0
      %2108 = vmatpush1.bf16.msra.mxu0 %v2084
      %2109 = vmatprep.subr.bf16.mxu0 0
      %2110 = vmatpush1.bf16.msra.mxu0 0
      %2111 = vmatprep.subr.bf16.mxu0 0
      %2112 = vmatpush1.bf16.msra.mxu0 0
      %2113 = vmatprep.subr.bf16.mxu0 0
      %2114 = vmatpush1.bf16.msra.mxu0 0
      %2115 = vmatprep.subr.bf16.mxu0 0
      %2116 = vmatpush1.bf16.msra.mxu0 0
      %2117 = vmatprep.subr.bf16.mxu0 0
      %2118 = vmatpush1.bf16.msra.mxu0 0
      %2119 = vmatprep.subr.bf16.mxu0 0
      %2120 = vmatpush1.bf16.msra.mxu0 0
      %2121 = vmatprep.subr.bf16.mxu0 0
      %2122 = vmatpush1.bf16.msra.mxu0 0
      %2123 = vmatprep.subr.bf16.mxu0 0
      %2124 = vmatpush1.bf16.msra.mxu0 0
      %2125 = vmatprep.mubr.bf16.mxu0 0
      %2126 = vmatmul.mubr.bf16.gmra.mrb[0].mxu0 %v2043
      %v2127 = vpop.f32.mrb[0].mxu0
      %v2128 = vadd.f32 0.0, %v2127
      %v2129 = vpop.f32.mrb[0].mxu0
      %v2130 = vpop.f32.mrb[0].mxu0
      %v2131 = vpop.f32.mrb[0].mxu0
      %2132 = vdwg.mxu0
      %v2149 = vunpack.c.l.b16 %v1999
      %v2150 = vunpack.c.l.b16 %v2000
      %v2151 = vunpack.c.l.b16 %v2001
      %v2152 = vunpack.c.l.b16 %v2002
      %v2153 = vunpack.c.l.b16 %v2003
      %v2154 = vunpack.c.l.b16 %v2004
      %v2155 = vunpack.c.l.b16 %v2005
      %v2156 = vunpack.c.l.b16 %v2006
      %v2157 = vunpack.c.l.b16 %v2007
      %v2158 = vunpack.c.l.b16 %v2008
      %v2159 = vunpack.c.l.b16 %v2009
      %v2160 = vunpack.c.l.b16 %v2010
      %v2161 = vunpack.c.l.b16 %v2011
      %v2162 = vunpack.c.l.b16 %v2012
      %v2163 = vunpack.c.l.b16 %v2013
      %v2164 = vunpack.c.l.b16 %v2014
      %v2165 = vpack.c.b16 %v2150, %v2149
      %v2166 = vpack.c.b16 %v2152, %v2151
      %v2167 = vpack.c.b16 %v2154, %v2153
      %v2168 = vpack.c.b16 %v2156, %v2155
      %v2169 = vpack.c.b16 %v2158, %v2157
      %v2170 = vpack.c.b16 %v2160, %v2159
      %v2171 = vpack.c.b16 %v2162, %v2161
      %v2172 = vpack.c.b16 %v2164, %v2163
      %2181 = vmatprep.subr.bf16.mxu0 0
      %2182 = vmatpush1.bf16.msra.mxu0 %v2165
      %2183 = vmatprep.subr.bf16.mxu0 0
      %2184 = vmatpush1.bf16.msra.mxu0 %v2166
      %2185 = vmatprep.subr.bf16.mxu0 0
      %2186 = vmatpush1.bf16.msra.mxu0 %v2167
      %2187 = vmatprep.subr.bf16.mxu0 0
      %2188 = vmatpush1.bf16.msra.mxu0 %v2168
      %2189 = vmatprep.subr.bf16.mxu0 0
      %2190 = vmatpush1.bf16.msra.mxu0 %v2169
      %2191 = vmatprep.subr.bf16.mxu0 0
      %2192 = vmatpush1.bf16.msra.mxu0 %v2170
      %2193 = vmatprep.subr.bf16.mxu0 0
      %2194 = vmatpush1.bf16.msra.mxu0 %v2171
      %2195 = vmatprep.subr.bf16.mxu0 0
      %2196 = vmatpush1.bf16.msra.mxu0 %v2172
      %2197 = vmatprep.subr.bf16.mxu0 0
      %2198 = vmatpush1.bf16.msra.mxu0 0
      %2199 = vmatprep.subr.bf16.mxu0 0
      %2200 = vmatpush1.bf16.msra.mxu0 0
      %2201 = vmatprep.subr.bf16.mxu0 0
      %2202 = vmatpush1.bf16.msra.mxu0 0
      %2203 = vmatprep.subr.bf16.mxu0 0
      %2204 = vmatpush1.bf16.msra.mxu0 0
      %2205 = vmatprep.subr.bf16.mxu0 0
      %2206 = vmatpush1.bf16.msra.mxu0 0
      %2207 = vmatprep.subr.bf16.mxu0 0
      %2208 = vmatpush1.bf16.msra.mxu0 0
      %2209 = vmatprep.subr.bf16.mxu0 0
      %2210 = vmatpush1.bf16.msra.mxu0 0
      %2211 = vmatprep.subr.bf16.mxu0 0
      %2212 = vmatpush1.bf16.msra.mxu0 0
      %2213 = vmatprep.mubr.bf16.mxu0 0
      %2214 = vmatmul.mubr.bf16.gmra.mrb[0].mxu0 %v1998
      %v2215 = vpop.f32.mrb[0].mxu0
      %v2216 = vadd.f32 %v2128, %v2215
      %v2217 = vpop.f32.mrb[0].mxu0
      %v2218 = vpop.f32.mrb[0].mxu0
      %v2219 = vpop.f32.mrb[0].mxu0
      %2220 = vdwg.mxu0
      %s2221 = scalar_lea.vmem %s165, 40
      %v2222 = vld [vmem:[%s2221] sm:$0xf]
      %v2223 = vld [vmem:[%s1 + $0x80] sm:$0xf]
      %v2224 = vld [vmem:[%s1 + $0x84] sm:$0xf]
      %v2225 = vld [vmem:[%s1 + $0x88] sm:$0xf]
      %v2226 = vld [vmem:[%s1 + $0x8c] sm:$0xf]
      %v2227 = vld [vmem:[%s1 + $0x90] sm:$0xf]
      %v2228 = vld [vmem:[%s1 + $0x94] sm:$0xf]
      %v2229 = vld [vmem:[%s1 + $0x98] sm:$0xf]
      %v2230 = vld [vmem:[%s1 + $0x9c] sm:$0xf]
      %v2231 = vld [vmem:[%s1 + $0xa0] sm:$0xf]
      %v2232 = vld [vmem:[%s1 + $0xa4] sm:$0xf]
      %v2233 = vld [vmem:[%s1 + $0xa8] sm:$0xf]
      %v2234 = vld [vmem:[%s1 + $0xac] sm:$0xf]
      %v2235 = vld [vmem:[%s1 + $0xb0] sm:$0xf]
      %v2236 = vld [vmem:[%s1 + $0xb4] sm:$0xf]
      %v2237 = vld [vmem:[%s1 + $0xb8] sm:$0xf]
      %v2238 = vld [vmem:[%s1 + $0xbc] sm:$0xf]
      %v2255 = vunpack.c.l.b16 %v2223
      %v2256 = vunpack.c.l.b16 %v2224
      %v2257 = vunpack.c.l.b16 %v2225
      %v2258 = vunpack.c.l.b16 %v2226
      %v2259 = vunpack.c.l.b16 %v2227
      %v2260 = vunpack.c.l.b16 %v2228
      %v2261 = vunpack.c.l.b16 %v2229
      %v2262 = vunpack.c.l.b16 %v2230
      %v2263 = vunpack.c.l.b16 %v2231
      %v2264 = vunpack.c.l.b16 %v2232
      %v2265 = vunpack.c.l.b16 %v2233
      %v2266 = vunpack.c.l.b16 %v2234
      %v2267 = vunpack.c.l.b16 %v2235
      %v2268 = vunpack.c.l.b16 %v2236
      %v2269 = vunpack.c.l.b16 %v2237
      %v2270 = vunpack.c.l.b16 %v2238
      %v2271 = vpack.c.b16 %v2256, %v2255
      %v2272 = vpack.c.b16 %v2258, %v2257
      %v2273 = vpack.c.b16 %v2260, %v2259
      %v2274 = vpack.c.b16 %v2262, %v2261
      %v2275 = vpack.c.b16 %v2264, %v2263
      %v2276 = vpack.c.b16 %v2266, %v2265
      %v2277 = vpack.c.b16 %v2268, %v2267
      %v2278 = vpack.c.b16 %v2270, %v2269
      %2287 = vmatprep.subr.bf16.mxu0 0
      %2288 = vmatpush1.bf16.msra.mxu0 %v2271
      %2289 = vmatprep.subr.bf16.mxu0 0
      %2290 = vmatpush1.bf16.msra.mxu0 %v2272
      %2291 = vmatprep.subr.bf16.mxu0 0
      %2292 = vmatpush1.bf16.msra.mxu0 %v2273
      %2293 = vmatprep.subr.bf16.mxu0 0
      %2294 = vmatpush1.bf16.msra.mxu0 %v2274
      %2295 = vmatprep.subr.bf16.mxu0 0
      %2296 = vmatpush1.bf16.msra.mxu0 %v2275
      %2297 = vmatprep.subr.bf16.mxu0 0
      %2298 = vmatpush1.bf16.msra.mxu0 %v2276
      %2299 = vmatprep.subr.bf16.mxu0 0
      %2300 = vmatpush1.bf16.msra.mxu0 %v2277
      %2301 = vmatprep.subr.bf16.mxu0 0
      %2302 = vmatpush1.bf16.msra.mxu0 %v2278
      %2303 = vmatprep.subr.bf16.mxu0 0
      %2304 = vmatpush1.bf16.msra.mxu0 0
      %2305 = vmatprep.subr.bf16.mxu0 0
      %2306 = vmatpush1.bf16.msra.mxu0 0
      %2307 = vmatprep.subr.bf16.mxu0 0
      %2308 = vmatpush1.bf16.msra.mxu0 0
      %2309 = vmatprep.subr.bf16.mxu0 0
      %2310 = vmatpush1.bf16.msra.mxu0 0
      %2311 = vmatprep.subr.bf16.mxu0 0
      %2312 = vmatpush1.bf16.msra.mxu0 0
      %2313 = vmatprep.subr.bf16.mxu0 0
      %2314 = vmatpush1.bf16.msra.mxu0 0
      %2315 = vmatprep.subr.bf16.mxu0 0
      %2316 = vmatpush1.bf16.msra.mxu0 0
      %2317 = vmatprep.subr.bf16.mxu0 0
      %2318 = vmatpush1.bf16.msra.mxu0 0
      %2319 = vmatprep.mubr.bf16.mxu0 0
      %2320 = vmatmul.mubr.bf16.gmra.mrb[0].mxu0 %v2222
      %v2321 = vpop.f32.mrb[0].mxu0
      %v2322 = vadd.f32 0.0, %v2321
      %v2323 = vpop.f32.mrb[0].mxu0
      %v2324 = vpop.f32.mrb[0].mxu0
      %v2325 = vpop.f32.mrb[0].mxu0
      %2326 = vdwg.mxu0
      %v2327 = vadd.f32 %v2216, %v2322
      %v2328 = vld [vmem:[%s2221] sm:$0xf]
      %v2329 = vld [vmem:[%s2221 + $0x4] sm:$0x1]
      %v2330 = vld [vmem:[%s1 + $0xc0] sm:$0xf]
      %v2331 = vld [vmem:[%s1 + $0xc4] sm:$0xf]
      %v2332 = vld [vmem:[%s1 + $0xc8] sm:$0xf]
      %v2333 = vld [vmem:[%s1 + $0xcc] sm:$0xf]
      %v2334 = vld [vmem:[%s1 + $0xd0] sm:$0xf]
      %v2335 = vld [vmem:[%s1 + $0xd4] sm:$0xf]
      %v2336 = vld [vmem:[%s1 + $0xd8] sm:$0xf]
      %v2337 = vld [vmem:[%s1 + $0xdc] sm:$0xf]
      %v2338 = vld [vmem:[%s1 + $0xe0] sm:$0xf]
      %v2339 = vld [vmem:[%s1 + $0xe4] sm:$0xf]
      %v2340 = vld [vmem:[%s1 + $0xe8] sm:$0xf]
      %v2341 = vld [vmem:[%s1 + $0xec] sm:$0xf]
      %v2342 = vld [vmem:[%s1 + $0xf0] sm:$0xf]
      %v2343 = vld [vmem:[%s1 + $0xf4] sm:$0xf]
      %v2344 = vld [vmem:[%s1 + $0xf8] sm:$0xf]
      %v2345 = vld [vmem:[%s1 + $0xfc] sm:$0xf]
      %v2348 = vunpack.c.l.b16 %v2328
      %v2349 = vunpack.c.l.b16 %v2329
      %v2350 = vpack.c.b16 %v2349, %v2348
      %v2352 = vshrl.u32 %v2350, 16
      %v2354 = vshll.u32 %v2350, 16
      %v2356 = vrot.slane %v2354, 1
      %v2357 = vor.u32 %v2352, %v2356
      %v2375 = vunpack.c.l.b16 %v2330
      %v2376 = vunpack.c.l.b16 %v2331
      %v2377 = vunpack.c.l.b16 %v2332
      %v2378 = vunpack.c.l.b16 %v2333
      %v2379 = vunpack.c.l.b16 %v2334
      %v2380 = vunpack.c.l.b16 %v2335
      %v2381 = vunpack.c.l.b16 %v2336
      %v2382 = vunpack.c.l.b16 %v2337
      %v2383 = vunpack.c.l.b16 %v2338
      %v2384 = vunpack.c.l.b16 %v2339
      %v2385 = vunpack.c.l.b16 %v2340
      %v2386 = vunpack.c.l.b16 %v2341
      %v2387 = vunpack.c.l.b16 %v2342
      %v2388 = vunpack.c.l.b16 %v2343
      %v2389 = vunpack.c.l.b16 %v2344
      %v2390 = vunpack.c.l.b16 %v2345
      %v2391 = vpack.c.b16 %v2376, %v2375
      %v2392 = vpack.c.b16 %v2378, %v2377
      %v2393 = vpack.c.b16 %v2380, %v2379
      %v2394 = vpack.c.b16 %v2382, %v2381
      %v2395 = vpack.c.b16 %v2384, %v2383
      %v2396 = vpack.c.b16 %v2386, %v2385
      %v2397 = vpack.c.b16 %v2388, %v2387
      %v2398 = vpack.c.b16 %v2390, %v2389
      %2407 = vmatprep.subr.bf16.mxu0 0
      %2408 = vmatpush1.bf16.msra.mxu0 %v2391
      %2409 = vmatprep.subr.bf16.mxu0 0
      %2410 = vmatpush1.bf16.msra.mxu0 %v2392
      %2411 = vmatprep.subr.bf16.mxu0 0
      %2412 = vmatpush1.bf16.msra.mxu0 %v2393
      %2413 = vmatprep.subr.bf16.mxu0 0
      %2414 = vmatpush1.bf16.msra.mxu0 %v2394
      %2415 = vmatprep.subr.bf16.mxu0 0
      %2416 = vmatpush1.bf16.msra.mxu0 %v2395
      %2417 = vmatprep.subr.bf16.mxu0 0
      %2418 = vmatpush1.bf16.msra.mxu0 %v2396
      %2419 = vmatprep.subr.bf16.mxu0 0
      %2420 = vmatpush1.bf16.msra.mxu0 %v2397
      %2421 = vmatprep.subr.bf16.mxu0 0
      %2422 = vmatpush1.bf16.msra.mxu0 %v2398
      %2423 = vmatprep.subr.bf16.mxu0 0
      %2424 = vmatpush1.bf16.msra.mxu0 0
      %2425 = vmatprep.subr.bf16.mxu0 0
      %2426 = vmatpush1.bf16.msra.mxu0 0
      %2427 = vmatprep.subr.bf16.mxu0 0
      %2428 = vmatpush1.bf16.msra.mxu0 0
      %2429 = vmatprep.subr.bf16.mxu0 0
      %2430 = vmatpush1.bf16.msra.mxu0 0
      %2431 = vmatprep.subr.bf16.mxu0 0
      %2432 = vmatpush1.bf16.msra.mxu0 0
      %2433 = vmatprep.subr.bf16.mxu0 0
      %2434 = vmatpush1.bf16.msra.mxu0 0
      %2435 = vmatprep.subr.bf16.mxu0 0
      %2436 = vmatpush1.bf16.msra.mxu0 0
      %2437 = vmatprep.subr.bf16.mxu0 0
      %2438 = vmatpush1.bf16.msra.mxu0 0
      %2439 = vmatprep.mubr.bf16.mxu0 0
      %2440 = vmatmul.mubr.bf16.gmra.mrb[0].mxu0 %v2357
      %v2441 = vpop.f32.mrb[0].mxu0
      %v2442 = vadd.f32 0.0, %v2441
      %v2443 = vpop.f32.mrb[0].mxu0
      %v2444 = vpop.f32.mrb[0].mxu0
      %v2445 = vpop.f32.mrb[0].mxu0
      %2446 = vdwg.mxu0
      %v2447 = vadd.f32 %v2327, %v2442
      %v2448 = vadd.f32 %v2447, %v627
      %v2449 = vmax.f32 %v2448, 0.0
      %v2450 = vpack.c.bf16 %v2449, %v2449
      %s2451 = scalar_lea.vmem %s170, 16
      %2452 = vst [vmem:[%s2451] sm:$0xf] %v2450
      %v2453 = vld [vmem:[%s2221] sm:$0xf]
      %v2454 = vld [vmem:[%s1] sm:$0xf]
      %v2455 = vld [vmem:[%s1 + $0x4] sm:$0xf]
      %v2456 = vld [vmem:[%s1 + $0x8] sm:$0xf]
      %v2457 = vld [vmem:[%s1 + $0xc] sm:$0xf]
      %v2458 = vld [vmem:[%s1 + $0x10] sm:$0xf]
      %v2459 = vld [vmem:[%s1 + $0x14] sm:$0xf]
      %v2460 = vld [vmem:[%s1 + $0x18] sm:$0xf]
      %v2461 = vld [vmem:[%s1 + $0x1c] sm:$0xf]
      %v2462 = vld [vmem:[%s1 + $0x20] sm:$0xf]
      %v2463 = vld [vmem:[%s1 + $0x24] sm:$0xf]
      %v2464 = vld [vmem:[%s1 + $0x28] sm:$0xf]
      %v2465 = vld [vmem:[%s1 + $0x2c] sm:$0xf]
      %v2466 = vld [vmem:[%s1 + $0x30] sm:$0xf]
      %v2467 = vld [vmem:[%s1 + $0x34] sm:$0xf]
      %v2468 = vld [vmem:[%s1 + $0x38] sm:$0xf]
      %v2469 = vld [vmem:[%s1 + $0x3c] sm:$0xf]
      %v2470 = vld [vmem:[%s2221 + $0x4] sm:$0x1]
      %v2471 = vld [vmem:[%s1 + $0x40] sm:$0xf]
      %v2472 = vld [vmem:[%s1 + $0x44] sm:$0xf]
      %v2473 = vld [vmem:[%s1 + $0x48] sm:$0xf]
      %v2474 = vld [vmem:[%s1 + $0x4c] sm:$0xf]
      %v2475 = vld [vmem:[%s1 + $0x50] sm:$0xf]
      %v2476 = vld [vmem:[%s1 + $0x54] sm:$0xf]
      %v2477 = vld [vmem:[%s1 + $0x58] sm:$0xf]
      %v2478 = vld [vmem:[%s1 + $0x5c] sm:$0xf]
      %v2479 = vld [vmem:[%s1 + $0x60] sm:$0xf]
      %v2480 = vld [vmem:[%s1 + $0x64] sm:$0xf]
      %v2481 = vld [vmem:[%s1 + $0x68] sm:$0xf]
      %v2482 = vld [vmem:[%s1 + $0x6c] sm:$0xf]
      %v2483 = vld [vmem:[%s1 + $0x70] sm:$0xf]
      %v2484 = vld [vmem:[%s1 + $0x74] sm:$0xf]
      %v2485 = vld [vmem:[%s1 + $0x78] sm:$0xf]
      %v2486 = vld [vmem:[%s1 + $0x7c] sm:$0xf]
      %v2489 = vunpack.c.l.b16 %v2453
      %v2490 = vunpack.c.l.b16 %v2470
      %v2491 = vpack.c.b16 %v2490, %v2489
      %v2493 = vshrl.u32 %v2491, 16
      %v2495 = vshll.u32 %v2491, 16
      %v2497 = vrot.slane %v2495, 1
      %v2498 = vor.u32 %v2493, %v2497
      %v2516 = vunpack.c.l.b16 %v2471
      %v2517 = vunpack.c.l.b16 %v2472
      %v2518 = vunpack.c.l.b16 %v2473
      %v2519 = vunpack.c.l.b16 %v2474
      %v2520 = vunpack.c.l.b16 %v2475
      %v2521 = vunpack.c.l.b16 %v2476
      %v2522 = vunpack.c.l.b16 %v2477
      %v2523 = vunpack.c.l.b16 %v2478
      %v2524 = vunpack.c.l.b16 %v2479
      %v2525 = vunpack.c.l.b16 %v2480
      %v2526 = vunpack.c.l.b16 %v2481
      %v2527 = vunpack.c.l.b16 %v2482
      %v2528 = vunpack.c.l.b16 %v2483
      %v2529 = vunpack.c.l.b16 %v2484
      %v2530 = vunpack.c.l.b16 %v2485
      %v2531 = vunpack.c.l.b16 %v2486
      %v2532 = vpack.c.b16 %v2517, %v2516
      %v2533 = vpack.c.b16 %v2519, %v2518
      %v2534 = vpack.c.b16 %v2521, %v2520
      %v2535 = vpack.c.b16 %v2523, %v2522
      %v2536 = vpack.c.b16 %v2525, %v2524
      %v2537 = vpack.c.b16 %v2527, %v2526
      %v2538 = vpack.c.b16 %v2529, %v2528
      %v2539 = vpack.c.b16 %v2531, %v2530
      %2548 = vmatprep.subr.bf16.mxu0 0
      %2549 = vmatpush1.bf16.msra.mxu0 %v2532
      %2550 = vmatprep.subr.bf16.mxu0 0
      %2551 = vmatpush1.bf16.msra.mxu0 %v2533
      %2552 = vmatprep.subr.bf16.mxu0 0
      %2553 = vmatpush1.bf16.msra.mxu0 %v2534
      %2554 = vmatprep.subr.bf16.mxu0 0
      %2555 = vmatpush1.bf16.msra.mxu0 %v2535
      %2556 = vmatprep.subr.bf16.mxu0 0
      %2557 = vmatpush1.bf16.msra.mxu0 %v2536
      %2558 = vmatprep.subr.bf16.mxu0 0
      %2559 = vmatpush1.bf16.msra.mxu0 %v2537
      %2560 = vmatprep.subr.bf16.mxu0 0
      %2561 = vmatpush1.bf16.msra.mxu0 %v2538
      %2562 = vmatprep.subr.bf16.mxu0 0
      %2563 = vmatpush1.bf16.msra.mxu0 %v2539
      %2564 = vmatprep.subr.bf16.mxu0 0
      %2565 = vmatpush1.bf16.msra.mxu0 0
      %2566 = vmatprep.subr.bf16.mxu0 0
      %2567 = vmatpush1.bf16.msra.mxu0 0
      %2568 = vmatprep.subr.bf16.mxu0 0
      %2569 = vmatpush1.bf16.msra.mxu0 0
      %2570 = vmatprep.subr.bf16.mxu0 0
      %2571 = vmatpush1.bf16.msra.mxu0 0
      %2572 = vmatprep.subr.bf16.mxu0 0
      %2573 = vmatpush1.bf16.msra.mxu0 0
      %2574 = vmatprep.subr.bf16.mxu0 0
      %2575 = vmatpush1.bf16.msra.mxu0 0
      %2576 = vmatprep.subr.bf16.mxu0 0
      %2577 = vmatpush1.bf16.msra.mxu0 0
      %2578 = vmatprep.subr.bf16.mxu0 0
      %2579 = vmatpush1.bf16.msra.mxu0 0
      %2580 = vmatprep.mubr.bf16.mxu0 0
      %2581 = vmatmul.mubr.bf16.gmra.mrb[0].mxu0 %v2498
      %v2582 = vpop.f32.mrb[0].mxu0
      %v2583 = vadd.f32 0.0, %v2582
      %v2584 = vpop.f32.mrb[0].mxu0
      %v2585 = vpop.f32.mrb[0].mxu0
      %v2586 = vpop.f32.mrb[0].mxu0
      %2587 = vdwg.mxu0
      %v2604 = vunpack.c.l.b16 %v2454
      %v2605 = vunpack.c.l.b16 %v2455
      %v2606 = vunpack.c.l.b16 %v2456
      %v2607 = vunpack.c.l.b16 %v2457
      %v2608 = vunpack.c.l.b16 %v2458
      %v2609 = vunpack.c.l.b16 %v2459
      %v2610 = vunpack.c.l.b16 %v2460
      %v2611 = vunpack.c.l.b16 %v2461
      %v2612 = vunpack.c.l.b16 %v2462
      %v2613 = vunpack.c.l.b16 %v2463
      %v2614 = vunpack.c.l.b16 %v2464
      %v2615 = vunpack.c.l.b16 %v2465
      %v2616 = vunpack.c.l.b16 %v2466
      %v2617 = vunpack.c.l.b16 %v2467
      %v2618 = vunpack.c.l.b16 %v2468
      %v2619 = vunpack.c.l.b16 %v2469
      %v2620 = vpack.c.b16 %v2605, %v2604
      %v2621 = vpack.c.b16 %v2607, %v2606
      %v2622 = vpack.c.b16 %v2609, %v2608
      %v2623 = vpack.c.b16 %v2611, %v2610
      %v2624 = vpack.c.b16 %v2613, %v2612
      %v2625 = vpack.c.b16 %v2615, %v2614
      %v2626 = vpack.c.b16 %v2617, %v2616
      %v2627 = vpack.c.b16 %v2619, %v2618
      %2636 = vmatprep.subr.bf16.mxu0 0
      %2637 = vmatpush1.bf16.msra.mxu0 %v2620
      %2638 = vmatprep.subr.bf16.mxu0 0
      %2639 = vmatpush1.bf16.msra.mxu0 %v2621
      %2640 = vmatprep.subr.bf16.mxu0 0
      %2641 = vmatpush1.bf16.msra.mxu0 %v2622
      %2642 = vmatprep.subr.bf16.mxu0 0
      %2643 = vmatpush1.bf16.msra.mxu0 %v2623
      %2644 = vmatprep.subr.bf16.mxu0 0
      %2645 = vmatpush1.bf16.msra.mxu0 %v2624
      %2646 = vmatprep.subr.bf16.mxu0 0
      %2647 = vmatpush1.bf16.msra.mxu0 %v2625
      %2648 = vmatprep.subr.bf16.mxu0 0
      %2649 = vmatpush1.bf16.msra.mxu0 %v2626
      %2650 = vmatprep.subr.bf16.mxu0 0
      %2651 = vmatpush1.bf16.msra.mxu0 %v2627
      %2652 = vmatprep.subr.bf16.mxu0 0
      %2653 = vmatpush1.bf16.msra.mxu0 0
      %2654 = vmatprep.subr.bf16.mxu0 0
      %2655 = vmatpush1.bf16.msra.mxu0 0
      %2656 = vmatprep.subr.bf16.mxu0 0
      %2657 = vmatpush1.bf16.msra.mxu0 0
      %2658 = vmatprep.subr.bf16.mxu0 0
      %2659 = vmatpush1.bf16.msra.mxu0 0
      %2660 = vmatprep.subr.bf16.mxu0 0
      %2661 = vmatpush1.bf16.msra.mxu0 0
      %2662 = vmatprep.subr.bf16.mxu0 0
      %2663 = vmatpush1.bf16.msra.mxu0 0
      %2664 = vmatprep.subr.bf16.mxu0 0
      %2665 = vmatpush1.bf16.msra.mxu0 0
      %2666 = vmatprep.subr.bf16.mxu0 0
      %2667 = vmatpush1.bf16.msra.mxu0 0
      %2668 = vmatprep.mubr.bf16.mxu0 0
      %2669 = vmatmul.mubr.bf16.gmra.mrb[0].mxu0 %v2453
      %v2670 = vpop.f32.mrb[0].mxu0
      %v2671 = vadd.f32 %v2583, %v2670
      %v2672 = vpop.f32.mrb[0].mxu0
      %v2673 = vpop.f32.mrb[0].mxu0
      %v2674 = vpop.f32.mrb[0].mxu0
      %2675 = vdwg.mxu0
      %s2676 = scalar_lea.vmem %s165, 48
      %v2677 = vld [vmem:[%s2676] sm:$0xf]
      %v2678 = vld [vmem:[%s1 + $0x80] sm:$0xf]
      %v2679 = vld [vmem:[%s1 + $0x84] sm:$0xf]
      %v2680 = vld [vmem:[%s1 + $0x88] sm:$0xf]
      %v2681 = vld [vmem:[%s1 + $0x8c] sm:$0xf]
      %v2682 = vld [vmem:[%s1 + $0x90] sm:$0xf]
      %v2683 = vld [vmem:[%s1 + $0x94] sm:$0xf]
      %v2684 = vld [vmem:[%s1 + $0x98] sm:$0xf]
      %v2685 = vld [vmem:[%s1 + $0x9c] sm:$0xf]
      %v2686 = vld [vmem:[%s1 + $0xa0] sm:$0xf]
      %v2687 = vld [vmem:[%s1 + $0xa4] sm:$0xf]
      %v2688 = vld [vmem:[%s1 + $0xa8] sm:$0xf]
      %v2689 = vld [vmem:[%s1 + $0xac] sm:$0xf]
      %v2690 = vld [vmem:[%s1 + $0xb0] sm:$0xf]
      %v2691 = vld [vmem:[%s1 + $0xb4] sm:$0xf]
      %v2692 = vld [vmem:[%s1 + $0xb8] sm:$0xf]
      %v2693 = vld [vmem:[%s1 + $0xbc] sm:$0xf]
      %v2710 = vunpack.c.l.b16 %v2678
      %v2711 = vunpack.c.l.b16 %v2679
      %v2712 = vunpack.c.l.b16 %v2680
      %v2713 = vunpack.c.l.b16 %v2681
      %v2714 = vunpack.c.l.b16 %v2682
      %v2715 = vunpack.c.l.b16 %v2683
      %v2716 = vunpack.c.l.b16 %v2684
      %v2717 = vunpack.c.l.b16 %v2685
      %v2718 = vunpack.c.l.b16 %v2686
      %v2719 = vunpack.c.l.b16 %v2687
      %v2720 = vunpack.c.l.b16 %v2688
      %v2721 = vunpack.c.l.b16 %v2689
      %v2722 = vunpack.c.l.b16 %v2690
      %v2723 = vunpack.c.l.b16 %v2691
      %v2724 = vunpack.c.l.b16 %v2692
      %v2725 = vunpack.c.l.b16 %v2693
      %v2726 = vpack.c.b16 %v2711, %v2710
      %v2727 = vpack.c.b16 %v2713, %v2712
      %v2728 = vpack.c.b16 %v2715, %v2714
      %v2729 = vpack.c.b16 %v2717, %v2716
      %v2730 = vpack.c.b16 %v2719, %v2718
      %v2731 = vpack.c.b16 %v2721, %v2720
      %v2732 = vpack.c.b16 %v2723, %v2722
      %v2733 = vpack.c.b16 %v2725, %v2724
      %2742 = vmatprep.subr.bf16.mxu0 0
      %2743 = vmatpush1.bf16.msra.mxu0 %v2726
      %2744 = vmatprep.subr.bf16.mxu0 0
      %2745 = vmatpush1.bf16.msra.mxu0 %v2727
      %2746 = vmatprep.subr.bf16.mxu0 0
      %2747 = vmatpush1.bf16.msra.mxu0 %v2728
      %2748 = vmatprep.subr.bf16.mxu0 0
      %2749 = vmatpush1.bf16.msra.mxu0 %v2729
      %2750 = vmatprep.subr.bf16.mxu0 0
      %2751 = vmatpush1.bf16.msra.mxu0 %v2730
      %2752 = vmatprep.subr.bf16.mxu0 0
      %2753 = vmatpush1.bf16.msra.mxu0 %v2731
      %2754 = vmatprep.subr.bf16.mxu0 0
      %2755 = vmatpush1.bf16.msra.mxu0 %v2732
      %2756 = vmatprep.subr.bf16.mxu0 0
      %2757 = vmatpush1.bf16.msra.mxu0 %v2733
      %2758 = vmatprep.subr.bf16.mxu0 0
      %2759 = vmatpush1.bf16.msra.mxu0 0
      %2760 = vmatprep.subr.bf16.mxu0 0
      %2761 = vmatpush1.bf16.msra.mxu0 0
      %2762 = vmatprep.subr.bf16.mxu0 0
      %2763 = vmatpush1.bf16.msra.mxu0 0
      %2764 = vmatprep.subr.bf16.mxu0 0
      %2765 = vmatpush1.bf16.msra.mxu0 0
      %2766 = vmatprep.subr.bf16.mxu0 0
      %2767 = vmatpush1.bf16.msra.mxu0 0
      %2768 = vmatprep.subr.bf16.mxu0 0
      %2769 = vmatpush1.bf16.msra.mxu0 0
      %2770 = vmatprep.subr.bf16.mxu0 0
      %2771 = vmatpush1.bf16.msra.mxu0 0
      %2772 = vmatprep.subr.bf16.mxu0 0
      %2773 = vmatpush1.bf16.msra.mxu0 0
      %2774 = vmatprep.mubr.bf16.mxu0 0
      %2775 = vmatmul.mubr.bf16.gmra.mrb[0].mxu0 %v2677
      %v2776 = vpop.f32.mrb[0].mxu0
      %v2777 = vadd.f32 0.0, %v2776
      %v2778 = vpop.f32.mrb[0].mxu0
      %v2779 = vpop.f32.mrb[0].mxu0
      %v2780 = vpop.f32.mrb[0].mxu0
      %2781 = vdwg.mxu0
      %v2782 = vadd.f32 %v2671, %v2777
      %v2783 = vld [vmem:[%s2676] sm:$0xf]
      %v2784 = vld [vmem:[%s2676 + $0x4] sm:$0x1]
      %v2785 = vld [vmem:[%s1 + $0xc0] sm:$0xf]
      %v2786 = vld [vmem:[%s1 + $0xc4] sm:$0xf]
      %v2787 = vld [vmem:[%s1 + $0xc8] sm:$0xf]
      %v2788 = vld [vmem:[%s1 + $0xcc] sm:$0xf]
      %v2789 = vld [vmem:[%s1 + $0xd0] sm:$0xf]
      %v2790 = vld [vmem:[%s1 + $0xd4] sm:$0xf]
      %v2791 = vld [vmem:[%s1 + $0xd8] sm:$0xf]
      %v2792 = vld [vmem:[%s1 + $0xdc] sm:$0xf]
      %v2793 = vld [vmem:[%s1 + $0xe0] sm:$0xf]
      %v2794 = vld [vmem:[%s1 + $0xe4] sm:$0xf]
      %v2795 = vld [vmem:[%s1 + $0xe8] sm:$0xf]
      %v2796 = vld [vmem:[%s1 + $0xec] sm:$0xf]
      %v2797 = vld [vmem:[%s1 + $0xf0] sm:$0xf]
      %v2798 = vld [vmem:[%s1 + $0xf4] sm:$0xf]
      %v2799 = vld [vmem:[%s1 + $0xf8] sm:$0xf]
      %v2800 = vld [vmem:[%s1 + $0xfc] sm:$0xf]
      %v2803 = vunpack.c.l.b16 %v2783
      %v2804 = vunpack.c.l.b16 %v2784
      %v2805 = vpack.c.b16 %v2804, %v2803
      %v2807 = vshrl.u32 %v2805, 16
      %v2809 = vshll.u32 %v2805, 16
      %v2811 = vrot.slane %v2809, 1
      %v2812 = vor.u32 %v2807, %v2811
      %v2830 = vunpack.c.l.b16 %v2785
      %v2831 = vunpack.c.l.b16 %v2786
      %v2832 = vunpack.c.l.b16 %v2787
      %v2833 = vunpack.c.l.b16 %v2788
      %v2834 = vunpack.c.l.b16 %v2789
      %v2835 = vunpack.c.l.b16 %v2790
      %v2836 = vunpack.c.l.b16 %v2791
      %v2837 = vunpack.c.l.b16 %v2792
      %v2838 = vunpack.c.l.b16 %v2793
      %v2839 = vunpack.c.l.b16 %v2794
      %v2840 = vunpack.c.l.b16 %v2795
      %v2841 = vunpack.c.l.b16 %v2796
      %v2842 = vunpack.c.l.b16 %v2797
      %v2843 = vunpack.c.l.b16 %v2798
      %v2844 = vunpack.c.l.b16 %v2799
      %v2845 = vunpack.c.l.b16 %v2800
      %v2846 = vpack.c.b16 %v2831, %v2830
      %v2847 = vpack.c.b16 %v2833, %v2832
      %v2848 = vpack.c.b16 %v2835, %v2834
      %v2849 = vpack.c.b16 %v2837, %v2836
      %v2850 = vpack.c.b16 %v2839, %v2838
      %v2851 = vpack.c.b16 %v2841, %v2840
      %v2852 = vpack.c.b16 %v2843, %v2842
      %v2853 = vpack.c.b16 %v2845, %v2844
      %2862 = vmatprep.subr.bf16.mxu0 0
      %2863 = vmatpush1.bf16.msra.mxu0 %v2846
      %2864 = vmatprep.subr.bf16.mxu0 0
      %2865 = vmatpush1.bf16.msra.mxu0 %v2847
      %2866 = vmatprep.subr.bf16.mxu0 0
      %2867 = vmatpush1.bf16.msra.mxu0 %v2848
      %2868 = vmatprep.subr.bf16.mxu0 0
      %2869 = vmatpush1.bf16.msra.mxu0 %v2849
      %2870 = vmatprep.subr.bf16.mxu0 0
      %2871 = vmatpush1.bf16.msra.mxu0 %v2850
      %2872 = vmatprep.subr.bf16.mxu0 0
      %2873 = vmatpush1.bf16.msra.mxu0 %v2851
      %2874 = vmatprep.subr.bf16.mxu0 0
      %2875 = vmatpush1.bf16.msra.mxu0 %v2852
      %2876 = vmatprep.subr.bf16.mxu0 0
      %2877 = vmatpush1.bf16.msra.mxu0 %v2853
      %2878 = vmatprep.subr.bf16.mxu0 0
      %2879 = vmatpush1.bf16.msra.mxu0 0
      %2880 = vmatprep.subr.bf16.mxu0 0
      %2881 = vmatpush1.bf16.msra.mxu0 0
      %2882 = vmatprep.subr.bf16.mxu0 0
      %2883 = vmatpush1.bf16.msra.mxu0 0
      %2884 = vmatprep.subr.bf16.mxu0 0
      %2885 = vmatpush1.bf16.msra.mxu0 0
      %2886 = vmatprep.subr.bf16.mxu0 0
      %2887 = vmatpush1.bf16.msra.mxu0 0
      %2888 = vmatprep.subr.bf16.mxu0 0
      %2889 = vmatpush1.bf16.msra.mxu0 0
      %2890 = vmatprep.subr.bf16.mxu0 0
      %2891 = vmatpush1.bf16.msra.mxu0 0
      %2892 = vmatprep.subr.bf16.mxu0 0
      %2893 = vmatpush1.bf16.msra.mxu0 0
      %2894 = vmatprep.mubr.bf16.mxu0 0
      %2895 = vmatmul.mubr.bf16.gmra.mrb[0].mxu0 %v2812
      %v2896 = vpop.f32.mrb[0].mxu0
      %v2897 = vadd.f32 0.0, %v2896
      %v2898 = vpop.f32.mrb[0].mxu0
      %v2899 = vpop.f32.mrb[0].mxu0
      %v2900 = vpop.f32.mrb[0].mxu0
      %2901 = vdwg.mxu0
      %v2902 = vadd.f32 %v2782, %v2897
      %v2903 = vadd.f32 %v2902, %v627
      %v2904 = vmax.f32 %v2903, 0.0
      %v2905 = vpack.c.bf16 %v2904, %v2904
      %s2906 = scalar_lea.vmem %s170, 20
      %2907 = vst [vmem:[%s2906] sm:$0xf] %v2905
      %v2908 = vld [vmem:[%s2676] sm:$0xf]
      %v2909 = vld [vmem:[%s1] sm:$0xf]
      %v2910 = vld [vmem:[%s1 + $0x4] sm:$0xf]
      %v2911 = vld [vmem:[%s1 + $0x8] sm:$0xf]
      %v2912 = vld [vmem:[%s1 + $0xc] sm:$0xf]
      %v2913 = vld [vmem:[%s1 + $0x10] sm:$0xf]
      %v2914 = vld [vmem:[%s1 + $0x14] sm:$0xf]
      %v2915 = vld [vmem:[%s1 + $0x18] sm:$0xf]
      %v2916 = vld [vmem:[%s1 + $0x1c] sm:$0xf]
      %v2917 = vld [vmem:[%s1 + $0x20] sm:$0xf]
      %v2918 = vld [vmem:[%s1 + $0x24] sm:$0xf]
      %v2919 = vld [vmem:[%s1 + $0x28] sm:$0xf]
      %v2920 = vld [vmem:[%s1 + $0x2c] sm:$0xf]
      %v2921 = vld [vmem:[%s1 + $0x30] sm:$0xf]
      %v2922 = vld [vmem:[%s1 + $0x34] sm:$0xf]
      %v2923 = vld [vmem:[%s1 + $0x38] sm:$0xf]
      %v2924 = vld [vmem:[%s1 + $0x3c] sm:$0xf]
      %v2925 = vld [vmem:[%s2676 + $0x4] sm:$0x1]
      %v2926 = vld [vmem:[%s1 + $0x40] sm:$0xf]
      %v2927 = vld [vmem:[%s1 + $0x44] sm:$0xf]
      %v2928 = vld [vmem:[%s1 + $0x48] sm:$0xf]
      %v2929 = vld [vmem:[%s1 + $0x4c] sm:$0xf]
      %v2930 = vld [vmem:[%s1 + $0x50] sm:$0xf]
      %v2931 = vld [vmem:[%s1 + $0x54] sm:$0xf]
      %v2932 = vld [vmem:[%s1 + $0x58] sm:$0xf]
      %v2933 = vld [vmem:[%s1 + $0x5c] sm:$0xf]
      %v2934 = vld [vmem:[%s1 + $0x60] sm:$0xf]
      %v2935 = vld [vmem:[%s1 + $0x64] sm:$0xf]
      %v2936 = vld [vmem:[%s1 + $0x68] sm:$0xf]
      %v2937 = vld [vmem:[%s1 + $0x6c] sm:$0xf]
      %v2938 = vld [vmem:[%s1 + $0x70] sm:$0xf]
      %v2939 = vld [vmem:[%s1 + $0x74] sm:$0xf]
      %v2940 = vld [vmem:[%s1 + $0x78] sm:$0xf]
      %v2941 = vld [vmem:[%s1 + $0x7c] sm:$0xf]
      %v2944 = vunpack.c.l.b16 %v2908
      %v2945 = vunpack.c.l.b16 %v2925
      %v2946 = vpack.c.b16 %v2945, %v2944
      %v2948 = vshrl.u32 %v2946, 16
      %v2950 = vshll.u32 %v2946, 16
      %v2952 = vrot.slane %v2950, 1
      %v2953 = vor.u32 %v2948, %v2952
      %v2971 = vunpack.c.l.b16 %v2926
      %v2972 = vunpack.c.l.b16 %v2927
      %v2973 = vunpack.c.l.b16 %v2928
      %v2974 = vunpack.c.l.b16 %v2929
      %v2975 = vunpack.c.l.b16 %v2930
      %v2976 = vunpack.c.l.b16 %v2931
      %v2977 = vunpack.c.l.b16 %v2932
      %v2978 = vunpack.c.l.b16 %v2933
      %v2979 = vunpack.c.l.b16 %v2934
      %v2980 = vunpack.c.l.b16 %v2935
      %v2981 = vunpack.c.l.b16 %v2936
      %v2982 = vunpack.c.l.b16 %v2937
      %v2983 = vunpack.c.l.b16 %v2938
      %v2984 = vunpack.c.l.b16 %v2939
      %v2985 = vunpack.c.l.b16 %v2940
      %v2986 = vunpack.c.l.b16 %v2941
      %v2987 = vpack.c.b16 %v2972, %v2971
      %v2988 = vpack.c.b16 %v2974, %v2973
      %v2989 = vpack.c.b16 %v2976, %v2975
      %v2990 = vpack.c.b16 %v2978, %v2977
      %v2991 = vpack.c.b16 %v2980, %v2979
      %v2992 = vpack.c.b16 %v2982, %v2981
      %v2993 = vpack.c.b16 %v2984, %v2983
      %v2994 = vpack.c.b16 %v2986, %v2985
      %3003 = vmatprep.subr.bf16.mxu0 0
      %3004 = vmatpush1.bf16.msra.mxu0 %v2987
      %3005 = vmatprep.subr.bf16.mxu0 0
      %3006 = vmatpush1.bf16.msra.mxu0 %v2988
      %3007 = vmatprep.subr.bf16.mxu0 0
      %3008 = vmatpush1.bf16.msra.mxu0 %v2989
      %3009 = vmatprep.subr.bf16.mxu0 0
      %3010 = vmatpush1.bf16.msra.mxu0 %v2990
      %3011 = vmatprep.subr.bf16.mxu0 0
      %3012 = vmatpush1.bf16.msra.mxu0 %v2991
      %3013 = vmatprep.subr.bf16.mxu0 0
      %3014 = vmatpush1.bf16.msra.mxu0 %v2992
      %3015 = vmatprep.subr.bf16.mxu0 0
      %3016 = vmatpush1.bf16.msra.mxu0 %v2993
      %3017 = vmatprep.subr.bf16.mxu0 0
      %3018 = vmatpush1.bf16.msra.mxu0 %v2994
      %3019 = vmatprep.subr.bf16.mxu0 0
      %3020 = vmatpush1.bf16.msra.mxu0 0
      %3021 = vmatprep.subr.bf16.mxu0 0
      %3022 = vmatpush1.bf16.msra.mxu0 0
      %3023 = vmatprep.subr.bf16.mxu0 0
      %3024 = vmatpush1.bf16.msra.mxu0 0
      %3025 = vmatprep.subr.bf16.mxu0 0
      %3026 = vmatpush1.bf16.msra.mxu0 0
      %3027 = vmatprep.subr.bf16.mxu0 0
      %3028 = vmatpush1.bf16.msra.mxu0 0
      %3029 = vmatprep.subr.bf16.mxu0 0
      %3030 = vmatpush1.bf16.msra.mxu0 0
      %3031 = vmatprep.subr.bf16.mxu0 0
      %3032 = vmatpush1.bf16.msra.mxu0 0
      %3033 = vmatprep.subr.bf16.mxu0 0
      %3034 = vmatpush1.bf16.msra.mxu0 0
      %3035 = vmatprep.mubr.bf16.mxu0 0
      %3036 = vmatmul.mubr.bf16.gmra.mrb[0].mxu0 %v2953
      %v3037 = vpop.f32.mrb[0].mxu0
      %v3038 = vadd.f32 0.0, %v3037
      %v3039 = vpop.f32.mrb[0].mxu0
      %v3040 = vpop.f32.mrb[0].mxu0
      %v3041 = vpop.f32.mrb[0].mxu0
      %3042 = vdwg.mxu0
      %v3059 = vunpack.c.l.b16 %v2909
      %v3060 = vunpack.c.l.b16 %v2910
      %v3061 = vunpack.c.l.b16 %v2911
      %v3062 = vunpack.c.l.b16 %v2912
      %v3063 = vunpack.c.l.b16 %v2913
      %v3064 = vunpack.c.l.b16 %v2914
      %v3065 = vunpack.c.l.b16 %v2915
      %v3066 = vunpack.c.l.b16 %v2916
      %v3067 = vunpack.c.l.b16 %v2917
      %v3068 = vunpack.c.l.b16 %v2918
      %v3069 = vunpack.c.l.b16 %v2919
      %v3070 = vunpack.c.l.b16 %v2920
      %v3071 = vunpack.c.l.b16 %v2921
      %v3072 = vunpack.c.l.b16 %v2922
      %v3073 = vunpack.c.l.b16 %v2923
      %v3074 = vunpack.c.l.b16 %v2924
      %v3075 = vpack.c.b16 %v3060, %v3059
      %v3076 = vpack.c.b16 %v3062, %v3061
      %v3077 = vpack.c.b16 %v3064, %v3063
      %v3078 = vpack.c.b16 %v3066, %v3065
      %v3079 = vpack.c.b16 %v3068, %v3067
      %v3080 = vpack.c.b16 %v3070, %v3069
      %v3081 = vpack.c.b16 %v3072, %v3071
      %v3082 = vpack.c.b16 %v3074, %v3073
      %3091 = vmatprep.subr.bf16.mxu0 0
      %3092 = vmatpush1.bf16.msra.mxu0 %v3075
      %3093 = vmatprep.subr.bf16.mxu0 0
      %3094 = vmatpush1.bf16.msra.mxu0 %v3076
      %3095 = vmatprep.subr.bf16.mxu0 0
      %3096 = vmatpush1.bf16.msra.mxu0 %v3077
      %3097 = vmatprep.subr.bf16.mxu0 0
      %3098 = vmatpush1.bf16.msra.mxu0 %v3078
      %3099 = vmatprep.subr.bf16.mxu0 0
      %3100 = vmatpush1.bf16.msra.mxu0 %v3079
      %3101 = vmatprep.subr.bf16.mxu0 0
      %3102 = vmatpush1.bf16.msra.mxu0 %v3080
      %3103 = vmatprep.subr.bf16.mxu0 0
      %3104 = vmatpush1.bf16.msra.mxu0 %v3081
      %3105 = vmatprep.subr.bf16.mxu0 0
      %3106 = vmatpush1.bf16.msra.mxu0 %v3082
      %3107 = vmatprep.subr.bf16.mxu0 0
      %3108 = vmatpush1.bf16.msra.mxu0 0
      %3109 = vmatprep.subr.bf16.mxu0 0
      %3110 = vmatpush1.bf16.msra.mxu0 0
      %3111 = vmatprep.subr.bf16.mxu0 0
      %3112 = vmatpush1.bf16.msra.mxu0 0
      %3113 = vmatprep.subr.bf16.mxu0 0
      %3114 = vmatpush1.bf16.msra.mxu0 0
      %3115 = vmatprep.subr.bf16.mxu0 0
      %3116 = vmatpush1.bf16.msra.mxu0 0
      %3117 = vmatprep.subr.bf16.mxu0 0
      %3118 = vmatpush1.bf16.msra.mxu0 0
      %3119 = vmatprep.subr.bf16.mxu0 0
      %3120 = vmatpush1.bf16.msra.mxu0 0
      %3121 = vmatprep.subr.bf16.mxu0 0
      %3122 = vmatpush1.bf16.msra.mxu0 0
      %3123 = vmatprep.mubr.bf16.mxu0 0
      %3124 = vmatmul.mubr.bf16.gmra.mrb[0].mxu0 %v2908
      %v3125 = vpop.f32.mrb[0].mxu0
      %v3126 = vadd.f32 %v3038, %v3125
      %v3127 = vpop.f32.mrb[0].mxu0
      %v3128 = vpop.f32.mrb[0].mxu0
      %v3129 = vpop.f32.mrb[0].mxu0
      %3130 = vdwg.mxu0
      %s3131 = scalar_lea.vmem %s165, 56
      %v3132 = vld [vmem:[%s3131] sm:$0xf]
      %v3133 = vld [vmem:[%s1 + $0x80] sm:$0xf]
      %v3134 = vld [vmem:[%s1 + $0x84] sm:$0xf]
      %v3135 = vld [vmem:[%s1 + $0x88] sm:$0xf]
      %v3136 = vld [vmem:[%s1 + $0x8c] sm:$0xf]
      %v3137 = vld [vmem:[%s1 + $0x90] sm:$0xf]
      %v3138 = vld [vmem:[%s1 + $0x94] sm:$0xf]
      %v3139 = vld [vmem:[%s1 + $0x98] sm:$0xf]
      %v3140 = vld [vmem:[%s1 + $0x9c] sm:$0xf]
      %v3141 = vld [vmem:[%s1 + $0xa0] sm:$0xf]
      %v3142 = vld [vmem:[%s1 + $0xa4] sm:$0xf]
      %v3143 = vld [vmem:[%s1 + $0xa8] sm:$0xf]
      %v3144 = vld [vmem:[%s1 + $0xac] sm:$0xf]
      %v3145 = vld [vmem:[%s1 + $0xb0] sm:$0xf]
      %v3146 = vld [vmem:[%s1 + $0xb4] sm:$0xf]
      %v3147 = vld [vmem:[%s1 + $0xb8] sm:$0xf]
      %v3148 = vld [vmem:[%s1 + $0xbc] sm:$0xf]
      %v3165 = vunpack.c.l.b16 %v3133
      %v3166 = vunpack.c.l.b16 %v3134
      %v3167 = vunpack.c.l.b16 %v3135
      %v3168 = vunpack.c.l.b16 %v3136
      %v3169 = vunpack.c.l.b16 %v3137
      %v3170 = vunpack.c.l.b16 %v3138
      %v3171 = vunpack.c.l.b16 %v3139
      %v3172 = vunpack.c.l.b16 %v3140
      %v3173 = vunpack.c.l.b16 %v3141
      %v3174 = vunpack.c.l.b16 %v3142
      %v3175 = vunpack.c.l.b16 %v3143
      %v3176 = vunpack.c.l.b16 %v3144
      %v3177 = vunpack.c.l.b16 %v3145
      %v3178 = vunpack.c.l.b16 %v3146
      %v3179 = vunpack.c.l.b16 %v3147
      %v3180 = vunpack.c.l.b16 %v3148
      %v3181 = vpack.c.b16 %v3166, %v3165
      %v3182 = vpack.c.b16 %v3168, %v3167
      %v3183 = vpack.c.b16 %v3170, %v3169
      %v3184 = vpack.c.b16 %v3172, %v3171
      %v3185 = vpack.c.b16 %v3174, %v3173
      %v3186 = vpack.c.b16 %v3176, %v3175
      %v3187 = vpack.c.b16 %v3178, %v3177
      %v3188 = vpack.c.b16 %v3180, %v3179
      %3197 = vmatprep.subr.bf16.mxu0 0
      %3198 = vmatpush1.bf16.msra.mxu0 %v3181
      %3199 = vmatprep.subr.bf16.mxu0 0
      %3200 = vmatpush1.bf16.msra.mxu0 %v3182
      %3201 = vmatprep.subr.bf16.mxu0 0
      %3202 = vmatpush1.bf16.msra.mxu0 %v3183
      %3203 = vmatprep.subr.bf16.mxu0 0
      %3204 = vmatpush1.bf16.msra.mxu0 %v3184
      %3205 = vmatprep.subr.bf16.mxu0 0
      %3206 = vmatpush1.bf16.msra.mxu0 %v3185
      %3207 = vmatprep.subr.bf16.mxu0 0
      %3208 = vmatpush1.bf16.msra.mxu0 %v3186
      %3209 = vmatprep.subr.bf16.mxu0 0
      %3210 = vmatpush1.bf16.msra.mxu0 %v3187
      %3211 = vmatprep.subr.bf16.mxu0 0
      %3212 = vmatpush1.bf16.msra.mxu0 %v3188
      %3213 = vmatprep.subr.bf16.mxu0 0
      %3214 = vmatpush1.bf16.msra.mxu0 0
      %3215 = vmatprep.subr.bf16.mxu0 0
      %3216 = vmatpush1.bf16.msra.mxu0 0
      %3217 = vmatprep.subr.bf16.mxu0 0
      %3218 = vmatpush1.bf16.msra.mxu0 0
      %3219 = vmatprep.subr.bf16.mxu0 0
      %3220 = vmatpush1.bf16.msra.mxu0 0
      %3221 = vmatprep.subr.bf16.mxu0 0
      %3222 = vmatpush1.bf16.msra.mxu0 0
      %3223 = vmatprep.subr.bf16.mxu0 0
      %3224 = vmatpush1.bf16.msra.mxu0 0
      %3225 = vmatprep.subr.bf16.mxu0 0
      %3226 = vmatpush1.bf16.msra.mxu0 0
      %3227 = vmatprep.subr.bf16.mxu0 0
      %3228 = vmatpush1.bf16.msra.mxu0 0
      %3229 = vmatprep.mubr.bf16.mxu0 0
      %3230 = vmatmul.mubr.bf16.gmra.mrb[0].mxu0 %v3132
      %v3231 = vpop.f32.mrb[0].mxu0
      %v3232 = vadd.f32 0.0, %v3231
      %v3233 = vpop.f32.mrb[0].mxu0
      %v3234 = vpop.f32.mrb[0].mxu0
      %v3235 = vpop.f32.mrb[0].mxu0
      %3236 = vdwg.mxu0
      %v3237 = vadd.f32 %v3126, %v3232
      %v3238 = vld [vmem:[%s3131] sm:$0xf]
      %v3239 = vld [vmem:[%s3131 + $0x4] sm:$0x1]
      %v3240 = vld [vmem:[%s1 + $0xc0] sm:$0xf]
      %v3241 = vld [vmem:[%s1 + $0xc4] sm:$0xf]
      %v3242 = vld [vmem:[%s1 + $0xc8] sm:$0xf]
      %v3243 = vld [vmem:[%s1 + $0xcc] sm:$0xf]
      %v3244 = vld [vmem:[%s1 + $0xd0] sm:$0xf]
      %v3245 = vld [vmem:[%s1 + $0xd4] sm:$0xf]
      %v3246 = vld [vmem:[%s1 + $0xd8] sm:$0xf]
      %v3247 = vld [vmem:[%s1 + $0xdc] sm:$0xf]
      %v3248 = vld [vmem:[%s1 + $0xe0] sm:$0xf]
      %v3249 = vld [vmem:[%s1 + $0xe4] sm:$0xf]
      %v3250 = vld [vmem:[%s1 + $0xe8] sm:$0xf]
      %v3251 = vld [vmem:[%s1 + $0xec] sm:$0xf]
      %v3252 = vld [vmem:[%s1 + $0xf0] sm:$0xf]
      %v3253 = vld [vmem:[%s1 + $0xf4] sm:$0xf]
      %v3254 = vld [vmem:[%s1 + $0xf8] sm:$0xf]
      %v3255 = vld [vmem:[%s1 + $0xfc] sm:$0xf]
      %v3258 = vunpack.c.l.b16 %v3238
      %v3259 = vunpack.c.l.b16 %v3239
      %v3260 = vpack.c.b16 %v3259, %v3258
      %v3262 = vshrl.u32 %v3260, 16
      %v3264 = vshll.u32 %v3260, 16
      %v3266 = vrot.slane %v3264, 1
      %v3267 = vor.u32 %v3262, %v3266
      %v3285 = vunpack.c.l.b16 %v3240
      %v3286 = vunpack.c.l.b16 %v3241
      %v3287 = vunpack.c.l.b16 %v3242
      %v3288 = vunpack.c.l.b16 %v3243
      %v3289 = vunpack.c.l.b16 %v3244
      %v3290 = vunpack.c.l.b16 %v3245
      %v3291 = vunpack.c.l.b16 %v3246
      %v3292 = vunpack.c.l.b16 %v3247
      %v3293 = vunpack.c.l.b16 %v3248
      %v3294 = vunpack.c.l.b16 %v3249
      %v3295 = vunpack.c.l.b16 %v3250
      %v3296 = vunpack.c.l.b16 %v3251
      %v3297 = vunpack.c.l.b16 %v3252
      %v3298 = vunpack.c.l.b16 %v3253
      %v3299 = vunpack.c.l.b16 %v3254
      %v3300 = vunpack.c.l.b16 %v3255
      %v3301 = vpack.c.b16 %v3286, %v3285
      %v3302 = vpack.c.b16 %v3288, %v3287
      %v3303 = vpack.c.b16 %v3290, %v3289
      %v3304 = vpack.c.b16 %v3292, %v3291
      %v3305 = vpack.c.b16 %v3294, %v3293
      %v3306 = vpack.c.b16 %v3296, %v3295
      %v3307 = vpack.c.b16 %v3298, %v3297
      %v3308 = vpack.c.b16 %v3300, %v3299
      %3317 = vmatprep.subr.bf16.mxu0 0
      %3318 = vmatpush1.bf16.msra.mxu0 %v3301
      %3319 = vmatprep.subr.bf16.mxu0 0
      %3320 = vmatpush1.bf16.msra.mxu0 %v3302
      %3321 = vmatprep.subr.bf16.mxu0 0
      %3322 = vmatpush1.bf16.msra.mxu0 %v3303
      %3323 = vmatprep.subr.bf16.mxu0 0
      %3324 = vmatpush1.bf16.msra.mxu0 %v3304
      %3325 = vmatprep.subr.bf16.mxu0 0
      %3326 = vmatpush1.bf16.msra.mxu0 %v3305
      %3327 = vmatprep.subr.bf16.mxu0 0
      %3328 = vmatpush1.bf16.msra.mxu0 %v3306
      %3329 = vmatprep.subr.bf16.mxu0 0
      %3330 = vmatpush1.bf16.msra.mxu0 %v3307
      %3331 = vmatprep.subr.bf16.mxu0 0
      %3332 = vmatpush1.bf16.msra.mxu0 %v3308
      %3333 = vmatprep.subr.bf16.mxu0 0
      %3334 = vmatpush1.bf16.msra.mxu0 0
      %3335 = vmatprep.subr.bf16.mxu0 0
      %3336 = vmatpush1.bf16.msra.mxu0 0
      %3337 = vmatprep.subr.bf16.mxu0 0
      %3338 = vmatpush1.bf16.msra.mxu0 0
      %3339 = vmatprep.subr.bf16.mxu0 0
      %3340 = vmatpush1.bf16.msra.mxu0 0
      %3341 = vmatprep.subr.bf16.mxu0 0
      %3342 = vmatpush1.bf16.msra.mxu0 0
      %3343 = vmatprep.subr.bf16.mxu0 0
      %3344 = vmatpush1.bf16.msra.mxu0 0
      %3345 = vmatprep.subr.bf16.mxu0 0
      %3346 = vmatpush1.bf16.msra.mxu0 0
      %3347 = vmatprep.subr.bf16.mxu0 0
      %3348 = vmatpush1.bf16.msra.mxu0 0
      %3349 = vmatprep.mubr.bf16.mxu0 0
      %3350 = vmatmul.mubr.bf16.gmra.mrb[0].mxu0 %v3267
      %v3351 = vpop.f32.mrb[0].mxu0
      %v3352 = vadd.f32 0.0, %v3351
      %v3353 = vpop.f32.mrb[0].mxu0
      %v3354 = vpop.f32.mrb[0].mxu0
      %v3355 = vpop.f32.mrb[0].mxu0
      %3356 = vdwg.mxu0
      %v3357 = vadd.f32 %v3237, %v3352
      %v3358 = vadd.f32 %v3357, %v627
      %v3359 = vmax.f32 %v3358, 0.0
      %v3360 = vpack.c.bf16 %v3359, %v3359
      %s3361 = scalar_lea.vmem %s170, 24
      %3362 = vst [vmem:[%s3361] sm:$0xf] %v3360
      %v3363 = vld [vmem:[%s3131] sm:$0xf]
      %v3364 = vld [vmem:[%s1] sm:$0xf]
      %v3365 = vld [vmem:[%s1 + $0x4] sm:$0xf]
      %v3366 = vld [vmem:[%s1 + $0x8] sm:$0xf]
      %v3367 = vld [vmem:[%s1 + $0xc] sm:$0xf]
      %v3368 = vld [vmem:[%s1 + $0x10] sm:$0xf]
      %v3369 = vld [vmem:[%s1 + $0x14] sm:$0xf]
      %v3370 = vld [vmem:[%s1 + $0x18] sm:$0xf]
      %v3371 = vld [vmem:[%s1 + $0x1c] sm:$0xf]
      %v3372 = vld [vmem:[%s1 + $0x20] sm:$0xf]
      %v3373 = vld [vmem:[%s1 + $0x24] sm:$0xf]
      %v3374 = vld [vmem:[%s1 + $0x28] sm:$0xf]
      %v3375 = vld [vmem:[%s1 + $0x2c] sm:$0xf]
      %v3376 = vld [vmem:[%s1 + $0x30] sm:$0xf]
      %v3377 = vld [vmem:[%s1 + $0x34] sm:$0xf]
      %v3378 = vld [vmem:[%s1 + $0x38] sm:$0xf]
      %v3379 = vld [vmem:[%s1 + $0x3c] sm:$0xf]
      %v3380 = vld [vmem:[%s3131 + $0x4] sm:$0x1]
      %v3381 = vld [vmem:[%s1 + $0x40] sm:$0xf]
      %v3382 = vld [vmem:[%s1 + $0x44] sm:$0xf]
      %v3383 = vld [vmem:[%s1 + $0x48] sm:$0xf]
      %v3384 = vld [vmem:[%s1 + $0x4c] sm:$0xf]
      %v3385 = vld [vmem:[%s1 + $0x50] sm:$0xf]
      %v3386 = vld [vmem:[%s1 + $0x54] sm:$0xf]
      %v3387 = vld [vmem:[%s1 + $0x58] sm:$0xf]
      %v3388 = vld [vmem:[%s1 + $0x5c] sm:$0xf]
      %v3389 = vld [vmem:[%s1 + $0x60] sm:$0xf]
      %v3390 = vld [vmem:[%s1 + $0x64] sm:$0xf]
      %v3391 = vld [vmem:[%s1 + $0x68] sm:$0xf]
      %v3392 = vld [vmem:[%s1 + $0x6c] sm:$0xf]
      %v3393 = vld [vmem:[%s1 + $0x70] sm:$0xf]
      %v3394 = vld [vmem:[%s1 + $0x74] sm:$0xf]
      %v3395 = vld [vmem:[%s1 + $0x78] sm:$0xf]
      %v3396 = vld [vmem:[%s1 + $0x7c] sm:$0xf]
      %v3399 = vunpack.c.l.b16 %v3363
      %v3400 = vunpack.c.l.b16 %v3380
      %v3401 = vpack.c.b16 %v3400, %v3399
      %v3403 = vshrl.u32 %v3401, 16
      %v3405 = vshll.u32 %v3401, 16
      %v3407 = vrot.slane %v3405, 1
      %v3408 = vor.u32 %v3403, %v3407
      %v3426 = vunpack.c.l.b16 %v3381
      %v3427 = vunpack.c.l.b16 %v3382
      %v3428 = vunpack.c.l.b16 %v3383
      %v3429 = vunpack.c.l.b16 %v3384
      %v3430 = vunpack.c.l.b16 %v3385
      %v3431 = vunpack.c.l.b16 %v3386
      %v3432 = vunpack.c.l.b16 %v3387
      %v3433 = vunpack.c.l.b16 %v3388
      %v3434 = vunpack.c.l.b16 %v3389
      %v3435 = vunpack.c.l.b16 %v3390
      %v3436 = vunpack.c.l.b16 %v3391
      %v3437 = vunpack.c.l.b16 %v3392
      %v3438 = vunpack.c.l.b16 %v3393
      %v3439 = vunpack.c.l.b16 %v3394
      %v3440 = vunpack.c.l.b16 %v3395
      %v3441 = vunpack.c.l.b16 %v3396
      %v3442 = vpack.c.b16 %v3427, %v3426
      %v3443 = vpack.c.b16 %v3429, %v3428
      %v3444 = vpack.c.b16 %v3431, %v3430
      %v3445 = vpack.c.b16 %v3433, %v3432
      %v3446 = vpack.c.b16 %v3435, %v3434
      %v3447 = vpack.c.b16 %v3437, %v3436
      %v3448 = vpack.c.b16 %v3439, %v3438
      %v3449 = vpack.c.b16 %v3441, %v3440
      %3458 = vmatprep.subr.bf16.mxu0 0
      %3459 = vmatpush1.bf16.msra.mxu0 %v3442
      %3460 = vmatprep.subr.bf16.mxu0 0
      %3461 = vmatpush1.bf16.msra.mxu0 %v3443
      %3462 = vmatprep.subr.bf16.mxu0 0
      %3463 = vmatpush1.bf16.msra.mxu0 %v3444
      %3464 = vmatprep.subr.bf16.mxu0 0
      %3465 = vmatpush1.bf16.msra.mxu0 %v3445
      %3466 = vmatprep.subr.bf16.mxu0 0
      %3467 = vmatpush1.bf16.msra.mxu0 %v3446
      %3468 = vmatprep.subr.bf16.mxu0 0
      %3469 = vmatpush1.bf16.msra.mxu0 %v3447
      %3470 = vmatprep.subr.bf16.mxu0 0
      %3471 = vmatpush1.bf16.msra.mxu0 %v3448
      %3472 = vmatprep.subr.bf16.mxu0 0
      %3473 = vmatpush1.bf16.msra.mxu0 %v3449
      %3474 = vmatprep.subr.bf16.mxu0 0
      %3475 = vmatpush1.bf16.msra.mxu0 0
      %3476 = vmatprep.subr.bf16.mxu0 0
      %3477 = vmatpush1.bf16.msra.mxu0 0
      %3478 = vmatprep.subr.bf16.mxu0 0
      %3479 = vmatpush1.bf16.msra.mxu0 0
      %3480 = vmatprep.subr.bf16.mxu0 0
      %3481 = vmatpush1.bf16.msra.mxu0 0
      %3482 = vmatprep.subr.bf16.mxu0 0
      %3483 = vmatpush1.bf16.msra.mxu0 0
      %3484 = vmatprep.subr.bf16.mxu0 0
      %3485 = vmatpush1.bf16.msra.mxu0 0
      %3486 = vmatprep.subr.bf16.mxu0 0
      %3487 = vmatpush1.bf16.msra.mxu0 0
      %3488 = vmatprep.subr.bf16.mxu0 0
      %3489 = vmatpush1.bf16.msra.mxu0 0
      %3490 = vmatprep.mubr.bf16.mxu0 0
      %3491 = vmatmul.mubr.bf16.gmra.mrb[0].mxu0 %v3408
      %v3492 = vpop.f32.mrb[0].mxu0
      %v3493 = vadd.f32 0.0, %v3492
      %v3494 = vpop.f32.mrb[0].mxu0
      %v3495 = vpop.f32.mrb[0].mxu0
      %v3496 = vpop.f32.mrb[0].mxu0
      %3497 = vdwg.mxu0
      %v3514 = vunpack.c.l.b16 %v3364
      %v3515 = vunpack.c.l.b16 %v3365
      %v3516 = vunpack.c.l.b16 %v3366
      %v3517 = vunpack.c.l.b16 %v3367
      %v3518 = vunpack.c.l.b16 %v3368
      %v3519 = vunpack.c.l.b16 %v3369
      %v3520 = vunpack.c.l.b16 %v3370
      %v3521 = vunpack.c.l.b16 %v3371
      %v3522 = vunpack.c.l.b16 %v3372
      %v3523 = vunpack.c.l.b16 %v3373
      %v3524 = vunpack.c.l.b16 %v3374
      %v3525 = vunpack.c.l.b16 %v3375
      %v3526 = vunpack.c.l.b16 %v3376
      %v3527 = vunpack.c.l.b16 %v3377
      %v3528 = vunpack.c.l.b16 %v3378
      %v3529 = vunpack.c.l.b16 %v3379
      %v3530 = vpack.c.b16 %v3515, %v3514
      %v3531 = vpack.c.b16 %v3517, %v3516
      %v3532 = vpack.c.b16 %v3519, %v3518
      %v3533 = vpack.c.b16 %v3521, %v3520
      %v3534 = vpack.c.b16 %v3523, %v3522
      %v3535 = vpack.c.b16 %v3525, %v3524
      %v3536 = vpack.c.b16 %v3527, %v3526
      %v3537 = vpack.c.b16 %v3529, %v3528
      %3546 = vmatprep.subr.bf16.mxu0 0
      %3547 = vmatpush1.bf16.msra.mxu0 %v3530
      %3548 = vmatprep.subr.bf16.mxu0 0
      %3549 = vmatpush1.bf16.msra.mxu0 %v3531
      %3550 = vmatprep.subr.bf16.mxu0 0
      %3551 = vmatpush1.bf16.msra.mxu0 %v3532
      %3552 = vmatprep.subr.bf16.mxu0 0
      %3553 = vmatpush1.bf16.msra.mxu0 %v3533
      %3554 = vmatprep.subr.bf16.mxu0 0
      %3555 = vmatpush1.bf16.msra.mxu0 %v3534
      %3556 = vmatprep.subr.bf16.mxu0 0
      %3557 = vmatpush1.bf16.msra.mxu0 %v3535
      %3558 = vmatprep.subr.bf16.mxu0 0
      %3559 = vmatpush1.bf16.msra.mxu0 %v3536
      %3560 = vmatprep.subr.bf16.mxu0 0
      %3561 = vmatpush1.bf16.msra.mxu0 %v3537
      %3562 = vmatprep.subr.bf16.mxu0 0
      %3563 = vmatpush1.bf16.msra.mxu0 0
      %3564 = vmatprep.subr.bf16.mxu0 0
      %3565 = vmatpush1.bf16.msra.mxu0 0
      %3566 = vmatprep.subr.bf16.mxu0 0
      %3567 = vmatpush1.bf16.msra.mxu0 0
      %3568 = vmatprep.subr.bf16.mxu0 0
      %3569 = vmatpush1.bf16.msra.mxu0 0
      %3570 = vmatprep.subr.bf16.mxu0 0
      %3571 = vmatpush1.bf16.msra.mxu0 0
      %3572 = vmatprep.subr.bf16.mxu0 0
      %3573 = vmatpush1.bf16.msra.mxu0 0
      %3574 = vmatprep.subr.bf16.mxu0 0
      %3575 = vmatpush1.bf16.msra.mxu0 0
      %3576 = vmatprep.subr.bf16.mxu0 0
      %3577 = vmatpush1.bf16.msra.mxu0 0
      %3578 = vmatprep.mubr.bf16.mxu0 0
      %3579 = vmatmul.mubr.bf16.gmra.mrb[0].mxu0 %v3363
      %v3580 = vpop.f32.mrb[0].mxu0
      %v3581 = vadd.f32 %v3493, %v3580
      %v3582 = vpop.f32.mrb[0].mxu0
      %v3583 = vpop.f32.mrb[0].mxu0
      %v3584 = vpop.f32.mrb[0].mxu0
      %3585 = vdwg.mxu0
      %s3586 = scalar_lea.vmem %s165, 64
      %v3587 = vld [vmem:[%s3586] sm:$0xf]
      %v3588 = vld [vmem:[%s1 + $0x80] sm:$0xf]
      %v3589 = vld [vmem:[%s1 + $0x84] sm:$0xf]
      %v3590 = vld [vmem:[%s1 + $0x88] sm:$0xf]
      %v3591 = vld [vmem:[%s1 + $0x8c] sm:$0xf]
      %v3592 = vld [vmem:[%s1 + $0x90] sm:$0xf]
      %v3593 = vld [vmem:[%s1 + $0x94] sm:$0xf]
      %v3594 = vld [vmem:[%s1 + $0x98] sm:$0xf]
      %v3595 = vld [vmem:[%s1 + $0x9c] sm:$0xf]
      %v3596 = vld [vmem:[%s1 + $0xa0] sm:$0xf]
      %v3597 = vld [vmem:[%s1 + $0xa4] sm:$0xf]
      %v3598 = vld [vmem:[%s1 + $0xa8] sm:$0xf]
      %v3599 = vld [vmem:[%s1 + $0xac] sm:$0xf]
      %v3600 = vld [vmem:[%s1 + $0xb0] sm:$0xf]
      %v3601 = vld [vmem:[%s1 + $0xb4] sm:$0xf]
      %v3602 = vld [vmem:[%s1 + $0xb8] sm:$0xf]
      %v3603 = vld [vmem:[%s1 + $0xbc] sm:$0xf]
      %v3620 = vunpack.c.l.b16 %v3588
      %v3621 = vunpack.c.l.b16 %v3589
      %v3622 = vunpack.c.l.b16 %v3590
      %v3623 = vunpack.c.l.b16 %v3591
      %v3624 = vunpack.c.l.b16 %v3592
      %v3625 = vunpack.c.l.b16 %v3593
      %v3626 = vunpack.c.l.b16 %v3594
      %v3627 = vunpack.c.l.b16 %v3595
      %v3628 = vunpack.c.l.b16 %v3596
      %v3629 = vunpack.c.l.b16 %v3597
      %v3630 = vunpack.c.l.b16 %v3598
      %v3631 = vunpack.c.l.b16 %v3599
      %v3632 = vunpack.c.l.b16 %v3600
      %v3633 = vunpack.c.l.b16 %v3601
      %v3634 = vunpack.c.l.b16 %v3602
      %v3635 = vunpack.c.l.b16 %v3603
      %v3636 = vpack.c.b16 %v3621, %v3620
      %v3637 = vpack.c.b16 %v3623, %v3622
      %v3638 = vpack.c.b16 %v3625, %v3624
      %v3639 = vpack.c.b16 %v3627, %v3626
      %v3640 = vpack.c.b16 %v3629, %v3628
      %v3641 = vpack.c.b16 %v3631, %v3630
      %v3642 = vpack.c.b16 %v3633, %v3632
      %v3643 = vpack.c.b16 %v3635, %v3634
      %3652 = vmatprep.subr.bf16.mxu0 0
      %3653 = vmatpush1.bf16.msra.mxu0 %v3636
      %3654 = vmatprep.subr.bf16.mxu0 0
      %3655 = vmatpush1.bf16.msra.mxu0 %v3637
      %3656 = vmatprep.subr.bf16.mxu0 0
      %3657 = vmatpush1.bf16.msra.mxu0 %v3638
      %3658 = vmatprep.subr.bf16.mxu0 0
      %3659 = vmatpush1.bf16.msra.mxu0 %v3639
      %3660 = vmatprep.subr.bf16.mxu0 0
      %3661 = vmatpush1.bf16.msra.mxu0 %v3640
      %3662 = vmatprep.subr.bf16.mxu0 0
      %3663 = vmatpush1.bf16.msra.mxu0 %v3641
      %3664 = vmatprep.subr.bf16.mxu0 0
      %3665 = vmatpush1.bf16.msra.mxu0 %v3642
      %3666 = vmatprep.subr.bf16.mxu0 0
      %3667 = vmatpush1.bf16.msra.mxu0 %v3643
      %3668 = vmatprep.subr.bf16.mxu0 0
      %3669 = vmatpush1.bf16.msra.mxu0 0
      %3670 = vmatprep.subr.bf16.mxu0 0
      %3671 = vmatpush1.bf16.msra.mxu0 0
      %3672 = vmatprep.subr.bf16.mxu0 0
      %3673 = vmatpush1.bf16.msra.mxu0 0
      %3674 = vmatprep.subr.bf16.mxu0 0
      %3675 = vmatpush1.bf16.msra.mxu0 0
      %3676 = vmatprep.subr.bf16.mxu0 0
      %3677 = vmatpush1.bf16.msra.mxu0 0
      %3678 = vmatprep.subr.bf16.mxu0 0
      %3679 = vmatpush1.bf16.msra.mxu0 0
      %3680 = vmatprep.subr.bf16.mxu0 0
      %3681 = vmatpush1.bf16.msra.mxu0 0
      %3682 = vmatprep.subr.bf16.mxu0 0
      %3683 = vmatpush1.bf16.msra.mxu0 0
      %3684 = vmatprep.mubr.bf16.mxu0 0
      %3685 = vmatmul.mubr.bf16.gmra.mrb[0].mxu0 %v3587
      %v3686 = vpop.f32.mrb[0].mxu0
      %v3687 = vadd.f32 0.0, %v3686
      %v3688 = vpop.f32.mrb[0].mxu0
      %v3689 = vpop.f32.mrb[0].mxu0
      %v3690 = vpop.f32.mrb[0].mxu0
      %3691 = vdwg.mxu0
      %v3692 = vadd.f32 %v3581, %v3687
      %v3693 = vld [vmem:[%s3586] sm:$0xf]
      %v3694 = vld [vmem:[%s3586 + $0x4] sm:$0x1]
      %v3695 = vld [vmem:[%s1 + $0xc0] sm:$0xf]
      %v3696 = vld [vmem:[%s1 + $0xc4] sm:$0xf]
      %v3697 = vld [vmem:[%s1 + $0xc8] sm:$0xf]
      %v3698 = vld [vmem:[%s1 + $0xcc] sm:$0xf]
      %v3699 = vld [vmem:[%s1 + $0xd0] sm:$0xf]
      %v3700 = vld [vmem:[%s1 + $0xd4] sm:$0xf]
      %v3701 = vld [vmem:[%s1 + $0xd8] sm:$0xf]
      %v3702 = vld [vmem:[%s1 + $0xdc] sm:$0xf]
      %v3703 = vld [vmem:[%s1 + $0xe0] sm:$0xf]
      %v3704 = vld [vmem:[%s1 + $0xe4] sm:$0xf]
      %v3705 = vld [vmem:[%s1 + $0xe8] sm:$0xf]
      %v3706 = vld [vmem:[%s1 + $0xec] sm:$0xf]
      %v3707 = vld [vmem:[%s1 + $0xf0] sm:$0xf]
      %v3708 = vld [vmem:[%s1 + $0xf4] sm:$0xf]
      %v3709 = vld [vmem:[%s1 + $0xf8] sm:$0xf]
      %v3710 = vld [vmem:[%s1 + $0xfc] sm:$0xf]
      %v3713 = vunpack.c.l.b16 %v3693
      %v3714 = vunpack.c.l.b16 %v3694
      %v3715 = vpack.c.b16 %v3714, %v3713
      %v3717 = vshrl.u32 %v3715, 16
      %v3719 = vshll.u32 %v3715, 16
      %v3721 = vrot.slane %v3719, 1
      %v3722 = vor.u32 %v3717, %v3721
      %v3740 = vunpack.c.l.b16 %v3695
      %v3741 = vunpack.c.l.b16 %v3696
      %v3742 = vunpack.c.l.b16 %v3697
      %v3743 = vunpack.c.l.b16 %v3698
      %v3744 = vunpack.c.l.b16 %v3699
      %v3745 = vunpack.c.l.b16 %v3700
      %v3746 = vunpack.c.l.b16 %v3701
      %v3747 = vunpack.c.l.b16 %v3702
      %v3748 = vunpack.c.l.b16 %v3703
      %v3749 = vunpack.c.l.b16 %v3704
      %v3750 = vunpack.c.l.b16 %v3705
      %v3751 = vunpack.c.l.b16 %v3706
      %v3752 = vunpack.c.l.b16 %v3707
      %v3753 = vunpack.c.l.b16 %v3708
      %v3754 = vunpack.c.l.b16 %v3709
      %v3755 = vunpack.c.l.b16 %v3710
      %v3756 = vpack.c.b16 %v3741, %v3740
      %v3757 = vpack.c.b16 %v3743, %v3742
      %v3758 = vpack.c.b16 %v3745, %v3744
      %v3759 = vpack.c.b16 %v3747, %v3746
      %v3760 = vpack.c.b16 %v3749, %v3748
      %v3761 = vpack.c.b16 %v3751, %v3750
      %v3762 = vpack.c.b16 %v3753, %v3752
      %v3763 = vpack.c.b16 %v3755, %v3754
      %3772 = vmatprep.subr.bf16.mxu0 0
      %3773 = vmatpush1.bf16.msra.mxu0 %v3756
      %3774 = vmatprep.subr.bf16.mxu0 0
      %3775 = vmatpush1.bf16.msra.mxu0 %v3757
      %3776 = vmatprep.subr.bf16.mxu0 0
      %3777 = vmatpush1.bf16.msra.mxu0 %v3758
      %3778 = vmatprep.subr.bf16.mxu0 0
      %3779 = vmatpush1.bf16.msra.mxu0 %v3759
      %3780 = vmatprep.subr.bf16.mxu0 0
      %3781 = vmatpush1.bf16.msra.mxu0 %v3760
      %3782 = vmatprep.subr.bf16.mxu0 0
      %3783 = vmatpush1.bf16.msra.mxu0 %v3761
      %3784 = vmatprep.subr.bf16.mxu0 0
      %3785 = vmatpush1.bf16.msra.mxu0 %v3762
      %3786 = vmatprep.subr.bf16.mxu0 0
      %3787 = vmatpush1.bf16.msra.mxu0 %v3763
      %3788 = vmatprep.subr.bf16.mxu0 0
      %3789 = vmatpush1.bf16.msra.mxu0 0
      %3790 = vmatprep.subr.bf16.mxu0 0
      %3791 = vmatpush1.bf16.msra.mxu0 0
      %3792 = vmatprep.subr.bf16.mxu0 0
      %3793 = vmatpush1.bf16.msra.mxu0 0
      %3794 = vmatprep.subr.bf16.mxu0 0
      %3795 = vmatpush1.bf16.msra.mxu0 0
      %3796 = vmatprep.subr.bf16.mxu0 0
      %3797 = vmatpush1.bf16.msra.mxu0 0
      %3798 = vmatprep.subr.bf16.mxu0 0
      %3799 = vmatpush1.bf16.msra.mxu0 0
      %3800 = vmatprep.subr.bf16.mxu0 0
      %3801 = vmatpush1.bf16.msra.mxu0 0
      %3802 = vmatprep.subr.bf16.mxu0 0
      %3803 = vmatpush1.bf16.msra.mxu0 0
      %3804 = vmatprep.mubr.bf16.mxu0 0
      %3805 = vmatmul.mubr.bf16.gmra.mrb[0].mxu0 %v3722
      %v3806 = vpop.f32.mrb[0].mxu0
      %v3807 = vadd.f32 0.0, %v3806
      %v3808 = vpop.f32.mrb[0].mxu0
      %v3809 = vpop.f32.mrb[0].mxu0
      %v3810 = vpop.f32.mrb[0].mxu0
      %3811 = vdwg.mxu0
      %v3812 = vadd.f32 %v3692, %v3807
      %v3813 = vadd.f32 %v3812, %v627
      %v3814 = vmax.f32 %v3813, 0.0
      %v3815 = vpack.c.bf16 %v3814, %v3814
      %s3816 = scalar_lea.vmem %s170, 28
      %3817 = vst [vmem:[%s3816] sm:$0xf] %v3815
      %p3818 = scmp.lt.s32.totalorder %s14, 1
      %s3819 = scalar_select %p3818, %s14, 1
      %s3820 = smul.addr %s3819, 8
      %s3821 = smul.addr %s3820, 4
      %s3822 = scalar_lea.vmem %s3, %s3821
      // Predicated region
      $region33: #{dqn_distributional_forward.4} parent=31 // pred_check
        %p3823 = pneg %p100
      $region34: #{dqn_distributional_forward.4} parent=31 // pred_check_branch
        %3825 = sbr.rel (%p3823) target = $region36
      $region35: #{dqn_distributional_forward.4} parent=31 // pred_region
        _
      $region36: #{dqn_distributional_forward.4} parent=31 // pred_fallthru
        _
    $region32: #{dqn_distributional_forward.4} parent=5 // pred_fallthru
      _
    %p3826 = scmp.le.s32.totalorder 2, %s9
    // Predicated region
    $region37: #{dqn_distributional_forward.4} parent=5 // pred_check
      %p3827 = pneg %p3826
    $region38: #{dqn_distributional_forward.4} parent=5 // pred_check_branch
      %3829 = sbr.rel (%p3827) target = $region40
    $region39: #{dqn_distributional_forward.4} parent=5 // pred_region
      %s3830 = ssub.s32 %s9, 2
      // Predicated region
      $region41: #{dqn_distributional_forward.4} parent=39 // pred_check
        %p3831 = pneg %p106
      $region42: #{dqn_distributional_forward.4} parent=39 // pred_check_branch
        %3833 = sbr.rel (%p3831) target = $region44
      $region43: #{dqn_distributional_forward.4} parent=39 // pred_region
        %p3834 = scmp.lt.s32.totalorder %s15, 1
        %s3835 = scalar_select %p3834, %s15, 1
        %s3836 = smul.addr %s3835, 8
        %s3837 = smul.addr %s3836, 4
        %s3838 = scalar_lea.vmem %s3, %s3837
      $region44: #{dqn_distributional_forward.4} parent=39 // pred_fallthru
        _
    $region40: #{dqn_distributional_forward.4} parent=5 // pred_fallthru
      _
  $region6: #{dqn_distributional_forward.4} parent=0 // loop_footer
    %s13 = sadd.s32 1, %s9
  $region7: #{dqn_distributional_forward.4} parent=0 // loop_footer_branch
    %8 = sbr.rel target = $region3
  $region8: #{dqn_distributional_forward.4} parent=0 // loop_exit
    _

// kernel: dqn_distributional_forward.6
$region0: #{dqn_distributional_forward.6}
  #allocation0 [shape = 'u32[]', space=smem, size = 0x4, offset = 0x4, fixed_abs, tag = 'smem constant byte address 0x4 - core index']
  #allocation1 [shape = 'u32[144,128]{1,0:T(1,128)}', space=vmem, size = 0x12000, scoped, tag = 'internal scratch']
  %s0 = inlined_call_operand.vmem [shape: bf16[2,3,3,128], index: 0, kind: input, shape index: {}]
  %s1 = inlined_call_operand.vmem [shape: bf16[1152,128], index: 1, kind: input, shape index: {}]
  %s2 = inlined_call_operand.vmem [shape: f32[1,128], index: 2, kind: input, shape index: {}]
  %s3 = inlined_call_operand.vmem [shape: bf16[2,1,1,128], index: 3, kind: output, shape index: {}]
  %s4 = sld [smem:[#allocation0]]
  $region45: #{dqn_distributional_forward.6} parent=0
    _
  %s6 = ssub.s32 1, %s4
  %s7 = scalar_select 0, %s6, %s4
  loop: start=0, step=1, limit=4
  $region2: #{dqn_distributional_forward.6} parent=0 // loop_pre_header
    _
  $region3: #{dqn_distributional_forward.6} parent=0 // loop_header
    %s9 = sphi 0, %s13
    %p10 = scmp.ge.s32.totalorder %s9, 4
    %s19 = sphi 0, %s21
    %s22 = sphi 0, %s19
    %s23 = sphi 0, %s22
    %s39 = sphi 0, %s23
    %s43 = sphi 0, %s43
    %s45 = sphi 0, %s43
    %s46 = sphi 0, %s45
    %s60 = sphi 0, %s46
    %s64 = sphi 0, %s64
    %s66 = sphi 0, %s64
    %s67 = sphi 0, %s66
    %s81 = sphi 0, %s67
    %s87 = sphi 0, %s89
    %s90 = sphi 0, %s87
    %s91 = sphi 0, %s90
    %s107 = sphi 0, %s91
  $region4: #{dqn_distributional_forward.6} parent=0 // loop_header_branch
    %12 = sbr.rel (%p10) target = $region8
  $region5: #{dqn_distributional_forward.6} parent=0 // loop_body
    %s14 = ssub.s32 %s9, 1
    %s15 = ssub.s32 %s9, 2
    %s16 = sadd.s32 %s9, 1
    %s17 = ssub.s32 %s9, %s16
    %p18 = scmp.eq.s32.totalorder %s17, 0
    %s20 = sadd.s32 %s19, 1
    %s21 = scalar_select %p18, %s19, %s20
    %p24 = pneg %p18
    %p25 = scmp.eq.s32.totalorder %s9, 1
    %p26 = por %p24, %p25
    %p27 = scmp.ne.s32.totalorder %s19, %s22
    %p28 = scmp.eq.s32.totalorder %s9, 0
    %p29 = por %p27, %p28
    %p30 = scmp.ne.s32.totalorder %s19, %s22
    %p31 = scmp.eq.s32.totalorder %s14, 1
    %p32 = por %p30, %p31
    %p33 = scmp.ne.s32.totalorder %s22, %s23
    %p34 = scmp.eq.s32.totalorder %s14, 0
    %p35 = por %p33, %p34
    %p36 = scmp.ne.s32.totalorder %s22, %s23
    %p37 = scmp.eq.s32.totalorder %s15, 1
    %p38 = por %p36, %p37
    %p40 = scmp.ne.s32.totalorder %s23, %s39
    %p41 = scmp.eq.s32.totalorder %s15, 0
    %p42 = por %p40, %p41
    %s44 = sadd.s32 %s43, 1
    %p47 = scmp.eq.s32.totalorder %s9, 1
    %p48 = scmp.ne.s32.totalorder %s43, %s45
    %p49 = scmp.eq.s32.totalorder %s9, 0
    %p50 = por %p48, %p49
    %p51 = scmp.ne.s32.totalorder %s43, %s45
    %p52 = scmp.eq.s32.totalorder %s14, 1
    %p53 = por %p51, %p52
    %p54 = scmp.ne.s32.totalorder %s45, %s46
    %p55 = scmp.eq.s32.totalorder %s14, 0
    %p56 = por %p54, %p55
    %p57 = scmp.ne.s32.totalorder %s45, %s46
    %p58 = scmp.eq.s32.totalorder %s15, 1
    %p59 = por %p57, %p58
    %p61 = scmp.ne.s32.totalorder %s46, %s60
    %p62 = scmp.eq.s32.totalorder %s15, 0
    %p63 = por %p61, %p62
    %s65 = sadd.s32 %s64, 1
    %p68 = scmp.eq.s32.totalorder %s9, 1
    %p69 = scmp.ne.s32.totalorder %s64, %s66
    %p70 = scmp.eq.s32.totalorder %s9, 0
    %p71 = por %p69, %p70
    %p72 = scmp.ne.s32.totalorder %s64, %s66
    %p73 = scmp.eq.s32.totalorder %s14, 1
    %p74 = por %p72, %p73
    %p75 = scmp.ne.s32.totalorder %s66, %s67
    %p76 = scmp.eq.s32.totalorder %s14, 0
    %p77 = por %p75, %p76
    %p78 = scmp.ne.s32.totalorder %s66, %s67
    %p79 = scmp.eq.s32.totalorder %s15, 1
    %p80 = por %p78, %p79
    %p82 = scmp.ne.s32.totalorder %s67, %s81
    %p83 = scmp.eq.s32.totalorder %s15, 0
    %p84 = por %p82, %p83
    %s85 = ssub.s32 %s9, %s16
    %p86 = scmp.eq.s32.totalorder %s85, 0
    %s88 = sadd.s32 %s87, 1
    %s89 = scalar_select %p86, %s87, %s88
    %p92 = pneg %p86
    %p93 = scmp.eq.s32.totalorder %s9, 1
    %p94 = por %p92, %p93
    %p95 = scmp.ne.s32.totalorder %s87, %s90
    %p96 = scmp.eq.s32.totalorder %s9, 0
    %p97 = por %p95, %p96
    %p98 = scmp.ne.s32.totalorder %s87, %s90
    %p99 = scmp.eq.s32.totalorder %s14, 1
    %p100 = por %p98, %p99
    %p101 = scmp.ne.s32.totalorder %s90, %s91
    %p102 = scmp.eq.s32.totalorder %s14, 0
    %p103 = por %p101, %p102
    %p104 = scmp.ne.s32.totalorder %s90, %s91
    %p105 = scmp.eq.s32.totalorder %s15, 1
    %p106 = por %p104, %p105
    %p108 = scmp.ne.s32.totalorder %s91, %s107
    %p109 = scmp.eq.s32.totalorder %s15, 0
    %p110 = por %p108, %p109
    %p111 = scmp.le.s32.totalorder 1, %s9
    %p112 = scmp.lt.s32.totalorder %s9, 3
    %p113 = pnand %p111, %p112
    %p114 = pneg %p113
    // Predicated region
    $region9: #{dqn_distributional_forward.6} parent=5 // pred_check
      _
    $region10: #{dqn_distributional_forward.6} parent=5 // pred_check_branch
      %116 = sbr.rel (%p113) target = $region12
    $region11: #{dqn_distributional_forward.6} parent=5 // pred_region
      %s117 = ssub.s32 %s9, 1
      // Predicated region
      $region13: #{dqn_distributional_forward.6} parent=11 // pred_check
        %p118 = pneg %p56
      $region14: #{dqn_distributional_forward.6} parent=11 // pred_check_branch
        %120 = sbr.rel (%p118) target = $region16
      $region15: #{dqn_distributional_forward.6} parent=11 // pred_region
        _
      $region16: #{dqn_distributional_forward.6} parent=11 // pred_fallthru
        _
      // Predicated region
      $region17: #{dqn_distributional_forward.6} parent=11 // pred_check
        %p121 = pneg %p77
      $region18: #{dqn_distributional_forward.6} parent=11 // pred_check_branch
        %123 = sbr.rel (%p121) target = $region20
      $region19: #{dqn_distributional_forward.6} parent=11 // pred_region
        _
      $region20: #{dqn_distributional_forward.6} parent=11 // pred_fallthru
        _
    $region12: #{dqn_distributional_forward.6} parent=5 // pred_fallthru
      _
    %p124 = scmp.lt.s32.totalorder %s9, 2
    // Predicated region
    $region21: #{dqn_distributional_forward.6} parent=5 // pred_check
      %p125 = pneg %p124
    $region22: #{dqn_distributional_forward.6} parent=5 // pred_check_branch
      %127 = sbr.rel (%p125) target = $region24
    $region23: #{dqn_distributional_forward.6} parent=5 // pred_region
      // Predicated region
      $region25: #{dqn_distributional_forward.6} parent=23 // pred_check
        %p128 = pneg %p29
      $region26: #{dqn_distributional_forward.6} parent=23 // pred_check_branch
        %130 = sbr.rel (%p128) target = $region28
      $region27: #{dqn_distributional_forward.6} parent=23 // pred_region
        %p131 = scmp.lt.s32.totalorder %s9, 1
        %s132 = scalar_select %p131, %s9, 1
        %s133 = smul.addr %s132, 3
        %s134 = smul.addr %s133, 2
        %s135 = scalar_lea.vmem %s0, %s134
      $region28: #{dqn_distributional_forward.6} parent=23 // pred_fallthru
        _
    $region24: #{dqn_distributional_forward.6} parent=5 // pred_fallthru
      _
    %p136 = scmp.le.s32.totalorder 1, %s9
    %p137 = scmp.lt.s32.totalorder %s9, 3
    %p138 = pnand %p136, %p137
    %p139 = pneg %p138
    // Predicated region
    $region29: #{dqn_distributional_forward.6} parent=5 // pred_check
      _
    $region30: #{dqn_distributional_forward.6} parent=5 // pred_check_branch
      %141 = sbr.rel (%p138) target = $region32
    $region31: #{dqn_distributional_forward.6} parent=5 // pred_region
      %s142 = ssub.s32 %s9, 1
      %p143 = scmp.lt.s32.totalorder %s14, 1
      %s144 = scalar_select %p143, %s14, 1
      %s145 = smul.addr %s144, 3
      %s146 = smul.addr %s145, 2
      %s147 = scalar_lea.vmem %s0, %s146
      %p148 = pneg %p35
      %p149 = pneg %p32
      %p150 = pneg %p56
      %p151 = pneg %p53
      %p152 = pneg %p77
      %p153 = pneg %p74
      %p154 = pneg %p103
      %p155 = pneg %p100
      %p156 = scmp.lt.s32.totalorder %s14, 1
      %s157 = scalar_select %p156, %s14, 1
      %s158 = scalar_lea.vmem %s3, %s157
      %p159 = scmp.lt.s32.totalorder %s14, 1
      %s160 = scalar_select %p159, %s14, 1
      %s161 = smul.addr %s160, 3
      %s162 = smul.addr %s161, 2
      %s163 = scalar_lea.vmem %s0, %s162
      %p164 = scmp.lt.s32.totalorder %s14, 1
      %s165 = scalar_select %p164, %s14, 1
      %s166 = scalar_lea.vmem %s3, %s165
      %v168 = vld [vmem:[%s2] sm:$0x1]
      %v169 = vld [vmem:[%s163] sm:$0x1]
      %v170 = vld [vmem:[%s1] sm:$0xf]
      %v171 = vld [vmem:[%s1 + $0x4] sm:$0xf]
      %v172 = vld [vmem:[%s1 + $0x8] sm:$0xf]
      %v173 = vld [vmem:[%s1 + $0xc] sm:$0xf]
      %v174 = vld [vmem:[%s1 + $0x10] sm:$0xf]
      %v175 = vld [vmem:[%s1 + $0x14] sm:$0xf]
      %v176 = vld [vmem:[%s1 + $0x18] sm:$0xf]
      %v177 = vld [vmem:[%s1 + $0x1c] sm:$0xf]
      %v178 = vld [vmem:[%s1 + $0x20] sm:$0xf]
      %v179 = vld [vmem:[%s1 + $0x24] sm:$0xf]
      %v180 = vld [vmem:[%s1 + $0x28] sm:$0xf]
      %v181 = vld [vmem:[%s1 + $0x2c] sm:$0xf]
      %v182 = vld [vmem:[%s1 + $0x30] sm:$0xf]
      %v183 = vld [vmem:[%s1 + $0x34] sm:$0xf]
      %v184 = vld [vmem:[%s1 + $0x38] sm:$0xf]
      %v185 = vld [vmem:[%s1 + $0x3c] sm:$0xf]
      %v186 = vld [vmem:[%s1 + $0x40] sm:$0xf]
      %v187 = vld [vmem:[%s1 + $0x44] sm:$0xf]
      %v188 = vld [vmem:[%s1 + $0x48] sm:$0xf]
      %v189 = vld [vmem:[%s1 + $0x4c] sm:$0xf]
      %v190 = vld [vmem:[%s1 + $0x50] sm:$0xf]
      %v191 = vld [vmem:[%s1 + $0x54] sm:$0xf]
      %v192 = vld [vmem:[%s1 + $0x58] sm:$0xf]
      %v193 = vld [vmem:[%s1 + $0x5c] sm:$0xf]
      %v194 = vld [vmem:[%s1 + $0x60] sm:$0xf]
      %v195 = vld [vmem:[%s1 + $0x64] sm:$0xf]
      %v196 = vld [vmem:[%s1 + $0x68] sm:$0xf]
      %v197 = vld [vmem:[%s1 + $0x6c] sm:$0xf]
      %v198 = vld [vmem:[%s1 + $0x70] sm:$0xf]
      %v199 = vld [vmem:[%s1 + $0x74] sm:$0xf]
      %v200 = vld [vmem:[%s1 + $0x78] sm:$0xf]
      %v201 = vld [vmem:[%s1 + $0x7c] sm:$0xf]
      %v204 = vunpack.c.l.s4 1983009808
      %v205 = vunpack.c.0.s8 %v204
      %v206 = vlaneseq
      %v207 = vshrl.u32 %v206, 7
      %v208 = vsub.s32 %v205, %v207
      %v209 = vrot.slane %v169, %v208
      %v211 = vshrl.u32 %v209, 16
      %v230 = vunpack.c.l.b16 %v186
      %v231 = vunpack.c.l.b16 %v187
      %v232 = vunpack.c.l.b16 %v188
      %v233 = vunpack.c.l.b16 %v189
      %v234 = vunpack.c.l.b16 %v190
      %v235 = vunpack.c.l.b16 %v191
      %v236 = vunpack.c.l.b16 %v192
      %v237 = vunpack.c.l.b16 %v193
      %v238 = vunpack.c.l.b16 %v194
      %v239 = vunpack.c.l.b16 %v195
      %v240 = vunpack.c.l.b16 %v196
      %v241 = vunpack.c.l.b16 %v197
      %v242 = vunpack.c.l.b16 %v198
      %v243 = vunpack.c.l.b16 %v199
      %v244 = vunpack.c.l.b16 %v200
      %v245 = vunpack.c.l.b16 %v201
      %v246 = vpack.c.b16 %v231, %v230
      %v247 = vpack.c.b16 %v233, %v232
      %v248 = vpack.c.b16 %v235, %v234
      %v249 = vpack.c.b16 %v237, %v236
      %v250 = vpack.c.b16 %v239, %v238
      %v251 = vpack.c.b16 %v241, %v240
      %v252 = vpack.c.b16 %v243, %v242
      %v253 = vpack.c.b16 %v245, %v244
      %262 = vmatprep.subr.bf16.mxu0 0
      %263 = vmatpush1.bf16.msra.mxu0 %v246
      %264 = vmatprep.subr.bf16.mxu0 0
      %265 = vmatpush1.bf16.msra.mxu0 %v247
      %266 = vmatprep.subr.bf16.mxu0 0
      %267 = vmatpush1.bf16.msra.mxu0 %v248
      %268 = vmatprep.subr.bf16.mxu0 0
      %269 = vmatpush1.bf16.msra.mxu0 %v249
      %270 = vmatprep.subr.bf16.mxu0 0
      %271 = vmatpush1.bf16.msra.mxu0 %v250
      %272 = vmatprep.subr.bf16.mxu0 0
      %273 = vmatpush1.bf16.msra.mxu0 %v251
      %274 = vmatprep.subr.bf16.mxu0 0
      %275 = vmatpush1.bf16.msra.mxu0 %v252
      %276 = vmatprep.subr.bf16.mxu0 0
      %277 = vmatpush1.bf16.msra.mxu0 %v253
      %278 = vmatprep.subr.bf16.mxu0 0
      %279 = vmatpush1.bf16.msra.mxu0 0
      %280 = vmatprep.subr.bf16.mxu0 0
      %281 = vmatpush1.bf16.msra.mxu0 0
      %282 = vmatprep.subr.bf16.mxu0 0
      %283 = vmatpush1.bf16.msra.mxu0 0
      %284 = vmatprep.subr.bf16.mxu0 0
      %285 = vmatpush1.bf16.msra.mxu0 0
      %286 = vmatprep.subr.bf16.mxu0 0
      %287 = vmatpush1.bf16.msra.mxu0 0
      %288 = vmatprep.subr.bf16.mxu0 0
      %289 = vmatpush1.bf16.msra.mxu0 0
      %290 = vmatprep.subr.bf16.mxu0 0
      %291 = vmatpush1.bf16.msra.mxu0 0
      %292 = vmatprep.subr.bf16.mxu0 0
      %293 = vmatpush1.bf16.msra.mxu0 0
      %294 = vmatprep.mubr.bf16.mxu0 0
      %295 = vmatmul.mubr.bf16.gmra.mrb[0].mxu0 %v211
      %v296 = vpop.f32.mrb[0].mxu0
      %v297 = vadd.f32 0.0, %v296
      %v298 = vpop.f32.mrb[0].mxu0
      %v299 = vpop.f32.mrb[0].mxu0
      %v300 = vpop.f32.mrb[0].mxu0
      %301 = vdwg.mxu0
      %v318 = vunpack.c.l.b16 %v170
      %v319 = vunpack.c.l.b16 %v171
      %v320 = vunpack.c.l.b16 %v172
      %v321 = vunpack.c.l.b16 %v173
      %v322 = vunpack.c.l.b16 %v174
      %v323 = vunpack.c.l.b16 %v175
      %v324 = vunpack.c.l.b16 %v176
      %v325 = vunpack.c.l.b16 %v177
      %v326 = vunpack.c.l.b16 %v178
      %v327 = vunpack.c.l.b16 %v179
      %v328 = vunpack.c.l.b16 %v180
      %v329 = vunpack.c.l.b16 %v181
      %v330 = vunpack.c.l.b16 %v182
      %v331 = vunpack.c.l.b16 %v183
      %v332 = vunpack.c.l.b16 %v184
      %v333 = vunpack.c.l.b16 %v185
      %v334 = vpack.c.b16 %v319, %v318
      %v335 = vpack.c.b16 %v321, %v320
      %v336 = vpack.c.b16 %v323, %v322
      %v337 = vpack.c.b16 %v325, %v324
      %v338 = vpack.c.b16 %v327, %v326
      %v339 = vpack.c.b16 %v329, %v328
      %v340 = vpack.c.b16 %v331, %v330
      %v341 = vpack.c.b16 %v333, %v332
      %350 = vmatprep.subr.bf16.mxu0 0
      %351 = vmatpush1.bf16.msra.mxu0 %v334
      %352 = vmatprep.subr.bf16.mxu0 0
      %353 = vmatpush1.bf16.msra.mxu0 %v335
      %354 = vmatprep.subr.bf16.mxu0 0
      %355 = vmatpush1.bf16.msra.mxu0 %v336
      %356 = vmatprep.subr.bf16.mxu0 0
      %357 = vmatpush1.bf16.msra.mxu0 %v337
      %358 = vmatprep.subr.bf16.mxu0 0
      %359 = vmatpush1.bf16.msra.mxu0 %v338
      %360 = vmatprep.subr.bf16.mxu0 0
      %361 = vmatpush1.bf16.msra.mxu0 %v339
      %362 = vmatprep.subr.bf16.mxu0 0
      %363 = vmatpush1.bf16.msra.mxu0 %v340
      %364 = vmatprep.subr.bf16.mxu0 0
      %365 = vmatpush1.bf16.msra.mxu0 %v341
      %366 = vmatprep.subr.bf16.mxu0 0
      %367 = vmatpush1.bf16.msra.mxu0 0
      %368 = vmatprep.subr.bf16.mxu0 0
      %369 = vmatpush1.bf16.msra.mxu0 0
      %370 = vmatprep.subr.bf16.mxu0 0
      %371 = vmatpush1.bf16.msra.mxu0 0
      %372 = vmatprep.subr.bf16.mxu0 0
      %373 = vmatpush1.bf16.msra.mxu0 0
      %374 = vmatprep.subr.bf16.mxu0 0
      %375 = vmatpush1.bf16.msra.mxu0 0
      %376 = vmatprep.subr.bf16.mxu0 0
      %377 = vmatpush1.bf16.msra.mxu0 0
      %378 = vmatprep.subr.bf16.mxu0 0
      %379 = vmatpush1.bf16.msra.mxu0 0
      %380 = vmatprep.subr.bf16.mxu0 0
      %381 = vmatpush1.bf16.msra.mxu0 0
      %382 = vmatprep.mubr.bf16.mxu0 0
      %383 = vmatmul.mubr.bf16.gmra.mrb[0].mxu0 %v169
      %v384 = vpop.f32.mrb[0].mxu0
      %v385 = vadd.f32 %v297, %v384
      %v386 = vpop.f32.mrb[0].mxu0
      %v387 = vpop.f32.mrb[0].mxu0
      %v388 = vpop.f32.mrb[0].mxu0
      %389 = vdwg.mxu0
      %v390 = vld [vmem:[%s163] sm:$0x2]
      %v391 = vld [vmem:[%s1 + $0x80] sm:$0xf]
      %v392 = vld [vmem:[%s1 + $0x84] sm:$0xf]
      %v393 = vld [vmem:[%s1 + $0x88] sm:$0xf]
      %v394 = vld [vmem:[%s1 + $0x8c] sm:$0xf]
      %v395 = vld [vmem:[%s1 + $0x90] sm:$0xf]
      %v396 = vld [vmem:[%s1 + $0x94] sm:$0xf]
      %v397 = vld [vmem:[%s1 + $0x98] sm:$0xf]
      %v398 = vld [vmem:[%s1 + $0x9c] sm:$0xf]
      %v399 = vld [vmem:[%s1 + $0xa0] sm:$0xf]
      %v400 = vld [vmem:[%s1 + $0xa4] sm:$0xf]
      %v401 = vld [vmem:[%s1 + $0xa8] sm:$0xf]
      %v402 = vld [vmem:[%s1 + $0xac] sm:$0xf]
      %v403 = vld [vmem:[%s1 + $0xb0] sm:$0xf]
      %v404 = vld [vmem:[%s1 + $0xb4] sm:$0xf]
      %v405 = vld [vmem:[%s1 + $0xb8] sm:$0xf]
      %v406 = vld [vmem:[%s1 + $0xbc] sm:$0xf]
      %v409 = vunpack.c.l.s4 1983009808
      %v410 = vunpack.c.0.s8 %v409
      %v411 = vlaneseq
      %v412 = vshrl.u32 %v411, 7
      %v413 = vsub.s32 %v410, %v412
      %v414 = vrot.slane %v390, %v413
      %v415 = vrot.slane %v414, 1
      %v433 = vunpack.c.l.b16 %v391
      %v434 = vunpack.c.l.b16 %v392
      %v435 = vunpack.c.l.b16 %v393
      %v436 = vunpack.c.l.b16 %v394
      %v437 = vunpack.c.l.b16 %v395
      %v438 = vunpack.c.l.b16 %v396
      %v439 = vunpack.c.l.b16 %v397
      %v440 = vunpack.c.l.b16 %v398
      %v441 = vunpack.c.l.b16 %v399
      %v442 = vunpack.c.l.b16 %v400
      %v443 = vunpack.c.l.b16 %v401
      %v444 = vunpack.c.l.b16 %v402
      %v445 = vunpack.c.l.b16 %v403
      %v446 = vunpack.c.l.b16 %v404
      %v447 = vunpack.c.l.b16 %v405
      %v448 = vunpack.c.l.b16 %v406
      %v449 = vpack.c.b16 %v434, %v433
      %v450 = vpack.c.b16 %v436, %v435
      %v451 = vpack.c.b16 %v438, %v437
      %v452 = vpack.c.b16 %v440, %v439
      %v453 = vpack.c.b16 %v442, %v441
      %v454 = vpack.c.b16 %v444, %v443
      %v455 = vpack.c.b16 %v446, %v445
      %v456 = vpack.c.b16 %v448, %v447
      %465 = vmatprep.subr.bf16.mxu0 0
      %466 = vmatpush1.bf16.msra.mxu0 %v449
      %467 = vmatprep.subr.bf16.mxu0 0
      %468 = vmatpush1.bf16.msra.mxu0 %v450
      %469 = vmatprep.subr.bf16.mxu0 0
      %470 = vmatpush1.bf16.msra.mxu0 %v451
      %471 = vmatprep.subr.bf16.mxu0 0
      %472 = vmatpush1.bf16.msra.mxu0 %v452
      %473 = vmatprep.subr.bf16.mxu0 0
      %474 = vmatpush1.bf16.msra.mxu0 %v453
      %475 = vmatprep.subr.bf16.mxu0 0
      %476 = vmatpush1.bf16.msra.mxu0 %v454
      %477 = vmatprep.subr.bf16.mxu0 0
      %478 = vmatpush1.bf16.msra.mxu0 %v455
      %479 = vmatprep.subr.bf16.mxu0 0
      %480 = vmatpush1.bf16.msra.mxu0 %v456
      %481 = vmatprep.subr.bf16.mxu0 0
      %482 = vmatpush1.bf16.msra.mxu0 0
      %483 = vmatprep.subr.bf16.mxu0 0
      %484 = vmatpush1.bf16.msra.mxu0 0
      %485 = vmatprep.subr.bf16.mxu0 0
      %486 = vmatpush1.bf16.msra.mxu0 0
      %487 = vmatprep.subr.bf16.mxu0 0
      %488 = vmatpush1.bf16.msra.mxu0 0
      %489 = vmatprep.subr.bf16.mxu0 0
      %490 = vmatpush1.bf16.msra.mxu0 0
      %491 = vmatprep.subr.bf16.mxu0 0
      %492 = vmatpush1.bf16.msra.mxu0 0
      %493 = vmatprep.subr.bf16.mxu0 0
      %494 = vmatpush1.bf16.msra.mxu0 0
      %495 = vmatprep.subr.bf16.mxu0 0
      %496 = vmatpush1.bf16.msra.mxu0 0
      %497 = vmatprep.mubr.bf16.mxu0 0
      %498 = vmatmul.mubr.bf16.gmra.mrb[0].mxu0 %v415
      %v499 = vpop.f32.mrb[0].mxu0
      %v500 = vadd.f32 0.0, %v499
      %v501 = vpop.f32.mrb[0].mxu0
      %v502 = vpop.f32.mrb[0].mxu0
      %v503 = vpop.f32.mrb[0].mxu0
      %504 = vdwg.mxu0
      %v505 = vadd.f32 %v385, %v500
      %s506 = scalar_lea.vmem %s163, 2
      %v507 = vld [vmem:[%s506] sm:$0x1]
      %v508 = vld [vmem:[%s1 + $0xc0] sm:$0xf]
      %v509 = vld [vmem:[%s1 + $0xc4] sm:$0xf]
      %v510 = vld [vmem:[%s1 + $0xc8] sm:$0xf]
      %v511 = vld [vmem:[%s1 + $0xcc] sm:$0xf]
      %v512 = vld [vmem:[%s1 + $0xd0] sm:$0xf]
      %v513 = vld [vmem:[%s1 + $0xd4] sm:$0xf]
      %v514 = vld [vmem:[%s1 + $0xd8] sm:$0xf]
      %v515 = vld [vmem:[%s1 + $0xdc] sm:$0xf]
      %v516 = vld [vmem:[%s1 + $0xe0] sm:$0xf]
      %v517 = vld [vmem:[%s1 + $0xe4] sm:$0xf]
      %v518 = vld [vmem:[%s1 + $0xe8] sm:$0xf]
      %v519 = vld [vmem:[%s1 + $0xec] sm:$0xf]
      %v520 = vld [vmem:[%s1 + $0xf0] sm:$0xf]
      %v521 = vld [vmem:[%s1 + $0xf4] sm:$0xf]
      %v522 = vld [vmem:[%s1 + $0xf8] sm:$0xf]
      %v523 = vld [vmem:[%s1 + $0xfc] sm:$0xf]
      %v540 = vunpack.c.l.b16 %v508
      %v541 = vunpack.c.l.b16 %v509
      %v542 = vunpack.c.l.b16 %v510
      %v543 = vunpack.c.l.b16 %v511
      %v544 = vunpack.c.l.b16 %v512
      %v545 = vunpack.c.l.b16 %v513
      %v546 = vunpack.c.l.b16 %v514
      %v547 = vunpack.c.l.b16 %v515
      %v548 = vunpack.c.l.b16 %v516
      %v549 = vunpack.c.l.b16 %v517
      %v550 = vunpack.c.l.b16 %v518
      %v551 = vunpack.c.l.b16 %v519
      %v552 = vunpack.c.l.b16 %v520
      %v553 = vunpack.c.l.b16 %v521
      %v554 = vunpack.c.l.b16 %v522
      %v555 = vunpack.c.l.b16 %v523
      %v556 = vpack.c.b16 %v541, %v540
      %v557 = vpack.c.b16 %v543, %v542
      %v558 = vpack.c.b16 %v545, %v544
      %v559 = vpack.c.b16 %v547, %v546
      %v560 = vpack.c.b16 %v549, %v548
      %v561 = vpack.c.b16 %v551, %v550
      %v562 = vpack.c.b16 %v553, %v552
      %v563 = vpack.c.b16 %v555, %v554
      %572 = vmatprep.subr.bf16.mxu0 0
      %573 = vmatpush1.bf16.msra.mxu0 %v556
      %574 = vmatprep.subr.bf16.mxu0 0
      %575 = vmatpush1.bf16.msra.mxu0 %v557
      %576 = vmatprep.subr.bf16.mxu0 0
      %577 = vmatpush1.bf16.msra.mxu0 %v558
      %578 = vmatprep.subr.bf16.mxu0 0
      %579 = vmatpush1.bf16.msra.mxu0 %v559
      %580 = vmatprep.subr.bf16.mxu0 0
      %581 = vmatpush1.bf16.msra.mxu0 %v560
      %582 = vmatprep.subr.bf16.mxu0 0
      %583 = vmatpush1.bf16.msra.mxu0 %v561
      %584 = vmatprep.subr.bf16.mxu0 0
      %585 = vmatpush1.bf16.msra.mxu0 %v562
      %586 = vmatprep.subr.bf16.mxu0 0
      %587 = vmatpush1.bf16.msra.mxu0 %v563
      %588 = vmatprep.subr.bf16.mxu0 0
      %589 = vmatpush1.bf16.msra.mxu0 0
      %590 = vmatprep.subr.bf16.mxu0 0
      %591 = vmatpush1.bf16.msra.mxu0 0
      %592 = vmatprep.subr.bf16.mxu0 0
      %593 = vmatpush1.bf16.msra.mxu0 0
      %594 = vmatprep.subr.bf16.mxu0 0
      %595 = vmatpush1.bf16.msra.mxu0 0
      %596 = vmatprep.subr.bf16.mxu0 0
      %597 = vmatpush1.bf16.msra.mxu0 0
      %598 = vmatprep.subr.bf16.mxu0 0
      %599 = vmatpush1.bf16.msra.mxu0 0
      %600 = vmatprep.subr.bf16.mxu0 0
      %601 = vmatpush1.bf16.msra.mxu0 0
      %602 = vmatprep.subr.bf16.mxu0 0
      %603 = vmatpush1.bf16.msra.mxu0 0
      %604 = vmatprep.mubr.bf16.mxu0 0
      %605 = vmatmul.mubr.bf16.gmra.mrb[0].mxu0 %v507
      %v606 = vpop.f32.mrb[0].mxu0
      %v607 = vadd.f32 0.0, %v606
      %v608 = vpop.f32.mrb[0].mxu0
      %v609 = vpop.f32.mrb[0].mxu0
      %v610 = vpop.f32.mrb[0].mxu0
      %611 = vdwg.mxu0
      %v612 = vadd.f32 %v505, %v607
      %v613 = vld [vmem:[%s1 + $0x100] sm:$0xf]
      %v614 = vld [vmem:[%s1 + $0x104] sm:$0xf]
      %v615 = vld [vmem:[%s1 + $0x108] sm:$0xf]
      %v616 = vld [vmem:[%s1 + $0x10c] sm:$0xf]
      %v617 = vld [vmem:[%s1 + $0x110] sm:$0xf]
      %v618 = vld [vmem:[%s1 + $0x114] sm:$0xf]
      %v619 = vld [vmem:[%s1 + $0x118] sm:$0xf]
      %v620 = vld [vmem:[%s1 + $0x11c] sm:$0xf]
      %v621 = vld [vmem:[%s1 + $0x120] sm:$0xf]
      %v622 = vld [vmem:[%s1 + $0x124] sm:$0xf]
      %v623 = vld [vmem:[%s1 + $0x128] sm:$0xf]
      %v624 = vld [vmem:[%s1 + $0x12c] sm:$0xf]
      %v625 = vld [vmem:[%s1 + $0x130] sm:$0xf]
      %v626 = vld [vmem:[%s1 + $0x134] sm:$0xf]
      %v627 = vld [vmem:[%s1 + $0x138] sm:$0xf]
      %v628 = vld [vmem:[%s1 + $0x13c] sm:$0xf]
      %v631 = vunpack.c.l.s4 1983009808
      %v632 = vunpack.c.0.s8 %v631
      %v633 = vlaneseq
      %v634 = vshrl.u32 %v633, 7
      %v635 = vsub.s32 %v632, %v634
      %v636 = vrot.slane %v507, %v635
      %v638 = vshrl.u32 %v636, 16
      %v657 = vunpack.c.l.b16 %v613
      %v658 = vunpack.c.l.b16 %v614
      %v659 = vunpack.c.l.b16 %v615
      %v660 = vunpack.c.l.b16 %v616
      %v661 = vunpack.c.l.b16 %v617
      %v662 = vunpack.c.l.b16 %v618
      %v663 = vunpack.c.l.b16 %v619
      %v664 = vunpack.c.l.b16 %v620
      %v665 = vunpack.c.l.b16 %v621
      %v666 = vunpack.c.l.b16 %v622
      %v667 = vunpack.c.l.b16 %v623
      %v668 = vunpack.c.l.b16 %v624
      %v669 = vunpack.c.l.b16 %v625
      %v670 = vunpack.c.l.b16 %v626
      %v671 = vunpack.c.l.b16 %v627
      %v672 = vunpack.c.l.b16 %v628
      %v673 = vpack.c.b16 %v658, %v657
      %v674 = vpack.c.b16 %v660, %v659
      %v675 = vpack.c.b16 %v662, %v661
      %v676 = vpack.c.b16 %v664, %v663
      %v677 = vpack.c.b16 %v666, %v665
      %v678 = vpack.c.b16 %v668, %v667
      %v679 = vpack.c.b16 %v670, %v669
      %v680 = vpack.c.b16 %v672, %v671
      %689 = vmatprep.subr.bf16.mxu0 0
      %690 = vmatpush1.bf16.msra.mxu0 %v673
      %691 = vmatprep.subr.bf16.mxu0 0
      %692 = vmatpush1.bf16.msra.mxu0 %v674
      %693 = vmatprep.subr.bf16.mxu0 0
      %694 = vmatpush1.bf16.msra.mxu0 %v675
      %695 = vmatprep.subr.bf16.mxu0 0
      %696 = vmatpush1.bf16.msra.mxu0 %v676
      %697 = vmatprep.subr.bf16.mxu0 0
      %698 = vmatpush1.bf16.msra.mxu0 %v677
      %699 = vmatprep.subr.bf16.mxu0 0
      %700 = vmatpush1.bf16.msra.mxu0 %v678
      %701 = vmatprep.subr.bf16.mxu0 0
      %702 = vmatpush1.bf16.msra.mxu0 %v679
      %703 = vmatprep.subr.bf16.mxu0 0
      %704 = vmatpush1.bf16.msra.mxu0 %v680
      %705 = vmatprep.subr.bf16.mxu0 0
      %706 = vmatpush1.bf16.msra.mxu0 0
      %707 = vmatprep.subr.bf16.mxu0 0
      %708 = vmatpush1.bf16.msra.mxu0 0
      %709 = vmatprep.subr.bf16.mxu0 0
      %710 = vmatpush1.bf16.msra.mxu0 0
      %711 = vmatprep.subr.bf16.mxu0 0
      %712 = vmatpush1.bf16.msra.mxu0 0
      %713 = vmatprep.subr.bf16.mxu0 0
      %714 = vmatpush1.bf16.msra.mxu0 0
      %715 = vmatprep.subr.bf16.mxu0 0
      %716 = vmatpush1.bf16.msra.mxu0 0
      %717 = vmatprep.subr.bf16.mxu0 0
      %718 = vmatpush1.bf16.msra.mxu0 0
      %719 = vmatprep.subr.bf16.mxu0 0
      %720 = vmatpush1.bf16.msra.mxu0 0
      %721 = vmatprep.mubr.bf16.mxu0 0
      %722 = vmatmul.mubr.bf16.gmra.mrb[0].mxu0 %v638
      %v723 = vpop.f32.mrb[0].mxu0
      %v724 = vadd.f32 0.0, %v723
      %v725 = vpop.f32.mrb[0].mxu0
      %v726 = vpop.f32.mrb[0].mxu0
      %v727 = vpop.f32.mrb[0].mxu0
      %728 = vdwg.mxu0
      %v729 = vadd.f32 %v612, %v724
      %v730 = vld [vmem:[%s506] sm:$0x2]
      %v731 = vld [vmem:[%s1 + $0x140] sm:$0xf]
      %v732 = vld [vmem:[%s1 + $0x144] sm:$0xf]
      %v733 = vld [vmem:[%s1 + $0x148] sm:$0xf]
      %v734 = vld [vmem:[%s1 + $0x14c] sm:$0xf]
      %v735 = vld [vmem:[%s1 + $0x150] sm:$0xf]
      %v736 = vld [vmem:[%s1 + $0x154] sm:$0xf]
      %v737 = vld [vmem:[%s1 + $0x158] sm:$0xf]
      %v738 = vld [vmem:[%s1 + $0x15c] sm:$0xf]
      %v739 = vld [vmem:[%s1 + $0x160] sm:$0xf]
      %v740 = vld [vmem:[%s1 + $0x164] sm:$0xf]
      %v741 = vld [vmem:[%s1 + $0x168] sm:$0xf]
      %v742 = vld [vmem:[%s1 + $0x16c] sm:$0xf]
      %v743 = vld [vmem:[%s1 + $0x170] sm:$0xf]
      %v744 = vld [vmem:[%s1 + $0x174] sm:$0xf]
      %v745 = vld [vmem:[%s1 + $0x178] sm:$0xf]
      %v746 = vld [vmem:[%s1 + $0x17c] sm:$0xf]
      %v749 = vunpack.c.l.s4 1983009808
      %v750 = vunpack.c.0.s8 %v749
      %v751 = vlaneseq
      %v752 = vshrl.u32 %v751, 7
      %v753 = vsub.s32 %v750, %v752
      %v754 = vrot.slane %v730, %v753
      %v755 = vrot.slane %v754, 1
      %v773 = vunpack.c.l.b16 %v731
      %v774 = vunpack.c.l.b16 %v732
      %v775 = vunpack.c.l.b16 %v733
      %v776 = vunpack.c.l.b16 %v734
      %v777 = vunpack.c.l.b16 %v735
      %v778 = vunpack.c.l.b16 %v736
      %v779 = vunpack.c.l.b16 %v737
      %v780 = vunpack.c.l.b16 %v738
      %v781 = vunpack.c.l.b16 %v739
      %v782 = vunpack.c.l.b16 %v740
      %v783 = vunpack.c.l.b16 %v741
      %v784 = vunpack.c.l.b16 %v742
      %v785 = vunpack.c.l.b16 %v743
      %v786 = vunpack.c.l.b16 %v744
      %v787 = vunpack.c.l.b16 %v745
      %v788 = vunpack.c.l.b16 %v746
      %v789 = vpack.c.b16 %v774, %v773
      %v790 = vpack.c.b16 %v776, %v775
      %v791 = vpack.c.b16 %v778, %v777
      %v792 = vpack.c.b16 %v780, %v779
      %v793 = vpack.c.b16 %v782, %v781
      %v794 = vpack.c.b16 %v784, %v783
      %v795 = vpack.c.b16 %v786, %v785
      %v796 = vpack.c.b16 %v788, %v787
      %805 = vmatprep.subr.bf16.mxu0 0
      %806 = vmatpush1.bf16.msra.mxu0 %v789
      %807 = vmatprep.subr.bf16.mxu0 0
      %808 = vmatpush1.bf16.msra.mxu0 %v790
      %809 = vmatprep.subr.bf16.mxu0 0
      %810 = vmatpush1.bf16.msra.mxu0 %v791
      %811 = vmatprep.subr.bf16.mxu0 0
      %812 = vmatpush1.bf16.msra.mxu0 %v792
      %813 = vmatprep.subr.bf16.mxu0 0
      %814 = vmatpush1.bf16.msra.mxu0 %v793
      %815 = vmatprep.subr.bf16.mxu0 0
      %816 = vmatpush1.bf16.msra.mxu0 %v794
      %817 = vmatprep.subr.bf16.mxu0 0
      %818 = vmatpush1.bf16.msra.mxu0 %v795
      %819 = vmatprep.subr.bf16.mxu0 0
      %820 = vmatpush1.bf16.msra.mxu0 %v796
      %821 = vmatprep.subr.bf16.mxu0 0
      %822 = vmatpush1.bf16.msra.mxu0 0
      %823 = vmatprep.subr.bf16.mxu0 0
      %824 = vmatpush1.bf16.msra.mxu0 0
      %825 = vmatprep.subr.bf16.mxu0 0
      %826 = vmatpush1.bf16.msra.mxu0 0
      %827 = vmatprep.subr.bf16.mxu0 0
      %828 = vmatpush1.bf16.msra.mxu0 0
      %829 = vmatprep.subr.bf16.mxu0 0
      %830 = vmatpush1.bf16.msra.mxu0 0
      %831 = vmatprep.subr.bf16.mxu0 0
      %832 = vmatpush1.bf16.msra.mxu0 0
      %833 = vmatprep.subr.bf16.mxu0 0
      %834 = vmatpush1.bf16.msra.mxu0 0
      %835 = vmatprep.subr.bf16.mxu0 0
      %836 = vmatpush1.bf16.msra.mxu0 0
      %837 = vmatprep.mubr.bf16.mxu0 0
      %838 = vmatmul.mubr.bf16.gmra.mrb[0].mxu0 %v755
      %v839 = vpop.f32.mrb[0].mxu0
      %v840 = vadd.f32 0.0, %v839
      %v841 = vpop.f32.mrb[0].mxu0
      %v842 = vpop.f32.mrb[0].mxu0
      %v843 = vpop.f32.mrb[0].mxu0
      %844 = vdwg.mxu0
      %v845 = vadd.f32 %v729, %v840
      %s846 = scalar_lea.vmem %s163, 4
      %v847 = vld [vmem:[%s846] sm:$0x1]
      %v848 = vld [vmem:[%s1 + $0x180] sm:$0xf]
      %v849 = vld [vmem:[%s1 + $0x184] sm:$0xf]
      %v850 = vld [vmem:[%s1 + $0x188] sm:$0xf]
      %v851 = vld [vmem:[%s1 + $0x18c] sm:$0xf]
      %v852 = vld [vmem:[%s1 + $0x190] sm:$0xf]
      %v853 = vld [vmem:[%s1 + $0x194] sm:$0xf]
      %v854 = vld [vmem:[%s1 + $0x198] sm:$0xf]
      %v855 = vld [vmem:[%s1 + $0x19c] sm:$0xf]
      %v856 = vld [vmem:[%s1 + $0x1a0] sm:$0xf]
      %v857 = vld [vmem:[%s1 + $0x1a4] sm:$0xf]
      %v858 = vld [vmem:[%s1 + $0x1a8] sm:$0xf]
      %v859 = vld [vmem:[%s1 + $0x1ac] sm:$0xf]
      %v860 = vld [vmem:[%s1 + $0x1b0] sm:$0xf]
      %v861 = vld [vmem:[%s1 + $0x1b4] sm:$0xf]
      %v862 = vld [vmem:[%s1 + $0x1b8] sm:$0xf]
      %v863 = vld [vmem:[%s1 + $0x1bc] sm:$0xf]
      %v880 = vunpack.c.l.b16 %v848
      %v881 = vunpack.c.l.b16 %v849
      %v882 = vunpack.c.l.b16 %v850
      %v883 = vunpack.c.l.b16 %v851
      %v884 = vunpack.c.l.b16 %v852
      %v885 = vunpack.c.l.b16 %v853
      %v886 = vunpack.c.l.b16 %v854
      %v887 = vunpack.c.l.b16 %v855
      %v888 = vunpack.c.l.b16 %v856
      %v889 = vunpack.c.l.b16 %v857
      %v890 = vunpack.c.l.b16 %v858
      %v891 = vunpack.c.l.b16 %v859
      %v892 = vunpack.c.l.b16 %v860
      %v893 = vunpack.c.l.b16 %v861
      %v894 = vunpack.c.l.b16 %v862
      %v895 = vunpack.c.l.b16 %v863
      %v896 = vpack.c.b16 %v881, %v880
      %v897 = vpack.c.b16 %v883, %v882
      %v898 = vpack.c.b16 %v885, %v884
      %v899 = vpack.c.b16 %v887, %v886
      %v900 = vpack.c.b16 %v889, %v888
      %v901 = vpack.c.b16 %v891, %v890
      %v902 = vpack.c.b16 %v893, %v892
      %v903 = vpack.c.b16 %v895, %v894
      %912 = vmatprep.subr.bf16.mxu0 0
      %913 = vmatpush1.bf16.msra.mxu0 %v896
      %914 = vmatprep.subr.bf16.mxu0 0
      %915 = vmatpush1.bf16.msra.mxu0 %v897
      %916 = vmatprep.subr.bf16.mxu0 0
      %917 = vmatpush1.bf16.msra.mxu0 %v898
      %918 = vmatprep.subr.bf16.mxu0 0
      %919 = vmatpush1.bf16.msra.mxu0 %v899
      %920 = vmatprep.subr.bf16.mxu0 0
      %921 = vmatpush1.bf16.msra.mxu0 %v900
      %922 = vmatprep.subr.bf16.mxu0 0
      %923 = vmatpush1.bf16.msra.mxu0 %v901
      %924 = vmatprep.subr.bf16.mxu0 0
      %925 = vmatpush1.bf16.msra.mxu0 %v902
      %926 = vmatprep.subr.bf16.mxu0 0
      %927 = vmatpush1.bf16.msra.mxu0 %v903
      %928 = vmatprep.subr.bf16.mxu0 0
      %929 = vmatpush1.bf16.msra.mxu0 0
      %930 = vmatprep.subr.bf16.mxu0 0
      %931 = vmatpush1.bf16.msra.mxu0 0
      %932 = vmatprep.subr.bf16.mxu0 0
      %933 = vmatpush1.bf16.msra.mxu0 0
      %934 = vmatprep.subr.bf16.mxu0 0
      %935 = vmatpush1.bf16.msra.mxu0 0
      %936 = vmatprep.subr.bf16.mxu0 0
      %937 = vmatpush1.bf16.msra.mxu0 0
      %938 = vmatprep.subr.bf16.mxu0 0
      %939 = vmatpush1.bf16.msra.mxu0 0
      %940 = vmatprep.subr.bf16.mxu0 0
      %941 = vmatpush1.bf16.msra.mxu0 0
      %942 = vmatprep.subr.bf16.mxu0 0
      %943 = vmatpush1.bf16.msra.mxu0 0
      %944 = vmatprep.mubr.bf16.mxu0 0
      %945 = vmatmul.mubr.bf16.gmra.mrb[0].mxu0 %v847
      %v946 = vpop.f32.mrb[0].mxu0
      %v947 = vadd.f32 0.0, %v946
      %v948 = vpop.f32.mrb[0].mxu0
      %v949 = vpop.f32.mrb[0].mxu0
      %v950 = vpop.f32.mrb[0].mxu0
      %951 = vdwg.mxu0
      %v952 = vadd.f32 %v845, %v947
      %v953 = vld [vmem:[%s1 + $0x1c0] sm:$0xf]
      %v954 = vld [vmem:[%s1 + $0x1c4] sm:$0xf]
      %v955 = vld [vmem:[%s1 + $0x1c8] sm:$0xf]
      %v956 = vld [vmem:[%s1 + $0x1cc] sm:$0xf]
      %v957 = vld [vmem:[%s1 + $0x1d0] sm:$0xf]
      %v958 = vld [vmem:[%s1 + $0x1d4] sm:$0xf]
      %v959 = vld [vmem:[%s1 + $0x1d8] sm:$0xf]
      %v960 = vld [vmem:[%s1 + $0x1dc] sm:$0xf]
      %v961 = vld [vmem:[%s1 + $0x1e0] sm:$0xf]
      %v962 = vld [vmem:[%s1 + $0x1e4] sm:$0xf]
      %v963 = vld [vmem:[%s1 + $0x1e8] sm:$0xf]
      %v964 = vld [vmem:[%s1 + $0x1ec] sm:$0xf]
      %v965 = vld [vmem:[%s1 + $0x1f0] sm:$0xf]
      %v966 = vld [vmem:[%s1 + $0x1f4] sm:$0xf]
      %v967 = vld [vmem:[%s1 + $0x1f8] sm:$0xf]
      %v968 = vld [vmem:[%s1 + $0x1fc] sm:$0xf]
      %v971 = vunpack.c.l.s4 1983009808
      %v972 = vunpack.c.0.s8 %v971
      %v973 = vlaneseq
      %v974 = vshrl.u32 %v973, 7
      %v975 = vsub.s32 %v972, %v974
      %v976 = vrot.slane %v847, %v975
      %v978 = vshrl.u32 %v976, 16
      %v997 = vunpack.c.l.b16 %v953
      %v998 = vunpack.c.l.b16 %v954
      %v999 = vunpack.c.l.b16 %v955
      %v1000 = vunpack.c.l.b16 %v956
      %v1001 = vunpack.c.l.b16 %v957
      %v1002 = vunpack.c.l.b16 %v958
      %v1003 = vunpack.c.l.b16 %v959
      %v1004 = vunpack.c.l.b16 %v960
      %v1005 = vunpack.c.l.b16 %v961
      %v1006 = vunpack.c.l.b16 %v962
      %v1007 = vunpack.c.l.b16 %v963
      %v1008 = vunpack.c.l.b16 %v964
      %v1009 = vunpack.c.l.b16 %v965
      %v1010 = vunpack.c.l.b16 %v966
      %v1011 = vunpack.c.l.b16 %v967
      %v1012 = vunpack.c.l.b16 %v968
      %v1013 = vpack.c.b16 %v998, %v997
      %v1014 = vpack.c.b16 %v1000, %v999
      %v1015 = vpack.c.b16 %v1002, %v1001
      %v1016 = vpack.c.b16 %v1004, %v1003
      %v1017 = vpack.c.b16 %v1006, %v1005
      %v1018 = vpack.c.b16 %v1008, %v1007
      %v1019 = vpack.c.b16 %v1010, %v1009
      %v1020 = vpack.c.b16 %v1012, %v1011
      %1029 = vmatprep.subr.bf16.mxu0 0
      %1030 = vmatpush1.bf16.msra.mxu0 %v1013
      %1031 = vmatprep.subr.bf16.mxu0 0
      %1032 = vmatpush1.bf16.msra.mxu0 %v1014
      %1033 = vmatprep.subr.bf16.mxu0 0
      %1034 = vmatpush1.bf16.msra.mxu0 %v1015
      %1035 = vmatprep.subr.bf16.mxu0 0
      %1036 = vmatpush1.bf16.msra.mxu0 %v1016
      %1037 = vmatprep.subr.bf16.mxu0 0
      %1038 = vmatpush1.bf16.msra.mxu0 %v1017
      %1039 = vmatprep.subr.bf16.mxu0 0
      %1040 = vmatpush1.bf16.msra.mxu0 %v1018
      %1041 = vmatprep.subr.bf16.mxu0 0
      %1042 = vmatpush1.bf16.msra.mxu0 %v1019
      %1043 = vmatprep.subr.bf16.mxu0 0
      %1044 = vmatpush1.bf16.msra.mxu0 %v1020
      %1045 = vmatprep.subr.bf16.mxu0 0
      %1046 = vmatpush1.bf16.msra.mxu0 0
      %1047 = vmatprep.subr.bf16.mxu0 0
      %1048 = vmatpush1.bf16.msra.mxu0 0
      %1049 = vmatprep.subr.bf16.mxu0 0
      %1050 = vmatpush1.bf16.msra.mxu0 0
      %1051 = vmatprep.subr.bf16.mxu0 0
      %1052 = vmatpush1.bf16.msra.mxu0 0
      %1053 = vmatprep.subr.bf16.mxu0 0
      %1054 = vmatpush1.bf16.msra.mxu0 0
      %1055 = vmatprep.subr.bf16.mxu0 0
      %1056 = vmatpush1.bf16.msra.mxu0 0
      %1057 = vmatprep.subr.bf16.mxu0 0
      %1058 = vmatpush1.bf16.msra.mxu0 0
      %1059 = vmatprep.subr.bf16.mxu0 0
      %1060 = vmatpush1.bf16.msra.mxu0 0
      %1061 = vmatprep.mubr.bf16.mxu0 0
      %1062 = vmatmul.mubr.bf16.gmra.mrb[0].mxu0 %v978
      %v1063 = vpop.f32.mrb[0].mxu0
      %v1064 = vadd.f32 0.0, %v1063
      %v1065 = vpop.f32.mrb[0].mxu0
      %v1066 = vpop.f32.mrb[0].mxu0
      %v1067 = vpop.f32.mrb[0].mxu0
      %1068 = vdwg.mxu0
      %v1069 = vadd.f32 %v952, %v1064
      %v1070 = vld [vmem:[%s846] sm:$0x2]
      %v1071 = vld [vmem:[%s1 + $0x200] sm:$0xf]
      %v1072 = vld [vmem:[%s1 + $0x204] sm:$0xf]
      %v1073 = vld [vmem:[%s1 + $0x208] sm:$0xf]
      %v1074 = vld [vmem:[%s1 + $0x20c] sm:$0xf]
      %v1075 = vld [vmem:[%s1 + $0x210] sm:$0xf]
      %v1076 = vld [vmem:[%s1 + $0x214] sm:$0xf]
      %v1077 = vld [vmem:[%s1 + $0x218] sm:$0xf]
      %v1078 = vld [vmem:[%s1 + $0x21c] sm:$0xf]
      %v1079 = vld [vmem:[%s1 + $0x220] sm:$0xf]
      %v1080 = vld [vmem:[%s1 + $0x224] sm:$0xf]
      %v1081 = vld [vmem:[%s1 + $0x228] sm:$0xf]
      %v1082 = vld [vmem:[%s1 + $0x22c] sm:$0xf]
      %v1083 = vld [vmem:[%s1 + $0x230] sm:$0xf]
      %v1084 = vld [vmem:[%s1 + $0x234] sm:$0xf]
      %v1085 = vld [vmem:[%s1 + $0x238] sm:$0xf]
      %v1086 = vld [vmem:[%s1 + $0x23c] sm:$0xf]
      %v1089 = vunpack.c.l.s4 1983009808
      %v1090 = vunpack.c.0.s8 %v1089
      %v1091 = vlaneseq
      %v1092 = vshrl.u32 %v1091, 7
      %v1093 = vsub.s32 %v1090, %v1092
      %v1094 = vrot.slane %v1070, %v1093
      %v1095 = vrot.slane %v1094, 1
      %v1113 = vunpack.c.l.b16 %v1071
      %v1114 = vunpack.c.l.b16 %v1072
      %v1115 = vunpack.c.l.b16 %v1073
      %v1116 = vunpack.c.l.b16 %v1074
      %v1117 = vunpack.c.l.b16 %v1075
      %v1118 = vunpack.c.l.b16 %v1076
      %v1119 = vunpack.c.l.b16 %v1077
      %v1120 = vunpack.c.l.b16 %v1078
      %v1121 = vunpack.c.l.b16 %v1079
      %v1122 = vunpack.c.l.b16 %v1080
      %v1123 = vunpack.c.l.b16 %v1081
      %v1124 = vunpack.c.l.b16 %v1082
      %v1125 = vunpack.c.l.b16 %v1083
      %v1126 = vunpack.c.l.b16 %v1084
      %v1127 = vunpack.c.l.b16 %v1085
      %v1128 = vunpack.c.l.b16 %v1086
      %v1129 = vpack.c.b16 %v1114, %v1113
      %v1130 = vpack.c.b16 %v1116, %v1115
      %v1131 = vpack.c.b16 %v1118, %v1117
      %v1132 = vpack.c.b16 %v1120, %v1119
      %v1133 = vpack.c.b16 %v1122, %v1121
      %v1134 = vpack.c.b16 %v1124, %v1123
      %v1135 = vpack.c.b16 %v1126, %v1125
      %v1136 = vpack.c.b16 %v1128, %v1127
      %1145 = vmatprep.subr.bf16.mxu0 0
      %1146 = vmatpush1.bf16.msra.mxu0 %v1129
      %1147 = vmatprep.subr.bf16.mxu0 0
      %1148 = vmatpush1.bf16.msra.mxu0 %v1130
      %1149 = vmatprep.subr.bf16.mxu0 0
      %1150 = vmatpush1.bf16.msra.mxu0 %v1131
      %1151 = vmatprep.subr.bf16.mxu0 0
      %1152 = vmatpush1.bf16.msra.mxu0 %v1132
      %1153 = vmatprep.subr.bf16.mxu0 0
      %1154 = vmatpush1.bf16.msra.mxu0 %v1133
      %1155 = vmatprep.subr.bf16.mxu0 0
      %1156 = vmatpush1.bf16.msra.mxu0 %v1134
      %1157 = vmatprep.subr.bf16.mxu0 0
      %1158 = vmatpush1.bf16.msra.mxu0 %v1135
      %1159 = vmatprep.subr.bf16.mxu0 0
      %1160 = vmatpush1.bf16.msra.mxu0 %v1136
      %1161 = vmatprep.subr.bf16.mxu0 0
      %1162 = vmatpush1.bf16.msra.mxu0 0
      %1163 = vmatprep.subr.bf16.mxu0 0
      %1164 = vmatpush1.bf16.msra.mxu0 0
      %1165 = vmatprep.subr.bf16.mxu0 0
      %1166 = vmatpush1.bf16.msra.mxu0 0
      %1167 = vmatprep.subr.bf16.mxu0 0
      %1168 = vmatpush1.bf16.msra.mxu0 0
      %1169 = vmatprep.subr.bf16.mxu0 0
      %1170 = vmatpush1.bf16.msra.mxu0 0
      %1171 = vmatprep.subr.bf16.mxu0 0
      %1172 = vmatpush1.bf16.msra.mxu0 0
      %1173 = vmatprep.subr.bf16.mxu0 0
      %1174 = vmatpush1.bf16.msra.mxu0 0
      %1175 = vmatprep.subr.bf16.mxu0 0
      %1176 = vmatpush1.bf16.msra.mxu0 0
      %1177 = vmatprep.mubr.bf16.mxu0 0
      %1178 = vmatmul.mubr.bf16.gmra.mrb[0].mxu0 %v1095
      %v1179 = vpop.f32.mrb[0].mxu0
      %v1180 = vadd.f32 0.0, %v1179
      %v1181 = vpop.f32.mrb[0].mxu0
      %v1182 = vpop.f32.mrb[0].mxu0
      %v1183 = vpop.f32.mrb[0].mxu0
      %1184 = vdwg.mxu0
      %v1185 = vadd.f32 %v1069, %v1180
      %v1186 = vadd.f32 %v1185, %v168
      %v1187 = vmax.f32 %v1186, 0.0
      %v1188 = vpack.c.bf16 %v1187, %v1187
      %vm1189 = vcmask 1040384
      %vm1190 = vsmask.f32 256
      %vm1191 = vmand %vm1189, %vm1190
      %v1192 = vld [vmem:[%s166] sm:$0x1]
      %v1193 = vsel %vm1191, %v1188, %v1192
      %1194 = vst [vmem:[%s166] sm:$0x1] %v1193
      %p1195 = scmp.lt.s32.totalorder %s14, 1
      %s1196 = scalar_select %p1195, %s14, 1
      %s1197 = scalar_lea.vmem %s3, %s1196
      // Predicated region
      $region33: #{dqn_distributional_forward.6} parent=31 // pred_check
        %p1198 = pneg %p100
      $region34: #{dqn_distributional_forward.6} parent=31 // pred_check_branch
        %1200 = sbr.rel (%p1198) target = $region36
      $region35: #{dqn_distributional_forward.6} parent=31 // pred_region
        _
      $region36: #{dqn_distributional_forward.6} parent=31 // pred_fallthru
        _
    $region32: #{dqn_distributional_forward.6} parent=5 // pred_fallthru
      _
    %p1201 = scmp.le.s32.totalorder 2, %s9
    // Predicated region
    $region37: #{dqn_distributional_forward.6} parent=5 // pred_check
      %p1202 = pneg %p1201
    $region38: #{dqn_distributional_forward.6} parent=5 // pred_check_branch
      %1204 = sbr.rel (%p1202) target = $region40
    $region39: #{dqn_distributional_forward.6} parent=5 // pred_region
      %s1205 = ssub.s32 %s9, 2
      // Predicated region
      $region41: #{dqn_distributional_forward.6} parent=39 // pred_check
        %p1206 = pneg %p106
      $region42: #{dqn_distributional_forward.6} parent=39 // pred_check_branch
        %1208 = sbr.rel (%p1206) target = $region44
      $region43: #{dqn_distributional_forward.6} parent=39 // pred_region
        %p1209 = scmp.lt.s32.totalorder %s15, 1
        %s1210 = scalar_select %p1209, %s15, 1
        %s1211 = scalar_lea.vmem %s3, %s1210
      $region44: #{dqn_distributional_forward.6} parent=39 // pred_fallthru
        _
    $region40: #{dqn_distributional_forward.6} parent=5 // pred_fallthru
      _
  $region6: #{dqn_distributional_forward.6} parent=0 // loop_footer
    %s13 = sadd.s32 1, %s9
  $region7: #{dqn_distributional_forward.6} parent=0 // loop_footer_branch
    %8 = sbr.rel target = $region3
  $region8: #{dqn_distributional_forward.6} parent=0 // loop_exit
    _

// kernel: dqn_distributional_forward.5
$region0: #{dqn_distributional_forward.5}
  #allocation0 [shape = 'u32[]', space=smem, size = 0x4, offset = 0x4, fixed_abs, tag = 'smem constant byte address 0x4 - core index']
  #allocation1 [shape = 'u32[144,128]{1,0:T(1,128)}', space=vmem, size = 0x12000, scoped, tag = 'internal scratch']
  %s0 = inlined_call_operand.vmem [shape: bf16[2,4,4,512], index: 0, kind: input, shape index: {}]
  %s1 = inlined_call_operand.vmem [shape: bf16[2048,128], index: 1, kind: input, shape index: {}]
  %s2 = inlined_call_operand.vmem [shape: f32[1,128], index: 2, kind: input, shape index: {}]
  %s3 = inlined_call_operand.vmem [shape: bf16[2,3,3,128], index: 3, kind: output, shape index: {}]
  %s4 = sld [smem:[#allocation0]]
  $region45: #{dqn_distributional_forward.5} parent=0
    _
  %s6 = ssub.s32 1, %s4
  %s7 = scalar_select 0, %s6, %s4
  loop: start=0, step=1, limit=4
  $region2: #{dqn_distributional_forward.5} parent=0 // loop_pre_header
    _
  $region3: #{dqn_distributional_forward.5} parent=0 // loop_header
    %s9 = sphi 0, %s13
    %p10 = scmp.ge.s32.totalorder %s9, 4
    %s19 = sphi 0, %s21
    %s22 = sphi 0, %s19
    %s23 = sphi 0, %s22
    %s39 = sphi 0, %s23
    %s43 = sphi 0, %s43
    %s45 = sphi 0, %s43
    %s46 = sphi 0, %s45
    %s60 = sphi 0, %s46
    %s64 = sphi 0, %s64
    %s66 = sphi 0, %s64
    %s67 = sphi 0, %s66
    %s81 = sphi 0, %s67
    %s87 = sphi 0, %s89
    %s90 = sphi 0, %s87
    %s91 = sphi 0, %s90
    %s107 = sphi 0, %s91
  $region4: #{dqn_distributional_forward.5} parent=0 // loop_header_branch
    %12 = sbr.rel (%p10) target = $region8
  $region5: #{dqn_distributional_forward.5} parent=0 // loop_body
    %s14 = ssub.s32 %s9, 1
    %s15 = ssub.s32 %s9, 2
    %s16 = sadd.s32 %s9, 1
    %s17 = ssub.s32 %s9, %s16
    %p18 = scmp.eq.s32.totalorder %s17, 0
    %s20 = sadd.s32 %s19, 1
    %s21 = scalar_select %p18, %s19, %s20
    %p24 = pneg %p18
    %p25 = scmp.eq.s32.totalorder %s9, 1
    %p26 = por %p24, %p25
    %p27 = scmp.ne.s32.totalorder %s19, %s22
    %p28 = scmp.eq.s32.totalorder %s9, 0
    %p29 = por %p27, %p28
    %p30 = scmp.ne.s32.totalorder %s19, %s22
    %p31 = scmp.eq.s32.totalorder %s14, 1
    %p32 = por %p30, %p31
    %p33 = scmp.ne.s32.totalorder %s22, %s23
    %p34 = scmp.eq.s32.totalorder %s14, 0
    %p35 = por %p33, %p34
    %p36 = scmp.ne.s32.totalorder %s22, %s23
    %p37 = scmp.eq.s32.totalorder %s15, 1
    %p38 = por %p36, %p37
    %p40 = scmp.ne.s32.totalorder %s23, %s39
    %p41 = scmp.eq.s32.totalorder %s15, 0
    %p42 = por %p40, %p41
    %s44 = sadd.s32 %s43, 1
    %p47 = scmp.eq.s32.totalorder %s9, 1
    %p48 = scmp.ne.s32.totalorder %s43, %s45
    %p49 = scmp.eq.s32.totalorder %s9, 0
    %p50 = por %p48, %p49
    %p51 = scmp.ne.s32.totalorder %s43, %s45
    %p52 = scmp.eq.s32.totalorder %s14, 1
    %p53 = por %p51, %p52
    %p54 = scmp.ne.s32.totalorder %s45, %s46
    %p55 = scmp.eq.s32.totalorder %s14, 0
    %p56 = por %p54, %p55
    %p57 = scmp.ne.s32.totalorder %s45, %s46
    %p58 = scmp.eq.s32.totalorder %s15, 1
    %p59 = por %p57, %p58
    %p61 = scmp.ne.s32.totalorder %s46, %s60
    %p62 = scmp.eq.s32.totalorder %s15, 0
    %p63 = por %p61, %p62
    %s65 = sadd.s32 %s64, 1
    %p68 = scmp.eq.s32.totalorder %s9, 1
    %p69 = scmp.ne.s32.totalorder %s64, %s66
    %p70 = scmp.eq.s32.totalorder %s9, 0
    %p71 = por %p69, %p70
    %p72 = scmp.ne.s32.totalorder %s64, %s66
    %p73 = scmp.eq.s32.totalorder %s14, 1
    %p74 = por %p72, %p73
    %p75 = scmp.ne.s32.totalorder %s66, %s67
    %p76 = scmp.eq.s32.totalorder %s14, 0
    %p77 = por %p75, %p76
    %p78 = scmp.ne.s32.totalorder %s66, %s67
    %p79 = scmp.eq.s32.totalorder %s15, 1
    %p80 = por %p78, %p79
    %p82 = scmp.ne.s32.totalorder %s67, %s81
    %p83 = scmp.eq.s32.totalorder %s15, 0
    %p84 = por %p82, %p83
    %s85 = ssub.s32 %s9, %s16
    %p86 = scmp.eq.s32.totalorder %s85, 0
    %s88 = sadd.s32 %s87, 1
    %s89 = scalar_select %p86, %s87, %s88
    %p92 = pneg %p86
    %p93 = scmp.eq.s32.totalorder %s9, 1
    %p94 = por %p92, %p93
    %p95 = scmp.ne.s32.totalorder %s87, %s90
    %p96 = scmp.eq.s32.totalorder %s9, 0
    %p97 = por %p95, %p96
    %p98 = scmp.ne.s32.totalorder %s87, %s90
    %p99 = scmp.eq.s32.totalorder %s14, 1
    %p100 = por %p98, %p99
    %p101 = scmp.ne.s32.totalorder %s90, %s91
    %p102 = scmp.eq.s32.totalorder %s14, 0
    %p103 = por %p101, %p102
    %p104 = scmp.ne.s32.totalorder %s90, %s91
    %p105 = scmp.eq.s32.totalorder %s15, 1
    %p106 = por %p104, %p105
    %p108 = scmp.ne.s32.totalorder %s91, %s107
    %p109 = scmp.eq.s32.totalorder %s15, 0
    %p110 = por %p108, %p109
    %p111 = scmp.le.s32.totalorder 1, %s9
    %p112 = scmp.lt.s32.totalorder %s9, 3
    %p113 = pnand %p111, %p112
    %p114 = pneg %p113
    // Predicated region
    $region9: #{dqn_distributional_forward.5} parent=5 // pred_check
      _
    $region10: #{dqn_distributional_forward.5} parent=5 // pred_check_branch
      %116 = sbr.rel (%p113) target = $region12
    $region11: #{dqn_distributional_forward.5} parent=5 // pred_region
      %s117 = ssub.s32 %s9, 1
      // Predicated region
      $region13: #{dqn_distributional_forward.5} parent=11 // pred_check
        %p118 = pneg %p56
      $region14: #{dqn_distributional_forward.5} parent=11 // pred_check_branch
        %120 = sbr.rel (%p118) target = $region16
      $region15: #{dqn_distributional_forward.5} parent=11 // pred_region
        _
      $region16: #{dqn_distributional_forward.5} parent=11 // pred_fallthru
        _
      // Predicated region
      $region17: #{dqn_distributional_forward.5} parent=11 // pred_check
        %p121 = pneg %p77
      $region18: #{dqn_distributional_forward.5} parent=11 // pred_check_branch
        %123 = sbr.rel (%p121) target = $region20
      $region19: #{dqn_distributional_forward.5} parent=11 // pred_region
        _
      $region20: #{dqn_distributional_forward.5} parent=11 // pred_fallthru
        _
    $region12: #{dqn_distributional_forward.5} parent=5 // pred_fallthru
      _
    %p124 = scmp.lt.s32.totalorder %s9, 2
    // Predicated region
    $region21: #{dqn_distributional_forward.5} parent=5 // pred_check
      %p125 = pneg %p124
    $region22: #{dqn_distributional_forward.5} parent=5 // pred_check_branch
      %127 = sbr.rel (%p125) target = $region24
    $region23: #{dqn_distributional_forward.5} parent=5 // pred_region
      // Predicated region
      $region25: #{dqn_distributional_forward.5} parent=23 // pred_check
        %p128 = pneg %p29
      $region26: #{dqn_distributional_forward.5} parent=23 // pred_check_branch
        %130 = sbr.rel (%p128) target = $region28
      $region27: #{dqn_distributional_forward.5} parent=23 // pred_region
        %p131 = scmp.lt.s32.totalorder %s9, 1
        %s132 = scalar_select %p131, %s9, 1
        %s133 = smul.addr %s132, 16
        %s134 = smul.addr %s133, 2
        %s135 = scalar_lea.vmem %s0, %s134
      $region28: #{dqn_distributional_forward.5} parent=23 // pred_fallthru
        _
    $region24: #{dqn_distributional_forward.5} parent=5 // pred_fallthru
      _
    %p136 = scmp.le.s32.totalorder 1, %s9
    %p137 = scmp.lt.s32.totalorder %s9, 3
    %p138 = pnand %p136, %p137
    %p139 = pneg %p138
    // Predicated region
    $region29: #{dqn_distributional_forward.5} parent=5 // pred_check
      _
    $region30: #{dqn_distributional_forward.5} parent=5 // pred_check_branch
      %141 = sbr.rel (%p138) target = $region32
    $region31: #{dqn_distributional_forward.5} parent=5 // pred_region
      %s142 = ssub.s32 %s9, 1
      %p143 = scmp.lt.s32.totalorder %s14, 1
      %s144 = scalar_select %p143, %s14, 1
      %s145 = smul.addr %s144, 16
      %s146 = smul.addr %s145, 2
      %s147 = scalar_lea.vmem %s0, %s146
      %p148 = pneg %p35
      %p149 = pneg %p32
      %p150 = pneg %p56
      %p151 = pneg %p53
      %p152 = pneg %p77
      %p153 = pneg %p74
      %p154 = pneg %p103
      %p155 = pneg %p100
      %p156 = scmp.lt.s32.totalorder %s14, 1
      %s157 = scalar_select %p156, %s14, 1
      %s158 = smul.addr %s157, 3
      %s159 = smul.addr %s158, 2
      %s160 = scalar_lea.vmem %s3, %s159
      %p161 = scmp.lt.s32.totalorder %s14, 1
      %s162 = scalar_select %p161, %s14, 1
      %s163 = smul.addr %s162, 16
      %s164 = smul.addr %s163, 2
      %s165 = scalar_lea.vmem %s0, %s164
      %p166 = scmp.lt.s32.totalorder %s14, 1
      %s167 = scalar_select %p166, %s14, 1
      %s168 = smul.addr %s167, 3
      %s169 = smul.addr %s168, 2
      %s170 = scalar_lea.vmem %s3, %s169
      %v172 = vld [vmem:[%s2] sm:$0x1]
      %v173 = vld [vmem:[%s165] sm:$0xff]
      %v174 = vld [vmem:[%s1] sm:$0xf]
      %v175 = vld [vmem:[%s1 + $0x4] sm:$0xf]
      %v176 = vld [vmem:[%s1 + $0x8] sm:$0xf]
      %v177 = vld [vmem:[%s1 + $0xc] sm:$0xf]
      %v178 = vld [vmem:[%s1 + $0x10] sm:$0xf]
      %v179 = vld [vmem:[%s1 + $0x14] sm:$0xf]
      %v180 = vld [vmem:[%s1 + $0x18] sm:$0xf]
      %v181 = vld [vmem:[%s1 + $0x1c] sm:$0xf]
      %v182 = vld [vmem:[%s1 + $0x20] sm:$0xf]
      %v183 = vld [vmem:[%s1 + $0x24] sm:$0xf]
      %v184 = vld [vmem:[%s1 + $0x28] sm:$0xf]
      %v185 = vld [vmem:[%s1 + $0x2c] sm:$0xf]
      %v186 = vld [vmem:[%s1 + $0x30] sm:$0xf]
      %v187 = vld [vmem:[%s1 + $0x34] sm:$0xf]
      %v188 = vld [vmem:[%s1 + $0x38] sm:$0xf]
      %v189 = vld [vmem:[%s1 + $0x3c] sm:$0xf]
      %v190 = vld [vmem:[%s1 + $0x40] sm:$0xf]
      %v191 = vld [vmem:[%s1 + $0x44] sm:$0xf]
      %v192 = vld [vmem:[%s1 + $0x48] sm:$0xf]
      %v193 = vld [vmem:[%s1 + $0x4c] sm:$0xf]
      %v194 = vld [vmem:[%s1 + $0x50] sm:$0xf]
      %v195 = vld [vmem:[%s1 + $0x54] sm:$0xf]
      %v196 = vld [vmem:[%s1 + $0x58] sm:$0xf]
      %v197 = vld [vmem:[%s1 + $0x5c] sm:$0xf]
      %v198 = vld [vmem:[%s1 + $0x60] sm:$0xf]
      %v199 = vld [vmem:[%s1 + $0x64] sm:$0xf]
      %v200 = vld [vmem:[%s1 + $0x68] sm:$0xf]
      %v201 = vld [vmem:[%s1 + $0x6c] sm:$0xf]
      %v202 = vld [vmem:[%s1 + $0x70] sm:$0xf]
      %v203 = vld [vmem:[%s1 + $0x74] sm:$0xf]
      %v204 = vld [vmem:[%s1 + $0x78] sm:$0xf]
      %v205 = vld [vmem:[%s1 + $0x7c] sm:$0xf]
      %v206 = vld [vmem:[%s1 + $0x80] sm:$0xf]
      %v207 = vld [vmem:[%s1 + $0x84] sm:$0xf]
      %v208 = vld [vmem:[%s1 + $0x88] sm:$0xf]
      %v209 = vld [vmem:[%s1 + $0x8c] sm:$0xf]
      %v210 = vld [vmem:[%s1 + $0x90] sm:$0xf]
      %v211 = vld [vmem:[%s1 + $0x94] sm:$0xf]
      %v212 = vld [vmem:[%s1 + $0x98] sm:$0xf]
      %v213 = vld [vmem:[%s1 + $0x9c] sm:$0xf]
      %v214 = vld [vmem:[%s1 + $0xa0] sm:$0xf]
      %v215 = vld [vmem:[%s1 + $0xa4] sm:$0xf]
      %v216 = vld [vmem:[%s1 + $0xa8] sm:$0xf]
      %v217 = vld [vmem:[%s1 + $0xac] sm:$0xf]
      %v218 = vld [vmem:[%s1 + $0xb0] sm:$0xf]
      %v219 = vld [vmem:[%s1 + $0xb4] sm:$0xf]
      %v220 = vld [vmem:[%s1 + $0xb8] sm:$0xf]
      %v221 = vld [vmem:[%s1 + $0xbc] sm:$0xf]
      %v222 = vld [vmem:[%s1 + $0xc0] sm:$0xf]
      %v223 = vld [vmem:[%s1 + $0xc4] sm:$0xf]
      %v224 = vld [vmem:[%s1 + $0xc8] sm:$0xf]
      %v225 = vld [vmem:[%s1 + $0xcc] sm:$0xf]
      %v226 = vld [vmem:[%s1 + $0xd0] sm:$0xf]
      %v227 = vld [vmem:[%s1 + $0xd4] sm:$0xf]
      %v228 = vld [vmem:[%s1 + $0xd8] sm:$0xf]
      %v229 = vld [vmem:[%s1 + $0xdc] sm:$0xf]
      %v230 = vld [vmem:[%s1 + $0xe0] sm:$0xf]
      %v231 = vld [vmem:[%s1 + $0xe4] sm:$0xf]
      %v232 = vld [vmem:[%s1 + $0xe8] sm:$0xf]
      %v233 = vld [vmem:[%s1 + $0xec] sm:$0xf]
      %v234 = vld [vmem:[%s1 + $0xf0] sm:$0xf]
      %v235 = vld [vmem:[%s1 + $0xf4] sm:$0xf]
      %v236 = vld [vmem:[%s1 + $0xf8] sm:$0xf]
      %v237 = vld [vmem:[%s1 + $0xfc] sm:$0xf]
      %v238 = vld [vmem:[%s1 + $0x100] sm:$0xf]
      %v239 = vld [vmem:[%s1 + $0x104] sm:$0xf]
      %v240 = vld [vmem:[%s1 + $0x108] sm:$0xf]
      %v241 = vld [vmem:[%s1 + $0x10c] sm:$0xf]
      %v242 = vld [vmem:[%s1 + $0x110] sm:$0xf]
      %v243 = vld [vmem:[%s1 + $0x114] sm:$0xf]
      %v244 = vld [vmem:[%s1 + $0x118] sm:$0xf]
      %v245 = vld [vmem:[%s1 + $0x11c] sm:$0xf]
      %v246 = vld [vmem:[%s1 + $0x120] sm:$0xf]
      %v247 = vld [vmem:[%s1 + $0x124] sm:$0xf]
      %v248 = vld [vmem:[%s1 + $0x128] sm:$0xf]
      %v249 = vld [vmem:[%s1 + $0x12c] sm:$0xf]
      %v250 = vld [vmem:[%s1 + $0x130] sm:$0xf]
      %v251 = vld [vmem:[%s1 + $0x134] sm:$0xf]
      %v252 = vld [vmem:[%s1 + $0x138] sm:$0xf]
      %v253 = vld [vmem:[%s1 + $0x13c] sm:$0xf]
      %v254 = vld [vmem:[%s1 + $0x140] sm:$0xf]
      %v255 = vld [vmem:[%s1 + $0x144] sm:$0xf]
      %v256 = vld [vmem:[%s1 + $0x148] sm:$0xf]
      %v257 = vld [vmem:[%s1 + $0x14c] sm:$0xf]
      %v258 = vld [vmem:[%s1 + $0x150] sm:$0xf]
      %v259 = vld [vmem:[%s1 + $0x154] sm:$0xf]
      %v260 = vld [vmem:[%s1 + $0x158] sm:$0xf]
      %v261 = vld [vmem:[%s1 + $0x15c] sm:$0xf]
      %v262 = vld [vmem:[%s1 + $0x160] sm:$0xf]
      %v263 = vld [vmem:[%s1 + $0x164] sm:$0xf]
      %v264 = vld [vmem:[%s1 + $0x168] sm:$0xf]
      %v265 = vld [vmem:[%s1 + $0x16c] sm:$0xf]
      %v266 = vld [vmem:[%s1 + $0x170] sm:$0xf]
      %v267 = vld [vmem:[%s1 + $0x174] sm:$0xf]
      %v268 = vld [vmem:[%s1 + $0x178] sm:$0xf]
      %v269 = vld [vmem:[%s1 + $0x17c] sm:$0xf]
      %v270 = vld [vmem:[%s1 + $0x180] sm:$0xf]
      %v271 = vld [vmem:[%s1 + $0x184] sm:$0xf]
      %v272 = vld [vmem:[%s1 + $0x188] sm:$0xf]
      %v273 = vld [vmem:[%s1 + $0x18c] sm:$0xf]
      %v274 = vld [vmem:[%s1 + $0x190] sm:$0xf]
      %v275 = vld [vmem:[%s1 + $0x194] sm:$0xf]
      %v276 = vld [vmem:[%s1 + $0x198] sm:$0xf]
      %v277 = vld [vmem:[%s1 + $0x19c] sm:$0xf]
      %v278 = vld [vmem:[%s1 + $0x1a0] sm:$0xf]
      %v279 = vld [vmem:[%s1 + $0x1a4] sm:$0xf]
      %v280 = vld [vmem:[%s1 + $0x1a8] sm:$0xf]
      %v281 = vld [vmem:[%s1 + $0x1ac] sm:$0xf]
      %v282 = vld [vmem:[%s1 + $0x1b0] sm:$0xf]
      %v283 = vld [vmem:[%s1 + $0x1b4] sm:$0xf]
      %v284 = vld [vmem:[%s1 + $0x1b8] sm:$0xf]
      %v285 = vld [vmem:[%s1 + $0x1bc] sm:$0xf]
      %v286 = vld [vmem:[%s1 + $0x1c0] sm:$0xf]
      %v287 = vld [vmem:[%s1 + $0x1c4] sm:$0xf]
      %v288 = vld [vmem:[%s1 + $0x1c8] sm:$0xf]
      %v289 = vld [vmem:[%s1 + $0x1cc] sm:$0xf]
      %v290 = vld [vmem:[%s1 + $0x1d0] sm:$0xf]
      %v291 = vld [vmem:[%s1 + $0x1d4] sm:$0xf]
      %v292 = vld [vmem:[%s1 + $0x1d8] sm:$0xf]
      %v293 = vld [vmem:[%s1 + $0x1dc] sm:$0xf]
      %v294 = vld [vmem:[%s1 + $0x1e0] sm:$0xf]
      %v295 = vld [vmem:[%s1 + $0x1e4] sm:$0xf]
      %v296 = vld [vmem:[%s1 + $0x1e8] sm:$0xf]
      %v297 = vld [vmem:[%s1 + $0x1ec] sm:$0xf]
      %v298 = vld [vmem:[%s1 + $0x1f0] sm:$0xf]
      %v299 = vld [vmem:[%s1 + $0x1f4] sm:$0xf]
      %v300 = vld [vmem:[%s1 + $0x1f8] sm:$0xf]
      %v301 = vld [vmem:[%s1 + $0x1fc] sm:$0xf]
      %v303 = vcombine.high %v173, %v173
      %v305 = vunpack.c.l.s4 1983009808
      %v306 = vunpack.c.0.s8 %v305
      %v307 = vlaneseq
      %v308 = vshrl.u32 %v307, 7
      %v309 = vsub.s32 %v306, %v308
      %v310 = vrot.slane %v173, %v309
      %v312 = vunpack.c.l.s4 1983009808
      %v313 = vunpack.c.0.s8 %v312
      %v314 = vlaneseq
      %v315 = vshrl.u32 %v314, 7
      %v316 = vsub.s32 %v313, %v315
      %v317 = vrot.slane %v303, %v316
      %v318 = vcombine.high %v310, %v310
      %v319 = vcombine.high %v317, %v317
      %v321 = vshrl.u32 %v310, 16
      %v323 = vshll.u32 %v310, 16
      %v325 = vrot.slane %v323, 1
      %v326 = vor.u32 %v321, %v325
      %v328 = vshrl.u32 %v318, 16
      %v330 = vshll.u32 %v318, 16
      %v332 = vrot.slane %v330, 1
      %v333 = vor.u32 %v328, %v332
      %v335 = vshrl.u32 %v317, 16
      %v337 = vshll.u32 %v317, 16
      %v339 = vrot.slane %v337, 1
      %v340 = vor.u32 %v335, %v339
      %v342 = vshrl.u32 %v319, 16
      %v344 = vshll.u32 %v319, 16
      %v346 = vrot.slane %v344, 1
      %v347 = vor.u32 %v342, %v346
      %v416 = vunpack.c.l.b16 %v238
      %v417 = vunpack.c.l.b16 %v239
      %v418 = vunpack.c.l.b16 %v240
      %v419 = vunpack.c.l.b16 %v241
      %v420 = vunpack.c.l.b16 %v242
      %v421 = vunpack.c.l.b16 %v243
      %v422 = vunpack.c.l.b16 %v244
      %v423 = vunpack.c.l.b16 %v245
      %v424 = vunpack.c.l.b16 %v246
      %v425 = vunpack.c.l.b16 %v247
      %v426 = vunpack.c.l.b16 %v248
      %v427 = vunpack.c.l.b16 %v249
      %v428 = vunpack.c.l.b16 %v250
      %v429 = vunpack.c.l.b16 %v251
      %v430 = vunpack.c.l.b16 %v252
      %v431 = vunpack.c.l.b16 %v253
      %v432 = vunpack.c.l.b16 %v254
      %v433 = vunpack.c.l.b16 %v255
      %v434 = vunpack.c.l.b16 %v256
      %v435 = vunpack.c.l.b16 %v257
      %v436 = vunpack.c.l.b16 %v258
      %v437 = vunpack.c.l.b16 %v259
      %v438 = vunpack.c.l.b16 %v260
      %v439 = vunpack.c.l.b16 %v261
      %v440 = vunpack.c.l.b16 %v262
      %v441 = vunpack.c.l.b16 %v263
      %v442 = vunpack.c.l.b16 %v264
      %v443 = vunpack.c.l.b16 %v265
      %v444 = vunpack.c.l.b16 %v266
      %v445 = vunpack.c.l.b16 %v267
      %v446 = vunpack.c.l.b16 %v268
      %v447 = vunpack.c.l.b16 %v269
      %v448 = vunpack.c.l.b16 %v270
      %v449 = vunpack.c.l.b16 %v271
      %v450 = vunpack.c.l.b16 %v272
      %v451 = vunpack.c.l.b16 %v273
      %v452 = vunpack.c.l.b16 %v274
      %v453 = vunpack.c.l.b16 %v275
      %v454 = vunpack.c.l.b16 %v276
      %v455 = vunpack.c.l.b16 %v277
      %v456 = vunpack.c.l.b16 %v278
      %v457 = vunpack.c.l.b16 %v279
      %v458 = vunpack.c.l.b16 %v280
      %v459 = vunpack.c.l.b16 %v281
      %v460 = vunpack.c.l.b16 %v282
      %v461 = vunpack.c.l.b16 %v283
      %v462 = vunpack.c.l.b16 %v284
      %v463 = vunpack.c.l.b16 %v285
      %v464 = vunpack.c.l.b16 %v286
      %v465 = vunpack.c.l.b16 %v287
      %v466 = vunpack.c.l.b16 %v288
      %v467 = vunpack.c.l.b16 %v289
      %v468 = vunpack.c.l.b16 %v290
      %v469 = vunpack.c.l.b16 %v291
      %v470 = vunpack.c.l.b16 %v292
      %v471 = vunpack.c.l.b16 %v293
      %v472 = vunpack.c.l.b16 %v294
      %v473 = vunpack.c.l.b16 %v295
      %v474 = vunpack.c.l.b16 %v296
      %v475 = vunpack.c.l.b16 %v297
      %v476 = vunpack.c.l.b16 %v298
      %v477 = vunpack.c.l.b16 %v299
      %v478 = vunpack.c.l.b16 %v300
      %v479 = vunpack.c.l.b16 %v301
      %v480 = vpack.c.b16 %v417, %v416
      %v481 = vpack.c.b16 %v419, %v418
      %v482 = vpack.c.b16 %v421, %v420
      %v483 = vpack.c.b16 %v423, %v422
      %v484 = vpack.c.b16 %v425, %v424
      %v485 = vpack.c.b16 %v427, %v426
      %v486 = vpack.c.b16 %v429, %v428
      %v487 = vpack.c.b16 %v431, %v430
      %v488 = vpack.c.b16 %v433, %v432
      %v489 = vpack.c.b16 %v435, %v434
      %v490 = vpack.c.b16 %v437, %v436
      %v491 = vpack.c.b16 %v439, %v438
      %v492 = vpack.c.b16 %v441, %v440
      %v493 = vpack.c.b16 %v443, %v442
      %v494 = vpack.c.b16 %v445, %v444
      %v495 = vpack.c.b16 %v447, %v446
      %v496 = vpack.c.b16 %v449, %v448
      %v497 = vpack.c.b16 %v451, %v450
      %v498 = vpack.c.b16 %v453, %v452
      %v499 = vpack.c.b16 %v455, %v454
      %v500 = vpack.c.b16 %v457, %v456
      %v501 = vpack.c.b16 %v459, %v458
      %v502 = vpack.c.b16 %v461, %v460
      %v503 = vpack.c.b16 %v463, %v462
      %v504 = vpack.c.b16 %v465, %v464
      %v505 = vpack.c.b16 %v467, %v466
      %v506 = vpack.c.b16 %v469, %v468
      %v507 = vpack.c.b16 %v471, %v470
      %v508 = vpack.c.b16 %v473, %v472
      %v509 = vpack.c.b16 %v475, %v474
      %v510 = vpack.c.b16 %v477, %v476
      %v511 = vpack.c.b16 %v479, %v478
      %544 = vmatprep.subr.bf16.mxu0 0
      %545 = vmatpush1.bf16.msra.mxu0 %v480
      %546 = vmatprep.subr.bf16.mxu0 0
      %547 = vmatpush1.bf16.msra.mxu0 %v481
      %548 = vmatprep.subr.bf16.mxu0 0
      %549 = vmatpush1.bf16.msra.mxu0 %v482
      %550 = vmatprep.subr.bf16.mxu0 0
      %551 = vmatpush1.bf16.msra.mxu0 %v483
      %552 = vmatprep.subr.bf16.mxu0 0
      %553 = vmatpush1.bf16.msra.mxu0 %v484
      %554 = vmatprep.subr.bf16.mxu0 0
      %555 = vmatpush1.bf16.msra.mxu0 %v485
      %556 = vmatprep.subr.bf16.mxu0 0
      %557 = vmatpush1.bf16.msra.mxu0 %v486
      %558 = vmatprep.subr.bf16.mxu0 0
      %559 = vmatpush1.bf16.msra.mxu0 %v487
      %560 = vmatprep.subr.bf16.mxu0 0
      %561 = vmatpush1.bf16.msra.mxu0 %v488
      %562 = vmatprep.subr.bf16.mxu0 0
      %563 = vmatpush1.bf16.msra.mxu0 %v489
      %564 = vmatprep.subr.bf16.mxu0 0
      %565 = vmatpush1.bf16.msra.mxu0 %v490
      %566 = vmatprep.subr.bf16.mxu0 0
      %567 = vmatpush1.bf16.msra.mxu0 %v491
      %568 = vmatprep.subr.bf16.mxu0 0
      %569 = vmatpush1.bf16.msra.mxu0 %v492
      %570 = vmatprep.subr.bf16.mxu0 0
      %571 = vmatpush1.bf16.msra.mxu0 %v493
      %572 = vmatprep.subr.bf16.mxu0 0
      %573 = vmatpush1.bf16.msra.mxu0 %v494
      %574 = vmatprep.subr.bf16.mxu0 0
      %575 = vmatpush1.bf16.msra.mxu0 %v495
      %576 = vmatprep.mubr.bf16.mxu0 %v333
      %577 = vmatmul.mubr.bf16.gmra.mrb[0].mxu0 %v326
      %v578 = vpop.f32.mrb[0].mxu0
      %v579 = vadd.f32 0.0, %v578
      %v580 = vpop.f32.mrb[0].mxu0
      %v581 = vpop.f32.mrb[0].mxu0
      %v582 = vpop.f32.mrb[0].mxu0
      %583 = vdwg.mxu0
      %584 = vmatprep.subr.bf16.mxu0 0
      %585 = vmatpush1.bf16.msra.mxu0 %v496
      %586 = vmatprep.subr.bf16.mxu0 0
      %587 = vmatpush1.bf16.msra.mxu0 %v497
      %588 = vmatprep.subr.bf16.mxu0 0
      %589 = vmatpush1.bf16.msra.mxu0 %v498
      %590 = vmatprep.subr.bf16.mxu0 0
      %591 = vmatpush1.bf16.msra.mxu0 %v499
      %592 = vmatprep.subr.bf16.mxu0 0
      %593 = vmatpush1.bf16.msra.mxu0 %v500
      %594 = vmatprep.subr.bf16.mxu0 0
      %595 = vmatpush1.bf16.msra.mxu0 %v501
      %596 = vmatprep.subr.bf16.mxu0 0
      %597 = vmatpush1.bf16.msra.mxu0 %v502
      %598 = vmatprep.subr.bf16.mxu0 0
      %599 = vmatpush1.bf16.msra.mxu0 %v503
      %600 = vmatprep.subr.bf16.mxu0 0
      %601 = vmatpush1.bf16.msra.mxu0 %v504
      %602 = vmatprep.subr.bf16.mxu0 0
      %603 = vmatpush1.bf16.msra.mxu0 %v505
      %604 = vmatprep.subr.bf16.mxu0 0
      %605 = vmatpush1.bf16.msra.mxu0 %v506
      %606 = vmatprep.subr.bf16.mxu0 0
      %607 = vmatpush1.bf16.msra.mxu0 %v507
      %608 = vmatprep.subr.bf16.mxu0 0
      %609 = vmatpush1.bf16.msra.mxu0 %v508
      %610 = vmatprep.subr.bf16.mxu0 0
      %611 = vmatpush1.bf16.msra.mxu0 %v509
      %612 = vmatprep.subr.bf16.mxu0 0
      %613 = vmatpush1.bf16.msra.mxu0 %v510
      %614 = vmatprep.subr.bf16.mxu0 0
      %615 = vmatpush1.bf16.msra.mxu0 %v511
      %616 = vmatprep.mubr.bf16.mxu0 %v347
      %617 = vmatmul.mubr.bf16.gmra.mrb[0].mxu0 %v340
      %v618 = vpop.f32.mrb[0].mxu0
      %v619 = vadd.f32 %v579, %v618
      %v620 = vpop.f32.mrb[0].mxu0
      %v621 = vpop.f32.mrb[0].mxu0
      %v622 = vpop.f32.mrb[0].mxu0
      %623 = vdwg.mxu0
      %v692 = vunpack.c.l.b16 %v174
      %v693 = vunpack.c.l.b16 %v175
      %v694 = vunpack.c.l.b16 %v176
      %v695 = vunpack.c.l.b16 %v177
      %v696 = vunpack.c.l.b16 %v178
      %v697 = vunpack.c.l.b16 %v179
      %v698 = vunpack.c.l.b16 %v180
      %v699 = vunpack.c.l.b16 %v181
      %v700 = vunpack.c.l.b16 %v182
      %v701 = vunpack.c.l.b16 %v183
      %v702 = vunpack.c.l.b16 %v184
      %v703 = vunpack.c.l.b16 %v185
      %v704 = vunpack.c.l.b16 %v186
      %v705 = vunpack.c.l.b16 %v187
      %v706 = vunpack.c.l.b16 %v188
      %v707 = vunpack.c.l.b16 %v189
      %v708 = vunpack.c.l.b16 %v190
      %v709 = vunpack.c.l.b16 %v191
      %v710 = vunpack.c.l.b16 %v192
      %v711 = vunpack.c.l.b16 %v193
      %v712 = vunpack.c.l.b16 %v194
      %v713 = vunpack.c.l.b16 %v195
      %v714 = vunpack.c.l.b16 %v196
      %v715 = vunpack.c.l.b16 %v197
      %v716 = vunpack.c.l.b16 %v198
      %v717 = vunpack.c.l.b16 %v199
      %v718 = vunpack.c.l.b16 %v200
      %v719 = vunpack.c.l.b16 %v201
      %v720 = vunpack.c.l.b16 %v202
      %v721 = vunpack.c.l.b16 %v203
      %v722 = vunpack.c.l.b16 %v204
      %v723 = vunpack.c.l.b16 %v205
      %v724 = vunpack.c.l.b16 %v206
      %v725 = vunpack.c.l.b16 %v207
      %v726 = vunpack.c.l.b16 %v208
      %v727 = vunpack.c.l.b16 %v209
      %v728 = vunpack.c.l.b16 %v210
      %v729 = vunpack.c.l.b16 %v211
      %v730 = vunpack.c.l.b16 %v212
      %v731 = vunpack.c.l.b16 %v213
      %v732 = vunpack.c.l.b16 %v214
      %v733 = vunpack.c.l.b16 %v215
      %v734 = vunpack.c.l.b16 %v216
      %v735 = vunpack.c.l.b16 %v217
      %v736 = vunpack.c.l.b16 %v218
      %v737 = vunpack.c.l.b16 %v219
      %v738 = vunpack.c.l.b16 %v220
      %v739 = vunpack.c.l.b16 %v221
      %v740 = vunpack.c.l.b16 %v222
      %v741 = vunpack.c.l.b16 %v223
      %v742 = vunpack.c.l.b16 %v224
      %v743 = vunpack.c.l.b16 %v225
      %v744 = vunpack.c.l.b16 %v226
      %v745 = vunpack.c.l.b16 %v227
      %v746 = vunpack.c.l.b16 %v228
      %v747 = vunpack.c.l.b16 %v229
      %v748 = vunpack.c.l.b16 %v230
      %v749 = vunpack.c.l.b16 %v231
      %v750 = vunpack.c.l.b16 %v232
      %v751 = vunpack.c.l.b16 %v233
      %v752 = vunpack.c.l.b16 %v234
      %v753 = vunpack.c.l.b16 %v235
      %v754 = vunpack.c.l.b16 %v236
      %v755 = vunpack.c.l.b16 %v237
      %v756 = vpack.c.b16 %v693, %v692
      %v757 = vpack.c.b16 %v695, %v694
      %v758 = vpack.c.b16 %v697, %v696
      %v759 = vpack.c.b16 %v699, %v698
      %v760 = vpack.c.b16 %v701, %v700
      %v761 = vpack.c.b16 %v703, %v702
      %v762 = vpack.c.b16 %v705, %v704
      %v763 = vpack.c.b16 %v707, %v706
      %v764 = vpack.c.b16 %v709, %v708
      %v765 = vpack.c.b16 %v711, %v710
      %v766 = vpack.c.b16 %v713, %v712
      %v767 = vpack.c.b16 %v715, %v714
      %v768 = vpack.c.b16 %v717, %v716
      %v769 = vpack.c.b16 %v719, %v718
      %v770 = vpack.c.b16 %v721, %v720
      %v771 = vpack.c.b16 %v723, %v722
      %v772 = vpack.c.b16 %v725, %v724
      %v773 = vpack.c.b16 %v727, %v726
      %v774 = vpack.c.b16 %v729, %v728
      %v775 = vpack.c.b16 %v731, %v730
      %v776 = vpack.c.b16 %v733, %v732
      %v777 = vpack.c.b16 %v735, %v734
      %v778 = vpack.c.b16 %v737, %v736
      %v779 = vpack.c.b16 %v739, %v738
      %v780 = vpack.c.b16 %v741, %v740
      %v781 = vpack.c.b16 %v743, %v742
      %v782 = vpack.c.b16 %v745, %v744
      %v783 = vpack.c.b16 %v747, %v746
      %v784 = vpack.c.b16 %v749, %v748
      %v785 = vpack.c.b16 %v751, %v750
      %v786 = vpack.c.b16 %v753, %v752
      %v787 = vpack.c.b16 %v755, %v754
      %820 = vmatprep.subr.bf16.mxu0 0
      %821 = vmatpush1.bf16.msra.mxu0 %v756
      %822 = vmatprep.subr.bf16.mxu0 0
      %823 = vmatpush1.bf16.msra.mxu0 %v757
      %824 = vmatprep.subr.bf16.mxu0 0
      %825 = vmatpush1.bf16.msra.mxu0 %v758
      %826 = vmatprep.subr.bf16.mxu0 0
      %827 = vmatpush1.bf16.msra.mxu0 %v759
      %828 = vmatprep.subr.bf16.mxu0 0
      %829 = vmatpush1.bf16.msra.mxu0 %v760
      %830 = vmatprep.subr.bf16.mxu0 0
      %831 = vmatpush1.bf16.msra.mxu0 %v761
      %832 = vmatprep.subr.bf16.mxu0 0
      %833 = vmatpush1.bf16.msra.mxu0 %v762
      %834 = vmatprep.subr.bf16.mxu0 0
      %835 = vmatpush1.bf16.msra.mxu0 %v763
      %836 = vmatprep.subr.bf16.mxu0 0
      %837 = vmatpush1.bf16.msra.mxu0 %v764
      %838 = vmatprep.subr.bf16.mxu0 0
      %839 = vmatpush1.bf16.msra.mxu0 %v765
      %840 = vmatprep.subr.bf16.mxu0 0
      %841 = vmatpush1.bf16.msra.mxu0 %v766
      %842 = vmatprep.subr.bf16.mxu0 0
      %843 = vmatpush1.bf16.msra.mxu0 %v767
      %844 = vmatprep.subr.bf16.mxu0 0
      %845 = vmatpush1.bf16.msra.mxu0 %v768
      %846 = vmatprep.subr.bf16.mxu0 0
      %847 = vmatpush1.bf16.msra.mxu0 %v769
      %848 = vmatprep.subr.bf16.mxu0 0
      %849 = vmatpush1.bf16.msra.mxu0 %v770
      %850 = vmatprep.subr.bf16.mxu0 0
      %851 = vmatpush1.bf16.msra.mxu0 %v771
      %852 = vmatprep.mubr.bf16.mxu0 %v318
      %853 = vmatmul.mubr.bf16.gmra.mrb[0].mxu0 %v310
      %v854 = vpop.f32.mrb[0].mxu0
      %v855 = vadd.f32 %v619, %v854
      %v856 = vpop.f32.mrb[0].mxu0
      %v857 = vpop.f32.mrb[0].mxu0
      %v858 = vpop.f32.mrb[0].mxu0
      %859 = vdwg.mxu0
      %860 = vmatprep.subr.bf16.mxu0 0
      %861 = vmatpush1.bf16.msra.mxu0 %v772
      %862 = vmatprep.subr.bf16.mxu0 0
      %863 = vmatpush1.bf16.msra.mxu0 %v773
      %864 = vmatprep.subr.bf16.mxu0 0
      %865 = vmatpush1.bf16.msra.mxu0 %v774
      %866 = vmatprep.subr.bf16.mxu0 0
      %867 = vmatpush1.bf16.msra.mxu0 %v775
      %868 = vmatprep.subr.bf16.mxu0 0
      %869 = vmatpush1.bf16.msra.mxu0 %v776
      %870 = vmatprep.subr.bf16.mxu0 0
      %871 = vmatpush1.bf16.msra.mxu0 %v777
      %872 = vmatprep.subr.bf16.mxu0 0
      %873 = vmatpush1.bf16.msra.mxu0 %v778
      %874 = vmatprep.subr.bf16.mxu0 0
      %875 = vmatpush1.bf16.msra.mxu0 %v779
      %876 = vmatprep.subr.bf16.mxu0 0
      %877 = vmatpush1.bf16.msra.mxu0 %v780
      %878 = vmatprep.subr.bf16.mxu0 0
      %879 = vmatpush1.bf16.msra.mxu0 %v781
      %880 = vmatprep.subr.bf16.mxu0 0
      %881 = vmatpush1.bf16.msra.mxu0 %v782
      %882 = vmatprep.subr.bf16.mxu0 0
      %883 = vmatpush1.bf16.msra.mxu0 %v783
      %884 = vmatprep.subr.bf16.mxu0 0
      %885 = vmatpush1.bf16.msra.mxu0 %v784
      %886 = vmatprep.subr.bf16.mxu0 0
      %887 = vmatpush1.bf16.msra.mxu0 %v785
      %888 = vmatprep.subr.bf16.mxu0 0
      %889 = vmatpush1.bf16.msra.mxu0 %v786
      %890 = vmatprep.subr.bf16.mxu0 0
      %891 = vmatpush1.bf16.msra.mxu0 %v787
      %892 = vmatprep.mubr.bf16.mxu0 %v319
      %893 = vmatmul.mubr.bf16.gmra.mrb[0].mxu0 %v317
      %v894 = vpop.f32.mrb[0].mxu0
      %v895 = vadd.f32 %v855, %v894
      %v896 = vpop.f32.mrb[0].mxu0
      %v897 = vpop.f32.mrb[0].mxu0
      %v898 = vpop.f32.mrb[0].mxu0
      %899 = vdwg.mxu0
      %s900 = scalar_lea.vmem %s165, 8
      %v901 = vld [vmem:[%s900] sm:$0xff]
      %v902 = vld [vmem:[%s1 + $0x200] sm:$0xf]
      %v903 = vld [vmem:[%s1 + $0x204] sm:$0xf]
      %v904 = vld [vmem:[%s1 + $0x208] sm:$0xf]
      %v905 = vld [vmem:[%s1 + $0x20c] sm:$0xf]
      %v906 = vld [vmem:[%s1 + $0x210] sm:$0xf]
      %v907 = vld [vmem:[%s1 + $0x214] sm:$0xf]
      %v908 = vld [vmem:[%s1 + $0x218] sm:$0xf]
      %v909 = vld [vmem:[%s1 + $0x21c] sm:$0xf]
      %v910 = vld [vmem:[%s1 + $0x220] sm:$0xf]
      %v911 = vld [vmem:[%s1 + $0x224] sm:$0xf]
      %v912 = vld [vmem:[%s1 + $0x228] sm:$0xf]
      %v913 = vld [vmem:[%s1 + $0x22c] sm:$0xf]
      %v914 = vld [vmem:[%s1 + $0x230] sm:$0xf]
      %v915 = vld [vmem:[%s1 + $0x234] sm:$0xf]
      %v916 = vld [vmem:[%s1 + $0x238] sm:$0xf]
      %v917 = vld [vmem:[%s1 + $0x23c] sm:$0xf]
      %v918 = vld [vmem:[%s1 + $0x240] sm:$0xf]
      %v919 = vld [vmem:[%s1 + $0x244] sm:$0xf]
      %v920 = vld [vmem:[%s1 + $0x248] sm:$0xf]
      %v921 = vld [vmem:[%s1 + $0x24c] sm:$0xf]
      %v922 = vld [vmem:[%s1 + $0x250] sm:$0xf]
      %v923 = vld [vmem:[%s1 + $0x254] sm:$0xf]
      %v924 = vld [vmem:[%s1 + $0x258] sm:$0xf]
      %v925 = vld [vmem:[%s1 + $0x25c] sm:$0xf]
      %v926 = vld [vmem:[%s1 + $0x260] sm:$0xf]
      %v927 = vld [vmem:[%s1 + $0x264] sm:$0xf]
      %v928 = vld [vmem:[%s1 + $0x268] sm:$0xf]
      %v929 = vld [vmem:[%s1 + $0x26c] sm:$0xf]
      %v930 = vld [vmem:[%s1 + $0x270] sm:$0xf]
      %v931 = vld [vmem:[%s1 + $0x274] sm:$0xf]
      %v932 = vld [vmem:[%s1 + $0x278] sm:$0xf]
      %v933 = vld [vmem:[%s1 + $0x27c] sm:$0xf]
      %v934 = vld [vmem:[%s1 + $0x280] sm:$0xf]
      %v935 = vld [vmem:[%s1 + $0x284] sm:$0xf]
      %v936 = vld [vmem:[%s1 + $0x288] sm:$0xf]
      %v937 = vld [vmem:[%s1 + $0x28c] sm:$0xf]
      %v938 = vld [vmem:[%s1 + $0x290] sm:$0xf]
      %v939 = vld [vmem:[%s1 + $0x294] sm:$0xf]
      %v940 = vld [vmem:[%s1 + $0x298] sm:$0xf]
      %v941 = vld [vmem:[%s1 + $0x29c] sm:$0xf]
      %v942 = vld [vmem:[%s1 + $0x2a0] sm:$0xf]
      %v943 = vld [vmem:[%s1 + $0x2a4] sm:$0xf]
      %v944 = vld [vmem:[%s1 + $0x2a8] sm:$0xf]
      %v945 = vld [vmem:[%s1 + $0x2ac] sm:$0xf]
      %v946 = vld [vmem:[%s1 + $0x2b0] sm:$0xf]
      %v947 = vld [vmem:[%s1 + $0x2b4] sm:$0xf]
      %v948 = vld [vmem:[%s1 + $0x2b8] sm:$0xf]
      %v949 = vld [vmem:[%s1 + $0x2bc] sm:$0xf]
      %v950 = vld [vmem:[%s1 + $0x2c0] sm:$0xf]
      %v951 = vld [vmem:[%s1 + $0x2c4] sm:$0xf]
      %v952 = vld [vmem:[%s1 + $0x2c8] sm:$0xf]
      %v953 = vld [vmem:[%s1 + $0x2cc] sm:$0xf]
      %v954 = vld [vmem:[%s1 + $0x2d0] sm:$0xf]
      %v955 = vld [vmem:[%s1 + $0x2d4] sm:$0xf]
      %v956 = vld [vmem:[%s1 + $0x2d8] sm:$0xf]
      %v957 = vld [vmem:[%s1 + $0x2dc] sm:$0xf]
      %v958 = vld [vmem:[%s1 + $0x2e0] sm:$0xf]
      %v959 = vld [vmem:[%s1 + $0x2e4] sm:$0xf]
      %v960 = vld [vmem:[%s1 + $0x2e8] sm:$0xf]
      %v961 = vld [vmem:[%s1 + $0x2ec] sm:$0xf]
      %v962 = vld [vmem:[%s1 + $0x2f0] sm:$0xf]
      %v963 = vld [vmem:[%s1 + $0x2f4] sm:$0xf]
      %v964 = vld [vmem:[%s1 + $0x2f8] sm:$0xf]
      %v965 = vld [vmem:[%s1 + $0x2fc] sm:$0xf]
      %v967 = vcombine.high %v901, %v901
      %v969 = vunpack.c.l.s4 1983009808
      %v970 = vunpack.c.0.s8 %v969
      %v971 = vlaneseq
      %v972 = vshrl.u32 %v971, 7
      %v973 = vsub.s32 %v970, %v972
      %v974 = vrot.slane %v901, %v973
      %v976 = vunpack.c.l.s4 1983009808
      %v977 = vunpack.c.0.s8 %v976
      %v978 = vlaneseq
      %v979 = vshrl.u32 %v978, 7
      %v980 = vsub.s32 %v977, %v979
      %v981 = vrot.slane %v967, %v980
      %v982 = vcombine.high %v974, %v974
      %v983 = vcombine.high %v981, %v981
      %v1052 = vunpack.c.l.b16 %v902
      %v1053 = vunpack.c.l.b16 %v903
      %v1054 = vunpack.c.l.b16 %v904
      %v1055 = vunpack.c.l.b16 %v905
      %v1056 = vunpack.c.l.b16 %v906
      %v1057 = vunpack.c.l.b16 %v907
      %v1058 = vunpack.c.l.b16 %v908
      %v1059 = vunpack.c.l.b16 %v909
      %v1060 = vunpack.c.l.b16 %v910
      %v1061 = vunpack.c.l.b16 %v911
      %v1062 = vunpack.c.l.b16 %v912
      %v1063 = vunpack.c.l.b16 %v913
      %v1064 = vunpack.c.l.b16 %v914
      %v1065 = vunpack.c.l.b16 %v915
      %v1066 = vunpack.c.l.b16 %v916
      %v1067 = vunpack.c.l.b16 %v917
      %v1068 = vunpack.c.l.b16 %v918
      %v1069 = vunpack.c.l.b16 %v919
      %v1070 = vunpack.c.l.b16 %v920
      %v1071 = vunpack.c.l.b16 %v921
      %v1072 = vunpack.c.l.b16 %v922
      %v1073 = vunpack.c.l.b16 %v923
      %v1074 = vunpack.c.l.b16 %v924
      %v1075 = vunpack.c.l.b16 %v925
      %v1076 = vunpack.c.l.b16 %v926
      %v1077 = vunpack.c.l.b16 %v927
      %v1078 = vunpack.c.l.b16 %v928
      %v1079 = vunpack.c.l.b16 %v929
      %v1080 = vunpack.c.l.b16 %v930
      %v1081 = vunpack.c.l.b16 %v931
      %v1082 = vunpack.c.l.b16 %v932
      %v1083 = vunpack.c.l.b16 %v933
      %v1084 = vunpack.c.l.b16 %v934
      %v1085 = vunpack.c.l.b16 %v935
      %v1086 = vunpack.c.l.b16 %v936
      %v1087 = vunpack.c.l.b16 %v937
      %v1088 = vunpack.c.l.b16 %v938
      %v1089 = vunpack.c.l.b16 %v939
      %v1090 = vunpack.c.l.b16 %v940
      %v1091 = vunpack.c.l.b16 %v941
      %v1092 = vunpack.c.l.b16 %v942
      %v1093 = vunpack.c.l.b16 %v943
      %v1094 = vunpack.c.l.b16 %v944
      %v1095 = vunpack.c.l.b16 %v945
      %v1096 = vunpack.c.l.b16 %v946
      %v1097 = vunpack.c.l.b16 %v947
      %v1098 = vunpack.c.l.b16 %v948
      %v1099 = vunpack.c.l.b16 %v949
      %v1100 = vunpack.c.l.b16 %v950
      %v1101 = vunpack.c.l.b16 %v951
      %v1102 = vunpack.c.l.b16 %v952
      %v1103 = vunpack.c.l.b16 %v953
      %v1104 = vunpack.c.l.b16 %v954
      %v1105 = vunpack.c.l.b16 %v955
      %v1106 = vunpack.c.l.b16 %v956
      %v1107 = vunpack.c.l.b16 %v957
      %v1108 = vunpack.c.l.b16 %v958
      %v1109 = vunpack.c.l.b16 %v959
      %v1110 = vunpack.c.l.b16 %v960
      %v1111 = vunpack.c.l.b16 %v961
      %v1112 = vunpack.c.l.b16 %v962
      %v1113 = vunpack.c.l.b16 %v963
      %v1114 = vunpack.c.l.b16 %v964
      %v1115 = vunpack.c.l.b16 %v965
      %v1116 = vpack.c.b16 %v1053, %v1052
      %v1117 = vpack.c.b16 %v1055, %v1054
      %v1118 = vpack.c.b16 %v1057, %v1056
      %v1119 = vpack.c.b16 %v1059, %v1058
      %v1120 = vpack.c.b16 %v1061, %v1060
      %v1121 = vpack.c.b16 %v1063, %v1062
      %v1122 = vpack.c.b16 %v1065, %v1064
      %v1123 = vpack.c.b16 %v1067, %v1066
      %v1124 = vpack.c.b16 %v1069, %v1068
      %v1125 = vpack.c.b16 %v1071, %v1070
      %v1126 = vpack.c.b16 %v1073, %v1072
      %v1127 = vpack.c.b16 %v1075, %v1074
      %v1128 = vpack.c.b16 %v1077, %v1076
      %v1129 = vpack.c.b16 %v1079, %v1078
      %v1130 = vpack.c.b16 %v1081, %v1080
      %v1131 = vpack.c.b16 %v1083, %v1082
      %v1132 = vpack.c.b16 %v1085, %v1084
      %v1133 = vpack.c.b16 %v1087, %v1086
      %v1134 = vpack.c.b16 %v1089, %v1088
      %v1135 = vpack.c.b16 %v1091, %v1090
      %v1136 = vpack.c.b16 %v1093, %v1092
      %v1137 = vpack.c.b16 %v1095, %v1094
      %v1138 = vpack.c.b16 %v1097, %v1096
      %v1139 = vpack.c.b16 %v1099, %v1098
      %v1140 = vpack.c.b16 %v1101, %v1100
      %v1141 = vpack.c.b16 %v1103, %v1102
      %v1142 = vpack.c.b16 %v1105, %v1104
      %v1143 = vpack.c.b16 %v1107, %v1106
      %v1144 = vpack.c.b16 %v1109, %v1108
      %v1145 = vpack.c.b16 %v1111, %v1110
      %v1146 = vpack.c.b16 %v1113, %v1112
      %v1147 = vpack.c.b16 %v1115, %v1114
      %1180 = vmatprep.subr.bf16.mxu0 0
      %1181 = vmatpush1.bf16.msra.mxu0 %v1116
      %1182 = vmatprep.subr.bf16.mxu0 0
      %1183 = vmatpush1.bf16.msra.mxu0 %v1117
      %1184 = vmatprep.subr.bf16.mxu0 0
      %1185 = vmatpush1.bf16.msra.mxu0 %v1118
      %1186 = vmatprep.subr.bf16.mxu0 0
      %1187 = vmatpush1.bf16.msra.mxu0 %v1119
      %1188 = vmatprep.subr.bf16.mxu0 0
      %1189 = vmatpush1.bf16.msra.mxu0 %v1120
      %1190 = vmatprep.subr.bf16.mxu0 0
      %1191 = vmatpush1.bf16.msra.mxu0 %v1121
      %1192 = vmatprep.subr.bf16.mxu0 0
      %1193 = vmatpush1.bf16.msra.mxu0 %v1122
      %1194 = vmatprep.subr.bf16.mxu0 0
      %1195 = vmatpush1.bf16.msra.mxu0 %v1123
      %1196 = vmatprep.subr.bf16.mxu0 0
      %1197 = vmatpush1.bf16.msra.mxu0 %v1124
      %1198 = vmatprep.subr.bf16.mxu0 0
      %1199 = vmatpush1.bf16.msra.mxu0 %v1125
      %1200 = vmatprep.subr.bf16.mxu0 0
      %1201 = vmatpush1.bf16.msra.mxu0 %v1126
      %1202 = vmatprep.subr.bf16.mxu0 0
      %1203 = vmatpush1.bf16.msra.mxu0 %v1127
      %1204 = vmatprep.subr.bf16.mxu0 0
      %1205 = vmatpush1.bf16.msra.mxu0 %v1128
      %1206 = vmatprep.subr.bf16.mxu0 0
      %1207 = vmatpush1.bf16.msra.mxu0 %v1129
      %1208 = vmatprep.subr.bf16.mxu0 0
      %1209 = vmatpush1.bf16.msra.mxu0 %v1130
      %1210 = vmatprep.subr.bf16.mxu0 0
      %1211 = vmatpush1.bf16.msra.mxu0 %v1131
      %1212 = vmatprep.mubr.bf16.mxu0 %v982
      %1213 = vmatmul.mubr.bf16.gmra.mrb[0].mxu0 %v974
      %v1214 = vpop.f32.mrb[0].mxu0
      %v1215 = vadd.f32 0.0, %v1214
      %v1216 = vpop.f32.mrb[0].mxu0
      %v1217 = vpop.f32.mrb[0].mxu0
      %v1218 = vpop.f32.mrb[0].mxu0
      %1219 = vdwg.mxu0
      %1220 = vmatprep.subr.bf16.mxu0 0
      %1221 = vmatpush1.bf16.msra.mxu0 %v1132
      %1222 = vmatprep.subr.bf16.mxu0 0
      %1223 = vmatpush1.bf16.msra.mxu0 %v1133
      %1224 = vmatprep.subr.bf16.mxu0 0
      %1225 = vmatpush1.bf16.msra.mxu0 %v1134
      %1226 = vmatprep.subr.bf16.mxu0 0
      %1227 = vmatpush1.bf16.msra.mxu0 %v1135
      %1228 = vmatprep.subr.bf16.mxu0 0
      %1229 = vmatpush1.bf16.msra.mxu0 %v1136
      %1230 = vmatprep.subr.bf16.mxu0 0
      %1231 = vmatpush1.bf16.msra.mxu0 %v1137
      %1232 = vmatprep.subr.bf16.mxu0 0
      %1233 = vmatpush1.bf16.msra.mxu0 %v1138
      %1234 = vmatprep.subr.bf16.mxu0 0
      %1235 = vmatpush1.bf16.msra.mxu0 %v1139
      %1236 = vmatprep.subr.bf16.mxu0 0
      %1237 = vmatpush1.bf16.msra.mxu0 %v1140
      %1238 = vmatprep.subr.bf16.mxu0 0
      %1239 = vmatpush1.bf16.msra.mxu0 %v1141
      %1240 = vmatprep.subr.bf16.mxu0 0
      %1241 = vmatpush1.bf16.msra.mxu0 %v1142
      %1242 = vmatprep.subr.bf16.mxu0 0
      %1243 = vmatpush1.bf16.msra.mxu0 %v1143
      %1244 = vmatprep.subr.bf16.mxu0 0
      %1245 = vmatpush1.bf16.msra.mxu0 %v1144
      %1246 = vmatprep.subr.bf16.mxu0 0
      %1247 = vmatpush1.bf16.msra.mxu0 %v1145
      %1248 = vmatprep.subr.bf16.mxu0 0
      %1249 = vmatpush1.bf16.msra.mxu0 %v1146
      %1250 = vmatprep.subr.bf16.mxu0 0
      %1251 = vmatpush1.bf16.msra.mxu0 %v1147
      %1252 = vmatprep.mubr.bf16.mxu0 %v983
      %1253 = vmatmul.mubr.bf16.gmra.mrb[0].mxu0 %v981
      %v1254 = vpop.f32.mrb[0].mxu0
      %v1255 = vadd.f32 %v1215, %v1254
      %v1256 = vpop.f32.mrb[0].mxu0
      %v1257 = vpop.f32.mrb[0].mxu0
      %v1258 = vpop.f32.mrb[0].mxu0
      %1259 = vdwg.mxu0
      %v1260 = vadd.f32 %v895, %v1255
      %v1261 = vld [vmem:[%s900] sm:$0xff]
      %v1262 = vld [vmem:[%s1 + $0x300] sm:$0xf]
      %v1263 = vld [vmem:[%s1 + $0x304] sm:$0xf]
      %v1264 = vld [vmem:[%s1 + $0x308] sm:$0xf]
      %v1265 = vld [vmem:[%s1 + $0x30c] sm:$0xf]
      %v1266 = vld [vmem:[%s1 + $0x310] sm:$0xf]
      %v1267 = vld [vmem:[%s1 + $0x314] sm:$0xf]
      %v1268 = vld [vmem:[%s1 + $0x318] sm:$0xf]
      %v1269 = vld [vmem:[%s1 + $0x31c] sm:$0xf]
      %v1270 = vld [vmem:[%s1 + $0x320] sm:$0xf]
      %v1271 = vld [vmem:[%s1 + $0x324] sm:$0xf]
      %v1272 = vld [vmem:[%s1 + $0x328] sm:$0xf]
      %v1273 = vld [vmem:[%s1 + $0x32c] sm:$0xf]
      %v1274 = vld [vmem:[%s1 + $0x330] sm:$0xf]
      %v1275 = vld [vmem:[%s1 + $0x334] sm:$0xf]
      %v1276 = vld [vmem:[%s1 + $0x338] sm:$0xf]
      %v1277 = vld [vmem:[%s1 + $0x33c] sm:$0xf]
      %v1278 = vld [vmem:[%s1 + $0x340] sm:$0xf]
      %v1279 = vld [vmem:[%s1 + $0x344] sm:$0xf]
      %v1280 = vld [vmem:[%s1 + $0x348] sm:$0xf]
      %v1281 = vld [vmem:[%s1 + $0x34c] sm:$0xf]
      %v1282 = vld [vmem:[%s1 + $0x350] sm:$0xf]
      %v1283 = vld [vmem:[%s1 + $0x354] sm:$0xf]
      %v1284 = vld [vmem:[%s1 + $0x358] sm:$0xf]
      %v1285 = vld [vmem:[%s1 + $0x35c] sm:$0xf]
      %v1286 = vld [vmem:[%s1 + $0x360] sm:$0xf]
      %v1287 = vld [vmem:[%s1 + $0x364] sm:$0xf]
      %v1288 = vld [vmem:[%s1 + $0x368] sm:$0xf]
      %v1289 = vld [vmem:[%s1 + $0x36c] sm:$0xf]
      %v1290 = vld [vmem:[%s1 + $0x370] sm:$0xf]
      %v1291 = vld [vmem:[%s1 + $0x374] sm:$0xf]
      %v1292 = vld [vmem:[%s1 + $0x378] sm:$0xf]
      %v1293 = vld [vmem:[%s1 + $0x37c] sm:$0xf]
      %v1294 = vld [vmem:[%s1 + $0x380] sm:$0xf]
      %v1295 = vld [vmem:[%s1 + $0x384] sm:$0xf]
      %v1296 = vld [vmem:[%s1 + $0x388] sm:$0xf]
      %v1297 = vld [vmem:[%s1 + $0x38c] sm:$0xf]
      %v1298 = vld [vmem:[%s1 + $0x390] sm:$0xf]
      %v1299 = vld [vmem:[%s1 + $0x394] sm:$0xf]
      %v1300 = vld [vmem:[%s1 + $0x398] sm:$0xf]
      %v1301 = vld [vmem:[%s1 + $0x39c] sm:$0xf]
      %v1302 = vld [vmem:[%s1 + $0x3a0] sm:$0xf]
      %v1303 = vld [vmem:[%s1 + $0x3a4] sm:$0xf]
      %v1304 = vld [vmem:[%s1 + $0x3a8] sm:$0xf]
      %v1305 = vld [vmem:[%s1 + $0x3ac] sm:$0xf]
      %v1306 = vld [vmem:[%s1 + $0x3b0] sm:$0xf]
      %v1307 = vld [vmem:[%s1 + $0x3b4] sm:$0xf]
      %v1308 = vld [vmem:[%s1 + $0x3b8] sm:$0xf]
      %v1309 = vld [vmem:[%s1 + $0x3bc] sm:$0xf]
      %v1310 = vld [vmem:[%s1 + $0x3c0] sm:$0xf]
      %v1311 = vld [vmem:[%s1 + $0x3c4] sm:$0xf]
      %v1312 = vld [vmem:[%s1 + $0x3c8] sm:$0xf]
      %v1313 = vld [vmem:[%s1 + $0x3cc] sm:$0xf]
      %v1314 = vld [vmem:[%s1 + $0x3d0] sm:$0xf]
      %v1315 = vld [vmem:[%s1 + $0x3d4] sm:$0xf]
      %v1316 = vld [vmem:[%s1 + $0x3d8] sm:$0xf]
      %v1317 = vld [vmem:[%s1 + $0x3dc] sm:$0xf]
      %v1318 = vld [vmem:[%s1 + $0x3e0] sm:$0xf]
      %v1319 = vld [vmem:[%s1 + $0x3e4] sm:$0xf]
      %v1320 = vld [vmem:[%s1 + $0x3e8] sm:$0xf]
      %v1321 = vld [vmem:[%s1 + $0x3ec] sm:$0xf]
      %v1322 = vld [vmem:[%s1 + $0x3f0] sm:$0xf]
      %v1323 = vld [vmem:[%s1 + $0x3f4] sm:$0xf]
      %v1324 = vld [vmem:[%s1 + $0x3f8] sm:$0xf]
      %v1325 = vld [vmem:[%s1 + $0x3fc] sm:$0xf]
      %v1327 = vcombine.high %v1261, %v1261
      %v1329 = vunpack.c.l.s4 1983009808
      %v1330 = vunpack.c.0.s8 %v1329
      %v1331 = vlaneseq
      %v1332 = vshrl.u32 %v1331, 7
      %v1333 = vsub.s32 %v1330, %v1332
      %v1334 = vrot.slane %v1261, %v1333
      %v1336 = vunpack.c.l.s4 1983009808
      %v1337 = vunpack.c.0.s8 %v1336
      %v1338 = vlaneseq
      %v1339 = vshrl.u32 %v1338, 7
      %v1340 = vsub.s32 %v1337, %v1339
      %v1341 = vrot.slane %v1327, %v1340
      %v1342 = vcombine.high %v1334, %v1334
      %v1343 = vcombine.high %v1341, %v1341
      %v1345 = vshrl.u32 %v1334, 16
      %v1347 = vshll.u32 %v1334, 16
      %v1349 = vrot.slane %v1347, 1
      %v1350 = vor.u32 %v1345, %v1349
      %v1352 = vshrl.u32 %v1342, 16
      %v1354 = vshll.u32 %v1342, 16
      %v1356 = vrot.slane %v1354, 1
      %v1357 = vor.u32 %v1352, %v1356
      %v1359 = vshrl.u32 %v1341, 16
      %v1361 = vshll.u32 %v1341, 16
      %v1363 = vrot.slane %v1361, 1
      %v1364 = vor.u32 %v1359, %v1363
      %v1366 = vshrl.u32 %v1343, 16
      %v1368 = vshll.u32 %v1343, 16
      %v1370 = vrot.slane %v1368, 1
      %v1371 = vor.u32 %v1366, %v1370
      %v1440 = vunpack.c.l.b16 %v1262
      %v1441 = vunpack.c.l.b16 %v1263
      %v1442 = vunpack.c.l.b16 %v1264
      %v1443 = vunpack.c.l.b16 %v1265
      %v1444 = vunpack.c.l.b16 %v1266
      %v1445 = vunpack.c.l.b16 %v1267
      %v1446 = vunpack.c.l.b16 %v1268
      %v1447 = vunpack.c.l.b16 %v1269
      %v1448 = vunpack.c.l.b16 %v1270
      %v1449 = vunpack.c.l.b16 %v1271
      %v1450 = vunpack.c.l.b16 %v1272
      %v1451 = vunpack.c.l.b16 %v1273
      %v1452 = vunpack.c.l.b16 %v1274
      %v1453 = vunpack.c.l.b16 %v1275
      %v1454 = vunpack.c.l.b16 %v1276
      %v1455 = vunpack.c.l.b16 %v1277
      %v1456 = vunpack.c.l.b16 %v1278
      %v1457 = vunpack.c.l.b16 %v1279
      %v1458 = vunpack.c.l.b16 %v1280
      %v1459 = vunpack.c.l.b16 %v1281
      %v1460 = vunpack.c.l.b16 %v1282
      %v1461 = vunpack.c.l.b16 %v1283
      %v1462 = vunpack.c.l.b16 %v1284
      %v1463 = vunpack.c.l.b16 %v1285
      %v1464 = vunpack.c.l.b16 %v1286
      %v1465 = vunpack.c.l.b16 %v1287
      %v1466 = vunpack.c.l.b16 %v1288
      %v1467 = vunpack.c.l.b16 %v1289
      %v1468 = vunpack.c.l.b16 %v1290
      %v1469 = vunpack.c.l.b16 %v1291
      %v1470 = vunpack.c.l.b16 %v1292
      %v1471 = vunpack.c.l.b16 %v1293
      %v1472 = vunpack.c.l.b16 %v1294
      %v1473 = vunpack.c.l.b16 %v1295
      %v1474 = vunpack.c.l.b16 %v1296
      %v1475 = vunpack.c.l.b16 %v1297
      %v1476 = vunpack.c.l.b16 %v1298
      %v1477 = vunpack.c.l.b16 %v1299
      %v1478 = vunpack.c.l.b16 %v1300
      %v1479 = vunpack.c.l.b16 %v1301
      %v1480 = vunpack.c.l.b16 %v1302
      %v1481 = vunpack.c.l.b16 %v1303
      %v1482 = vunpack.c.l.b16 %v1304
      %v1483 = vunpack.c.l.b16 %v1305
      %v1484 = vunpack.c.l.b16 %v1306
      %v1485 = vunpack.c.l.b16 %v1307
      %v1486 = vunpack.c.l.b16 %v1308
      %v1487 = vunpack.c.l.b16 %v1309
      %v1488 = vunpack.c.l.b16 %v1310
      %v1489 = vunpack.c.l.b16 %v1311
      %v1490 = vunpack.c.l.b16 %v1312
      %v1491 = vunpack.c.l.b16 %v1313
      %v1492 = vunpack.c.l.b16 %v1314
      %v1493 = vunpack.c.l.b16 %v1315
      %v1494 = vunpack.c.l.b16 %v1316
      %v1495 = vunpack.c.l.b16 %v1317
      %v1496 = vunpack.c.l.b16 %v1318
      %v1497 = vunpack.c.l.b16 %v1319
      %v1498 = vunpack.c.l.b16 %v1320
      %v1499 = vunpack.c.l.b16 %v1321
      %v1500 = vunpack.c.l.b16 %v1322
      %v1501 = vunpack.c.l.b16 %v1323
      %v1502 = vunpack.c.l.b16 %v1324
      %v1503 = vunpack.c.l.b16 %v1325
      %v1504 = vpack.c.b16 %v1441, %v1440
      %v1505 = vpack.c.b16 %v1443, %v1442
      %v1506 = vpack.c.b16 %v1445, %v1444
      %v1507 = vpack.c.b16 %v1447, %v1446
      %v1508 = vpack.c.b16 %v1449, %v1448
      %v1509 = vpack.c.b16 %v1451, %v1450
      %v1510 = vpack.c.b16 %v1453, %v1452
      %v1511 = vpack.c.b16 %v1455, %v1454
      %v1512 = vpack.c.b16 %v1457, %v1456
      %v1513 = vpack.c.b16 %v1459, %v1458
      %v1514 = vpack.c.b16 %v1461, %v1460
      %v1515 = vpack.c.b16 %v1463, %v1462
      %v1516 = vpack.c.b16 %v1465, %v1464
      %v1517 = vpack.c.b16 %v1467, %v1466
      %v1518 = vpack.c.b16 %v1469, %v1468
      %v1519 = vpack.c.b16 %v1471, %v1470
      %v1520 = vpack.c.b16 %v1473, %v1472
      %v1521 = vpack.c.b16 %v1475, %v1474
      %v1522 = vpack.c.b16 %v1477, %v1476
      %v1523 = vpack.c.b16 %v1479, %v1478
      %v1524 = vpack.c.b16 %v1481, %v1480
      %v1525 = vpack.c.b16 %v1483, %v1482
      %v1526 = vpack.c.b16 %v1485, %v1484
      %v1527 = vpack.c.b16 %v1487, %v1486
      %v1528 = vpack.c.b16 %v1489, %v1488
      %v1529 = vpack.c.b16 %v1491, %v1490
      %v1530 = vpack.c.b16 %v1493, %v1492
      %v1531 = vpack.c.b16 %v1495, %v1494
      %v1532 = vpack.c.b16 %v1497, %v1496
      %v1533 = vpack.c.b16 %v1499, %v1498
      %v1534 = vpack.c.b16 %v1501, %v1500
      %v1535 = vpack.c.b16 %v1503, %v1502
      %1568 = vmatprep.subr.bf16.mxu0 0
      %1569 = vmatpush1.bf16.msra.mxu0 %v1504
      %1570 = vmatprep.subr.bf16.mxu0 0
      %1571 = vmatpush1.bf16.msra.mxu0 %v1505
      %1572 = vmatprep.subr.bf16.mxu0 0
      %1573 = vmatpush1.bf16.msra.mxu0 %v1506
      %1574 = vmatprep.subr.bf16.mxu0 0
      %1575 = vmatpush1.bf16.msra.mxu0 %v1507
      %1576 = vmatprep.subr.bf16.mxu0 0
      %1577 = vmatpush1.bf16.msra.mxu0 %v1508
      %1578 = vmatprep.subr.bf16.mxu0 0
      %1579 = vmatpush1.bf16.msra.mxu0 %v1509
      %1580 = vmatprep.subr.bf16.mxu0 0
      %1581 = vmatpush1.bf16.msra.mxu0 %v1510
      %1582 = vmatprep.subr.bf16.mxu0 0
      %1583 = vmatpush1.bf16.msra.mxu0 %v1511
      %1584 = vmatprep.subr.bf16.mxu0 0
      %1585 = vmatpush1.bf16.msra.mxu0 %v1512
      %1586 = vmatprep.subr.bf16.mxu0 0
      %1587 = vmatpush1.bf16.msra.mxu0 %v1513
      %1588 = vmatprep.subr.bf16.mxu0 0
      %1589 = vmatpush1.bf16.msra.mxu0 %v1514
      %1590 = vmatprep.subr.bf16.mxu0 0
      %1591 = vmatpush1.bf16.msra.mxu0 %v1515
      %1592 = vmatprep.subr.bf16.mxu0 0
      %1593 = vmatpush1.bf16.msra.mxu0 %v1516
      %1594 = vmatprep.subr.bf16.mxu0 0
      %1595 = vmatpush1.bf16.msra.mxu0 %v1517
      %1596 = vmatprep.subr.bf16.mxu0 0
      %1597 = vmatpush1.bf16.msra.mxu0 %v1518
      %1598 = vmatprep.subr.bf16.mxu0 0
      %1599 = vmatpush1.bf16.msra.mxu0 %v1519
      %1600 = vmatprep.mubr.bf16.mxu0 %v1357
      %1601 = vmatmul.mubr.bf16.gmra.mrb[0].mxu0 %v1350
      %v1602 = vpop.f32.mrb[0].mxu0
      %v1603 = vadd.f32 0.0, %v1602
      %v1604 = vpop.f32.mrb[0].mxu0
      %v1605 = vpop.f32.mrb[0].mxu0
      %v1606 = vpop.f32.mrb[0].mxu0
      %1607 = vdwg.mxu0
      %1608 = vmatprep.subr.bf16.mxu0 0
      %1609 = vmatpush1.bf16.msra.mxu0 %v1520
      %1610 = vmatprep.subr.bf16.mxu0 0
      %1611 = vmatpush1.bf16.msra.mxu0 %v1521
      %1612 = vmatprep.subr.bf16.mxu0 0
      %1613 = vmatpush1.bf16.msra.mxu0 %v1522
      %1614 = vmatprep.subr.bf16.mxu0 0
      %1615 = vmatpush1.bf16.msra.mxu0 %v1523
      %1616 = vmatprep.subr.bf16.mxu0 0
      %1617 = vmatpush1.bf16.msra.mxu0 %v1524
      %1618 = vmatprep.subr.bf16.mxu0 0
      %1619 = vmatpush1.bf16.msra.mxu0 %v1525
      %1620 = vmatprep.subr.bf16.mxu0 0
      %1621 = vmatpush1.bf16.msra.mxu0 %v1526
      %1622 = vmatprep.subr.bf16.mxu0 0
      %1623 = vmatpush1.bf16.msra.mxu0 %v1527
      %1624 = vmatprep.subr.bf16.mxu0 0
      %1625 = vmatpush1.bf16.msra.mxu0 %v1528
      %1626 = vmatprep.subr.bf16.mxu0 0
      %1627 = vmatpush1.bf16.msra.mxu0 %v1529
      %1628 = vmatprep.subr.bf16.mxu0 0
      %1629 = vmatpush1.bf16.msra.mxu0 %v1530
      %1630 = vmatprep.subr.bf16.mxu0 0
      %1631 = vmatpush1.bf16.msra.mxu0 %v1531
      %1632 = vmatprep.subr.bf16.mxu0 0
      %1633 = vmatpush1.bf16.msra.mxu0 %v1532
      %1634 = vmatprep.subr.bf16.mxu0 0
      %1635 = vmatpush1.bf16.msra.mxu0 %v1533
      %1636 = vmatprep.subr.bf16.mxu0 0
      %1637 = vmatpush1.bf16.msra.mxu0 %v1534
      %1638 = vmatprep.subr.bf16.mxu0 0
      %1639 = vmatpush1.bf16.msra.mxu0 %v1535
      %1640 = vmatprep.mubr.bf16.mxu0 %v1371
      %1641 = vmatmul.mubr.bf16.gmra.mrb[0].mxu0 %v1364
      %v1642 = vpop.f32.mrb[0].mxu0
      %v1643 = vadd.f32 %v1603, %v1642
      %v1644 = vpop.f32.mrb[0].mxu0
      %v1645 = vpop.f32.mrb[0].mxu0
      %v1646 = vpop.f32.mrb[0].mxu0
      %1647 = vdwg.mxu0
      %v1648 = vadd.f32 %v1260, %v1643
      %v1650 = vlaneseq
      %v1651 = vshrl.u32 %v1650, 7
      %v1652 = vsub.s32 0, %v1651
      %v1653 = vrot.slane %v172, %v1652
      %v1655 = vadd.f32 %v1648, %v1653
      %v1656 = vmax.f32 %v1655, 0.0
      %v1657 = vpack.c.bf16 %v1656, %v1656
      %vm1658 = vcmask 1041408
      %vm1659 = vsmask.f32 1280
      %vm1660 = vmand %vm1658, %vm1659
      %v1661 = vld [vmem:[%s170] sm:$0x3]
      %v1662 = vsel %vm1660, %v1657, %v1661
      %1663 = vst [vmem:[%s170] sm:$0x3] %v1662
      %v1664 = vld [vmem:[%s900] sm:$0xff]
      %v1665 = vld [vmem:[%s1] sm:$0xf]
      %v1666 = vld [vmem:[%s1 + $0x4] sm:$0xf]
      %v1667 = vld [vmem:[%s1 + $0x8] sm:$0xf]
      %v1668 = vld [vmem:[%s1 + $0xc] sm:$0xf]
      %v1669 = vld [vmem:[%s1 + $0x10] sm:$0xf]
      %v1670 = vld [vmem:[%s1 + $0x14] sm:$0xf]
      %v1671 = vld [vmem:[%s1 + $0x18] sm:$0xf]
      %v1672 = vld [vmem:[%s1 + $0x1c] sm:$0xf]
      %v1673 = vld [vmem:[%s1 + $0x20] sm:$0xf]
      %v1674 = vld [vmem:[%s1 + $0x24] sm:$0xf]
      %v1675 = vld [vmem:[%s1 + $0x28] sm:$0xf]
      %v1676 = vld [vmem:[%s1 + $0x2c] sm:$0xf]
      %v1677 = vld [vmem:[%s1 + $0x30] sm:$0xf]
      %v1678 = vld [vmem:[%s1 + $0x34] sm:$0xf]
      %v1679 = vld [vmem:[%s1 + $0x38] sm:$0xf]
      %v1680 = vld [vmem:[%s1 + $0x3c] sm:$0xf]
      %v1681 = vld [vmem:[%s1 + $0x40] sm:$0xf]
      %v1682 = vld [vmem:[%s1 + $0x44] sm:$0xf]
      %v1683 = vld [vmem:[%s1 + $0x48] sm:$0xf]
      %v1684 = vld [vmem:[%s1 + $0x4c] sm:$0xf]
      %v1685 = vld [vmem:[%s1 + $0x50] sm:$0xf]
      %v1686 = vld [vmem:[%s1 + $0x54] sm:$0xf]
      %v1687 = vld [vmem:[%s1 + $0x58] sm:$0xf]
      %v1688 = vld [vmem:[%s1 + $0x5c] sm:$0xf]
      %v1689 = vld [vmem:[%s1 + $0x60] sm:$0xf]
      %v1690 = vld [vmem:[%s1 + $0x64] sm:$0xf]
      %v1691 = vld [vmem:[%s1 + $0x68] sm:$0xf]
      %v1692 = vld [vmem:[%s1 + $0x6c] sm:$0xf]
      %v1693 = vld [vmem:[%s1 + $0x70] sm:$0xf]
      %v1694 = vld [vmem:[%s1 + $0x74] sm:$0xf]
      %v1695 = vld [vmem:[%s1 + $0x78] sm:$0xf]
      %v1696 = vld [vmem:[%s1 + $0x7c] sm:$0xf]
      %v1697 = vld [vmem:[%s1 + $0x80] sm:$0xf]
      %v1698 = vld [vmem:[%s1 + $0x84] sm:$0xf]
      %v1699 = vld [vmem:[%s1 + $0x88] sm:$0xf]
      %v1700 = vld [vmem:[%s1 + $0x8c] sm:$0xf]
      %v1701 = vld [vmem:[%s1 + $0x90] sm:$0xf]
      %v1702 = vld [vmem:[%s1 + $0x94] sm:$0xf]
      %v1703 = vld [vmem:[%s1 + $0x98] sm:$0xf]
      %v1704 = vld [vmem:[%s1 + $0x9c] sm:$0xf]
      %v1705 = vld [vmem:[%s1 + $0xa0] sm:$0xf]
      %v1706 = vld [vmem:[%s1 + $0xa4] sm:$0xf]
      %v1707 = vld [vmem:[%s1 + $0xa8] sm:$0xf]
      %v1708 = vld [vmem:[%s1 + $0xac] sm:$0xf]
      %v1709 = vld [vmem:[%s1 + $0xb0] sm:$0xf]
      %v1710 = vld [vmem:[%s1 + $0xb4] sm:$0xf]
      %v1711 = vld [vmem:[%s1 + $0xb8] sm:$0xf]
      %v1712 = vld [vmem:[%s1 + $0xbc] sm:$0xf]
      %v1713 = vld [vmem:[%s1 + $0xc0] sm:$0xf]
      %v1714 = vld [vmem:[%s1 + $0xc4] sm:$0xf]
      %v1715 = vld [vmem:[%s1 + $0xc8] sm:$0xf]
      %v1716 = vld [vmem:[%s1 + $0xcc] sm:$0xf]
      %v1717 = vld [vmem:[%s1 + $0xd0] sm:$0xf]
      %v1718 = vld [vmem:[%s1 + $0xd4] sm:$0xf]
      %v1719 = vld [vmem:[%s1 + $0xd8] sm:$0xf]
      %v1720 = vld [vmem:[%s1 + $0xdc] sm:$0xf]
      %v1721 = vld [vmem:[%s1 + $0xe0] sm:$0xf]
      %v1722 = vld [vmem:[%s1 + $0xe4] sm:$0xf]
      %v1723 = vld [vmem:[%s1 + $0xe8] sm:$0xf]
      %v1724 = vld [vmem:[%s1 + $0xec] sm:$0xf]
      %v1725 = vld [vmem:[%s1 + $0xf0] sm:$0xf]
      %v1726 = vld [vmem:[%s1 + $0xf4] sm:$0xf]
      %v1727 = vld [vmem:[%s1 + $0xf8] sm:$0xf]
      %v1728 = vld [vmem:[%s1 + $0xfc] sm:$0xf]
      %v1729 = vld [vmem:[%s1 + $0x100] sm:$0xf]
      %v1730 = vld [vmem:[%s1 + $0x104] sm:$0xf]
      %v1731 = vld [vmem:[%s1 + $0x108] sm:$0xf]
      %v1732 = vld [vmem:[%s1 + $0x10c] sm:$0xf]
      %v1733 = vld [vmem:[%s1 + $0x110] sm:$0xf]
      %v1734 = vld [vmem:[%s1 + $0x114] sm:$0xf]
      %v1735 = vld [vmem:[%s1 + $0x118] sm:$0xf]
      %v1736 = vld [vmem:[%s1 + $0x11c] sm:$0xf]
      %v1737 = vld [vmem:[%s1 + $0x120] sm:$0xf]
      %v1738 = vld [vmem:[%s1 + $0x124] sm:$0xf]
      %v1739 = vld [vmem:[%s1 + $0x128] sm:$0xf]
      %v1740 = vld [vmem:[%s1 + $0x12c] sm:$0xf]
      %v1741 = vld [vmem:[%s1 + $0x130] sm:$0xf]
      %v1742 = vld [vmem:[%s1 + $0x134] sm:$0xf]
      %v1743 = vld [vmem:[%s1 + $0x138] sm:$0xf]
      %v1744 = vld [vmem:[%s1 + $0x13c] sm:$0xf]
      %v1745 = vld [vmem:[%s1 + $0x140] sm:$0xf]
      %v1746 = vld [vmem:[%s1 + $0x144] sm:$0xf]
      %v1747 = vld [vmem:[%s1 + $0x148] sm:$0xf]
      %v1748 = vld [vmem:[%s1 + $0x14c] sm:$0xf]
      %v1749 = vld [vmem:[%s1 + $0x150] sm:$0xf]
      %v1750 = vld [vmem:[%s1 + $0x154] sm:$0xf]
      %v1751 = vld [vmem:[%s1 + $0x158] sm:$0xf]
      %v1752 = vld [vmem:[%s1 + $0x15c] sm:$0xf]
      %v1753 = vld [vmem:[%s1 + $0x160] sm:$0xf]
      %v1754 = vld [vmem:[%s1 + $0x164] sm:$0xf]
      %v1755 = vld [vmem:[%s1 + $0x168] sm:$0xf]
      %v1756 = vld [vmem:[%s1 + $0x16c] sm:$0xf]
      %v1757 = vld [vmem:[%s1 + $0x170] sm:$0xf]
      %v1758 = vld [vmem:[%s1 + $0x174] sm:$0xf]
      %v1759 = vld [vmem:[%s1 + $0x178] sm:$0xf]
      %v1760 = vld [vmem:[%s1 + $0x17c] sm:$0xf]
      %v1761 = vld [vmem:[%s1 + $0x180] sm:$0xf]
      %v1762 = vld [vmem:[%s1 + $0x184] sm:$0xf]
      %v1763 = vld [vmem:[%s1 + $0x188] sm:$0xf]
      %v1764 = vld [vmem:[%s1 + $0x18c] sm:$0xf]
      %v1765 = vld [vmem:[%s1 + $0x190] sm:$0xf]
      %v1766 = vld [vmem:[%s1 + $0x194] sm:$0xf]
      %v1767 = vld [vmem:[%s1 + $0x198] sm:$0xf]
      %v1768 = vld [vmem:[%s1 + $0x19c] sm:$0xf]
      %v1769 = vld [vmem:[%s1 + $0x1a0] sm:$0xf]
      %v1770 = vld [vmem:[%s1 + $0x1a4] sm:$0xf]
      %v1771 = vld [vmem:[%s1 + $0x1a8] sm:$0xf]
      %v1772 = vld [vmem:[%s1 + $0x1ac] sm:$0xf]
      %v1773 = vld [vmem:[%s1 + $0x1b0] sm:$0xf]
      %v1774 = vld [vmem:[%s1 + $0x1b4] sm:$0xf]
      %v1775 = vld [vmem:[%s1 + $0x1b8] sm:$0xf]
      %v1776 = vld [vmem:[%s1 + $0x1bc] sm:$0xf]
      %v1777 = vld [vmem:[%s1 + $0x1c0] sm:$0xf]
      %v1778 = vld [vmem:[%s1 + $0x1c4] sm:$0xf]
      %v1779 = vld [vmem:[%s1 + $0x1c8] sm:$0xf]
      %v1780 = vld [vmem:[%s1 + $0x1cc] sm:$0xf]
      %v1781 = vld [vmem:[%s1 + $0x1d0] sm:$0xf]
      %v1782 = vld [vmem:[%s1 + $0x1d4] sm:$0xf]
      %v1783 = vld [vmem:[%s1 + $0x1d8] sm:$0xf]
      %v1784 = vld [vmem:[%s1 + $0x1dc] sm:$0xf]
      %v1785 = vld [vmem:[%s1 + $0x1e0] sm:$0xf]
      %v1786 = vld [vmem:[%s1 + $0x1e4] sm:$0xf]
      %v1787 = vld [vmem:[%s1 + $0x1e8] sm:$0xf]
      %v1788 = vld [vmem:[%s1 + $0x1ec] sm:$0xf]
      %v1789 = vld [vmem:[%s1 + $0x1f0] sm:$0xf]
      %v1790 = vld [vmem:[%s1 + $0x1f4] sm:$0xf]
      %v1791 = vld [vmem:[%s1 + $0x1f8] sm:$0xf]
      %v1792 = vld [vmem:[%s1 + $0x1fc] sm:$0xf]
      %v1794 = vcombine.high %v1664, %v1664
      %v1796 = vunpack.c.l.s4 1983009808
      %v1797 = vunpack.c.0.s8 %v1796
      %v1798 = vlaneseq
      %v1799 = vshrl.u32 %v1798, 7
      %v1800 = vsub.s32 %v1797, %v1799
      %v1801 = vrot.slane %v1664, %v1800
      %v1803 = vunpack.c.l.s4 1983009808
      %v1804 = vunpack.c.0.s8 %v1803
      %v1805 = vlaneseq
      %v1806 = vshrl.u32 %v1805, 7
      %v1807 = vsub.s32 %v1804, %v1806
      %v1808 = vrot.slane %v1794, %v1807
      %v1809 = vcombine.high %v1801, %v1801
      %v1810 = vcombine.high %v1808, %v1808
      %v1812 = vshrl.u32 %v1801, 16
      %v1814 = vshll.u32 %v1801, 16
      %v1816 = vrot.slane %v1814, 1
      %v1817 = vor.u32 %v1812, %v1816
      %v1819 = vshrl.u32 %v1809, 16
      %v1821 = vshll.u32 %v1809, 16
      %v1823 = vrot.slane %v1821, 1
      %v1824 = vor.u32 %v1819, %v1823
      %v1826 = vshrl.u32 %v1808, 16
      %v1828 = vshll.u32 %v1808, 16
      %v1830 = vrot.slane %v1828, 1
      %v1831 = vor.u32 %v1826, %v1830
      %v1833 = vshrl.u32 %v1810, 16
      %v1835 = vshll.u32 %v1810, 16
      %v1837 = vrot.slane %v1835, 1
      %v1838 = vor.u32 %v1833, %v1837
      %v1907 = vunpack.c.l.b16 %v1729
      %v1908 = vunpack.c.l.b16 %v1730
      %v1909 = vunpack.c.l.b16 %v1731
      %v1910 = vunpack.c.l.b16 %v1732
      %v1911 = vunpack.c.l.b16 %v1733
      %v1912 = vunpack.c.l.b16 %v1734
      %v1913 = vunpack.c.l.b16 %v1735
      %v1914 = vunpack.c.l.b16 %v1736
      %v1915 = vunpack.c.l.b16 %v1737
      %v1916 = vunpack.c.l.b16 %v1738
      %v1917 = vunpack.c.l.b16 %v1739
      %v1918 = vunpack.c.l.b16 %v1740
      %v1919 = vunpack.c.l.b16 %v1741
      %v1920 = vunpack.c.l.b16 %v1742
      %v1921 = vunpack.c.l.b16 %v1743
      %v1922 = vunpack.c.l.b16 %v1744
      %v1923 = vunpack.c.l.b16 %v1745
      %v1924 = vunpack.c.l.b16 %v1746
      %v1925 = vunpack.c.l.b16 %v1747
      %v1926 = vunpack.c.l.b16 %v1748
      %v1927 = vunpack.c.l.b16 %v1749
      %v1928 = vunpack.c.l.b16 %v1750
      %v1929 = vunpack.c.l.b16 %v1751
      %v1930 = vunpack.c.l.b16 %v1752
      %v1931 = vunpack.c.l.b16 %v1753
      %v1932 = vunpack.c.l.b16 %v1754
      %v1933 = vunpack.c.l.b16 %v1755
      %v1934 = vunpack.c.l.b16 %v1756
      %v1935 = vunpack.c.l.b16 %v1757
      %v1936 = vunpack.c.l.b16 %v1758
      %v1937 = vunpack.c.l.b16 %v1759
      %v1938 = vunpack.c.l.b16 %v1760
      %v1939 = vunpack.c.l.b16 %v1761
      %v1940 = vunpack.c.l.b16 %v1762
      %v1941 = vunpack.c.l.b16 %v1763
      %v1942 = vunpack.c.l.b16 %v1764
      %v1943 = vunpack.c.l.b16 %v1765
      %v1944 = vunpack.c.l.b16 %v1766
      %v1945 = vunpack.c.l.b16 %v1767
      %v1946 = vunpack.c.l.b16 %v1768
      %v1947 = vunpack.c.l.b16 %v1769
      %v1948 = vunpack.c.l.b16 %v1770
      %v1949 = vunpack.c.l.b16 %v1771
      %v1950 = vunpack.c.l.b16 %v1772
      %v1951 = vunpack.c.l.b16 %v1773
      %v1952 = vunpack.c.l.b16 %v1774
      %v1953 = vunpack.c.l.b16 %v1775
      %v1954 = vunpack.c.l.b16 %v1776
      %v1955 = vunpack.c.l.b16 %v1777
      %v1956 = vunpack.c.l.b16 %v1778
      %v1957 = vunpack.c.l.b16 %v1779
      %v1958 = vunpack.c.l.b16 %v1780
      %v1959 = vunpack.c.l.b16 %v1781
      %v1960 = vunpack.c.l.b16 %v1782
      %v1961 = vunpack.c.l.b16 %v1783
      %v1962 = vunpack.c.l.b16 %v1784
      %v1963 = vunpack.c.l.b16 %v1785
      %v1964 = vunpack.c.l.b16 %v1786
      %v1965 = vunpack.c.l.b16 %v1787
      %v1966 = vunpack.c.l.b16 %v1788
      %v1967 = vunpack.c.l.b16 %v1789
      %v1968 = vunpack.c.l.b16 %v1790
      %v1969 = vunpack.c.l.b16 %v1791
      %v1970 = vunpack.c.l.b16 %v1792
      %v1971 = vpack.c.b16 %v1908, %v1907
      %v1972 = vpack.c.b16 %v1910, %v1909
      %v1973 = vpack.c.b16 %v1912, %v1911
      %v1974 = vpack.c.b16 %v1914, %v1913
      %v1975 = vpack.c.b16 %v1916, %v1915
      %v1976 = vpack.c.b16 %v1918, %v1917
      %v1977 = vpack.c.b16 %v1920, %v1919
      %v1978 = vpack.c.b16 %v1922, %v1921
      %v1979 = vpack.c.b16 %v1924, %v1923
      %v1980 = vpack.c.b16 %v1926, %v1925
      %v1981 = vpack.c.b16 %v1928, %v1927
      %v1982 = vpack.c.b16 %v1930, %v1929
      %v1983 = vpack.c.b16 %v1932, %v1931
      %v1984 = vpack.c.b16 %v1934, %v1933
      %v1985 = vpack.c.b16 %v1936, %v1935
      %v1986 = vpack.c.b16 %v1938, %v1937
      %v1987 = vpack.c.b16 %v1940, %v1939
      %v1988 = vpack.c.b16 %v1942, %v1941
      %v1989 = vpack.c.b16 %v1944, %v1943
      %v1990 = vpack.c.b16 %v1946, %v1945
      %v1991 = vpack.c.b16 %v1948, %v1947
      %v1992 = vpack.c.b16 %v1950, %v1949
      %v1993 = vpack.c.b16 %v1952, %v1951
      %v1994 = vpack.c.b16 %v1954, %v1953
      %v1995 = vpack.c.b16 %v1956, %v1955
      %v1996 = vpack.c.b16 %v1958, %v1957
      %v1997 = vpack.c.b16 %v1960, %v1959
      %v1998 = vpack.c.b16 %v1962, %v1961
      %v1999 = vpack.c.b16 %v1964, %v1963
      %v2000 = vpack.c.b16 %v1966, %v1965
      %v2001 = vpack.c.b16 %v1968, %v1967
      %v2002 = vpack.c.b16 %v1970, %v1969
      %2035 = vmatprep.subr.bf16.mxu0 0
      %2036 = vmatpush1.bf16.msra.mxu0 %v1971
      %2037 = vmatprep.subr.bf16.mxu0 0
      %2038 = vmatpush1.bf16.msra.mxu0 %v1972
      %2039 = vmatprep.subr.bf16.mxu0 0
      %2040 = vmatpush1.bf16.msra.mxu0 %v1973
      %2041 = vmatprep.subr.bf16.mxu0 0
      %2042 = vmatpush1.bf16.msra.mxu0 %v1974
      %2043 = vmatprep.subr.bf16.mxu0 0
      %2044 = vmatpush1.bf16.msra.mxu0 %v1975
      %2045 = vmatprep.subr.bf16.mxu0 0
      %2046 = vmatpush1.bf16.msra.mxu0 %v1976
      %2047 = vmatprep.subr.bf16.mxu0 0
      %2048 = vmatpush1.bf16.msra.mxu0 %v1977
      %2049 = vmatprep.subr.bf16.mxu0 0
      %2050 = vmatpush1.bf16.msra.mxu0 %v1978
      %2051 = vmatprep.subr.bf16.mxu0 0
      %2052 = vmatpush1.bf16.msra.mxu0 %v1979
      %2053 = vmatprep.subr.bf16.mxu0 0
      %2054 = vmatpush1.bf16.msra.mxu0 %v1980
      %2055 = vmatprep.subr.bf16.mxu0 0
      %2056 = vmatpush1.bf16.msra.mxu0 %v1981
      %2057 = vmatprep.subr.bf16.mxu0 0
      %2058 = vmatpush1.bf16.msra.mxu0 %v1982
      %2059 = vmatprep.subr.bf16.mxu0 0
      %2060 = vmatpush1.bf16.msra.mxu0 %v1983
      %2061 = vmatprep.subr.bf16.mxu0 0
      %2062 = vmatpush1.bf16.msra.mxu0 %v1984
      %2063 = vmatprep.subr.bf16.mxu0 0
      %2064 = vmatpush1.bf16.msra.mxu0 %v1985
      %2065 = vmatprep.subr.bf16.mxu0 0
      %2066 = vmatpush1.bf16.msra.mxu0 %v1986
      %2067 = vmatprep.mubr.bf16.mxu0 %v1824
      %2068 = vmatmul.mubr.bf16.gmra.mrb[0].mxu0 %v1817
      %v2069 = vpop.f32.mrb[0].mxu0
      %v2070 = vadd.f32 0.0, %v2069
      %v2071 = vpop.f32.mrb[0].mxu0
      %v2072 = vpop.f32.mrb[0].mxu0
      %v2073 = vpop.f32.mrb[0].mxu0
      %2074 = vdwg.mxu0
      %2075 = vmatprep.subr.bf16.mxu0 0
      %2076 = vmatpush1.bf16.msra.mxu0 %v1987
      %2077 = vmatprep.subr.bf16.mxu0 0
      %2078 = vmatpush1.bf16.msra.mxu0 %v1988
      %2079 = vmatprep.subr.bf16.mxu0 0
      %2080 = vmatpush1.bf16.msra.mxu0 %v1989
      %2081 = vmatprep.subr.bf16.mxu0 0
      %2082 = vmatpush1.bf16.msra.mxu0 %v1990
      %2083 = vmatprep.subr.bf16.mxu0 0
      %2084 = vmatpush1.bf16.msra.mxu0 %v1991
      %2085 = vmatprep.subr.bf16.mxu0 0
      %2086 = vmatpush1.bf16.msra.mxu0 %v1992
      %2087 = vmatprep.subr.bf16.mxu0 0
      %2088 = vmatpush1.bf16.msra.mxu0 %v1993
      %2089 = vmatprep.subr.bf16.mxu0 0
      %2090 = vmatpush1.bf16.msra.mxu0 %v1994
      %2091 = vmatprep.subr.bf16.mxu0 0
      %2092 = vmatpush1.bf16.msra.mxu0 %v1995
      %2093 = vmatprep.subr.bf16.mxu0 0
      %2094 = vmatpush1.bf16.msra.mxu0 %v1996
      %2095 = vmatprep.subr.bf16.mxu0 0
      %2096 = vmatpush1.bf16.msra.mxu0 %v1997
      %2097 = vmatprep.subr.bf16.mxu0 0
      %2098 = vmatpush1.bf16.msra.mxu0 %v1998
      %2099 = vmatprep.subr.bf16.mxu0 0
      %2100 = vmatpush1.bf16.msra.mxu0 %v1999
      %2101 = vmatprep.subr.bf16.mxu0 0
      %2102 = vmatpush1.bf16.msra.mxu0 %v2000
      %2103 = vmatprep.subr.bf16.mxu0 0
      %2104 = vmatpush1.bf16.msra.mxu0 %v2001
      %2105 = vmatprep.subr.bf16.mxu0 0
      %2106 = vmatpush1.bf16.msra.mxu0 %v2002
      %2107 = vmatprep.mubr.bf16.mxu0 %v1838
      %2108 = vmatmul.mubr.bf16.gmra.mrb[0].mxu0 %v1831
      %v2109 = vpop.f32.mrb[0].mxu0
      %v2110 = vadd.f32 %v2070, %v2109
      %v2111 = vpop.f32.mrb[0].mxu0
      %v2112 = vpop.f32.mrb[0].mxu0
      %v2113 = vpop.f32.mrb[0].mxu0
      %2114 = vdwg.mxu0
      %v2183 = vunpack.c.l.b16 %v1665
      %v2184 = vunpack.c.l.b16 %v1666
      %v2185 = vunpack.c.l.b16 %v1667
      %v2186 = vunpack.c.l.b16 %v1668
      %v2187 = vunpack.c.l.b16 %v1669
      %v2188 = vunpack.c.l.b16 %v1670
      %v2189 = vunpack.c.l.b16 %v1671
      %v2190 = vunpack.c.l.b16 %v1672
      %v2191 = vunpack.c.l.b16 %v1673
      %v2192 = vunpack.c.l.b16 %v1674
      %v2193 = vunpack.c.l.b16 %v1675
      %v2194 = vunpack.c.l.b16 %v1676
      %v2195 = vunpack.c.l.b16 %v1677
      %v2196 = vunpack.c.l.b16 %v1678
      %v2197 = vunpack.c.l.b16 %v1679
      %v2198 = vunpack.c.l.b16 %v1680
      %v2199 = vunpack.c.l.b16 %v1681
      %v2200 = vunpack.c.l.b16 %v1682
      %v2201 = vunpack.c.l.b16 %v1683
      %v2202 = vunpack.c.l.b16 %v1684
      %v2203 = vunpack.c.l.b16 %v1685
      %v2204 = vunpack.c.l.b16 %v1686
      %v2205 = vunpack.c.l.b16 %v1687
      %v2206 = vunpack.c.l.b16 %v1688
      %v2207 = vunpack.c.l.b16 %v1689
      %v2208 = vunpack.c.l.b16 %v1690
      %v2209 = vunpack.c.l.b16 %v1691
      %v2210 = vunpack.c.l.b16 %v1692
      %v2211 = vunpack.c.l.b16 %v1693
      %v2212 = vunpack.c.l.b16 %v1694
      %v2213 = vunpack.c.l.b16 %v1695
      %v2214 = vunpack.c.l.b16 %v1696
      %v2215 = vunpack.c.l.b16 %v1697
      %v2216 = vunpack.c.l.b16 %v1698
      %v2217 = vunpack.c.l.b16 %v1699
      %v2218 = vunpack.c.l.b16 %v1700
      %v2219 = vunpack.c.l.b16 %v1701
      %v2220 = vunpack.c.l.b16 %v1702
      %v2221 = vunpack.c.l.b16 %v1703
      %v2222 = vunpack.c.l.b16 %v1704
      %v2223 = vunpack.c.l.b16 %v1705
      %v2224 = vunpack.c.l.b16 %v1706
      %v2225 = vunpack.c.l.b16 %v1707
      %v2226 = vunpack.c.l.b16 %v1708
      %v2227 = vunpack.c.l.b16 %v1709
      %v2228 = vunpack.c.l.b16 %v1710
      %v2229 = vunpack.c.l.b16 %v1711
      %v2230 = vunpack.c.l.b16 %v1712
      %v2231 = vunpack.c.l.b16 %v1713
      %v2232 = vunpack.c.l.b16 %v1714
      %v2233 = vunpack.c.l.b16 %v1715
      %v2234 = vunpack.c.l.b16 %v1716
      %v2235 = vunpack.c.l.b16 %v1717
      %v2236 = vunpack.c.l.b16 %v1718
      %v2237 = vunpack.c.l.b16 %v1719
      %v2238 = vunpack.c.l.b16 %v1720
      %v2239 = vunpack.c.l.b16 %v1721
      %v2240 = vunpack.c.l.b16 %v1722
      %v2241 = vunpack.c.l.b16 %v1723
      %v2242 = vunpack.c.l.b16 %v1724
      %v2243 = vunpack.c.l.b16 %v1725
      %v2244 = vunpack.c.l.b16 %v1726
      %v2245 = vunpack.c.l.b16 %v1727
      %v2246 = vunpack.c.l.b16 %v1728
      %v2247 = vpack.c.b16 %v2184, %v2183
      %v2248 = vpack.c.b16 %v2186, %v2185
      %v2249 = vpack.c.b16 %v2188, %v2187
      %v2250 = vpack.c.b16 %v2190, %v2189
      %v2251 = vpack.c.b16 %v2192, %v2191
      %v2252 = vpack.c.b16 %v2194, %v2193
      %v2253 = vpack.c.b16 %v2196, %v2195
      %v2254 = vpack.c.b16 %v2198, %v2197
      %v2255 = vpack.c.b16 %v2200, %v2199
      %v2256 = vpack.c.b16 %v2202, %v2201
      %v2257 = vpack.c.b16 %v2204, %v2203
      %v2258 = vpack.c.b16 %v2206, %v2205
      %v2259 = vpack.c.b16 %v2208, %v2207
      %v2260 = vpack.c.b16 %v2210, %v2209
      %v2261 = vpack.c.b16 %v2212, %v2211
      %v2262 = vpack.c.b16 %v2214, %v2213
      %v2263 = vpack.c.b16 %v2216, %v2215
      %v2264 = vpack.c.b16 %v2218, %v2217
      %v2265 = vpack.c.b16 %v2220, %v2219
      %v2266 = vpack.c.b16 %v2222, %v2221
      %v2267 = vpack.c.b16 %v2224, %v2223
      %v2268 = vpack.c.b16 %v2226, %v2225
      %v2269 = vpack.c.b16 %v2228, %v2227
      %v2270 = vpack.c.b16 %v2230, %v2229
      %v2271 = vpack.c.b16 %v2232, %v2231
      %v2272 = vpack.c.b16 %v2234, %v2233
      %v2273 = vpack.c.b16 %v2236, %v2235
      %v2274 = vpack.c.b16 %v2238, %v2237
      %v2275 = vpack.c.b16 %v2240, %v2239
      %v2276 = vpack.c.b16 %v2242, %v2241
      %v2277 = vpack.c.b16 %v2244, %v2243
      %v2278 = vpack.c.b16 %v2246, %v2245
      %2311 = vmatprep.subr.bf16.mxu0 0
      %2312 = vmatpush1.bf16.msra.mxu0 %v2247
      %2313 = vmatprep.subr.bf16.mxu0 0
      %2314 = vmatpush1.bf16.msra.mxu0 %v2248
      %2315 = vmatprep.subr.bf16.mxu0 0
      %2316 = vmatpush1.bf16.msra.mxu0 %v2249
      %2317 = vmatprep.subr.bf16.mxu0 0
      %2318 = vmatpush1.bf16.msra.mxu0 %v2250
      %2319 = vmatprep.subr.bf16.mxu0 0
      %2320 = vmatpush1.bf16.msra.mxu0 %v2251
      %2321 = vmatprep.subr.bf16.mxu0 0
      %2322 = vmatpush1.bf16.msra.mxu0 %v2252
      %2323 = vmatprep.subr.bf16.mxu0 0
      %2324 = vmatpush1.bf16.msra.mxu0 %v2253
      %2325 = vmatprep.subr.bf16.mxu0 0
      %2326 = vmatpush1.bf16.msra.mxu0 %v2254
      %2327 = vmatprep.subr.bf16.mxu0 0
      %2328 = vmatpush1.bf16.msra.mxu0 %v2255
      %2329 = vmatprep.subr.bf16.mxu0 0
      %2330 = vmatpush1.bf16.msra.mxu0 %v2256
      %2331 = vmatprep.subr.bf16.mxu0 0
      %2332 = vmatpush1.bf16.msra.mxu0 %v2257
      %2333 = vmatprep.subr.bf16.mxu0 0
      %2334 = vmatpush1.bf16.msra.mxu0 %v2258
      %2335 = vmatprep.subr.bf16.mxu0 0
      %2336 = vmatpush1.bf16.msra.mxu0 %v2259
      %2337 = vmatprep.subr.bf16.mxu0 0
      %2338 = vmatpush1.bf16.msra.mxu0 %v2260
      %2339 = vmatprep.subr.bf16.mxu0 0
      %2340 = vmatpush1.bf16.msra.mxu0 %v2261
      %2341 = vmatprep.subr.bf16.mxu0 0
      %2342 = vmatpush1.bf16.msra.mxu0 %v2262
      %2343 = vmatprep.mubr.bf16.mxu0 %v1809
      %2344 = vmatmul.mubr.bf16.gmra.mrb[0].mxu0 %v1801
      %v2345 = vpop.f32.mrb[0].mxu0
      %v2346 = vadd.f32 %v2110, %v2345
      %v2347 = vpop.f32.mrb[0].mxu0
      %v2348 = vpop.f32.mrb[0].mxu0
      %v2349 = vpop.f32.mrb[0].mxu0
      %2350 = vdwg.mxu0
      %2351 = vmatprep.subr.bf16.mxu0 0
      %2352 = vmatpush1.bf16.msra.mxu0 %v2263
      %2353 = vmatprep.subr.bf16.mxu0 0
      %2354 = vmatpush1.bf16.msra.mxu0 %v2264
      %2355 = vmatprep.subr.bf16.mxu0 0
      %2356 = vmatpush1.bf16.msra.mxu0 %v2265
      %2357 = vmatprep.subr.bf16.mxu0 0
      %2358 = vmatpush1.bf16.msra.mxu0 %v2266
      %2359 = vmatprep.subr.bf16.mxu0 0
      %2360 = vmatpush1.bf16.msra.mxu0 %v2267
      %2361 = vmatprep.subr.bf16.mxu0 0
      %2362 = vmatpush1.bf16.msra.mxu0 %v2268
      %2363 = vmatprep.subr.bf16.mxu0 0
      %2364 = vmatpush1.bf16.msra.mxu0 %v2269
      %2365 = vmatprep.subr.bf16.mxu0 0
      %2366 = vmatpush1.bf16.msra.mxu0 %v2270
      %2367 = vmatprep.subr.bf16.mxu0 0
      %2368 = vmatpush1.bf16.msra.mxu0 %v2271
      %2369 = vmatprep.subr.bf16.mxu0 0
      %2370 = vmatpush1.bf16.msra.mxu0 %v2272
      %2371 = vmatprep.subr.bf16.mxu0 0
      %2372 = vmatpush1.bf16.msra.mxu0 %v2273
      %2373 = vmatprep.subr.bf16.mxu0 0
      %2374 = vmatpush1.bf16.msra.mxu0 %v2274
      %2375 = vmatprep.subr.bf16.mxu0 0
      %2376 = vmatpush1.bf16.msra.mxu0 %v2275
      %2377 = vmatprep.subr.bf16.mxu0 0
      %2378 = vmatpush1.bf16.msra.mxu0 %v2276
      %2379 = vmatprep.subr.bf16.mxu0 0
      %2380 = vmatpush1.bf16.msra.mxu0 %v2277
      %2381 = vmatprep.subr.bf16.mxu0 0
      %2382 = vmatpush1.bf16.msra.mxu0 %v2278
      %2383 = vmatprep.mubr.bf16.mxu0 %v1810
      %2384 = vmatmul.mubr.bf16.gmra.mrb[0].mxu0 %v1808
      %v2385 = vpop.f32.mrb[0].mxu0
      %v2386 = vadd.f32 %v2346, %v2385
      %v2387 = vpop.f32.mrb[0].mxu0
      %v2388 = vpop.f32.mrb[0].mxu0
      %v2389 = vpop.f32.mrb[0].mxu0
      %2390 = vdwg.mxu0
      %s2391 = scalar_lea.vmem %s165, 16
      %v2392 = vld [vmem:[%s2391] sm:$0xff]
      %v2393 = vld [vmem:[%s1 + $0x200] sm:$0xf]
      %v2394 = vld [vmem:[%s1 + $0x204] sm:$0xf]
      %v2395 = vld [vmem:[%s1 + $0x208] sm:$0xf]
      %v2396 = vld [vmem:[%s1 + $0x20c] sm:$0xf]
      %v2397 = vld [vmem:[%s1 + $0x210] sm:$0xf]
      %v2398 = vld [vmem:[%s1 + $0x214] sm:$0xf]
      %v2399 = vld [vmem:[%s1 + $0x218] sm:$0xf]
      %v2400 = vld [vmem:[%s1 + $0x21c] sm:$0xf]
      %v2401 = vld [vmem:[%s1 + $0x220] sm:$0xf]
      %v2402 = vld [vmem:[%s1 + $0x224] sm:$0xf]
      %v2403 = vld [vmem:[%s1 + $0x228] sm:$0xf]
      %v2404 = vld [vmem:[%s1 + $0x22c] sm:$0xf]
      %v2405 = vld [vmem:[%s1 + $0x230] sm:$0xf]
      %v2406 = vld [vmem:[%s1 + $0x234] sm:$0xf]
      %v2407 = vld [vmem:[%s1 + $0x238] sm:$0xf]
      %v2408 = vld [vmem:[%s1 + $0x23c] sm:$0xf]
      %v2409 = vld [vmem:[%s1 + $0x240] sm:$0xf]
      %v2410 = vld [vmem:[%s1 + $0x244] sm:$0xf]
      %v2411 = vld [vmem:[%s1 + $0x248] sm:$0xf]
      %v2412 = vld [vmem:[%s1 + $0x24c] sm:$0xf]
      %v2413 = vld [vmem:[%s1 + $0x250] sm:$0xf]
      %v2414 = vld [vmem:[%s1 + $0x254] sm:$0xf]
      %v2415 = vld [vmem:[%s1 + $0x258] sm:$0xf]
      %v2416 = vld [vmem:[%s1 + $0x25c] sm:$0xf]
      %v2417 = vld [vmem:[%s1 + $0x260] sm:$0xf]
      %v2418 = vld [vmem:[%s1 + $0x264] sm:$0xf]
      %v2419 = vld [vmem:[%s1 + $0x268] sm:$0xf]
      %v2420 = vld [vmem:[%s1 + $0x26c] sm:$0xf]
      %v2421 = vld [vmem:[%s1 + $0x270] sm:$0xf]
      %v2422 = vld [vmem:[%s1 + $0x274] sm:$0xf]
      %v2423 = vld [vmem:[%s1 + $0x278] sm:$0xf]
      %v2424 = vld [vmem:[%s1 + $0x27c] sm:$0xf]
      %v2425 = vld [vmem:[%s1 + $0x280] sm:$0xf]
      %v2426 = vld [vmem:[%s1 + $0x284] sm:$0xf]
      %v2427 = vld [vmem:[%s1 + $0x288] sm:$0xf]
      %v2428 = vld [vmem:[%s1 + $0x28c] sm:$0xf]
      %v2429 = vld [vmem:[%s1 + $0x290] sm:$0xf]
      %v2430 = vld [vmem:[%s1 + $0x294] sm:$0xf]
      %v2431 = vld [vmem:[%s1 + $0x298] sm:$0xf]
      %v2432 = vld [vmem:[%s1 + $0x29c] sm:$0xf]
      %v2433 = vld [vmem:[%s1 + $0x2a0] sm:$0xf]
      %v2434 = vld [vmem:[%s1 + $0x2a4] sm:$0xf]
      %v2435 = vld [vmem:[%s1 + $0x2a8] sm:$0xf]
      %v2436 = vld [vmem:[%s1 + $0x2ac] sm:$0xf]
      %v2437 = vld [vmem:[%s1 + $0x2b0] sm:$0xf]
      %v2438 = vld [vmem:[%s1 + $0x2b4] sm:$0xf]
      %v2439 = vld [vmem:[%s1 + $0x2b8] sm:$0xf]
      %v2440 = vld [vmem:[%s1 + $0x2bc] sm:$0xf]
      %v2441 = vld [vmem:[%s1 + $0x2c0] sm:$0xf]
      %v2442 = vld [vmem:[%s1 + $0x2c4] sm:$0xf]
      %v2443 = vld [vmem:[%s1 + $0x2c8] sm:$0xf]
      %v2444 = vld [vmem:[%s1 + $0x2cc] sm:$0xf]
      %v2445 = vld [vmem:[%s1 + $0x2d0] sm:$0xf]
      %v2446 = vld [vmem:[%s1 + $0x2d4] sm:$0xf]
      %v2447 = vld [vmem:[%s1 + $0x2d8] sm:$0xf]
      %v2448 = vld [vmem:[%s1 + $0x2dc] sm:$0xf]
      %v2449 = vld [vmem:[%s1 + $0x2e0] sm:$0xf]
      %v2450 = vld [vmem:[%s1 + $0x2e4] sm:$0xf]
      %v2451 = vld [vmem:[%s1 + $0x2e8] sm:$0xf]
      %v2452 = vld [vmem:[%s1 + $0x2ec] sm:$0xf]
      %v2453 = vld [vmem:[%s1 + $0x2f0] sm:$0xf]
      %v2454 = vld [vmem:[%s1 + $0x2f4] sm:$0xf]
      %v2455 = vld [vmem:[%s1 + $0x2f8] sm:$0xf]
      %v2456 = vld [vmem:[%s1 + $0x2fc] sm:$0xf]
      %v2458 = vcombine.high %v2392, %v2392
      %v2460 = vunpack.c.l.s4 1983009808
      %v2461 = vunpack.c.0.s8 %v2460
      %v2462 = vlaneseq
      %v2463 = vshrl.u32 %v2462, 7
      %v2464 = vsub.s32 %v2461, %v2463
      %v2465 = vrot.slane %v2392, %v2464
      %v2467 = vunpack.c.l.s4 1983009808
      %v2468 = vunpack.c.0.s8 %v2467
      %v2469 = vlaneseq
      %v2470 = vshrl.u32 %v2469, 7
      %v2471 = vsub.s32 %v2468, %v2470
      %v2472 = vrot.slane %v2458, %v2471
      %v2473 = vcombine.high %v2465, %v2465
      %v2474 = vcombine.high %v2472, %v2472
      %v2543 = vunpack.c.l.b16 %v2393
      %v2544 = vunpack.c.l.b16 %v2394
      %v2545 = vunpack.c.l.b16 %v2395
      %v2546 = vunpack.c.l.b16 %v2396
      %v2547 = vunpack.c.l.b16 %v2397
      %v2548 = vunpack.c.l.b16 %v2398
      %v2549 = vunpack.c.l.b16 %v2399
      %v2550 = vunpack.c.l.b16 %v2400
      %v2551 = vunpack.c.l.b16 %v2401
      %v2552 = vunpack.c.l.b16 %v2402
      %v2553 = vunpack.c.l.b16 %v2403
      %v2554 = vunpack.c.l.b16 %v2404
      %v2555 = vunpack.c.l.b16 %v2405
      %v2556 = vunpack.c.l.b16 %v2406
      %v2557 = vunpack.c.l.b16 %v2407
      %v2558 = vunpack.c.l.b16 %v2408
      %v2559 = vunpack.c.l.b16 %v2409
      %v2560 = vunpack.c.l.b16 %v2410
      %v2561 = vunpack.c.l.b16 %v2411
      %v2562 = vunpack.c.l.b16 %v2412
      %v2563 = vunpack.c.l.b16 %v2413
      %v2564 = vunpack.c.l.b16 %v2414
      %v2565 = vunpack.c.l.b16 %v2415
      %v2566 = vunpack.c.l.b16 %v2416
      %v2567 = vunpack.c.l.b16 %v2417
      %v2568 = vunpack.c.l.b16 %v2418
      %v2569 = vunpack.c.l.b16 %v2419
      %v2570 = vunpack.c.l.b16 %v2420
      %v2571 = vunpack.c.l.b16 %v2421
      %v2572 = vunpack.c.l.b16 %v2422
      %v2573 = vunpack.c.l.b16 %v2423
      %v2574 = vunpack.c.l.b16 %v2424
      %v2575 = vunpack.c.l.b16 %v2425
      %v2576 = vunpack.c.l.b16 %v2426
      %v2577 = vunpack.c.l.b16 %v2427
      %v2578 = vunpack.c.l.b16 %v2428
      %v2579 = vunpack.c.l.b16 %v2429
      %v2580 = vunpack.c.l.b16 %v2430
      %v2581 = vunpack.c.l.b16 %v2431
      %v2582 = vunpack.c.l.b16 %v2432
      %v2583 = vunpack.c.l.b16 %v2433
      %v2584 = vunpack.c.l.b16 %v2434
      %v2585 = vunpack.c.l.b16 %v2435
      %v2586 = vunpack.c.l.b16 %v2436
      %v2587 = vunpack.c.l.b16 %v2437
      %v2588 = vunpack.c.l.b16 %v2438
      %v2589 = vunpack.c.l.b16 %v2439
      %v2590 = vunpack.c.l.b16 %v2440
      %v2591 = vunpack.c.l.b16 %v2441
      %v2592 = vunpack.c.l.b16 %v2442
      %v2593 = vunpack.c.l.b16 %v2443
      %v2594 = vunpack.c.l.b16 %v2444
      %v2595 = vunpack.c.l.b16 %v2445
      %v2596 = vunpack.c.l.b16 %v2446
      %v2597 = vunpack.c.l.b16 %v2447
      %v2598 = vunpack.c.l.b16 %v2448
      %v2599 = vunpack.c.l.b16 %v2449
      %v2600 = vunpack.c.l.b16 %v2450
      %v2601 = vunpack.c.l.b16 %v2451
      %v2602 = vunpack.c.l.b16 %v2452
      %v2603 = vunpack.c.l.b16 %v2453
      %v2604 = vunpack.c.l.b16 %v2454
      %v2605 = vunpack.c.l.b16 %v2455
      %v2606 = vunpack.c.l.b16 %v2456
      %v2607 = vpack.c.b16 %v2544, %v2543
      %v2608 = vpack.c.b16 %v2546, %v2545
      %v2609 = vpack.c.b16 %v2548, %v2547
      %v2610 = vpack.c.b16 %v2550, %v2549
      %v2611 = vpack.c.b16 %v2552, %v2551
      %v2612 = vpack.c.b16 %v2554, %v2553
      %v2613 = vpack.c.b16 %v2556, %v2555
      %v2614 = vpack.c.b16 %v2558, %v2557
      %v2615 = vpack.c.b16 %v2560, %v2559
      %v2616 = vpack.c.b16 %v2562, %v2561
      %v2617 = vpack.c.b16 %v2564, %v2563
      %v2618 = vpack.c.b16 %v2566, %v2565
      %v2619 = vpack.c.b16 %v2568, %v2567
      %v2620 = vpack.c.b16 %v2570, %v2569
      %v2621 = vpack.c.b16 %v2572, %v2571
      %v2622 = vpack.c.b16 %v2574, %v2573
      %v2623 = vpack.c.b16 %v2576, %v2575
      %v2624 = vpack.c.b16 %v2578, %v2577
      %v2625 = vpack.c.b16 %v2580, %v2579
      %v2626 = vpack.c.b16 %v2582, %v2581
      %v2627 = vpack.c.b16 %v2584, %v2583
      %v2628 = vpack.c.b16 %v2586, %v2585
      %v2629 = vpack.c.b16 %v2588, %v2587
      %v2630 = vpack.c.b16 %v2590, %v2589
      %v2631 = vpack.c.b16 %v2592, %v2591
      %v2632 = vpack.c.b16 %v2594, %v2593
      %v2633 = vpack.c.b16 %v2596, %v2595
      %v2634 = vpack.c.b16 %v2598, %v2597
      %v2635 = vpack.c.b16 %v2600, %v2599
      %v2636 = vpack.c.b16 %v2602, %v2601
      %v2637 = vpack.c.b16 %v2604, %v2603
      %v2638 = vpack.c.b16 %v2606, %v2605
      %2671 = vmatprep.subr.bf16.mxu0 0
      %2672 = vmatpush1.bf16.msra.mxu0 %v2607
      %2673 = vmatprep.subr.bf16.mxu0 0
      %2674 = vmatpush1.bf16.msra.mxu0 %v2608
      %2675 = vmatprep.subr.bf16.mxu0 0
      %2676 = vmatpush1.bf16.msra.mxu0 %v2609
      %2677 = vmatprep.subr.bf16.mxu0 0
      %2678 = vmatpush1.bf16.msra.mxu0 %v2610
      %2679 = vmatprep.subr.bf16.mxu0 0
      %2680 = vmatpush1.bf16.msra.mxu0 %v2611
      %2681 = vmatprep.subr.bf16.mxu0 0
      %2682 = vmatpush1.bf16.msra.mxu0 %v2612
      %2683 = vmatprep.subr.bf16.mxu0 0
      %2684 = vmatpush1.bf16.msra.mxu0 %v2613
      %2685 = vmatprep.subr.bf16.mxu0 0
      %2686 = vmatpush1.bf16.msra.mxu0 %v2614
      %2687 = vmatprep.subr.bf16.mxu0 0
      %2688 = vmatpush1.bf16.msra.mxu0 %v2615
      %2689 = vmatprep.subr.bf16.mxu0 0
      %2690 = vmatpush1.bf16.msra.mxu0 %v2616
      %2691 = vmatprep.subr.bf16.mxu0 0
      %2692 = vmatpush1.bf16.msra.mxu0 %v2617
      %2693 = vmatprep.subr.bf16.mxu0 0
      %2694 = vmatpush1.bf16.msra.mxu0 %v2618
      %2695 = vmatprep.subr.bf16.mxu0 0
      %2696 = vmatpush1.bf16.msra.mxu0 %v2619
      %2697 = vmatprep.subr.bf16.mxu0 0
      %2698 = vmatpush1.bf16.msra.mxu0 %v2620
      %2699 = vmatprep.subr.bf16.mxu0 0
      %2700 = vmatpush1.bf16.msra.mxu0 %v2621
      %2701 = vmatprep.subr.bf16.mxu0 0
      %2702 = vmatpush1.bf16.msra.mxu0 %v2622
      %2703 = vmatprep.mubr.bf16.mxu0 %v2473
      %2704 = vmatmul.mubr.bf16.gmra.mrb[0].mxu0 %v2465
      %v2705 = vpop.f32.mrb[0].mxu0
      %v2706 = vadd.f32 0.0, %v2705
      %v2707 = vpop.f32.mrb[0].mxu0
      %v2708 = vpop.f32.mrb[0].mxu0
      %v2709 = vpop.f32.mrb[0].mxu0
      %2710 = vdwg.mxu0
      %2711 = vmatprep.subr.bf16.mxu0 0
      %2712 = vmatpush1.bf16.msra.mxu0 %v2623
      %2713 = vmatprep.subr.bf16.mxu0 0
      %2714 = vmatpush1.bf16.msra.mxu0 %v2624
      %2715 = vmatprep.subr.bf16.mxu0 0
      %2716 = vmatpush1.bf16.msra.mxu0 %v2625
      %2717 = vmatprep.subr.bf16.mxu0 0
      %2718 = vmatpush1.bf16.msra.mxu0 %v2626
      %2719 = vmatprep.subr.bf16.mxu0 0
      %2720 = vmatpush1.bf16.msra.mxu0 %v2627
      %2721 = vmatprep.subr.bf16.mxu0 0
      %2722 = vmatpush1.bf16.msra.mxu0 %v2628
      %2723 = vmatprep.subr.bf16.mxu0 0
      %2724 = vmatpush1.bf16.msra.mxu0 %v2629
      %2725 = vmatprep.subr.bf16.mxu0 0
      %2726 = vmatpush1.bf16.msra.mxu0 %v2630
      %2727 = vmatprep.subr.bf16.mxu0 0
      %2728 = vmatpush1.bf16.msra.mxu0 %v2631
      %2729 = vmatprep.subr.bf16.mxu0 0
      %2730 = vmatpush1.bf16.msra.mxu0 %v2632
      %2731 = vmatprep.subr.bf16.mxu0 0
      %2732 = vmatpush1.bf16.msra.mxu0 %v2633
      %2733 = vmatprep.subr.bf16.mxu0 0
      %2734 = vmatpush1.bf16.msra.mxu0 %v2634
      %2735 = vmatprep.subr.bf16.mxu0 0
      %2736 = vmatpush1.bf16.msra.mxu0 %v2635
      %2737 = vmatprep.subr.bf16.mxu0 0
      %2738 = vmatpush1.bf16.msra.mxu0 %v2636
      %2739 = vmatprep.subr.bf16.mxu0 0
      %2740 = vmatpush1.bf16.msra.mxu0 %v2637
      %2741 = vmatprep.subr.bf16.mxu0 0
      %2742 = vmatpush1.bf16.msra.mxu0 %v2638
      %2743 = vmatprep.mubr.bf16.mxu0 %v2474
      %2744 = vmatmul.mubr.bf16.gmra.mrb[0].mxu0 %v2472
      %v2745 = vpop.f32.mrb[0].mxu0
      %v2746 = vadd.f32 %v2706, %v2745
      %v2747 = vpop.f32.mrb[0].mxu0
      %v2748 = vpop.f32.mrb[0].mxu0
      %v2749 = vpop.f32.mrb[0].mxu0
      %2750 = vdwg.mxu0
      %v2751 = vadd.f32 %v2386, %v2746
      %v2752 = vld [vmem:[%s2391] sm:$0xff]
      %v2753 = vld [vmem:[%s1 + $0x300] sm:$0xf]
      %v2754 = vld [vmem:[%s1 + $0x304] sm:$0xf]
      %v2755 = vld [vmem:[%s1 + $0x308] sm:$0xf]
      %v2756 = vld [vmem:[%s1 + $0x30c] sm:$0xf]
      %v2757 = vld [vmem:[%s1 + $0x310] sm:$0xf]
      %v2758 = vld [vmem:[%s1 + $0x314] sm:$0xf]
      %v2759 = vld [vmem:[%s1 + $0x318] sm:$0xf]
      %v2760 = vld [vmem:[%s1 + $0x31c] sm:$0xf]
      %v2761 = vld [vmem:[%s1 + $0x320] sm:$0xf]
      %v2762 = vld [vmem:[%s1 + $0x324] sm:$0xf]
      %v2763 = vld [vmem:[%s1 + $0x328] sm:$0xf]
      %v2764 = vld [vmem:[%s1 + $0x32c] sm:$0xf]
      %v2765 = vld [vmem:[%s1 + $0x330] sm:$0xf]
      %v2766 = vld [vmem:[%s1 + $0x334] sm:$0xf]
      %v2767 = vld [vmem:[%s1 + $0x338] sm:$0xf]
      %v2768 = vld [vmem:[%s1 + $0x33c] sm:$0xf]
      %v2769 = vld [vmem:[%s1 + $0x340] sm:$0xf]
      %v2770 = vld [vmem:[%s1 + $0x344] sm:$0xf]
      %v2771 = vld [vmem:[%s1 + $0x348] sm:$0xf]
      %v2772 = vld [vmem:[%s1 + $0x34c] sm:$0xf]
      %v2773 = vld [vmem:[%s1 + $0x350] sm:$0xf]
      %v2774 = vld [vmem:[%s1 + $0x354] sm:$0xf]
      %v2775 = vld [vmem:[%s1 + $0x358] sm:$0xf]
      %v2776 = vld [vmem:[%s1 + $0x35c] sm:$0xf]
      %v2777 = vld [vmem:[%s1 + $0x360] sm:$0xf]
      %v2778 = vld [vmem:[%s1 + $0x364] sm:$0xf]
      %v2779 = vld [vmem:[%s1 + $0x368] sm:$0xf]
      %v2780 = vld [vmem:[%s1 + $0x36c] sm:$0xf]
      %v2781 = vld [vmem:[%s1 + $0x370] sm:$0xf]
      %v2782 = vld [vmem:[%s1 + $0x374] sm:$0xf]
      %v2783 = vld [vmem:[%s1 + $0x378] sm:$0xf]
      %v2784 = vld [vmem:[%s1 + $0x37c] sm:$0xf]
      %v2785 = vld [vmem:[%s1 + $0x380] sm:$0xf]
      %v2786 = vld [vmem:[%s1 + $0x384] sm:$0xf]
      %v2787 = vld [vmem:[%s1 + $0x388] sm:$0xf]
      %v2788 = vld [vmem:[%s1 + $0x38c] sm:$0xf]
      %v2789 = vld [vmem:[%s1 + $0x390] sm:$0xf]
      %v2790 = vld [vmem:[%s1 + $0x394] sm:$0xf]
      %v2791 = vld [vmem:[%s1 + $0x398] sm:$0xf]
      %v2792 = vld [vmem:[%s1 + $0x39c] sm:$0xf]
      %v2793 = vld [vmem:[%s1 + $0x3a0] sm:$0xf]
      %v2794 = vld [vmem:[%s1 + $0x3a4] sm:$0xf]
      %v2795 = vld [vmem:[%s1 + $0x3a8] sm:$0xf]
      %v2796 = vld [vmem:[%s1 + $0x3ac] sm:$0xf]
      %v2797 = vld [vmem:[%s1 + $0x3b0] sm:$0xf]
      %v2798 = vld [vmem:[%s1 + $0x3b4] sm:$0xf]
      %v2799 = vld [vmem:[%s1 + $0x3b8] sm:$0xf]
      %v2800 = vld [vmem:[%s1 + $0x3bc] sm:$0xf]
      %v2801 = vld [vmem:[%s1 + $0x3c0] sm:$0xf]
      %v2802 = vld [vmem:[%s1 + $0x3c4] sm:$0xf]
      %v2803 = vld [vmem:[%s1 + $0x3c8] sm:$0xf]
      %v2804 = vld [vmem:[%s1 + $0x3cc] sm:$0xf]
      %v2805 = vld [vmem:[%s1 + $0x3d0] sm:$0xf]
      %v2806 = vld [vmem:[%s1 + $0x3d4] sm:$0xf]
      %v2807 = vld [vmem:[%s1 + $0x3d8] sm:$0xf]
      %v2808 = vld [vmem:[%s1 + $0x3dc] sm:$0xf]
      %v2809 = vld [vmem:[%s1 + $0x3e0] sm:$0xf]
      %v2810 = vld [vmem:[%s1 + $0x3e4] sm:$0xf]
      %v2811 = vld [vmem:[%s1 + $0x3e8] sm:$0xf]
      %v2812 = vld [vmem:[%s1 + $0x3ec] sm:$0xf]
      %v2813 = vld [vmem:[%s1 + $0x3f0] sm:$0xf]
      %v2814 = vld [vmem:[%s1 + $0x3f4] sm:$0xf]
      %v2815 = vld [vmem:[%s1 + $0x3f8] sm:$0xf]
      %v2816 = vld [vmem:[%s1 + $0x3fc] sm:$0xf]
      %v2818 = vcombine.high %v2752, %v2752
      %v2820 = vunpack.c.l.s4 1983009808
      %v2821 = vunpack.c.0.s8 %v2820
      %v2822 = vlaneseq
      %v2823 = vshrl.u32 %v2822, 7
      %v2824 = vsub.s32 %v2821, %v2823
      %v2825 = vrot.slane %v2752, %v2824
      %v2827 = vunpack.c.l.s4 1983009808
      %v2828 = vunpack.c.0.s8 %v2827
      %v2829 = vlaneseq
      %v2830 = vshrl.u32 %v2829, 7
      %v2831 = vsub.s32 %v2828, %v2830
      %v2832 = vrot.slane %v2818, %v2831
      %v2833 = vcombine.high %v2825, %v2825
      %v2834 = vcombine.high %v2832, %v2832
      %v2836 = vshrl.u32 %v2825, 16
      %v2838 = vshll.u32 %v2825, 16
      %v2840 = vrot.slane %v2838, 1
      %v2841 = vor.u32 %v2836, %v2840
      %v2843 = vshrl.u32 %v2833, 16
      %v2845 = vshll.u32 %v2833, 16
      %v2847 = vrot.slane %v2845, 1
      %v2848 = vor.u32 %v2843, %v2847
      %v2850 = vshrl.u32 %v2832, 16
      %v2852 = vshll.u32 %v2832, 16
      %v2854 = vrot.slane %v2852, 1
      %v2855 = vor.u32 %v2850, %v2854
      %v2857 = vshrl.u32 %v2834, 16
      %v2859 = vshll.u32 %v2834, 16
      %v2861 = vrot.slane %v2859, 1
      %v2862 = vor.u32 %v2857, %v2861
      %v2931 = vunpack.c.l.b16 %v2753
      %v2932 = vunpack.c.l.b16 %v2754
      %v2933 = vunpack.c.l.b16 %v2755
      %v2934 = vunpack.c.l.b16 %v2756
      %v2935 = vunpack.c.l.b16 %v2757
      %v2936 = vunpack.c.l.b16 %v2758
      %v2937 = vunpack.c.l.b16 %v2759
      %v2938 = vunpack.c.l.b16 %v2760
      %v2939 = vunpack.c.l.b16 %v2761
      %v2940 = vunpack.c.l.b16 %v2762
      %v2941 = vunpack.c.l.b16 %v2763
      %v2942 = vunpack.c.l.b16 %v2764
      %v2943 = vunpack.c.l.b16 %v2765
      %v2944 = vunpack.c.l.b16 %v2766
      %v2945 = vunpack.c.l.b16 %v2767
      %v2946 = vunpack.c.l.b16 %v2768
      %v2947 = vunpack.c.l.b16 %v2769
      %v2948 = vunpack.c.l.b16 %v2770
      %v2949 = vunpack.c.l.b16 %v2771
      %v2950 = vunpack.c.l.b16 %v2772
      %v2951 = vunpack.c.l.b16 %v2773
      %v2952 = vunpack.c.l.b16 %v2774
      %v2953 = vunpack.c.l.b16 %v2775
      %v2954 = vunpack.c.l.b16 %v2776
      %v2955 = vunpack.c.l.b16 %v2777
      %v2956 = vunpack.c.l.b16 %v2778
      %v2957 = vunpack.c.l.b16 %v2779
      %v2958 = vunpack.c.l.b16 %v2780
      %v2959 = vunpack.c.l.b16 %v2781
      %v2960 = vunpack.c.l.b16 %v2782
      %v2961 = vunpack.c.l.b16 %v2783
      %v2962 = vunpack.c.l.b16 %v2784
      %v2963 = vunpack.c.l.b16 %v2785
      %v2964 = vunpack.c.l.b16 %v2786
      %v2965 = vunpack.c.l.b16 %v2787
      %v2966 = vunpack.c.l.b16 %v2788
      %v2967 = vunpack.c.l.b16 %v2789
      %v2968 = vunpack.c.l.b16 %v2790
      %v2969 = vunpack.c.l.b16 %v2791
      %v2970 = vunpack.c.l.b16 %v2792
      %v2971 = vunpack.c.l.b16 %v2793
      %v2972 = vunpack.c.l.b16 %v2794
      %v2973 = vunpack.c.l.b16 %v2795
      %v2974 = vunpack.c.l.b16 %v2796
      %v2975 = vunpack.c.l.b16 %v2797
      %v2976 = vunpack.c.l.b16 %v2798
      %v2977 = vunpack.c.l.b16 %v2799
      %v2978 = vunpack.c.l.b16 %v2800
      %v2979 = vunpack.c.l.b16 %v2801
      %v2980 = vunpack.c.l.b16 %v2802
      %v2981 = vunpack.c.l.b16 %v2803
      %v2982 = vunpack.c.l.b16 %v2804
      %v2983 = vunpack.c.l.b16 %v2805
      %v2984 = vunpack.c.l.b16 %v2806
      %v2985 = vunpack.c.l.b16 %v2807
      %v2986 = vunpack.c.l.b16 %v2808
      %v2987 = vunpack.c.l.b16 %v2809
      %v2988 = vunpack.c.l.b16 %v2810
      %v2989 = vunpack.c.l.b16 %v2811
      %v2990 = vunpack.c.l.b16 %v2812
      %v2991 = vunpack.c.l.b16 %v2813
      %v2992 = vunpack.c.l.b16 %v2814
      %v2993 = vunpack.c.l.b16 %v2815
      %v2994 = vunpack.c.l.b16 %v2816
      %v2995 = vpack.c.b16 %v2932, %v2931
      %v2996 = vpack.c.b16 %v2934, %v2933
      %v2997 = vpack.c.b16 %v2936, %v2935
      %v2998 = vpack.c.b16 %v2938, %v2937
      %v2999 = vpack.c.b16 %v2940, %v2939
      %v3000 = vpack.c.b16 %v2942, %v2941
      %v3001 = vpack.c.b16 %v2944, %v2943
      %v3002 = vpack.c.b16 %v2946, %v2945
      %v3003 = vpack.c.b16 %v2948, %v2947
      %v3004 = vpack.c.b16 %v2950, %v2949
      %v3005 = vpack.c.b16 %v2952, %v2951
      %v3006 = vpack.c.b16 %v2954, %v2953
      %v3007 = vpack.c.b16 %v2956, %v2955
      %v3008 = vpack.c.b16 %v2958, %v2957
      %v3009 = vpack.c.b16 %v2960, %v2959
      %v3010 = vpack.c.b16 %v2962, %v2961
      %v3011 = vpack.c.b16 %v2964, %v2963
      %v3012 = vpack.c.b16 %v2966, %v2965
      %v3013 = vpack.c.b16 %v2968, %v2967
      %v3014 = vpack.c.b16 %v2970, %v2969
      %v3015 = vpack.c.b16 %v2972, %v2971
      %v3016 = vpack.c.b16 %v2974, %v2973
      %v3017 = vpack.c.b16 %v2976, %v2975
      %v3018 = vpack.c.b16 %v2978, %v2977
      %v3019 = vpack.c.b16 %v2980, %v2979
      %v3020 = vpack.c.b16 %v2982, %v2981
      %v3021 = vpack.c.b16 %v2984, %v2983
      %v3022 = vpack.c.b16 %v2986, %v2985
      %v3023 = vpack.c.b16 %v2988, %v2987
      %v3024 = vpack.c.b16 %v2990, %v2989
      %v3025 = vpack.c.b16 %v2992, %v2991
      %v3026 = vpack.c.b16 %v2994, %v2993
      %3059 = vmatprep.subr.bf16.mxu0 0
      %3060 = vmatpush1.bf16.msra.mxu0 %v2995
      %3061 = vmatprep.subr.bf16.mxu0 0
      %3062 = vmatpush1.bf16.msra.mxu0 %v2996
      %3063 = vmatprep.subr.bf16.mxu0 0
      %3064 = vmatpush1.bf16.msra.mxu0 %v2997
      %3065 = vmatprep.subr.bf16.mxu0 0
      %3066 = vmatpush1.bf16.msra.mxu0 %v2998
      %3067 = vmatprep.subr.bf16.mxu0 0
      %3068 = vmatpush1.bf16.msra.mxu0 %v2999
      %3069 = vmatprep.subr.bf16.mxu0 0
      %3070 = vmatpush1.bf16.msra.mxu0 %v3000
      %3071 = vmatprep.subr.bf16.mxu0 0
      %3072 = vmatpush1.bf16.msra.mxu0 %v3001
      %3073 = vmatprep.subr.bf16.mxu0 0
      %3074 = vmatpush1.bf16.msra.mxu0 %v3002
      %3075 = vmatprep.subr.bf16.mxu0 0
      %3076 = vmatpush1.bf16.msra.mxu0 %v3003
      %3077 = vmatprep.subr.bf16.mxu0 0
      %3078 = vmatpush1.bf16.msra.mxu0 %v3004
      %3079 = vmatprep.subr.bf16.mxu0 0
      %3080 = vmatpush1.bf16.msra.mxu0 %v3005
      %3081 = vmatprep.subr.bf16.mxu0 0
      %3082 = vmatpush1.bf16.msra.mxu0 %v3006
      %3083 = vmatprep.subr.bf16.mxu0 0
      %3084 = vmatpush1.bf16.msra.mxu0 %v3007
      %3085 = vmatprep.subr.bf16.mxu0 0
      %3086 = vmatpush1.bf16.msra.mxu0 %v3008
      %3087 = vmatprep.subr.bf16.mxu0 0
      %3088 = vmatpush1.bf16.msra.mxu0 %v3009
      %3089 = vmatprep.subr.bf16.mxu0 0
      %3090 = vmatpush1.bf16.msra.mxu0 %v3010
      %3091 = vmatprep.mubr.bf16.mxu0 %v2848
      %3092 = vmatmul.mubr.bf16.gmra.mrb[0].mxu0 %v2841
      %v3093 = vpop.f32.mrb[0].mxu0
      %v3094 = vadd.f32 0.0, %v3093
      %v3095 = vpop.f32.mrb[0].mxu0
      %v3096 = vpop.f32.mrb[0].mxu0
      %v3097 = vpop.f32.mrb[0].mxu0
      %3098 = vdwg.mxu0
      %3099 = vmatprep.subr.bf16.mxu0 0
      %3100 = vmatpush1.bf16.msra.mxu0 %v3011
      %3101 = vmatprep.subr.bf16.mxu0 0
      %3102 = vmatpush1.bf16.msra.mxu0 %v3012
      %3103 = vmatprep.subr.bf16.mxu0 0
      %3104 = vmatpush1.bf16.msra.mxu0 %v3013
      %3105 = vmatprep.subr.bf16.mxu0 0
      %3106 = vmatpush1.bf16.msra.mxu0 %v3014
      %3107 = vmatprep.subr.bf16.mxu0 0
      %3108 = vmatpush1.bf16.msra.mxu0 %v3015
      %3109 = vmatprep.subr.bf16.mxu0 0
      %3110 = vmatpush1.bf16.msra.mxu0 %v3016
      %3111 = vmatprep.subr.bf16.mxu0 0
      %3112 = vmatpush1.bf16.msra.mxu0 %v3017
      %3113 = vmatprep.subr.bf16.mxu0 0
      %3114 = vmatpush1.bf16.msra.mxu0 %v3018
      %3115 = vmatprep.subr.bf16.mxu0 0
      %3116 = vmatpush1.bf16.msra.mxu0 %v3019
      %3117 = vmatprep.subr.bf16.mxu0 0
      %3118 = vmatpush1.bf16.msra.mxu0 %v3020
      %3119 = vmatprep.subr.bf16.mxu0 0
      %3120 = vmatpush1.bf16.msra.mxu0 %v3021
      %3121 = vmatprep.subr.bf16.mxu0 0
      %3122 = vmatpush1.bf16.msra.mxu0 %v3022
      %3123 = vmatprep.subr.bf16.mxu0 0
      %3124 = vmatpush1.bf16.msra.mxu0 %v3023
      %3125 = vmatprep.subr.bf16.mxu0 0
      %3126 = vmatpush1.bf16.msra.mxu0 %v3024
      %3127 = vmatprep.subr.bf16.mxu0 0
      %3128 = vmatpush1.bf16.msra.mxu0 %v3025
      %3129 = vmatprep.subr.bf16.mxu0 0
      %3130 = vmatpush1.bf16.msra.mxu0 %v3026
      %3131 = vmatprep.mubr.bf16.mxu0 %v2862
      %3132 = vmatmul.mubr.bf16.gmra.mrb[0].mxu0 %v2855
      %v3133 = vpop.f32.mrb[0].mxu0
      %v3134 = vadd.f32 %v3094, %v3133
      %v3135 = vpop.f32.mrb[0].mxu0
      %v3136 = vpop.f32.mrb[0].mxu0
      %v3137 = vpop.f32.mrb[0].mxu0
      %3138 = vdwg.mxu0
      %v3139 = vadd.f32 %v2751, %v3134
      %v3140 = vadd.f32 %v3139, %v1653
      %v3141 = vmax.f32 %v3140, 0.0
      %v3142 = vpack.c.bf16 %v3141, %v3141
      %s3143 = scalar_lea.vmem %s170, 2
      %v3144 = vld [vmem:[%s3143] sm:$0x3]
      %v3145 = vsel %vm1660, %v3142, %v3144
      %3146 = vst [vmem:[%s3143] sm:$0x3] %v3145
      %v3147 = vld [vmem:[%s2391] sm:$0xff]
      %v3148 = vld [vmem:[%s1] sm:$0xf]
      %v3149 = vld [vmem:[%s1 + $0x4] sm:$0xf]
      %v3150 = vld [vmem:[%s1 + $0x8] sm:$0xf]
      %v3151 = vld [vmem:[%s1 + $0xc] sm:$0xf]
      %v3152 = vld [vmem:[%s1 + $0x10] sm:$0xf]
      %v3153 = vld [vmem:[%s1 + $0x14] sm:$0xf]
      %v3154 = vld [vmem:[%s1 + $0x18] sm:$0xf]
      %v3155 = vld [vmem:[%s1 + $0x1c] sm:$0xf]
      %v3156 = vld [vmem:[%s1 + $0x20] sm:$0xf]
      %v3157 = vld [vmem:[%s1 + $0x24] sm:$0xf]
      %v3158 = vld [vmem:[%s1 + $0x28] sm:$0xf]
      %v3159 = vld [vmem:[%s1 + $0x2c] sm:$0xf]
      %v3160 = vld [vmem:[%s1 + $0x30] sm:$0xf]
      %v3161 = vld [vmem:[%s1 + $0x34] sm:$0xf]
      %v3162 = vld [vmem:[%s1 + $0x38] sm:$0xf]
      %v3163 = vld [vmem:[%s1 + $0x3c] sm:$0xf]
      %v3164 = vld [vmem:[%s1 + $0x40] sm:$0xf]
      %v3165 = vld [vmem:[%s1 + $0x44] sm:$0xf]
      %v3166 = vld [vmem:[%s1 + $0x48] sm:$0xf]
      %v3167 = vld [vmem:[%s1 + $0x4c] sm:$0xf]
      %v3168 = vld [vmem:[%s1 + $0x50] sm:$0xf]
      %v3169 = vld [vmem:[%s1 + $0x54] sm:$0xf]
      %v3170 = vld [vmem:[%s1 + $0x58] sm:$0xf]
      %v3171 = vld [vmem:[%s1 + $0x5c] sm:$0xf]
      %v3172 = vld [vmem:[%s1 + $0x60] sm:$0xf]
      %v3173 = vld [vmem:[%s1 + $0x64] sm:$0xf]
      %v3174 = vld [vmem:[%s1 + $0x68] sm:$0xf]
      %v3175 = vld [vmem:[%s1 + $0x6c] sm:$0xf]
      %v3176 = vld [vmem:[%s1 + $0x70] sm:$0xf]
      %v3177 = vld [vmem:[%s1 + $0x74] sm:$0xf]
      %v3178 = vld [vmem:[%s1 + $0x78] sm:$0xf]
      %v3179 = vld [vmem:[%s1 + $0x7c] sm:$0xf]
      %v3180 = vld [vmem:[%s1 + $0x80] sm:$0xf]
      %v3181 = vld [vmem:[%s1 + $0x84] sm:$0xf]
      %v3182 = vld [vmem:[%s1 + $0x88] sm:$0xf]
      %v3183 = vld [vmem:[%s1 + $0x8c] sm:$0xf]
      %v3184 = vld [vmem:[%s1 + $0x90] sm:$0xf]
      %v3185 = vld [vmem:[%s1 + $0x94] sm:$0xf]
      %v3186 = vld [vmem:[%s1 + $0x98] sm:$0xf]
      %v3187 = vld [vmem:[%s1 + $0x9c] sm:$0xf]
      %v3188 = vld [vmem:[%s1 + $0xa0] sm:$0xf]
      %v3189 = vld [vmem:[%s1 + $0xa4] sm:$0xf]
      %v3190 = vld [vmem:[%s1 + $0xa8] sm:$0xf]
      %v3191 = vld [vmem:[%s1 + $0xac] sm:$0xf]
      %v3192 = vld [vmem:[%s1 + $0xb0] sm:$0xf]
      %v3193 = vld [vmem:[%s1 + $0xb4] sm:$0xf]
      %v3194 = vld [vmem:[%s1 + $0xb8] sm:$0xf]
      %v3195 = vld [vmem:[%s1 + $0xbc] sm:$0xf]
      %v3196 = vld [vmem:[%s1 + $0xc0] sm:$0xf]
      %v3197 = vld [vmem:[%s1 + $0xc4] sm:$0xf]
      %v3198 = vld [vmem:[%s1 + $0xc8] sm:$0xf]
      %v3199 = vld [vmem:[%s1 + $0xcc] sm:$0xf]
      %v3200 = vld [vmem:[%s1 + $0xd0] sm:$0xf]
      %v3201 = vld [vmem:[%s1 + $0xd4] sm:$0xf]
      %v3202 = vld [vmem:[%s1 + $0xd8] sm:$0xf]
      %v3203 = vld [vmem:[%s1 + $0xdc] sm:$0xf]
      %v3204 = vld [vmem:[%s1 + $0xe0] sm:$0xf]
      %v3205 = vld [vmem:[%s1 + $0xe4] sm:$0xf]
      %v3206 = vld [vmem:[%s1 + $0xe8] sm:$0xf]
      %v3207 = vld [vmem:[%s1 + $0xec] sm:$0xf]
      %v3208 = vld [vmem:[%s1 + $0xf0] sm:$0xf]
      %v3209 = vld [vmem:[%s1 + $0xf4] sm:$0xf]
      %v3210 = vld [vmem:[%s1 + $0xf8] sm:$0xf]
      %v3211 = vld [vmem:[%s1 + $0xfc] sm:$0xf]
      %v3212 = vld [vmem:[%s1 + $0x100] sm:$0xf]
      %v3213 = vld [vmem:[%s1 + $0x104] sm:$0xf]
      %v3214 = vld [vmem:[%s1 + $0x108] sm:$0xf]
      %v3215 = vld [vmem:[%s1 + $0x10c] sm:$0xf]
      %v3216 = vld [vmem:[%s1 + $0x110] sm:$0xf]
      %v3217 = vld [vmem:[%s1 + $0x114] sm:$0xf]
      %v3218 = vld [vmem:[%s1 + $0x118] sm:$0xf]
      %v3219 = vld [vmem:[%s1 + $0x11c] sm:$0xf]
      %v3220 = vld [vmem:[%s1 + $0x120] sm:$0xf]
      %v3221 = vld [vmem:[%s1 + $0x124] sm:$0xf]
      %v3222 = vld [vmem:[%s1 + $0x128] sm:$0xf]
      %v3223 = vld [vmem:[%s1 + $0x12c] sm:$0xf]
      %v3224 = vld [vmem:[%s1 + $0x130] sm:$0xf]
      %v3225 = vld [vmem:[%s1 + $0x134] sm:$0xf]
      %v3226 = vld [vmem:[%s1 + $0x138] sm:$0xf]
      %v3227 = vld [vmem:[%s1 + $0x13c] sm:$0xf]
      %v3228 = vld [vmem:[%s1 + $0x140] sm:$0xf]
      %v3229 = vld [vmem:[%s1 + $0x144] sm:$0xf]
      %v3230 = vld [vmem:[%s1 + $0x148] sm:$0xf]
      %v3231 = vld [vmem:[%s1 + $0x14c] sm:$0xf]
      %v3232 = vld [vmem:[%s1 + $0x150] sm:$0xf]
      %v3233 = vld [vmem:[%s1 + $0x154] sm:$0xf]
      %v3234 = vld [vmem:[%s1 + $0x158] sm:$0xf]
      %v3235 = vld [vmem:[%s1 + $0x15c] sm:$0xf]
      %v3236 = vld [vmem:[%s1 + $0x160] sm:$0xf]
      %v3237 = vld [vmem:[%s1 + $0x164] sm:$0xf]
      %v3238 = vld [vmem:[%s1 + $0x168] sm:$0xf]
      %v3239 = vld [vmem:[%s1 + $0x16c] sm:$0xf]
      %v3240 = vld [vmem:[%s1 + $0x170] sm:$0xf]
      %v3241 = vld [vmem:[%s1 + $0x174] sm:$0xf]
      %v3242 = vld [vmem:[%s1 + $0x178] sm:$0xf]
      %v3243 = vld [vmem:[%s1 + $0x17c] sm:$0xf]
      %v3244 = vld [vmem:[%s1 + $0x180] sm:$0xf]
      %v3245 = vld [vmem:[%s1 + $0x184] sm:$0xf]
      %v3246 = vld [vmem:[%s1 + $0x188] sm:$0xf]
      %v3247 = vld [vmem:[%s1 + $0x18c] sm:$0xf]
      %v3248 = vld [vmem:[%s1 + $0x190] sm:$0xf]
      %v3249 = vld [vmem:[%s1 + $0x194] sm:$0xf]
      %v3250 = vld [vmem:[%s1 + $0x198] sm:$0xf]
      %v3251 = vld [vmem:[%s1 + $0x19c] sm:$0xf]
      %v3252 = vld [vmem:[%s1 + $0x1a0] sm:$0xf]
      %v3253 = vld [vmem:[%s1 + $0x1a4] sm:$0xf]
      %v3254 = vld [vmem:[%s1 + $0x1a8] sm:$0xf]
      %v3255 = vld [vmem:[%s1 + $0x1ac] sm:$0xf]
      %v3256 = vld [vmem:[%s1 + $0x1b0] sm:$0xf]
      %v3257 = vld [vmem:[%s1 + $0x1b4] sm:$0xf]
      %v3258 = vld [vmem:[%s1 + $0x1b8] sm:$0xf]
      %v3259 = vld [vmem:[%s1 + $0x1bc] sm:$0xf]
      %v3260 = vld [vmem:[%s1 + $0x1c0] sm:$0xf]
      %v3261 = vld [vmem:[%s1 + $0x1c4] sm:$0xf]
      %v3262 = vld [vmem:[%s1 + $0x1c8] sm:$0xf]
      %v3263 = vld [vmem:[%s1 + $0x1cc] sm:$0xf]
      %v3264 = vld [vmem:[%s1 + $0x1d0] sm:$0xf]
      %v3265 = vld [vmem:[%s1 + $0x1d4] sm:$0xf]
      %v3266 = vld [vmem:[%s1 + $0x1d8] sm:$0xf]
      %v3267 = vld [vmem:[%s1 + $0x1dc] sm:$0xf]
      %v3268 = vld [vmem:[%s1 + $0x1e0] sm:$0xf]
      %v3269 = vld [vmem:[%s1 + $0x1e4] sm:$0xf]
      %v3270 = vld [vmem:[%s1 + $0x1e8] sm:$0xf]
      %v3271 = vld [vmem:[%s1 + $0x1ec] sm:$0xf]
      %v3272 = vld [vmem:[%s1 + $0x1f0] sm:$0xf]
      %v3273 = vld [vmem:[%s1 + $0x1f4] sm:$0xf]
      %v3274 = vld [vmem:[%s1 + $0x1f8] sm:$0xf]
      %v3275 = vld [vmem:[%s1 + $0x1fc] sm:$0xf]
      %v3277 = vcombine.high %v3147, %v3147
      %v3279 = vunpack.c.l.s4 1983009808
      %v3280 = vunpack.c.0.s8 %v3279
      %v3281 = vlaneseq
      %v3282 = vshrl.u32 %v3281, 7
      %v3283 = vsub.s32 %v3280, %v3282
      %v3284 = vrot.slane %v3147, %v3283
      %v3286 = vunpack.c.l.s4 1983009808
      %v3287 = vunpack.c.0.s8 %v3286
      %v3288 = vlaneseq
      %v3289 = vshrl.u32 %v3288, 7
      %v3290 = vsub.s32 %v3287, %v3289
      %v3291 = vrot.slane %v3277, %v3290
      %v3292 = vcombine.high %v3284, %v3284
      %v3293 = vcombine.high %v3291, %v3291
      %v3295 = vshrl.u32 %v3284, 16
      %v3297 = vshll.u32 %v3284, 16
      %v3299 = vrot.slane %v3297, 1
      %v3300 = vor.u32 %v3295, %v3299
      %v3302 = vshrl.u32 %v3292, 16
      %v3304 = vshll.u32 %v3292, 16
      %v3306 = vrot.slane %v3304, 1
      %v3307 = vor.u32 %v3302, %v3306
      %v3309 = vshrl.u32 %v3291, 16
      %v3311 = vshll.u32 %v3291, 16
      %v3313 = vrot.slane %v3311, 1
      %v3314 = vor.u32 %v3309, %v3313
      %v3316 = vshrl.u32 %v3293, 16
      %v3318 = vshll.u32 %v3293, 16
      %v3320 = vrot.slane %v3318, 1
      %v3321 = vor.u32 %v3316, %v3320
      %v3390 = vunpack.c.l.b16 %v3212
      %v3391 = vunpack.c.l.b16 %v3213
      %v3392 = vunpack.c.l.b16 %v3214
      %v3393 = vunpack.c.l.b16 %v3215
      %v3394 = vunpack.c.l.b16 %v3216
      %v3395 = vunpack.c.l.b16 %v3217
      %v3396 = vunpack.c.l.b16 %v3218
      %v3397 = vunpack.c.l.b16 %v3219
      %v3398 = vunpack.c.l.b16 %v3220
      %v3399 = vunpack.c.l.b16 %v3221
      %v3400 = vunpack.c.l.b16 %v3222
      %v3401 = vunpack.c.l.b16 %v3223
      %v3402 = vunpack.c.l.b16 %v3224
      %v3403 = vunpack.c.l.b16 %v3225
      %v3404 = vunpack.c.l.b16 %v3226
      %v3405 = vunpack.c.l.b16 %v3227
      %v3406 = vunpack.c.l.b16 %v3228
      %v3407 = vunpack.c.l.b16 %v3229
      %v3408 = vunpack.c.l.b16 %v3230
      %v3409 = vunpack.c.l.b16 %v3231
      %v3410 = vunpack.c.l.b16 %v3232
      %v3411 = vunpack.c.l.b16 %v3233
      %v3412 = vunpack.c.l.b16 %v3234
      %v3413 = vunpack.c.l.b16 %v3235
      %v3414 = vunpack.c.l.b16 %v3236
      %v3415 = vunpack.c.l.b16 %v3237
      %v3416 = vunpack.c.l.b16 %v3238
      %v3417 = vunpack.c.l.b16 %v3239
      %v3418 = vunpack.c.l.b16 %v3240
      %v3419 = vunpack.c.l.b16 %v3241
      %v3420 = vunpack.c.l.b16 %v3242
      %v3421 = vunpack.c.l.b16 %v3243
      %v3422 = vunpack.c.l.b16 %v3244
      %v3423 = vunpack.c.l.b16 %v3245
      %v3424 = vunpack.c.l.b16 %v3246
      %v3425 = vunpack.c.l.b16 %v3247
      %v3426 = vunpack.c.l.b16 %v3248
      %v3427 = vunpack.c.l.b16 %v3249
      %v3428 = vunpack.c.l.b16 %v3250
      %v3429 = vunpack.c.l.b16 %v3251
      %v3430 = vunpack.c.l.b16 %v3252
      %v3431 = vunpack.c.l.b16 %v3253
      %v3432 = vunpack.c.l.b16 %v3254
      %v3433 = vunpack.c.l.b16 %v3255
      %v3434 = vunpack.c.l.b16 %v3256
      %v3435 = vunpack.c.l.b16 %v3257
      %v3436 = vunpack.c.l.b16 %v3258
      %v3437 = vunpack.c.l.b16 %v3259
      %v3438 = vunpack.c.l.b16 %v3260
      %v3439 = vunpack.c.l.b16 %v3261
      %v3440 = vunpack.c.l.b16 %v3262
      %v3441 = vunpack.c.l.b16 %v3263
      %v3442 = vunpack.c.l.b16 %v3264
      %v3443 = vunpack.c.l.b16 %v3265
      %v3444 = vunpack.c.l.b16 %v3266
      %v3445 = vunpack.c.l.b16 %v3267
      %v3446 = vunpack.c.l.b16 %v3268
      %v3447 = vunpack.c.l.b16 %v3269
      %v3448 = vunpack.c.l.b16 %v3270
      %v3449 = vunpack.c.l.b16 %v3271
      %v3450 = vunpack.c.l.b16 %v3272
      %v3451 = vunpack.c.l.b16 %v3273
      %v3452 = vunpack.c.l.b16 %v3274
      %v3453 = vunpack.c.l.b16 %v3275
      %v3454 = vpack.c.b16 %v3391, %v3390
      %v3455 = vpack.c.b16 %v3393, %v3392
      %v3456 = vpack.c.b16 %v3395, %v3394
      %v3457 = vpack.c.b16 %v3397, %v3396
      %v3458 = vpack.c.b16 %v3399, %v3398
      %v3459 = vpack.c.b16 %v3401, %v3400
      %v3460 = vpack.c.b16 %v3403, %v3402
      %v3461 = vpack.c.b16 %v3405, %v3404
      %v3462 = vpack.c.b16 %v3407, %v3406
      %v3463 = vpack.c.b16 %v3409, %v3408
      %v3464 = vpack.c.b16 %v3411, %v3410
      %v3465 = vpack.c.b16 %v3413, %v3412
      %v3466 = vpack.c.b16 %v3415, %v3414
      %v3467 = vpack.c.b16 %v3417, %v3416
      %v3468 = vpack.c.b16 %v3419, %v3418
      %v3469 = vpack.c.b16 %v3421, %v3420
      %v3470 = vpack.c.b16 %v3423, %v3422
      %v3471 = vpack.c.b16 %v3425, %v3424
      %v3472 = vpack.c.b16 %v3427, %v3426
      %v3473 = vpack.c.b16 %v3429, %v3428
      %v3474 = vpack.c.b16 %v3431, %v3430
      %v3475 = vpack.c.b16 %v3433, %v3432
      %v3476 = vpack.c.b16 %v3435, %v3434
      %v3477 = vpack.c.b16 %v3437, %v3436
      %v3478 = vpack.c.b16 %v3439, %v3438
      %v3479 = vpack.c.b16 %v3441, %v3440
      %v3480 = vpack.c.b16 %v3443, %v3442
      %v3481 = vpack.c.b16 %v3445, %v3444
      %v3482 = vpack.c.b16 %v3447, %v3446
      %v3483 = vpack.c.b16 %v3449, %v3448
      %v3484 = vpack.c.b16 %v3451, %v3450
      %v3485 = vpack.c.b16 %v3453, %v3452
      %3518 = vmatprep.subr.bf16.mxu0 0
      %3519 = vmatpush1.bf16.msra.mxu0 %v3454
      %3520 = vmatprep.subr.bf16.mxu0 0
      %3521 = vmatpush1.bf16.msra.mxu0 %v3455
      %3522 = vmatprep.subr.bf16.mxu0 0
      %3523 = vmatpush1.bf16.msra.mxu0 %v3456
      %3524 = vmatprep.subr.bf16.mxu0 0
      %3525 = vmatpush1.bf16.msra.mxu0 %v3457
      %3526 = vmatprep.subr.bf16.mxu0 0
      %3527 = vmatpush1.bf16.msra.mxu0 %v3458
      %3528 = vmatprep.subr.bf16.mxu0 0
      %3529 = vmatpush1.bf16.msra.mxu0 %v3459
      %3530 = vmatprep.subr.bf16.mxu0 0
      %3531 = vmatpush1.bf16.msra.mxu0 %v3460
      %3532 = vmatprep.subr.bf16.mxu0 0
      %3533 = vmatpush1.bf16.msra.mxu0 %v3461
      %3534 = vmatprep.subr.bf16.mxu0 0
      %3535 = vmatpush1.bf16.msra.mxu0 %v3462
      %3536 = vmatprep.subr.bf16.mxu0 0
      %3537 = vmatpush1.bf16.msra.mxu0 %v3463
      %3538 = vmatprep.subr.bf16.mxu0 0
      %3539 = vmatpush1.bf16.msra.mxu0 %v3464
      %3540 = vmatprep.subr.bf16.mxu0 0
      %3541 = vmatpush1.bf16.msra.mxu0 %v3465
      %3542 = vmatprep.subr.bf16.mxu0 0
      %3543 = vmatpush1.bf16.msra.mxu0 %v3466
      %3544 = vmatprep.subr.bf16.mxu0 0
      %3545 = vmatpush1.bf16.msra.mxu0 %v3467
      %3546 = vmatprep.subr.bf16.mxu0 0
      %3547 = vmatpush1.bf16.msra.mxu0 %v3468
      %3548 = vmatprep.subr.bf16.mxu0 0
      %3549 = vmatpush1.bf16.msra.mxu0 %v3469
      %3550 = vmatprep.mubr.bf16.mxu0 %v3307
      %3551 = vmatmul.mubr.bf16.gmra.mrb[0].mxu0 %v3300
      %v3552 = vpop.f32.mrb[0].mxu0
      %v3553 = vadd.f32 0.0, %v3552
      %v3554 = vpop.f32.mrb[0].mxu0
      %v3555 = vpop.f32.mrb[0].mxu0
      %v3556 = vpop.f32.mrb[0].mxu0
      %3557 = vdwg.mxu0
      %3558 = vmatprep.subr.bf16.mxu0 0
      %3559 = vmatpush1.bf16.msra.mxu0 %v3470
      %3560 = vmatprep.subr.bf16.mxu0 0
      %3561 = vmatpush1.bf16.msra.mxu0 %v3471
      %3562 = vmatprep.subr.bf16.mxu0 0
      %3563 = vmatpush1.bf16.msra.mxu0 %v3472
      %3564 = vmatprep.subr.bf16.mxu0 0
      %3565 = vmatpush1.bf16.msra.mxu0 %v3473
      %3566 = vmatprep.subr.bf16.mxu0 0
      %3567 = vmatpush1.bf16.msra.mxu0 %v3474
      %3568 = vmatprep.subr.bf16.mxu0 0
      %3569 = vmatpush1.bf16.msra.mxu0 %v3475
      %3570 = vmatprep.subr.bf16.mxu0 0
      %3571 = vmatpush1.bf16.msra.mxu0 %v3476
      %3572 = vmatprep.subr.bf16.mxu0 0
      %3573 = vmatpush1.bf16.msra.mxu0 %v3477
      %3574 = vmatprep.subr.bf16.mxu0 0
      %3575 = vmatpush1.bf16.msra.mxu0 %v3478
      %3576 = vmatprep.subr.bf16.mxu0 0
      %3577 = vmatpush1.bf16.msra.mxu0 %v3479
      %3578 = vmatprep.subr.bf16.mxu0 0
      %3579 = vmatpush1.bf16.msra.mxu0 %v3480
      %3580 = vmatprep.subr.bf16.mxu0 0
      %3581 = vmatpush1.bf16.msra.mxu0 %v3481
      %3582 = vmatprep.subr.bf16.mxu0 0
      %3583 = vmatpush1.bf16.msra.mxu0 %v3482
      %3584 = vmatprep.subr.bf16.mxu0 0
      %3585 = vmatpush1.bf16.msra.mxu0 %v3483
      %3586 = vmatprep.subr.bf16.mxu0 0
      %3587 = vmatpush1.bf16.msra.mxu0 %v3484
      %3588 = vmatprep.subr.bf16.mxu0 0
      %3589 = vmatpush1.bf16.msra.mxu0 %v3485
      %3590 = vmatprep.mubr.bf16.mxu0 %v3321
      %3591 = vmatmul.mubr.bf16.gmra.mrb[0].mxu0 %v3314
      %v3592 = vpop.f32.mrb[0].mxu0
      %v3593 = vadd.f32 %v3553, %v3592
      %v3594 = vpop.f32.mrb[0].mxu0
      %v3595 = vpop.f32.mrb[0].mxu0
      %v3596 = vpop.f32.mrb[0].mxu0
      %3597 = vdwg.mxu0
      %v3666 = vunpack.c.l.b16 %v3148
      %v3667 = vunpack.c.l.b16 %v3149
      %v3668 = vunpack.c.l.b16 %v3150
      %v3669 = vunpack.c.l.b16 %v3151
      %v3670 = vunpack.c.l.b16 %v3152
      %v3671 = vunpack.c.l.b16 %v3153
      %v3672 = vunpack.c.l.b16 %v3154
      %v3673 = vunpack.c.l.b16 %v3155
      %v3674 = vunpack.c.l.b16 %v3156
      %v3675 = vunpack.c.l.b16 %v3157
      %v3676 = vunpack.c.l.b16 %v3158
      %v3677 = vunpack.c.l.b16 %v3159
      %v3678 = vunpack.c.l.b16 %v3160
      %v3679 = vunpack.c.l.b16 %v3161
      %v3680 = vunpack.c.l.b16 %v3162
      %v3681 = vunpack.c.l.b16 %v3163
      %v3682 = vunpack.c.l.b16 %v3164
      %v3683 = vunpack.c.l.b16 %v3165
      %v3684 = vunpack.c.l.b16 %v3166
      %v3685 = vunpack.c.l.b16 %v3167
      %v3686 = vunpack.c.l.b16 %v3168
      %v3687 = vunpack.c.l.b16 %v3169
      %v3688 = vunpack.c.l.b16 %v3170
      %v3689 = vunpack.c.l.b16 %v3171
      %v3690 = vunpack.c.l.b16 %v3172
      %v3691 = vunpack.c.l.b16 %v3173
      %v3692 = vunpack.c.l.b16 %v3174
      %v3693 = vunpack.c.l.b16 %v3175
      %v3694 = vunpack.c.l.b16 %v3176
      %v3695 = vunpack.c.l.b16 %v3177
      %v3696 = vunpack.c.l.b16 %v3178
      %v3697 = vunpack.c.l.b16 %v3179
      %v3698 = vunpack.c.l.b16 %v3180
      %v3699 = vunpack.c.l.b16 %v3181
      %v3700 = vunpack.c.l.b16 %v3182
      %v3701 = vunpack.c.l.b16 %v3183
      %v3702 = vunpack.c.l.b16 %v3184
      %v3703 = vunpack.c.l.b16 %v3185
      %v3704 = vunpack.c.l.b16 %v3186
      %v3705 = vunpack.c.l.b16 %v3187
      %v3706 = vunpack.c.l.b16 %v3188
      %v3707 = vunpack.c.l.b16 %v3189
      %v3708 = vunpack.c.l.b16 %v3190
      %v3709 = vunpack.c.l.b16 %v3191
      %v3710 = vunpack.c.l.b16 %v3192
      %v3711 = vunpack.c.l.b16 %v3193
      %v3712 = vunpack.c.l.b16 %v3194
      %v3713 = vunpack.c.l.b16 %v3195
      %v3714 = vunpack.c.l.b16 %v3196
      %v3715 = vunpack.c.l.b16 %v3197
      %v3716 = vunpack.c.l.b16 %v3198
      %v3717 = vunpack.c.l.b16 %v3199
      %v3718 = vunpack.c.l.b16 %v3200
      %v3719 = vunpack.c.l.b16 %v3201
      %v3720 = vunpack.c.l.b16 %v3202
      %v3721 = vunpack.c.l.b16 %v3203
      %v3722 = vunpack.c.l.b16 %v3204
      %v3723 = vunpack.c.l.b16 %v3205
      %v3724 = vunpack.c.l.b16 %v3206
      %v3725 = vunpack.c.l.b16 %v3207
      %v3726 = vunpack.c.l.b16 %v3208
      %v3727 = vunpack.c.l.b16 %v3209
      %v3728 = vunpack.c.l.b16 %v3210
      %v3729 = vunpack.c.l.b16 %v3211
      %v3730 = vpack.c.b16 %v3667, %v3666
      %v3731 = vpack.c.b16 %v3669, %v3668
      %v3732 = vpack.c.b16 %v3671, %v3670
      %v3733 = vpack.c.b16 %v3673, %v3672
      %v3734 = vpack.c.b16 %v3675, %v3674
      %v3735 = vpack.c.b16 %v3677, %v3676
      %v3736 = vpack.c.b16 %v3679, %v3678
      %v3737 = vpack.c.b16 %v3681, %v3680
      %v3738 = vpack.c.b16 %v3683, %v3682
      %v3739 = vpack.c.b16 %v3685, %v3684
      %v3740 = vpack.c.b16 %v3687, %v3686
      %v3741 = vpack.c.b16 %v3689, %v3688
      %v3742 = vpack.c.b16 %v3691, %v3690
      %v3743 = vpack.c.b16 %v3693, %v3692
      %v3744 = vpack.c.b16 %v3695, %v3694
      %v3745 = vpack.c.b16 %v3697, %v3696
      %v3746 = vpack.c.b16 %v3699, %v3698
      %v3747 = vpack.c.b16 %v3701, %v3700
      %v3748 = vpack.c.b16 %v3703, %v3702
      %v3749 = vpack.c.b16 %v3705, %v3704
      %v3750 = vpack.c.b16 %v3707, %v3706
      %v3751 = vpack.c.b16 %v3709, %v3708
      %v3752 = vpack.c.b16 %v3711, %v3710
      %v3753 = vpack.c.b16 %v3713, %v3712
      %v3754 = vpack.c.b16 %v3715, %v3714
      %v3755 = vpack.c.b16 %v3717, %v3716
      %v3756 = vpack.c.b16 %v3719, %v3718
      %v3757 = vpack.c.b16 %v3721, %v3720
      %v3758 = vpack.c.b16 %v3723, %v3722
      %v3759 = vpack.c.b16 %v3725, %v3724
      %v3760 = vpack.c.b16 %v3727, %v3726
      %v3761 = vpack.c.b16 %v3729, %v3728
      %3794 = vmatprep.subr.bf16.mxu0 0
      %3795 = vmatpush1.bf16.msra.mxu0 %v3730
      %3796 = vmatprep.subr.bf16.mxu0 0
      %3797 = vmatpush1.bf16.msra.mxu0 %v3731
      %3798 = vmatprep.subr.bf16.mxu0 0
      %3799 = vmatpush1.bf16.msra.mxu0 %v3732
      %3800 = vmatprep.subr.bf16.mxu0 0
      %3801 = vmatpush1.bf16.msra.mxu0 %v3733
      %3802 = vmatprep.subr.bf16.mxu0 0
      %3803 = vmatpush1.bf16.msra.mxu0 %v3734
      %3804 = vmatprep.subr.bf16.mxu0 0
      %3805 = vmatpush1.bf16.msra.mxu0 %v3735
      %3806 = vmatprep.subr.bf16.mxu0 0
      %3807 = vmatpush1.bf16.msra.mxu0 %v3736
      %3808 = vmatprep.subr.bf16.mxu0 0
      %3809 = vmatpush1.bf16.msra.mxu0 %v3737
      %3810 = vmatprep.subr.bf16.mxu0 0
      %3811 = vmatpush1.bf16.msra.mxu0 %v3738
      %3812 = vmatprep.subr.bf16.mxu0 0
      %3813 = vmatpush1.bf16.msra.mxu0 %v3739
      %3814 = vmatprep.subr.bf16.mxu0 0
      %3815 = vmatpush1.bf16.msra.mxu0 %v3740
      %3816 = vmatprep.subr.bf16.mxu0 0
      %3817 = vmatpush1.bf16.msra.mxu0 %v3741
      %3818 = vmatprep.subr.bf16.mxu0 0
      %3819 = vmatpush1.bf16.msra.mxu0 %v3742
      %3820 = vmatprep.subr.bf16.mxu0 0
      %3821 = vmatpush1.bf16.msra.mxu0 %v3743
      %3822 = vmatprep.subr.bf16.mxu0 0
      %3823 = vmatpush1.bf16.msra.mxu0 %v3744
      %3824 = vmatprep.subr.bf16.mxu0 0
      %3825 = vmatpush1.bf16.msra.mxu0 %v3745
      %3826 = vmatprep.mubr.bf16.mxu0 %v3292
      %3827 = vmatmul.mubr.bf16.gmra.mrb[0].mxu0 %v3284
      %v3828 = vpop.f32.mrb[0].mxu0
      %v3829 = vadd.f32 %v3593, %v3828
      %v3830 = vpop.f32.mrb[0].mxu0
      %v3831 = vpop.f32.mrb[0].mxu0
      %v3832 = vpop.f32.mrb[0].mxu0
      %3833 = vdwg.mxu0
      %3834 = vmatprep.subr.bf16.mxu0 0
      %3835 = vmatpush1.bf16.msra.mxu0 %v3746
      %3836 = vmatprep.subr.bf16.mxu0 0
      %3837 = vmatpush1.bf16.msra.mxu0 %v3747
      %3838 = vmatprep.subr.bf16.mxu0 0
      %3839 = vmatpush1.bf16.msra.mxu0 %v3748
      %3840 = vmatprep.subr.bf16.mxu0 0
      %3841 = vmatpush1.bf16.msra.mxu0 %v3749
      %3842 = vmatprep.subr.bf16.mxu0 0
      %3843 = vmatpush1.bf16.msra.mxu0 %v3750
      %3844 = vmatprep.subr.bf16.mxu0 0
      %3845 = vmatpush1.bf16.msra.mxu0 %v3751
      %3846 = vmatprep.subr.bf16.mxu0 0
      %3847 = vmatpush1.bf16.msra.mxu0 %v3752
      %3848 = vmatprep.subr.bf16.mxu0 0
      %3849 = vmatpush1.bf16.msra.mxu0 %v3753
      %3850 = vmatprep.subr.bf16.mxu0 0
      %3851 = vmatpush1.bf16.msra.mxu0 %v3754
      %3852 = vmatprep.subr.bf16.mxu0 0
      %3853 = vmatpush1.bf16.msra.mxu0 %v3755
      %3854 = vmatprep.subr.bf16.mxu0 0
      %3855 = vmatpush1.bf16.msra.mxu0 %v3756
      %3856 = vmatprep.subr.bf16.mxu0 0
      %3857 = vmatpush1.bf16.msra.mxu0 %v3757
      %3858 = vmatprep.subr.bf16.mxu0 0
      %3859 = vmatpush1.bf16.msra.mxu0 %v3758
      %3860 = vmatprep.subr.bf16.mxu0 0
      %3861 = vmatpush1.bf16.msra.mxu0 %v3759
      %3862 = vmatprep.subr.bf16.mxu0 0
      %3863 = vmatpush1.bf16.msra.mxu0 %v3760
      %3864 = vmatprep.subr.bf16.mxu0 0
      %3865 = vmatpush1.bf16.msra.mxu0 %v3761
      %3866 = vmatprep.mubr.bf16.mxu0 %v3293
      %3867 = vmatmul.mubr.bf16.gmra.mrb[0].mxu0 %v3291
      %v3868 = vpop.f32.mrb[0].mxu0
      %v3869 = vadd.f32 %v3829, %v3868
      %v3870 = vpop.f32.mrb[0].mxu0
      %v3871 = vpop.f32.mrb[0].mxu0
      %v3872 = vpop.f32.mrb[0].mxu0
      %3873 = vdwg.mxu0
      %s3874 = scalar_lea.vmem %s165, 24
      %v3875 = vld [vmem:[%s3874] sm:$0xff]
      %v3876 = vld [vmem:[%s1 + $0x200] sm:$0xf]
      %v3877 = vld [vmem:[%s1 + $0x204] sm:$0xf]
      %v3878 = vld [vmem:[%s1 + $0x208] sm:$0xf]
      %v3879 = vld [vmem:[%s1 + $0x20c] sm:$0xf]
      %v3880 = vld [vmem:[%s1 + $0x210] sm:$0xf]
      %v3881 = vld [vmem:[%s1 + $0x214] sm:$0xf]
      %v3882 = vld [vmem:[%s1 + $0x218] sm:$0xf]
      %v3883 = vld [vmem:[%s1 + $0x21c] sm:$0xf]
      %v3884 = vld [vmem:[%s1 + $0x220] sm:$0xf]
      %v3885 = vld [vmem:[%s1 + $0x224] sm:$0xf]
      %v3886 = vld [vmem:[%s1 + $0x228] sm:$0xf]
      %v3887 = vld [vmem:[%s1 + $0x22c] sm:$0xf]
      %v3888 = vld [vmem:[%s1 + $0x230] sm:$0xf]
      %v3889 = vld [vmem:[%s1 + $0x234] sm:$0xf]
      %v3890 = vld [vmem:[%s1 + $0x238] sm:$0xf]
      %v3891 = vld [vmem:[%s1 + $0x23c] sm:$0xf]
      %v3892 = vld [vmem:[%s1 + $0x240] sm:$0xf]
      %v3893 = vld [vmem:[%s1 + $0x244] sm:$0xf]
      %v3894 = vld [vmem:[%s1 + $0x248] sm:$0xf]
      %v3895 = vld [vmem:[%s1 + $0x24c] sm:$0xf]
      %v3896 = vld [vmem:[%s1 + $0x250] sm:$0xf]
      %v3897 = vld [vmem:[%s1 + $0x254] sm:$0xf]
      %v3898 = vld [vmem:[%s1 + $0x258] sm:$0xf]
      %v3899 = vld [vmem:[%s1 + $0x25c] sm:$0xf]
      %v3900 = vld [vmem:[%s1 + $0x260] sm:$0xf]
      %v3901 = vld [vmem:[%s1 + $0x264] sm:$0xf]
      %v3902 = vld [vmem:[%s1 + $0x268] sm:$0xf]
      %v3903 = vld [vmem:[%s1 + $0x26c] sm:$0xf]
      %v3904 = vld [vmem:[%s1 + $0x270] sm:$0xf]
      %v3905 = vld [vmem:[%s1 + $0x274] sm:$0xf]
      %v3906 = vld [vmem:[%s1 + $0x278] sm:$0xf]
      %v3907 = vld [vmem:[%s1 + $0x27c] sm:$0xf]
      %v3908 = vld [vmem:[%s1 + $0x280] sm:$0xf]
      %v3909 = vld [vmem:[%s1 + $0x284] sm:$0xf]
      %v3910 = vld [vmem:[%s1 + $0x288] sm:$0xf]
      %v3911 = vld [vmem:[%s1 + $0x28c] sm:$0xf]
      %v3912 = vld [vmem:[%s1 + $0x290] sm:$0xf]
      %v3913 = vld [vmem:[%s1 + $0x294] sm:$0xf]
      %v3914 = vld [vmem:[%s1 + $0x298] sm:$0xf]
      %v3915 = vld [vmem:[%s1 + $0x29c] sm:$0xf]
      %v3916 = vld [vmem:[%s1 + $0x2a0] sm:$0xf]
      %v3917 = vld [vmem:[%s1 + $0x2a4] sm:$0xf]
      %v3918 = vld [vmem:[%s1 + $0x2a8] sm:$0xf]
      %v3919 = vld [vmem:[%s1 + $0x2ac] sm:$0xf]
      %v3920 = vld [vmem:[%s1 + $0x2b0] sm:$0xf]
      %v3921 = vld [vmem:[%s1 + $0x2b4] sm:$0xf]
      %v3922 = vld [vmem:[%s1 + $0x2b8] sm:$0xf]
      %v3923 = vld [vmem:[%s1 + $0x2bc] sm:$0xf]
      %v3924 = vld [vmem:[%s1 + $0x2c0] sm:$0xf]
      %v3925 = vld [vmem:[%s1 + $0x2c4] sm:$0xf]
      %v3926 = vld [vmem:[%s1 + $0x2c8] sm:$0xf]
      %v3927 = vld [vmem:[%s1 + $0x2cc] sm:$0xf]
      %v3928 = vld [vmem:[%s1 + $0x2d0] sm:$0xf]
      %v3929 = vld [vmem:[%s1 + $0x2d4] sm:$0xf]
      %v3930 = vld [vmem:[%s1 + $0x2d8] sm:$0xf]
      %v3931 = vld [vmem:[%s1 + $0x2dc] sm:$0xf]
      %v3932 = vld [vmem:[%s1 + $0x2e0] sm:$0xf]
      %v3933 = vld [vmem:[%s1 + $0x2e4] sm:$0xf]
      %v3934 = vld [vmem:[%s1 + $0x2e8] sm:$0xf]
      %v3935 = vld [vmem:[%s1 + $0x2ec] sm:$0xf]
      %v3936 = vld [vmem:[%s1 + $0x2f0] sm:$0xf]
      %v3937 = vld [vmem:[%s1 + $0x2f4] sm:$0xf]
      %v3938 = vld [vmem:[%s1 + $0x2f8] sm:$0xf]
      %v3939 = vld [vmem:[%s1 + $0x2fc] sm:$0xf]
      %v3941 = vcombine.high %v3875, %v3875
      %v3943 = vunpack.c.l.s4 1983009808
      %v3944 = vunpack.c.0.s8 %v3943
      %v3945 = vlaneseq
      %v3946 = vshrl.u32 %v3945, 7
      %v3947 = vsub.s32 %v3944, %v3946
      %v3948 = vrot.slane %v3875, %v3947
      %v3950 = vunpack.c.l.s4 1983009808
      %v3951 = vunpack.c.0.s8 %v3950
      %v3952 = vlaneseq
      %v3953 = vshrl.u32 %v3952, 7
      %v3954 = vsub.s32 %v3951, %v3953
      %v3955 = vrot.slane %v3941, %v3954
      %v3956 = vcombine.high %v3948, %v3948
      %v3957 = vcombine.high %v3955, %v3955
      %v4026 = vunpack.c.l.b16 %v3876
      %v4027 = vunpack.c.l.b16 %v3877
      %v4028 = vunpack.c.l.b16 %v3878
      %v4029 = vunpack.c.l.b16 %v3879
      %v4030 = vunpack.c.l.b16 %v3880
      %v4031 = vunpack.c.l.b16 %v3881
      %v4032 = vunpack.c.l.b16 %v3882
      %v4033 = vunpack.c.l.b16 %v3883
      %v4034 = vunpack.c.l.b16 %v3884
      %v4035 = vunpack.c.l.b16 %v3885
      %v4036 = vunpack.c.l.b16 %v3886
      %v4037 = vunpack.c.l.b16 %v3887
      %v4038 = vunpack.c.l.b16 %v3888
      %v4039 = vunpack.c.l.b16 %v3889
      %v4040 = vunpack.c.l.b16 %v3890
      %v4041 = vunpack.c.l.b16 %v3891
      %v4042 = vunpack.c.l.b16 %v3892
      %v4043 = vunpack.c.l.b16 %v3893
      %v4044 = vunpack.c.l.b16 %v3894
      %v4045 = vunpack.c.l.b16 %v3895
      %v4046 = vunpack.c.l.b16 %v3896
      %v4047 = vunpack.c.l.b16 %v3897
      %v4048 = vunpack.c.l.b16 %v3898
      %v4049 = vunpack.c.l.b16 %v3899
      %v4050 = vunpack.c.l.b16 %v3900
      %v4051 = vunpack.c.l.b16 %v3901
      %v4052 = vunpack.c.l.b16 %v3902
      %v4053 = vunpack.c.l.b16 %v3903
      %v4054 = vunpack.c.l.b16 %v3904
      %v4055 = vunpack.c.l.b16 %v3905
      %v4056 = vunpack.c.l.b16 %v3906
      %v4057 = vunpack.c.l.b16 %v3907
      %v4058 = vunpack.c.l.b16 %v3908
      %v4059 = vunpack.c.l.b16 %v3909
      %v4060 = vunpack.c.l.b16 %v3910
      %v4061 = vunpack.c.l.b16 %v3911
      %v4062 = vunpack.c.l.b16 %v3912
      %v4063 = vunpack.c.l.b16 %v3913
      %v4064 = vunpack.c.l.b16 %v3914
      %v4065 = vunpack.c.l.b16 %v3915
      %v4066 = vunpack.c.l.b16 %v3916
      %v4067 = vunpack.c.l.b16 %v3917
      %v4068 = vunpack.c.l.b16 %v3918
      %v4069 = vunpack.c.l.b16 %v3919
      %v4070 = vunpack.c.l.b16 %v3920
      %v4071 = vunpack.c.l.b16 %v3921
      %v4072 = vunpack.c.l.b16 %v3922
      %v4073 = vunpack.c.l.b16 %v3923
      %v4074 = vunpack.c.l.b16 %v3924
      %v4075 = vunpack.c.l.b16 %v3925
      %v4076 = vunpack.c.l.b16 %v3926
      %v4077 = vunpack.c.l.b16 %v3927
      %v4078 = vunpack.c.l.b16 %v3928
      %v4079 = vunpack.c.l.b16 %v3929
      %v4080 = vunpack.c.l.b16 %v3930
      %v4081 = vunpack.c.l.b16 %v3931
      %v4082 = vunpack.c.l.b16 %v3932
      %v4083 = vunpack.c.l.b16 %v3933
      %v4084 = vunpack.c.l.b16 %v3934
      %v4085 = vunpack.c.l.b16 %v3935
      %v4086 = vunpack.c.l.b16 %v3936
      %v4087 = vunpack.c.l.b16 %v3937
      %v4088 = vunpack.c.l.b16 %v3938
      %v4089 = vunpack.c.l.b16 %v3939
      %v4090 = vpack.c.b16 %v4027, %v4026
      %v4091 = vpack.c.b16 %v4029, %v4028
      %v4092 = vpack.c.b16 %v4031, %v4030
      %v4093 = vpack.c.b16 %v4033, %v4032
      %v4094 = vpack.c.b16 %v4035, %v4034
      %v4095 = vpack.c.b16 %v4037, %v4036
      %v4096 = vpack.c.b16 %v4039, %v4038
      %v4097 = vpack.c.b16 %v4041, %v4040
      %v4098 = vpack.c.b16 %v4043, %v4042
      %v4099 = vpack.c.b16 %v4045, %v4044
      %v4100 = vpack.c.b16 %v4047, %v4046
      %v4101 = vpack.c.b16 %v4049, %v4048
      %v4102 = vpack.c.b16 %v4051, %v4050
      %v4103 = vpack.c.b16 %v4053, %v4052
      %v4104 = vpack.c.b16 %v4055, %v4054
      %v4105 = vpack.c.b16 %v4057, %v4056
      %v4106 = vpack.c.b16 %v4059, %v4058
      %v4107 = vpack.c.b16 %v4061, %v4060
      %v4108 = vpack.c.b16 %v4063, %v4062
      %v4109 = vpack.c.b16 %v4065, %v4064
      %v4110 = vpack.c.b16 %v4067, %v4066
      %v4111 = vpack.c.b16 %v4069, %v4068
      %v4112 = vpack.c.b16 %v4071, %v4070
      %v4113 = vpack.c.b16 %v4073, %v4072
      %v4114 = vpack.c.b16 %v4075, %v4074
      %v4115 = vpack.c.b16 %v4077, %v4076
      %v4116 = vpack.c.b16 %v4079, %v4078
      %v4117 = vpack.c.b16 %v4081, %v4080
      %v4118 = vpack.c.b16 %v4083, %v4082
      %v4119 = vpack.c.b16 %v4085, %v4084
      %v4120 = vpack.c.b16 %v4087, %v4086
      %v4121 = vpack.c.b16 %v4089, %v4088
      %4154 = vmatprep.subr.bf16.mxu0 0
      %4155 = vmatpush1.bf16.msra.mxu0 %v4090
      %4156 = vmatprep.subr.bf16.mxu0 0
      %4157 = vmatpush1.bf16.msra.mxu0 %v4091
      %4158 = vmatprep.subr.bf16.mxu0 0
      %4159 = vmatpush1.bf16.msra.mxu0 %v4092
      %4160 = vmatprep.subr.bf16.mxu0 0
      %4161 = vmatpush1.bf16.msra.mxu0 %v4093
      %4162 = vmatprep.subr.bf16.mxu0 0
      %4163 = vmatpush1.bf16.msra.mxu0 %v4094
      %4164 = vmatprep.subr.bf16.mxu0 0
      %4165 = vmatpush1.bf16.msra.mxu0 %v4095
      %4166 = vmatprep.subr.bf16.mxu0 0
      %4167 = vmatpush1.bf16.msra.mxu0 %v4096
      %4168 = vmatprep.subr.bf16.mxu0 0
      %4169 = vmatpush1.bf16.msra.mxu0 %v4097
      %4170 = vmatprep.subr.bf16.mxu0 0
      %4171 = vmatpush1.bf16.msra.mxu0 %v4098
      %4172 = vmatprep.subr.bf16.mxu0 0
      %4173 = vmatpush1.bf16.msra.mxu0 %v4099
      %4174 = vmatprep.subr.bf16.mxu0 0
      %4175 = vmatpush1.bf16.msra.mxu0 %v4100
      %4176 = vmatprep.subr.bf16.mxu0 0
      %4177 = vmatpush1.bf16.msra.mxu0 %v4101
      %4178 = vmatprep.subr.bf16.mxu0 0
      %4179 = vmatpush1.bf16.msra.mxu0 %v4102
      %4180 = vmatprep.subr.bf16.mxu0 0
      %4181 = vmatpush1.bf16.msra.mxu0 %v4103
      %4182 = vmatprep.subr.bf16.mxu0 0
      %4183 = vmatpush1.bf16.msra.mxu0 %v4104
      %4184 = vmatprep.subr.bf16.mxu0 0
      %4185 = vmatpush1.bf16.msra.mxu0 %v4105
      %4186 = vmatprep.mubr.bf16.mxu0 %v3956
      %4187 = vmatmul.mubr.bf16.gmra.mrb[0].mxu0 %v3948
      %v4188 = vpop.f32.mrb[0].mxu0
      %v4189 = vadd.f32 0.0, %v4188
      %v4190 = vpop.f32.mrb[0].mxu0
      %v4191 = vpop.f32.mrb[0].mxu0
      %v4192 = vpop.f32.mrb[0].mxu0
      %4193 = vdwg.mxu0
      %4194 = vmatprep.subr.bf16.mxu0 0
      %4195 = vmatpush1.bf16.msra.mxu0 %v4106
      %4196 = vmatprep.subr.bf16.mxu0 0
      %4197 = vmatpush1.bf16.msra.mxu0 %v4107
      %4198 = vmatprep.subr.bf16.mxu0 0
      %4199 = vmatpush1.bf16.msra.mxu0 %v4108
      %4200 = vmatprep.subr.bf16.mxu0 0
      %4201 = vmatpush1.bf16.msra.mxu0 %v4109
      %4202 = vmatprep.subr.bf16.mxu0 0
      %4203 = vmatpush1.bf16.msra.mxu0 %v4110
      %4204 = vmatprep.subr.bf16.mxu0 0
      %4205 = vmatpush1.bf16.msra.mxu0 %v4111
      %4206 = vmatprep.subr.bf16.mxu0 0
      %4207 = vmatpush1.bf16.msra.mxu0 %v4112
      %4208 = vmatprep.subr.bf16.mxu0 0
      %4209 = vmatpush1.bf16.msra.mxu0 %v4113
      %4210 = vmatprep.subr.bf16.mxu0 0
      %4211 = vmatpush1.bf16.msra.mxu0 %v4114
      %4212 = vmatprep.subr.bf16.mxu0 0
      %4213 = vmatpush1.bf16.msra.mxu0 %v4115
      %4214 = vmatprep.subr.bf16.mxu0 0
      %4215 = vmatpush1.bf16.msra.mxu0 %v4116
      %4216 = vmatprep.subr.bf16.mxu0 0
      %4217 = vmatpush1.bf16.msra.mxu0 %v4117
      %4218 = vmatprep.subr.bf16.mxu0 0
      %4219 = vmatpush1.bf16.msra.mxu0 %v4118
      %4220 = vmatprep.subr.bf16.mxu0 0
      %4221 = vmatpush1.bf16.msra.mxu0 %v4119
      %4222 = vmatprep.subr.bf16.mxu0 0
      %4223 = vmatpush1.bf16.msra.mxu0 %v4120
      %4224 = vmatprep.subr.bf16.mxu0 0
      %4225 = vmatpush1.bf16.msra.mxu0 %v4121
      %4226 = vmatprep.mubr.bf16.mxu0 %v3957
      %4227 = vmatmul.mubr.bf16.gmra.mrb[0].mxu0 %v3955
      %v4228 = vpop.f32.mrb[0].mxu0
      %v4229 = vadd.f32 %v4189, %v4228
      %v4230 = vpop.f32.mrb[0].mxu0
      %v4231 = vpop.f32.mrb[0].mxu0
      %v4232 = vpop.f32.mrb[0].mxu0
      %4233 = vdwg.mxu0
      %v4234 = vadd.f32 %v3869, %v4229
      %v4235 = vld [vmem:[%s3874] sm:$0xff]
      %v4236 = vld [vmem:[%s1 + $0x300] sm:$0xf]
      %v4237 = vld [vmem:[%s1 + $0x304] sm:$0xf]
      %v4238 = vld [vmem:[%s1 + $0x308] sm:$0xf]
      %v4239 = vld [vmem:[%s1 + $0x30c] sm:$0xf]
      %v4240 = vld [vmem:[%s1 + $0x310] sm:$0xf]
      %v4241 = vld [vmem:[%s1 + $0x314] sm:$0xf]
      %v4242 = vld [vmem:[%s1 + $0x318] sm:$0xf]
      %v4243 = vld [vmem:[%s1 + $0x31c] sm:$0xf]
      %v4244 = vld [vmem:[%s1 + $0x320] sm:$0xf]
      %v4245 = vld [vmem:[%s1 + $0x324] sm:$0xf]
      %v4246 = vld [vmem:[%s1 + $0x328] sm:$0xf]
      %v4247 = vld [vmem:[%s1 + $0x32c] sm:$0xf]
      %v4248 = vld [vmem:[%s1 + $0x330] sm:$0xf]
      %v4249 = vld [vmem:[%s1 + $0x334] sm:$0xf]
      %v4250 = vld [vmem:[%s1 + $0x338] sm:$0xf]
      %v4251 = vld [vmem:[%s1 + $0x33c] sm:$0xf]
      %v4252 = vld [vmem:[%s1 + $0x340] sm:$0xf]
      %v4253 = vld [vmem:[%s1 + $0x344] sm:$0xf]
      %v4254 = vld [vmem:[%s1 + $0x348] sm:$0xf]
      %v4255 = vld [vmem:[%s1 + $0x34c] sm:$0xf]
      %v4256 = vld [vmem:[%s1 + $0x350] sm:$0xf]
      %v4257 = vld [vmem:[%s1 + $0x354] sm:$0xf]
      %v4258 = vld [vmem:[%s1 + $0x358] sm:$0xf]
      %v4259 = vld [vmem:[%s1 + $0x35c] sm:$0xf]
      %v4260 = vld [vmem:[%s1 + $0x360] sm:$0xf]
      %v4261 = vld [vmem:[%s1 + $0x364] sm:$0xf]
      %v4262 = vld [vmem:[%s1 + $0x368] sm:$0xf]
      %v4263 = vld [vmem:[%s1 + $0x36c] sm:$0xf]
      %v4264 = vld [vmem:[%s1 + $0x370] sm:$0xf]
      %v4265 = vld [vmem:[%s1 + $0x374] sm:$0xf]
      %v4266 = vld [vmem:[%s1 + $0x378] sm:$0xf]
      %v4267 = vld [vmem:[%s1 + $0x37c] sm:$0xf]
      %v4268 = vld [vmem:[%s1 + $0x380] sm:$0xf]
      %v4269 = vld [vmem:[%s1 + $0x384] sm:$0xf]
      %v4270 = vld [vmem:[%s1 + $0x388] sm:$0xf]
      %v4271 = vld [vmem:[%s1 + $0x38c] sm:$0xf]
      %v4272 = vld [vmem:[%s1 + $0x390] sm:$0xf]
      %v4273 = vld [vmem:[%s1 + $0x394] sm:$0xf]
      %v4274 = vld [vmem:[%s1 + $0x398] sm:$0xf]
      %v4275 = vld [vmem:[%s1 + $0x39c] sm:$0xf]
      %v4276 = vld [vmem:[%s1 + $0x3a0] sm:$0xf]
      %v4277 = vld [vmem:[%s1 + $0x3a4] sm:$0xf]
      %v4278 = vld [vmem:[%s1 + $0x3a8] sm:$0xf]
      %v4279 = vld [vmem:[%s1 + $0x3ac] sm:$0xf]
      %v4280 = vld [vmem:[%s1 + $0x3b0] sm:$0xf]
      %v4281 = vld [vmem:[%s1 + $0x3b4] sm:$0xf]
      %v4282 = vld [vmem:[%s1 + $0x3b8] sm:$0xf]
      %v4283 = vld [vmem:[%s1 + $0x3bc] sm:$0xf]
      %v4284 = vld [vmem:[%s1 + $0x3c0] sm:$0xf]
      %v4285 = vld [vmem:[%s1 + $0x3c4] sm:$0xf]
      %v4286 = vld [vmem:[%s1 + $0x3c8] sm:$0xf]
      %v4287 = vld [vmem:[%s1 + $0x3cc] sm:$0xf]
      %v4288 = vld [vmem:[%s1 + $0x3d0] sm:$0xf]
      %v4289 = vld [vmem:[%s1 + $0x3d4] sm:$0xf]
      %v4290 = vld [vmem:[%s1 + $0x3d8] sm:$0xf]
      %v4291 = vld [vmem:[%s1 + $0x3dc] sm:$0xf]
      %v4292 = vld [vmem:[%s1 + $0x3e0] sm:$0xf]
      %v4293 = vld [vmem:[%s1 + $0x3e4] sm:$0xf]
      %v4294 = vld [vmem:[%s1 + $0x3e8] sm:$0xf]
      %v4295 = vld [vmem:[%s1 + $0x3ec] sm:$0xf]
      %v4296 = vld [vmem:[%s1 + $0x3f0] sm:$0xf]
      %v4297 = vld [vmem:[%s1 + $0x3f4] sm:$0xf]
      %v4298 = vld [vmem:[%s1 + $0x3f8] sm:$0xf]
      %v4299 = vld [vmem:[%s1 + $0x3fc] sm:$0xf]
      %v4301 = vcombine.high %v4235, %v4235
      %v4303 = vunpack.c.l.s4 1983009808
      %v4304 = vunpack.c.0.s8 %v4303
      %v4305 = vlaneseq
      %v4306 = vshrl.u32 %v4305, 7
      %v4307 = vsub.s32 %v4304, %v4306
      %v4308 = vrot.slane %v4235, %v4307
      %v4310 = vunpack.c.l.s4 1983009808
      %v4311 = vunpack.c.0.s8 %v4310
      %v4312 = vlaneseq
      %v4313 = vshrl.u32 %v4312, 7
      %v4314 = vsub.s32 %v4311, %v4313
      %v4315 = vrot.slane %v4301, %v4314
      %v4316 = vcombine.high %v4308, %v4308
      %v4317 = vcombine.high %v4315, %v4315
      %v4319 = vshrl.u32 %v4308, 16
      %v4321 = vshll.u32 %v4308, 16
      %v4323 = vrot.slane %v4321, 1
      %v4324 = vor.u32 %v4319, %v4323
      %v4326 = vshrl.u32 %v4316, 16
      %v4328 = vshll.u32 %v4316, 16
      %v4330 = vrot.slane %v4328, 1
      %v4331 = vor.u32 %v4326, %v4330
      %v4333 = vshrl.u32 %v4315, 16
      %v4335 = vshll.u32 %v4315, 16
      %v4337 = vrot.slane %v4335, 1
      %v4338 = vor.u32 %v4333, %v4337
      %v4340 = vshrl.u32 %v4317, 16
      %v4342 = vshll.u32 %v4317, 16
      %v4344 = vrot.slane %v4342, 1
      %v4345 = vor.u32 %v4340, %v4344
      %v4414 = vunpack.c.l.b16 %v4236
      %v4415 = vunpack.c.l.b16 %v4237
      %v4416 = vunpack.c.l.b16 %v4238
      %v4417 = vunpack.c.l.b16 %v4239
      %v4418 = vunpack.c.l.b16 %v4240
      %v4419 = vunpack.c.l.b16 %v4241
      %v4420 = vunpack.c.l.b16 %v4242
      %v4421 = vunpack.c.l.b16 %v4243
      %v4422 = vunpack.c.l.b16 %v4244
      %v4423 = vunpack.c.l.b16 %v4245
      %v4424 = vunpack.c.l.b16 %v4246
      %v4425 = vunpack.c.l.b16 %v4247
      %v4426 = vunpack.c.l.b16 %v4248
      %v4427 = vunpack.c.l.b16 %v4249
      %v4428 = vunpack.c.l.b16 %v4250
      %v4429 = vunpack.c.l.b16 %v4251
      %v4430 = vunpack.c.l.b16 %v4252
      %v4431 = vunpack.c.l.b16 %v4253
      %v4432 = vunpack.c.l.b16 %v4254
      %v4433 = vunpack.c.l.b16 %v4255
      %v4434 = vunpack.c.l.b16 %v4256
      %v4435 = vunpack.c.l.b16 %v4257
      %v4436 = vunpack.c.l.b16 %v4258
      %v4437 = vunpack.c.l.b16 %v4259
      %v4438 = vunpack.c.l.b16 %v4260
      %v4439 = vunpack.c.l.b16 %v4261
      %v4440 = vunpack.c.l.b16 %v4262
      %v4441 = vunpack.c.l.b16 %v4263
      %v4442 = vunpack.c.l.b16 %v4264
      %v4443 = vunpack.c.l.b16 %v4265
      %v4444 = vunpack.c.l.b16 %v4266
      %v4445 = vunpack.c.l.b16 %v4267
      %v4446 = vunpack.c.l.b16 %v4268
      %v4447 = vunpack.c.l.b16 %v4269
      %v4448 = vunpack.c.l.b16 %v4270
      %v4449 = vunpack.c.l.b16 %v4271
      %v4450 = vunpack.c.l.b16 %v4272
      %v4451 = vunpack.c.l.b16 %v4273
      %v4452 = vunpack.c.l.b16 %v4274
      %v4453 = vunpack.c.l.b16 %v4275
      %v4454 = vunpack.c.l.b16 %v4276
      %v4455 = vunpack.c.l.b16 %v4277
      %v4456 = vunpack.c.l.b16 %v4278
      %v4457 = vunpack.c.l.b16 %v4279
      %v4458 = vunpack.c.l.b16 %v4280
      %v4459 = vunpack.c.l.b16 %v4281
      %v4460 = vunpack.c.l.b16 %v4282
      %v4461 = vunpack.c.l.b16 %v4283
      %v4462 = vunpack.c.l.b16 %v4284
      %v4463 = vunpack.c.l.b16 %v4285
      %v4464 = vunpack.c.l.b16 %v4286
      %v4465 = vunpack.c.l.b16 %v4287
      %v4466 = vunpack.c.l.b16 %v4288
      %v4467 = vunpack.c.l.b16 %v4289
      %v4468 = vunpack.c.l.b16 %v4290
      %v4469 = vunpack.c.l.b16 %v4291
      %v4470 = vunpack.c.l.b16 %v4292
      %v4471 = vunpack.c.l.b16 %v4293
      %v4472 = vunpack.c.l.b16 %v4294
      %v4473 = vunpack.c.l.b16 %v4295
      %v4474 = vunpack.c.l.b16 %v4296
      %v4475 = vunpack.c.l.b16 %v4297
      %v4476 = vunpack.c.l.b16 %v4298
      %v4477 = vunpack.c.l.b16 %v4299
      %v4478 = vpack.c.b16 %v4415, %v4414
      %v4479 = vpack.c.b16 %v4417, %v4416
      %v4480 = vpack.c.b16 %v4419, %v4418
      %v4481 = vpack.c.b16 %v4421, %v4420
      %v4482 = vpack.c.b16 %v4423, %v4422
      %v4483 = vpack.c.b16 %v4425, %v4424
      %v4484 = vpack.c.b16 %v4427, %v4426
      %v4485 = vpack.c.b16 %v4429, %v4428
      %v4486 = vpack.c.b16 %v4431, %v4430
      %v4487 = vpack.c.b16 %v4433, %v4432
      %v4488 = vpack.c.b16 %v4435, %v4434
      %v4489 = vpack.c.b16 %v4437, %v4436
      %v4490 = vpack.c.b16 %v4439, %v4438
      %v4491 = vpack.c.b16 %v4441, %v4440
      %v4492 = vpack.c.b16 %v4443, %v4442
      %v4493 = vpack.c.b16 %v4445, %v4444
      %v4494 = vpack.c.b16 %v4447, %v4446
      %v4495 = vpack.c.b16 %v4449, %v4448
      %v4496 = vpack.c.b16 %v4451, %v4450
      %v4497 = vpack.c.b16 %v4453, %v4452
      %v4498 = vpack.c.b16 %v4455, %v4454
      %v4499 = vpack.c.b16 %v4457, %v4456
      %v4500 = vpack.c.b16 %v4459, %v4458
      %v4501 = vpack.c.b16 %v4461, %v4460
      %v4502 = vpack.c.b16 %v4463, %v4462
      %v4503 = vpack.c.b16 %v4465, %v4464
      %v4504 = vpack.c.b16 %v4467, %v4466
      %v4505 = vpack.c.b16 %v4469, %v4468
      %v4506 = vpack.c.b16 %v4471, %v4470
      %v4507 = vpack.c.b16 %v4473, %v4472
      %v4508 = vpack.c.b16 %v4475, %v4474
      %v4509 = vpack.c.b16 %v4477, %v4476
      %4542 = vmatprep.subr.bf16.mxu0 0
      %4543 = vmatpush1.bf16.msra.mxu0 %v4478
      %4544 = vmatprep.subr.bf16.mxu0 0
      %4545 = vmatpush1.bf16.msra.mxu0 %v4479
      %4546 = vmatprep.subr.bf16.mxu0 0
      %4547 = vmatpush1.bf16.msra.mxu0 %v4480
      %4548 = vmatprep.subr.bf16.mxu0 0
      %4549 = vmatpush1.bf16.msra.mxu0 %v4481
      %4550 = vmatprep.subr.bf16.mxu0 0
      %4551 = vmatpush1.bf16.msra.mxu0 %v4482
      %4552 = vmatprep.subr.bf16.mxu0 0
      %4553 = vmatpush1.bf16.msra.mxu0 %v4483
      %4554 = vmatprep.subr.bf16.mxu0 0
      %4555 = vmatpush1.bf16.msra.mxu0 %v4484
      %4556 = vmatprep.subr.bf16.mxu0 0
      %4557 = vmatpush1.bf16.msra.mxu0 %v4485
      %4558 = vmatprep.subr.bf16.mxu0 0
      %4559 = vmatpush1.bf16.msra.mxu0 %v4486
      %4560 = vmatprep.subr.bf16.mxu0 0
      %4561 = vmatpush1.bf16.msra.mxu0 %v4487
      %4562 = vmatprep.subr.bf16.mxu0 0
      %4563 = vmatpush1.bf16.msra.mxu0 %v4488
      %4564 = vmatprep.subr.bf16.mxu0 0
      %4565 = vmatpush1.bf16.msra.mxu0 %v4489
      %4566 = vmatprep.subr.bf16.mxu0 0
      %4567 = vmatpush1.bf16.msra.mxu0 %v4490
      %4568 = vmatprep.subr.bf16.mxu0 0
      %4569 = vmatpush1.bf16.msra.mxu0 %v4491
      %4570 = vmatprep.subr.bf16.mxu0 0
      %4571 = vmatpush1.bf16.msra.mxu0 %v4492
      %4572 = vmatprep.subr.bf16.mxu0 0
      %4573 = vmatpush1.bf16.msra.mxu0 %v4493
      %4574 = vmatprep.mubr.bf16.mxu0 %v4331
      %4575 = vmatmul.mubr.bf16.gmra.mrb[0].mxu0 %v4324
      %v4576 = vpop.f32.mrb[0].mxu0
      %v4577 = vadd.f32 0.0, %v4576
      %v4578 = vpop.f32.mrb[0].mxu0
      %v4579 = vpop.f32.mrb[0].mxu0
      %v4580 = vpop.f32.mrb[0].mxu0
      %4581 = vdwg.mxu0
      %4582 = vmatprep.subr.bf16.mxu0 0
      %4583 = vmatpush1.bf16.msra.mxu0 %v4494
      %4584 = vmatprep.subr.bf16.mxu0 0
      %4585 = vmatpush1.bf16.msra.mxu0 %v4495
      %4586 = vmatprep.subr.bf16.mxu0 0
      %4587 = vmatpush1.bf16.msra.mxu0 %v4496
      %4588 = vmatprep.subr.bf16.mxu0 0
      %4589 = vmatpush1.bf16.msra.mxu0 %v4497
      %4590 = vmatprep.subr.bf16.mxu0 0
      %4591 = vmatpush1.bf16.msra.mxu0 %v4498
      %4592 = vmatprep.subr.bf16.mxu0 0
      %4593 = vmatpush1.bf16.msra.mxu0 %v4499
      %4594 = vmatprep.subr.bf16.mxu0 0
      %4595 = vmatpush1.bf16.msra.mxu0 %v4500
      %4596 = vmatprep.subr.bf16.mxu0 0
      %4597 = vmatpush1.bf16.msra.mxu0 %v4501
      %4598 = vmatprep.subr.bf16.mxu0 0
      %4599 = vmatpush1.bf16.msra.mxu0 %v4502
      %4600 = vmatprep.subr.bf16.mxu0 0
      %4601 = vmatpush1.bf16.msra.mxu0 %v4503
      %4602 = vmatprep.subr.bf16.mxu0 0
      %4603 = vmatpush1.bf16.msra.mxu0 %v4504
      %4604 = vmatprep.subr.bf16.mxu0 0
      %4605 = vmatpush1.bf16.msra.mxu0 %v4505
      %4606 = vmatprep.subr.bf16.mxu0 0
      %4607 = vmatpush1.bf16.msra.mxu0 %v4506
      %4608 = vmatprep.subr.bf16.mxu0 0
      %4609 = vmatpush1.bf16.msra.mxu0 %v4507
      %4610 = vmatprep.subr.bf16.mxu0 0
      %4611 = vmatpush1.bf16.msra.mxu0 %v4508
      %4612 = vmatprep.subr.bf16.mxu0 0
      %4613 = vmatpush1.bf16.msra.mxu0 %v4509
      %4614 = vmatprep.mubr.bf16.mxu0 %v4345
      %4615 = vmatmul.mubr.bf16.gmra.mrb[0].mxu0 %v4338
      %v4616 = vpop.f32.mrb[0].mxu0
      %v4617 = vadd.f32 %v4577, %v4616
      %v4618 = vpop.f32.mrb[0].mxu0
      %v4619 = vpop.f32.mrb[0].mxu0
      %v4620 = vpop.f32.mrb[0].mxu0
      %4621 = vdwg.mxu0
      %v4622 = vadd.f32 %v4234, %v4617
      %v4623 = vadd.f32 %v4622, %v1653
      %v4624 = vmax.f32 %v4623, 0.0
      %v4625 = vpack.c.bf16 %v4624, %v4624
      %s4626 = scalar_lea.vmem %s170, 4
      %v4627 = vld [vmem:[%s4626] sm:$0x3]
      %v4628 = vsel %vm1660, %v4625, %v4627
      %4629 = vst [vmem:[%s4626] sm:$0x3] %v4628
      %p4630 = scmp.lt.s32.totalorder %s14, 1
      %s4631 = scalar_select %p4630, %s14, 1
      %s4632 = smul.addr %s4631, 3
      %s4633 = smul.addr %s4632, 2
      %s4634 = scalar_lea.vmem %s3, %s4633
      // Predicated region
      $region33: #{dqn_distributional_forward.5} parent=31 // pred_check
        %p4635 = pneg %p100
      $region34: #{dqn_distributional_forward.5} parent=31 // pred_check_branch
        %4637 = sbr.rel (%p4635) target = $region36
      $region35: #{dqn_distributional_forward.5} parent=31 // pred_region
        _
      $region36: #{dqn_distributional_forward.5} parent=31 // pred_fallthru
        _
    $region32: #{dqn_distributional_forward.5} parent=5 // pred_fallthru
      _
    %p4638 = scmp.le.s32.totalorder 2, %s9
    // Predicated region
    $region37: #{dqn_distributional_forward.5} parent=5 // pred_check
      %p4639 = pneg %p4638
    $region38: #{dqn_distributional_forward.5} parent=5 // pred_check_branch
      %4641 = sbr.rel (%p4639) target = $region40
    $region39: #{dqn_distributional_forward.5} parent=5 // pred_region
      %s4642 = ssub.s32 %s9, 2
      // Predicated region
      $region41: #{dqn_distributional_forward.5} parent=39 // pred_check
        %p4643 = pneg %p106
      $region42: #{dqn_distributional_forward.5} parent=39 // pred_check_branch
        %4645 = sbr.rel (%p4643) target = $region44
      $region43: #{dqn_distributional_forward.5} parent=39 // pred_region
        %p4646 = scmp.lt.s32.totalorder %s15, 1
        %s4647 = scalar_select %p4646, %s15, 1
        %s4648 = smul.addr %s4647, 3
        %s4649 = smul.addr %s4648, 2
        %s4650 = scalar_lea.vmem %s3, %s4649
      $region44: #{dqn_distributional_forward.5} parent=39 // pred_fallthru
        _
    $region40: #{dqn_distributional_forward.5} parent=5 // pred_fallthru
      _
  $region6: #{dqn_distributional_forward.5} parent=0 // loop_footer
    %s13 = sadd.s32 1, %s9
  $region7: #{dqn_distributional_forward.5} parent=0 // loop_footer_branch
    %8 = sbr.rel target = $region3
  $region8: #{dqn_distributional_forward.5} parent=0 // loop_exit
    _

// kernel: dqn_distributional_forward.7
$region0: #{dqn_distributional_forward.7}
  #allocation0 [shape = 'u32[]', space=smem, size = 0x4, offset = 0x4, fixed_abs, tag = 'smem constant byte address 0x4 - core index']
  #allocation1 [shape = 'u32[144,128]{1,0:T(1,128)}', space=vmem, size = 0x12000, scoped, tag = 'internal scratch']
  %s0 = inlined_call_operand.vmem [shape: bf16[16,128], index: 0, kind: input, shape index: {}]
  %s1 = inlined_call_operand.vmem [shape: bf16[128,512], index: 1, kind: input, shape index: {}]
  %s2 = inlined_call_operand.vmem [shape: f32[1,512], index: 2, kind: input, shape index: {}]
  %s3 = inlined_call_operand.vmem [shape: bf16[512,384], index: 3, kind: input, shape index: {}]
  %s4 = inlined_call_operand.vmem [shape: f32[1,384], index: 4, kind: input, shape index: {}]
  %s5 = inlined_call_operand.vmem [shape: f32[16,384], index: 5, kind: output, shape index: {}]
  %s6 = sld [smem:[#allocation0]]
  $region30: #{dqn_distributional_forward.7} parent=0
    _
  %s8 = ssub.s32 1, %s6
  %s9 = scalar_select 0, %s8, %s6
  // Predicated region
  $region2: #{dqn_distributional_forward.7} parent=0 // pred_check
    _
  $region3: #{dqn_distributional_forward.7} parent=0 // pred_check_branch
    %11 = sbr.rel (0) target = $region5
  $region4: #{dqn_distributional_forward.7} parent=0 // pred_region
    _
  $region5: #{dqn_distributional_forward.7} parent=0 // pred_fallthru
    _
  // Predicated region
  $region6: #{dqn_distributional_forward.7} parent=0 // pred_check
    _
  $region7: #{dqn_distributional_forward.7} parent=0 // pred_check_branch
    %13 = sbr.rel (0) target = $region9
  $region8: #{dqn_distributional_forward.7} parent=0 // pred_region
    _
  $region9: #{dqn_distributional_forward.7} parent=0 // pred_fallthru
    _
  // Predicated region
  $region10: #{dqn_distributional_forward.7} parent=0 // pred_check
    _
  $region11: #{dqn_distributional_forward.7} parent=0 // pred_check_branch
    %15 = sbr.rel (0) target = $region13
  $region12: #{dqn_distributional_forward.7} parent=0 // pred_region
    _
  $region13: #{dqn_distributional_forward.7} parent=0 // pred_fallthru
    _
  // Predicated region
  $region14: #{dqn_distributional_forward.7} parent=0 // pred_check
    _
  $region15: #{dqn_distributional_forward.7} parent=0 // pred_check_branch
    %17 = sbr.rel (0) target = $region17
  $region16: #{dqn_distributional_forward.7} parent=0 // pred_region
    _
  $region17: #{dqn_distributional_forward.7} parent=0 // pred_fallthru
    _
  // Predicated region
  $region18: #{dqn_distributional_forward.7} parent=0 // pred_check
    _
  $region19: #{dqn_distributional_forward.7} parent=0 // pred_check_branch
    %19 = sbr.rel (0) target = $region21
  $region20: #{dqn_distributional_forward.7} parent=0 // pred_region
    _
  $region21: #{dqn_distributional_forward.7} parent=0 // pred_fallthru
    _
  %v21 = vld [vmem:[%s0] sm:$0xf]
  %v22 = vld [vmem:[%s0 + $0x4] sm:$0xf]
  %v23 = vld [vmem:[%s1] sm:$0xff]
  %v24 = vld [vmem:[%s1 + $0x8] sm:$0xff]
  %v25 = vld [vmem:[%s1 + $0x10] sm:$0xff]
  %v26 = vld [vmem:[%s1 + $0x18] sm:$0xff]
  %v27 = vld [vmem:[%s1 + $0x20] sm:$0xff]
  %v28 = vld [vmem:[%s1 + $0x28] sm:$0xff]
  %v29 = vld [vmem:[%s1 + $0x30] sm:$0xff]
  %v30 = vld [vmem:[%s1 + $0x38] sm:$0xff]
  %v31 = vld [vmem:[%s1 + $0x40] sm:$0xff]
  %v32 = vld [vmem:[%s1 + $0x48] sm:$0xff]
  %v33 = vld [vmem:[%s1 + $0x50] sm:$0xff]
  %v34 = vld [vmem:[%s1 + $0x58] sm:$0xff]
  %v35 = vld [vmem:[%s1 + $0x60] sm:$0xff]
  %v36 = vld [vmem:[%s1 + $0x68] sm:$0xff]
  %v37 = vld [vmem:[%s1 + $0x70] sm:$0xff]
  %v38 = vld [vmem:[%s1 + $0x78] sm:$0xff]
  %v39 = vld [vmem:[%s1 + $0x80] sm:$0xff]
  %v40 = vld [vmem:[%s1 + $0x88] sm:$0xff]
  %v41 = vld [vmem:[%s1 + $0x90] sm:$0xff]
  %v42 = vld [vmem:[%s1 + $0x98] sm:$0xff]
  %v43 = vld [vmem:[%s1 + $0xa0] sm:$0xff]
  %v44 = vld [vmem:[%s1 + $0xa8] sm:$0xff]
  %v45 = vld [vmem:[%s1 + $0xb0] sm:$0xff]
  %v46 = vld [vmem:[%s1 + $0xb8] sm:$0xff]
  %v47 = vld [vmem:[%s1 + $0xc0] sm:$0xff]
  %v48 = vld [vmem:[%s1 + $0xc8] sm:$0xff]
  %v49 = vld [vmem:[%s1 + $0xd0] sm:$0xff]
  %v50 = vld [vmem:[%s1 + $0xd8] sm:$0xff]
  %v51 = vld [vmem:[%s1 + $0xe0] sm:$0xff]
  %v52 = vld [vmem:[%s1 + $0xe8] sm:$0xff]
  %v53 = vld [vmem:[%s1 + $0xf0] sm:$0xff]
  %v54 = vld [vmem:[%s1 + $0xf8] sm:$0xff]
  %v55 = vld [vmem:[%s2] sm:$0xf]
  %v57 = vlaneseq
  %v58 = vshrl.u32 %v57, 7
  %v59 = vsub.s32 0, %v58
  %v60 = vrot.slane %v55, %v59
  %v61 = vlaneseq
  %v62 = vshrl.u32 %v61, 7
  %v63 = vsub.s32 1, %v62
  %v64 = vrot.slane %v55, %v63
  %v65 = vlaneseq
  %v66 = vshrl.u32 %v65, 7
  %v67 = vsub.s32 2, %v66
  %v68 = vrot.slane %v55, %v67
  %v69 = vlaneseq
  %v70 = vshrl.u32 %v69, 7
  %v71 = vsub.s32 3, %v70
  %v72 = vrot.slane %v55, %v71
  %v79 = vunpack.c.l.b16 %v21
  %v80 = vunpack.c.l.b16 %v22
  %v81 = vpack.c.b16 %v80, %v79
  %v115 = vunpack.c.l.b16 %v23
  %v116 = vunpack.c.h.b16 %v23
  %v117 = vunpack.c.l.b16 %v24
  %v118 = vunpack.c.h.b16 %v24
  %v119 = vunpack.c.l.b16 %v25
  %v120 = vunpack.c.h.b16 %v25
  %v121 = vunpack.c.l.b16 %v26
  %v122 = vunpack.c.h.b16 %v26
  %v123 = vunpack.c.l.b16 %v27
  %v124 = vunpack.c.h.b16 %v27
  %v125 = vunpack.c.l.b16 %v28
  %v126 = vunpack.c.h.b16 %v28
  %v127 = vunpack.c.l.b16 %v29
  %v128 = vunpack.c.h.b16 %v29
  %v129 = vunpack.c.l.b16 %v30
  %v130 = vunpack.c.h.b16 %v30
  %v131 = vunpack.c.l.b16 %v31
  %v132 = vunpack.c.h.b16 %v31
  %v133 = vunpack.c.l.b16 %v32
  %v134 = vunpack.c.h.b16 %v32
  %v135 = vunpack.c.l.b16 %v33
  %v136 = vunpack.c.h.b16 %v33
  %v137 = vunpack.c.l.b16 %v34
  %v138 = vunpack.c.h.b16 %v34
  %v139 = vunpack.c.l.b16 %v35
  %v140 = vunpack.c.h.b16 %v35
  %v141 = vunpack.c.l.b16 %v36
  %v142 = vunpack.c.h.b16 %v36
  %v143 = vunpack.c.l.b16 %v37
  %v144 = vunpack.c.h.b16 %v37
  %v145 = vunpack.c.l.b16 %v38
  %v146 = vunpack.c.h.b16 %v38
  %v147 = vunpack.c.l.b16 %v39
  %v148 = vunpack.c.h.b16 %v39
  %v149 = vunpack.c.l.b16 %v40
  %v150 = vunpack.c.h.b16 %v40
  %v151 = vunpack.c.l.b16 %v41
  %v152 = vunpack.c.h.b16 %v41
  %v153 = vunpack.c.l.b16 %v42
  %v154 = vunpack.c.h.b16 %v42
  %v155 = vunpack.c.l.b16 %v43
  %v156 = vunpack.c.h.b16 %v43
  %v157 = vunpack.c.l.b16 %v44
  %v158 = vunpack.c.h.b16 %v44
  %v159 = vunpack.c.l.b16 %v45
  %v160 = vunpack.c.h.b16 %v45
  %v161 = vunpack.c.l.b16 %v46
  %v162 = vunpack.c.h.b16 %v46
  %v163 = vunpack.c.l.b16 %v47
  %v164 = vunpack.c.h.b16 %v47
  %v165 = vunpack.c.l.b16 %v48
  %v166 = vunpack.c.h.b16 %v48
  %v167 = vunpack.c.l.b16 %v49
  %v168 = vunpack.c.h.b16 %v49
  %v169 = vunpack.c.l.b16 %v50
  %v170 = vunpack.c.h.b16 %v50
  %v171 = vunpack.c.l.b16 %v51
  %v172 = vunpack.c.h.b16 %v51
  %v173 = vunpack.c.l.b16 %v52
  %v174 = vunpack.c.h.b16 %v52
  %v175 = vunpack.c.l.b16 %v53
  %v176 = vunpack.c.h.b16 %v53
  %v177 = vunpack.c.l.b16 %v54
  %v178 = vunpack.c.h.b16 %v54
  %v179 = vpack.c.b16 %v119, %v115
  %v180 = vpack.c.b16 %v120, %v116
  %v181 = vpack.c.b16 %v121, %v117
  %v182 = vpack.c.b16 %v122, %v118
  %v183 = vpack.c.b16 %v127, %v123
  %v184 = vpack.c.b16 %v128, %v124
  %v185 = vpack.c.b16 %v129, %v125
  %v186 = vpack.c.b16 %v130, %v126
  %v187 = vpack.c.b16 %v135, %v131
  %v188 = vpack.c.b16 %v136, %v132
  %v189 = vpack.c.b16 %v137, %v133
  %v190 = vpack.c.b16 %v138, %v134
  %v191 = vpack.c.b16 %v143, %v139
  %v192 = vpack.c.b16 %v144, %v140
  %v193 = vpack.c.b16 %v145, %v141
  %v194 = vpack.c.b16 %v146, %v142
  %v195 = vpack.c.b16 %v151, %v147
  %v196 = vpack.c.b16 %v152, %v148
  %v197 = vpack.c.b16 %v153, %v149
  %v198 = vpack.c.b16 %v154, %v150
  %v199 = vpack.c.b16 %v159, %v155
  %v200 = vpack.c.b16 %v160, %v156
  %v201 = vpack.c.b16 %v161, %v157
  %v202 = vpack.c.b16 %v162, %v158
  %v203 = vpack.c.b16 %v167, %v163
  %v204 = vpack.c.b16 %v168, %v164
  %v205 = vpack.c.b16 %v169, %v165
  %v206 = vpack.c.b16 %v170, %v166
  %v207 = vpack.c.b16 %v175, %v171
  %v208 = vpack.c.b16 %v176, %v172
  %v209 = vpack.c.b16 %v177, %v173
  %v210 = vpack.c.b16 %v178, %v174
  %243 = vmatprep.subr.bf16.mxu0 %v180
  %244 = vmatpush1.bf16.msra.mxu0 %v179
  %245 = vmatprep.subr.bf16.mxu0 %v184
  %246 = vmatpush1.bf16.msra.mxu0 %v183
  %247 = vmatprep.subr.bf16.mxu0 %v188
  %248 = vmatpush1.bf16.msra.mxu0 %v187
  %249 = vmatprep.subr.bf16.mxu0 %v192
  %250 = vmatpush1.bf16.msra.mxu0 %v191
  %251 = vmatprep.subr.bf16.mxu0 %v196
  %252 = vmatpush1.bf16.msra.mxu0 %v195
  %253 = vmatprep.subr.bf16.mxu0 %v200
  %254 = vmatpush1.bf16.msra.mxu0 %v199
  %255 = vmatprep.subr.bf16.mxu0 %v204
  %256 = vmatpush1.bf16.msra.mxu0 %v203
  %257 = vmatprep.subr.bf16.mxu0 %v208
  %258 = vmatpush1.bf16.msra.mxu0 %v207
  %259 = vmatprep.subr.bf16.mxu0 0
  %260 = vmatpush1.bf16.msra.mxu0 0
  %261 = vmatprep.subr.bf16.mxu0 0
  %262 = vmatpush1.bf16.msra.mxu0 0
  %263 = vmatprep.subr.bf16.mxu0 0
  %264 = vmatpush1.bf16.msra.mxu0 0
  %265 = vmatprep.subr.bf16.mxu0 0
  %266 = vmatpush1.bf16.msra.mxu0 0
  %267 = vmatprep.subr.bf16.mxu0 0
  %268 = vmatpush1.bf16.msra.mxu0 0
  %269 = vmatprep.subr.bf16.mxu0 0
  %270 = vmatpush1.bf16.msra.mxu0 0
  %271 = vmatprep.subr.bf16.mxu0 0
  %272 = vmatpush1.bf16.msra.mxu0 0
  %273 = vmatprep.subr.bf16.mxu0 0
  %274 = vmatpush1.bf16.msra.mxu0 0
  %275 = vmatprep.mubr.bf16.mxu0 0
  %276 = vmatmul.mubr.bf16.gmra.mrb[0].mxu0 %v81
  %v277 = vpop.f32.mrb[0].mxu0
  %v278 = vadd.f32 %v60, %v277
  %v279 = vpop.f32.mrb[0].mxu0
  %v280 = vadd.f32 %v64, %v279
  %v281 = vpop.f32.mrb[0].mxu0
  %v282 = vadd.f32 %v60, %v281
  %v283 = vpop.f32.mrb[0].mxu0
  %v284 = vadd.f32 %v64, %v283
  %285 = vdwg.mxu0
  %286 = vmatprep.subr.bf16.mxu0 %v182
  %287 = vmatpush1.bf16.msra.mxu0 %v181
  %288 = vmatprep.subr.bf16.mxu0 %v186
  %289 = vmatpush1.bf16.msra.mxu0 %v185
  %290 = vmatprep.subr.bf16.mxu0 %v190
  %291 = vmatpush1.bf16.msra.mxu0 %v189
  %292 = vmatprep.subr.bf16.mxu0 %v194
  %293 = vmatpush1.bf16.msra.mxu0 %v193
  %294 = vmatprep.subr.bf16.mxu0 %v198
  %295 = vmatpush1.bf16.msra.mxu0 %v197
  %296 = vmatprep.subr.bf16.mxu0 %v202
  %297 = vmatpush1.bf16.msra.mxu0 %v201
  %298 = vmatprep.subr.bf16.mxu0 %v206
  %299 = vmatpush1.bf16.msra.mxu0 %v205
  %300 = vmatprep.subr.bf16.mxu0 %v210
  %301 = vmatpush1.bf16.msra.mxu0 %v209
  %302 = vmatprep.subr.bf16.mxu0 0
  %303 = vmatpush1.bf16.msra.mxu0 0
  %304 = vmatprep.subr.bf16.mxu0 0
  %305 = vmatpush1.bf16.msra.mxu0 0
  %306 = vmatprep.subr.bf16.mxu0 0
  %307 = vmatpush1.bf16.msra.mxu0 0
  %308 = vmatprep.subr.bf16.mxu0 0
  %309 = vmatpush1.bf16.msra.mxu0 0
  %310 = vmatprep.subr.bf16.mxu0 0
  %311 = vmatpush1.bf16.msra.mxu0 0
  %312 = vmatprep.subr.bf16.mxu0 0
  %313 = vmatpush1.bf16.msra.mxu0 0
  %314 = vmatprep.subr.bf16.mxu0 0
  %315 = vmatpush1.bf16.msra.mxu0 0
  %316 = vmatprep.subr.bf16.mxu0 0
  %317 = vmatpush1.bf16.msra.mxu0 0
  %318 = vmatprep.mubr.bf16.mxu0 0
  %319 = vmatmul.mubr.bf16.gmra.mrb[0].mxu0 %v81
  %v320 = vpop.f32.mrb[0].mxu0
  %v321 = vadd.f32 %v68, %v320
  %v322 = vpop.f32.mrb[0].mxu0
  %v323 = vadd.f32 %v72, %v322
  %v324 = vpop.f32.mrb[0].mxu0
  %v325 = vadd.f32 %v68, %v324
  %v326 = vpop.f32.mrb[0].mxu0
  %v327 = vadd.f32 %v72, %v326
  %328 = vdwg.mxu0
  %v329 = vmax.f32 %v278, 0.0
  %v330 = vmax.f32 %v280, 0.0
  %v331 = vmax.f32 %v321, 0.0
  %v332 = vmax.f32 %v323, 0.0
  %v333 = vmax.f32 %v282, 0.0
  %v334 = vmax.f32 %v284, 0.0
  %v335 = vmax.f32 %v325, 0.0
  %v336 = vmax.f32 %v327, 0.0
  %v337 = vpack.c.bf16 %v333, %v329
  %v338 = vpack.c.bf16 %v334, %v330
  %v339 = vpack.c.bf16 %v335, %v331
  %v340 = vpack.c.bf16 %v336, %v332
  %v341 = vld [vmem:[%s3] sm:$0xff]
  %v342 = vld [vmem:[%s3 + $0x8] sm:$0xf]
  %v343 = vld [vmem:[%s3 + $0xc] sm:$0xff]
  %v344 = vld [vmem:[%s3 + $0x14] sm:$0xf]
  %v345 = vld [vmem:[%s3 + $0x18] sm:$0xff]
  %v346 = vld [vmem:[%s3 + $0x20] sm:$0xf]
  %v347 = vld [vmem:[%s3 + $0x24] sm:$0xff]
  %v348 = vld [vmem:[%s3 + $0x2c] sm:$0xf]
  %v349 = vld [vmem:[%s3 + $0x30] sm:$0xff]
  %v350 = vld [vmem:[%s3 + $0x38] sm:$0xf]
  %v351 = vld [vmem:[%s3 + $0x3c] sm:$0xff]
  %v352 = vld [vmem:[%s3 + $0x44] sm:$0xf]
  %v353 = vld [vmem:[%s3 + $0x48] sm:$0xff]
  %v354 = vld [vmem:[%s3 + $0x50] sm:$0xf]
  %v355 = vld [vmem:[%s3 + $0x54] sm:$0xff]
  %v356 = vld [vmem:[%s3 + $0x5c] sm:$0xf]
  %v357 = vld [vmem:[%s3 + $0x60] sm:$0xff]
  %v358 = vld [vmem:[%s3 + $0x68] sm:$0xf]
  %v359 = vld [vmem:[%s3 + $0x6c] sm:$0xff]
  %v360 = vld [vmem:[%s3 + $0x74] sm:$0xf]
  %v361 = vld [vmem:[%s3 + $0x78] sm:$0xff]
  %v362 = vld [vmem:[%s3 + $0x80] sm:$0xf]
  %v363 = vld [vmem:[%s3 + $0x84] sm:$0xff]
  %v364 = vld [vmem:[%s3 + $0x8c] sm:$0xf]
  %v365 = vld [vmem:[%s3 + $0x90] sm:$0xff]
  %v366 = vld [vmem:[%s3 + $0x98] sm:$0xf]
  %v367 = vld [vmem:[%s3 + $0x9c] sm:$0xff]
  %v368 = vld [vmem:[%s3 + $0xa4] sm:$0xf]
  %v369 = vld [vmem:[%s3 + $0xa8] sm:$0xff]
  %v370 = vld [vmem:[%s3 + $0xb0] sm:$0xf]
  %v371 = vld [vmem:[%s3 + $0xb4] sm:$0xff]
  %v372 = vld [vmem:[%s3 + $0xbc] sm:$0xf]
  %v373 = vld [vmem:[%s3 + $0xc0] sm:$0xff]
  %v374 = vld [vmem:[%s3 + $0xc8] sm:$0xf]
  %v375 = vld [vmem:[%s3 + $0xcc] sm:$0xff]
  %v376 = vld [vmem:[%s3 + $0xd4] sm:$0xf]
  %v377 = vld [vmem:[%s3 + $0xd8] sm:$0xff]
  %v378 = vld [vmem:[%s3 + $0xe0] sm:$0xf]
  %v379 = vld [vmem:[%s3 + $0xe4] sm:$0xff]
  %v380 = vld [vmem:[%s3 + $0xec] sm:$0xf]
  %v381 = vld [vmem:[%s3 + $0xf0] sm:$0xff]
  %v382 = vld [vmem:[%s3 + $0xf8] sm:$0xf]
  %v383 = vld [vmem:[%s3 + $0xfc] sm:$0xff]
  %v384 = vld [vmem:[%s3 + $0x104] sm:$0xf]
  %v385 = vld [vmem:[%s3 + $0x108] sm:$0xff]
  %v386 = vld [vmem:[%s3 + $0x110] sm:$0xf]
  %v387 = vld [vmem:[%s3 + $0x114] sm:$0xff]
  %v388 = vld [vmem:[%s3 + $0x11c] sm:$0xf]
  %v389 = vld [vmem:[%s3 + $0x120] sm:$0xff]
  %v390 = vld [vmem:[%s3 + $0x128] sm:$0xf]
  %v391 = vld [vmem:[%s3 + $0x12c] sm:$0xff]
  %v392 = vld [vmem:[%s3 + $0x134] sm:$0xf]
  %v393 = vld [vmem:[%s3 + $0x138] sm:$0xff]
  %v394 = vld [vmem:[%s3 + $0x140] sm:$0xf]
  %v395 = vld [vmem:[%s3 + $0x144] sm:$0xff]
  %v396 = vld [vmem:[%s3 + $0x14c] sm:$0xf]
  %v397 = vld [vmem:[%s3 + $0x150] sm:$0xff]
  %v398 = vld [vmem:[%s3 + $0x158] sm:$0xf]
  %v399 = vld [vmem:[%s3 + $0x15c] sm:$0xff]
  %v400 = vld [vmem:[%s3 + $0x164] sm:$0xf]
  %v401 = vld [vmem:[%s3 + $0x168] sm:$0xff]
  %v402 = vld [vmem:[%s3 + $0x170] sm:$0xf]
  %v403 = vld [vmem:[%s3 + $0x174] sm:$0xff]
  %v404 = vld [vmem:[%s3 + $0x17c] sm:$0xf]
  %v405 = vld [vmem:[%s3 + $0x180] sm:$0xff]
  %v406 = vld [vmem:[%s3 + $0x188] sm:$0xf]
  %v407 = vld [vmem:[%s3 + $0x18c] sm:$0xff]
  %v408 = vld [vmem:[%s3 + $0x194] sm:$0xf]
  %v409 = vld [vmem:[%s3 + $0x198] sm:$0xff]
  %v410 = vld [vmem:[%s3 + $0x1a0] sm:$0xf]
  %v411 = vld [vmem:[%s3 + $0x1a4] sm:$0xff]
  %v412 = vld [vmem:[%s3 + $0x1ac] sm:$0xf]
  %v413 = vld [vmem:[%s3 + $0x1b0] sm:$0xff]
  %v414 = vld [vmem:[%s3 + $0x1b8] sm:$0xf]
  %v415 = vld [vmem:[%s3 + $0x1bc] sm:$0xff]
  %v416 = vld [vmem:[%s3 + $0x1c4] sm:$0xf]
  %v417 = vld [vmem:[%s3 + $0x1c8] sm:$0xff]
  %v418 = vld [vmem:[%s3 + $0x1d0] sm:$0xf]
  %v419 = vld [vmem:[%s3 + $0x1d4] sm:$0xff]
  %v420 = vld [vmem:[%s3 + $0x1dc] sm:$0xf]
  %v421 = vld [vmem:[%s3 + $0x1e0] sm:$0xff]
  %v422 = vld [vmem:[%s3 + $0x1e8] sm:$0xf]
  %v423 = vld [vmem:[%s3 + $0x1ec] sm:$0xff]
  %v424 = vld [vmem:[%s3 + $0x1f4] sm:$0xf]
  %v425 = vld [vmem:[%s3 + $0x1f8] sm:$0xff]
  %v426 = vld [vmem:[%s3 + $0x200] sm:$0xf]
  %v427 = vld [vmem:[%s3 + $0x204] sm:$0xff]
  %v428 = vld [vmem:[%s3 + $0x20c] sm:$0xf]
  %v429 = vld [vmem:[%s3 + $0x210] sm:$0xff]
  %v430 = vld [vmem:[%s3 + $0x218] sm:$0xf]
  %v431 = vld [vmem:[%s3 + $0x21c] sm:$0xff]
  %v432 = vld [vmem:[%s3 + $0x224] sm:$0xf]
  %v433 = vld [vmem:[%s3 + $0x228] sm:$0xff]
  %v434 = vld [vmem:[%s3 + $0x230] sm:$0xf]
  %v435 = vld [vmem:[%s3 + $0x234] sm:$0xff]
  %v436 = vld [vmem:[%s3 + $0x23c] sm:$0xf]
  %v437 = vld [vmem:[%s3 + $0x240] sm:$0xff]
  %v438 = vld [vmem:[%s3 + $0x248] sm:$0xf]
  %v439 = vld [vmem:[%s3 + $0x24c] sm:$0xff]
  %v440 = vld [vmem:[%s3 + $0x254] sm:$0xf]
  %v441 = vld [vmem:[%s3 + $0x258] sm:$0xff]
  %v442 = vld [vmem:[%s3 + $0x260] sm:$0xf]
  %v443 = vld [vmem:[%s3 + $0x264] sm:$0xff]
  %v444 = vld [vmem:[%s3 + $0x26c] sm:$0xf]
  %v445 = vld [vmem:[%s3 + $0x270] sm:$0xff]
  %v446 = vld [vmem:[%s3 + $0x278] sm:$0xf]
  %v447 = vld [vmem:[%s3 + $0x27c] sm:$0xff]
  %v448 = vld [vmem:[%s3 + $0x284] sm:$0xf]
  %v449 = vld [vmem:[%s3 + $0x288] sm:$0xff]
  %v450 = vld [vmem:[%s3 + $0x290] sm:$0xf]
  %v451 = vld [vmem:[%s3 + $0x294] sm:$0xff]
  %v452 = vld [vmem:[%s3 + $0x29c] sm:$0xf]
  %v453 = vld [vmem:[%s3 + $0x2a0] sm:$0xff]
  %v454 = vld [vmem:[%s3 + $0x2a8] sm:$0xf]
  %v455 = vld [vmem:[%s3 + $0x2ac] sm:$0xff]
  %v456 = vld [vmem:[%s3 + $0x2b4] sm:$0xf]
  %v457 = vld [vmem:[%s3 + $0x2b8] sm:$0xff]
  %v458 = vld [vmem:[%s3 + $0x2c0] sm:$0xf]
  %v459 = vld [vmem:[%s3 + $0x2c4] sm:$0xff]
  %v460 = vld [vmem:[%s3 + $0x2cc] sm:$0xf]
  %v461 = vld [vmem:[%s3 + $0x2d0] sm:$0xff]
  %v462 = vld [vmem:[%s3 + $0x2d8] sm:$0xf]
  %v463 = vld [vmem:[%s3 + $0x2dc] sm:$0xff]
  %v464 = vld [vmem:[%s3 + $0x2e4] sm:$0xf]
  %v465 = vld [vmem:[%s3 + $0x2e8] sm:$0xff]
  %v466 = vld [vmem:[%s3 + $0x2f0] sm:$0xf]
  %v467 = vld [vmem:[%s3 + $0x2f4] sm:$0xff]
  %v468 = vld [vmem:[%s3 + $0x2fc] sm:$0xf]
  %v469 = vld [vmem:[%s4] sm:$0x7]
  %v471 = vlaneseq
  %v472 = vshrl.u32 %v471, 7
  %v473 = vsub.s32 0, %v472
  %v474 = vrot.slane %v469, %v473
  %v475 = vlaneseq
  %v476 = vshrl.u32 %v475, 7
  %v477 = vsub.s32 1, %v476
  %v478 = vrot.slane %v469, %v477
  %v479 = vlaneseq
  %v480 = vshrl.u32 %v479, 7
  %v481 = vsub.s32 2, %v480
  %v482 = vrot.slane %v469, %v481
  %v614 = vunpack.c.l.b16 %v341
  %v615 = vunpack.c.h.b16 %v341
  %v616 = vunpack.c.l.b16 %v342
  %v617 = vunpack.c.l.b16 %v343
  %v618 = vunpack.c.h.b16 %v343
  %v619 = vunpack.c.l.b16 %v344
  %v620 = vunpack.c.l.b16 %v345
  %v621 = vunpack.c.h.b16 %v345
  %v622 = vunpack.c.l.b16 %v346
  %v623 = vunpack.c.l.b16 %v347
  %v624 = vunpack.c.h.b16 %v347
  %v625 = vunpack.c.l.b16 %v348
  %v626 = vunpack.c.l.b16 %v349
  %v627 = vunpack.c.h.b16 %v349
  %v628 = vunpack.c.l.b16 %v350
  %v629 = vunpack.c.l.b16 %v351
  %v630 = vunpack.c.h.b16 %v351
  %v631 = vunpack.c.l.b16 %v352
  %v632 = vunpack.c.l.b16 %v353
  %v633 = vunpack.c.h.b16 %v353
  %v634 = vunpack.c.l.b16 %v354
  %v635 = vunpack.c.l.b16 %v355
  %v636 = vunpack.c.h.b16 %v355
  %v637 = vunpack.c.l.b16 %v356
  %v638 = vunpack.c.l.b16 %v357
  %v639 = vunpack.c.h.b16 %v357
  %v640 = vunpack.c.l.b16 %v358
  %v641 = vunpack.c.l.b16 %v359
  %v642 = vunpack.c.h.b16 %v359
  %v643 = vunpack.c.l.b16 %v360
  %v644 = vunpack.c.l.b16 %v361
  %v645 = vunpack.c.h.b16 %v361
  %v646 = vunpack.c.l.b16 %v362
  %v647 = vunpack.c.l.b16 %v363
  %v648 = vunpack.c.h.b16 %v363
  %v649 = vunpack.c.l.b16 %v364
  %v650 = vunpack.c.l.b16 %v365
  %v651 = vunpack.c.h.b16 %v365
  %v652 = vunpack.c.l.b16 %v366
  %v653 = vunpack.c.l.b16 %v367
  %v654 = vunpack.c.h.b16 %v367
  %v655 = vunpack.c.l.b16 %v368
  %v656 = vunpack.c.l.b16 %v369
  %v657 = vunpack.c.h.b16 %v369
  %v658 = vunpack.c.l.b16 %v370
  %v659 = vunpack.c.l.b16 %v371
  %v660 = vunpack.c.h.b16 %v371
  %v661 = vunpack.c.l.b16 %v372
  %v662 = vunpack.c.l.b16 %v373
  %v663 = vunpack.c.h.b16 %v373
  %v664 = vunpack.c.l.b16 %v374
  %v665 = vunpack.c.l.b16 %v375
  %v666 = vunpack.c.h.b16 %v375
  %v667 = vunpack.c.l.b16 %v376
  %v668 = vunpack.c.l.b16 %v377
  %v669 = vunpack.c.h.b16 %v377
  %v670 = vunpack.c.l.b16 %v378
  %v671 = vunpack.c.l.b16 %v379
  %v672 = vunpack.c.h.b16 %v379
  %v673 = vunpack.c.l.b16 %v380
  %v674 = vunpack.c.l.b16 %v381
  %v675 = vunpack.c.h.b16 %v381
  %v676 = vunpack.c.l.b16 %v382
  %v677 = vunpack.c.l.b16 %v383
  %v678 = vunpack.c.h.b16 %v383
  %v679 = vunpack.c.l.b16 %v384
  %v680 = vunpack.c.l.b16 %v385
  %v681 = vunpack.c.h.b16 %v385
  %v682 = vunpack.c.l.b16 %v386
  %v683 = vunpack.c.l.b16 %v387
  %v684 = vunpack.c.h.b16 %v387
  %v685 = vunpack.c.l.b16 %v388
  %v686 = vunpack.c.l.b16 %v389
  %v687 = vunpack.c.h.b16 %v389
  %v688 = vunpack.c.l.b16 %v390
  %v689 = vunpack.c.l.b16 %v391
  %v690 = vunpack.c.h.b16 %v391
  %v691 = vunpack.c.l.b16 %v392
  %v692 = vunpack.c.l.b16 %v393
  %v693 = vunpack.c.h.b16 %v393
  %v694 = vunpack.c.l.b16 %v394
  %v695 = vunpack.c.l.b16 %v395
  %v696 = vunpack.c.h.b16 %v395
  %v697 = vunpack.c.l.b16 %v396
  %v698 = vunpack.c.l.b16 %v397
  %v699 = vunpack.c.h.b16 %v397
  %v700 = vunpack.c.l.b16 %v398
  %v701 = vunpack.c.l.b16 %v399
  %v702 = vunpack.c.h.b16 %v399
  %v703 = vunpack.c.l.b16 %v400
  %v704 = vunpack.c.l.b16 %v401
  %v705 = vunpack.c.h.b16 %v401
  %v706 = vunpack.c.l.b16 %v402
  %v707 = vunpack.c.l.b16 %v403
  %v708 = vunpack.c.h.b16 %v403
  %v709 = vunpack.c.l.b16 %v404
  %v710 = vunpack.c.l.b16 %v405
  %v711 = vunpack.c.h.b16 %v405
  %v712 = vunpack.c.l.b16 %v406
  %v713 = vunpack.c.l.b16 %v407
  %v714 = vunpack.c.h.b16 %v407
  %v715 = vunpack.c.l.b16 %v408
  %v716 = vunpack.c.l.b16 %v409
  %v717 = vunpack.c.h.b16 %v409
  %v718 = vunpack.c.l.b16 %v410
  %v719 = vunpack.c.l.b16 %v411
  %v720 = vunpack.c.h.b16 %v411
  %v721 = vunpack.c.l.b16 %v412
  %v722 = vunpack.c.l.b16 %v413
  %v723 = vunpack.c.h.b16 %v413
  %v724 = vunpack.c.l.b16 %v414
  %v725 = vunpack.c.l.b16 %v415
  %v726 = vunpack.c.h.b16 %v415
  %v727 = vunpack.c.l.b16 %v416
  %v728 = vunpack.c.l.b16 %v417
  %v729 = vunpack.c.h.b16 %v417
  %v730 = vunpack.c.l.b16 %v418
  %v731 = vunpack.c.l.b16 %v419
  %v732 = vunpack.c.h.b16 %v419
  %v733 = vunpack.c.l.b16 %v420
  %v734 = vunpack.c.l.b16 %v421
  %v735 = vunpack.c.h.b16 %v421
  %v736 = vunpack.c.l.b16 %v422
  %v737 = vunpack.c.l.b16 %v423
  %v738 = vunpack.c.h.b16 %v423
  %v739 = vunpack.c.l.b16 %v424
  %v740 = vunpack.c.l.b16 %v425
  %v741 = vunpack.c.h.b16 %v425
  %v742 = vunpack.c.l.b16 %v426
  %v743 = vunpack.c.l.b16 %v427
  %v744 = vunpack.c.h.b16 %v427
  %v745 = vunpack.c.l.b16 %v428
  %v746 = vunpack.c.l.b16 %v429
  %v747 = vunpack.c.h.b16 %v429
  %v748 = vunpack.c.l.b16 %v430
  %v749 = vunpack.c.l.b16 %v431
  %v750 = vunpack.c.h.b16 %v431
  %v751 = vunpack.c.l.b16 %v432
  %v752 = vunpack.c.l.b16 %v433
  %v753 = vunpack.c.h.b16 %v433
  %v754 = vunpack.c.l.b16 %v434
  %v755 = vunpack.c.l.b16 %v435
  %v756 = vunpack.c.h.b16 %v435
  %v757 = vunpack.c.l.b16 %v436
  %v758 = vunpack.c.l.b16 %v437
  %v759 = vunpack.c.h.b16 %v437
  %v760 = vunpack.c.l.b16 %v438
  %v761 = vunpack.c.l.b16 %v439
  %v762 = vunpack.c.h.b16 %v439
  %v763 = vunpack.c.l.b16 %v440
  %v764 = vunpack.c.l.b16 %v441
  %v765 = vunpack.c.h.b16 %v441
  %v766 = vunpack.c.l.b16 %v442
  %v767 = vunpack.c.l.b16 %v443
  %v768 = vunpack.c.h.b16 %v443
  %v769 = vunpack.c.l.b16 %v444
  %v770 = vunpack.c.l.b16 %v445
  %v771 = vunpack.c.h.b16 %v445
  %v772 = vunpack.c.l.b16 %v446
  %v773 = vunpack.c.l.b16 %v447
  %v774 = vunpack.c.h.b16 %v447
  %v775 = vunpack.c.l.b16 %v448
  %v776 = vunpack.c.l.b16 %v449
  %v777 = vunpack.c.h.b16 %v449
  %v778 = vunpack.c.l.b16 %v450
  %v779 = vunpack.c.l.b16 %v451
  %v780 = vunpack.c.h.b16 %v451
  %v781 = vunpack.c.l.b16 %v452
  %v782 = vunpack.c.l.b16 %v453
  %v783 = vunpack.c.h.b16 %v453
  %v784 = vunpack.c.l.b16 %v454
  %v785 = vunpack.c.l.b16 %v455
  %v786 = vunpack.c.h.b16 %v455
  %v787 = vunpack.c.l.b16 %v456
  %v788 = vunpack.c.l.b16 %v457
  %v789 = vunpack.c.h.b16 %v457
  %v790 = vunpack.c.l.b16 %v458
  %v791 = vunpack.c.l.b16 %v459
  %v792 = vunpack.c.h.b16 %v459
  %v793 = vunpack.c.l.b16 %v460
  %v794 = vunpack.c.l.b16 %v461
  %v795 = vunpack.c.h.b16 %v461
  %v796 = vunpack.c.l.b16 %v462
  %v797 = vunpack.c.l.b16 %v463
  %v798 = vunpack.c.h.b16 %v463
  %v799 = vunpack.c.l.b16 %v464
  %v800 = vunpack.c.l.b16 %v465
  %v801 = vunpack.c.h.b16 %v465
  %v802 = vunpack.c.l.b16 %v466
  %v803 = vunpack.c.l.b16 %v467
  %v804 = vunpack.c.h.b16 %v467
  %v805 = vunpack.c.l.b16 %v468
  %v806 = vpack.c.b16 %v617, %v614
  %v807 = vpack.c.b16 %v618, %v615
  %v808 = vpack.c.b16 %v619, %v616
  %v809 = vpack.c.b16 %v623, %v620
  %v810 = vpack.c.b16 %v624, %v621
  %v811 = vpack.c.b16 %v625, %v622
  %v812 = vpack.c.b16 %v629, %v626
  %v813 = vpack.c.b16 %v630, %v627
  %v814 = vpack.c.b16 %v631, %v628
  %v815 = vpack.c.b16 %v635, %v632
  %v816 = vpack.c.b16 %v636, %v633
  %v817 = vpack.c.b16 %v637, %v634
  %v818 = vpack.c.b16 %v641, %v638
  %v819 = vpack.c.b16 %v642, %v639
  %v820 = vpack.c.b16 %v643, %v640
  %v821 = vpack.c.b16 %v647, %v644
  %v822 = vpack.c.b16 %v648, %v645
  %v823 = vpack.c.b16 %v649, %v646
  %v824 = vpack.c.b16 %v653, %v650
  %v825 = vpack.c.b16 %v654, %v651
  %v826 = vpack.c.b16 %v655, %v652
  %v827 = vpack.c.b16 %v659, %v656
  %v828 = vpack.c.b16 %v660, %v657
  %v829 = vpack.c.b16 %v661, %v658
  %v830 = vpack.c.b16 %v665, %v662
  %v831 = vpack.c.b16 %v666, %v663
  %v832 = vpack.c.b16 %v667, %v664
  %v833 = vpack.c.b16 %v671, %v668
  %v834 = vpack.c.b16 %v672, %v669
  %v835 = vpack.c.b16 %v673, %v670
  %v836 = vpack.c.b16 %v677, %v674
  %v837 = vpack.c.b16 %v678, %v675
  %v838 = vpack.c.b16 %v679, %v676
  %v839 = vpack.c.b16 %v683, %v680
  %v840 = vpack.c.b16 %v684, %v681
  %v841 = vpack.c.b16 %v685, %v682
  %v842 = vpack.c.b16 %v689, %v686
  %v843 = vpack.c.b16 %v690, %v687
  %v844 = vpack.c.b16 %v691, %v688
  %v845 = vpack.c.b16 %v695, %v692
  %v846 = vpack.c.b16 %v696, %v693
  %v847 = vpack.c.b16 %v697, %v694
  %v848 = vpack.c.b16 %v701, %v698
  %v849 = vpack.c.b16 %v702, %v699
  %v850 = vpack.c.b16 %v703, %v700
  %v851 = vpack.c.b16 %v707, %v704
  %v852 = vpack.c.b16 %v708, %v705
  %v853 = vpack.c.b16 %v709, %v706
  %v854 = vpack.c.b16 %v713, %v710
  %v855 = vpack.c.b16 %v714, %v711
  %v856 = vpack.c.b16 %v715, %v712
  %v857 = vpack.c.b16 %v719, %v716
  %v858 = vpack.c.b16 %v720, %v717
  %v859 = vpack.c.b16 %v721, %v718
  %v860 = vpack.c.b16 %v725, %v722
  %v861 = vpack.c.b16 %v726, %v723
  %v862 = vpack.c.b16 %v727, %v724
  %v863 = vpack.c.b16 %v731, %v728
  %v864 = vpack.c.b16 %v732, %v729
  %v865 = vpack.c.b16 %v733, %v730
  %v866 = vpack.c.b16 %v737, %v734
  %v867 = vpack.c.b16 %v738, %v735
  %v868 = vpack.c.b16 %v739, %v736
  %v869 = vpack.c.b16 %v743, %v740
  %v870 = vpack.c.b16 %v744, %v741
  %v871 = vpack.c.b16 %v745, %v742
  %v872 = vpack.c.b16 %v749, %v746
  %v873 = vpack.c.b16 %v750, %v747
  %v874 = vpack.c.b16 %v751, %v748
  %v875 = vpack.c.b16 %v755, %v752
  %v876 = vpack.c.b16 %v756, %v753
  %v877 = vpack.c.b16 %v757, %v754
  %v878 = vpack.c.b16 %v761, %v758
  %v879 = vpack.c.b16 %v762, %v759
  %v880 = vpack.c.b16 %v763, %v760
  %v881 = vpack.c.b16 %v767, %v764
  %v882 = vpack.c.b16 %v768, %v765
  %v883 = vpack.c.b16 %v769, %v766
  %v884 = vpack.c.b16 %v773, %v770
  %v885 = vpack.c.b16 %v774, %v771
  %v886 = vpack.c.b16 %v775, %v772
  %v887 = vpack.c.b16 %v779, %v776
  %v888 = vpack.c.b16 %v780, %v777
  %v889 = vpack.c.b16 %v781, %v778
  %v890 = vpack.c.b16 %v785, %v782
  %v891 = vpack.c.b16 %v786, %v783
  %v892 = vpack.c.b16 %v787, %v784
  %v893 = vpack.c.b16 %v791, %v788
  %v894 = vpack.c.b16 %v792, %v789
  %v895 = vpack.c.b16 %v793, %v790
  %v896 = vpack.c.b16 %v797, %v794
  %v897 = vpack.c.b16 %v798, %v795
  %v898 = vpack.c.b16 %v799, %v796
  %v899 = vpack.c.b16 %v803, %v800
  %v900 = vpack.c.b16 %v804, %v801
  %v901 = vpack.c.b16 %v805, %v802
  %998 = vmatprep.subr.bf16.mxu0 %v807
  %999 = vmatpush1.bf16.msra.mxu0 %v806
  %1000 = vmatprep.subr.bf16.mxu0 %v810
  %1001 = vmatpush1.bf16.msra.mxu0 %v809
  %1002 = vmatprep.subr.bf16.mxu0 %v813
  %1003 = vmatpush1.bf16.msra.mxu0 %v812
  %1004 = vmatprep.subr.bf16.mxu0 %v816
  %1005 = vmatpush1.bf16.msra.mxu0 %v815
  %1006 = vmatprep.subr.bf16.mxu0 %v819
  %1007 = vmatpush1.bf16.msra.mxu0 %v818
  %1008 = vmatprep.subr.bf16.mxu0 %v822
  %1009 = vmatpush1.bf16.msra.mxu0 %v821
  %1010 = vmatprep.subr.bf16.mxu0 %v825
  %1011 = vmatpush1.bf16.msra.mxu0 %v824
  %1012 = vmatprep.subr.bf16.mxu0 %v828
  %1013 = vmatpush1.bf16.msra.mxu0 %v827
  %1014 = vmatprep.subr.bf16.mxu0 %v831
  %1015 = vmatpush1.bf16.msra.mxu0 %v830
  %1016 = vmatprep.subr.bf16.mxu0 %v834
  %1017 = vmatpush1.bf16.msra.mxu0 %v833
  %1018 = vmatprep.subr.bf16.mxu0 %v837
  %1019 = vmatpush1.bf16.msra.mxu0 %v836
  %1020 = vmatprep.subr.bf16.mxu0 %v840
  %1021 = vmatpush1.bf16.msra.mxu0 %v839
  %1022 = vmatprep.subr.bf16.mxu0 %v843
  %1023 = vmatpush1.bf16.msra.mxu0 %v842
  %1024 = vmatprep.subr.bf16.mxu0 %v846
  %1025 = vmatpush1.bf16.msra.mxu0 %v845
  %1026 = vmatprep.subr.bf16.mxu0 %v849
  %1027 = vmatpush1.bf16.msra.mxu0 %v848
  %1028 = vmatprep.subr.bf16.mxu0 %v852
  %1029 = vmatpush1.bf16.msra.mxu0 %v851
  %1030 = vmatprep.mubr.bf16.mxu0 %v338
  %1031 = vmatmul.mubr.bf16.gmra.mrb[0].mxu0 %v337
  %v1032 = vpop.f32.mrb[0].mxu0
  %v1033 = vadd.f32 %v474, %v1032
  %v1034 = vpop.f32.mrb[0].mxu0
  %v1035 = vadd.f32 %v478, %v1034
  %v1036 = vpop.f32.mrb[0].mxu0
  %v1037 = vadd.f32 %v474, %v1036
  %v1038 = vpop.f32.mrb[0].mxu0
  %v1039 = vadd.f32 %v478, %v1038
  %1040 = vdwg.mxu0
  %1041 = vmatprep.subr.bf16.mxu0 %v855
  %1042 = vmatpush1.bf16.msra.mxu0 %v854
  %1043 = vmatprep.subr.bf16.mxu0 %v858
  %1044 = vmatpush1.bf16.msra.mxu0 %v857
  %1045 = vmatprep.subr.bf16.mxu0 %v861
  %1046 = vmatpush1.bf16.msra.mxu0 %v860
  %1047 = vmatprep.subr.bf16.mxu0 %v864
  %1048 = vmatpush1.bf16.msra.mxu0 %v863
  %1049 = vmatprep.subr.bf16.mxu0 %v867
  %1050 = vmatpush1.bf16.msra.mxu0 %v866
  %1051 = vmatprep.subr.bf16.mxu0 %v870
  %1052 = vmatpush1.bf16.msra.mxu0 %v869
  %1053 = vmatprep.subr.bf16.mxu0 %v873
  %1054 = vmatpush1.bf16.msra.mxu0 %v872
  %1055 = vmatprep.subr.bf16.mxu0 %v876
  %1056 = vmatpush1.bf16.msra.mxu0 %v875
  %1057 = vmatprep.subr.bf16.mxu0 %v879
  %1058 = vmatpush1.bf16.msra.mxu0 %v878
  %1059 = vmatprep.subr.bf16.mxu0 %v882
  %1060 = vmatpush1.bf16.msra.mxu0 %v881
  %1061 = vmatprep.subr.bf16.mxu0 %v885
  %1062 = vmatpush1.bf16.msra.mxu0 %v884
  %1063 = vmatprep.subr.bf16.mxu0 %v888
  %1064 = vmatpush1.bf16.msra.mxu0 %v887
  %1065 = vmatprep.subr.bf16.mxu0 %v891
  %1066 = vmatpush1.bf16.msra.mxu0 %v890
  %1067 = vmatprep.subr.bf16.mxu0 %v894
  %1068 = vmatpush1.bf16.msra.mxu0 %v893
  %1069 = vmatprep.subr.bf16.mxu0 %v897
  %1070 = vmatpush1.bf16.msra.mxu0 %v896
  %1071 = vmatprep.subr.bf16.mxu0 %v900
  %1072 = vmatpush1.bf16.msra.mxu0 %v899
  %1073 = vmatprep.mubr.bf16.mxu0 %v340
  %1074 = vmatmul.mubr.bf16.gmra.mrb[0].mxu0 %v339
  %v1075 = vpop.f32.mrb[0].mxu0
  %v1076 = vadd.f32 %v1033, %v1075
  %v1077 = vpop.f32.mrb[0].mxu0
  %v1078 = vadd.f32 %v1035, %v1077
  %v1079 = vpop.f32.mrb[0].mxu0
  %v1080 = vadd.f32 %v1037, %v1079
  %v1081 = vpop.f32.mrb[0].mxu0
  %v1082 = vadd.f32 %v1039, %v1081
  %1083 = vdwg.mxu0
  %1084 = vmatprep.subr.bf16.mxu0 0
  %1085 = vmatpush1.bf16.msra.mxu0 %v808
  %1086 = vmatprep.subr.bf16.mxu0 0
  %1087 = vmatpush1.bf16.msra.mxu0 %v811
  %1088 = vmatprep.subr.bf16.mxu0 0
  %1089 = vmatpush1.bf16.msra.mxu0 %v814
  %1090 = vmatprep.subr.bf16.mxu0 0
  %1091 = vmatpush1.bf16.msra.mxu0 %v817
  %1092 = vmatprep.subr.bf16.mxu0 0
  %1093 = vmatpush1.bf16.msra.mxu0 %v820
  %1094 = vmatprep.subr.bf16.mxu0 0
  %1095 = vmatpush1.bf16.msra.mxu0 %v823
  %1096 = vmatprep.subr.bf16.mxu0 0
  %1097 = vmatpush1.bf16.msra.mxu0 %v826
  %1098 = vmatprep.subr.bf16.mxu0 0
  %1099 = vmatpush1.bf16.msra.mxu0 %v829
  %1100 = vmatprep.subr.bf16.mxu0 0
  %1101 = vmatpush1.bf16.msra.mxu0 %v832
  %1102 = vmatprep.subr.bf16.mxu0 0
  %1103 = vmatpush1.bf16.msra.mxu0 %v835
  %1104 = vmatprep.subr.bf16.mxu0 0
  %1105 = vmatpush1.bf16.msra.mxu0 %v838
  %1106 = vmatprep.subr.bf16.mxu0 0
  %1107 = vmatpush1.bf16.msra.mxu0 %v841
  %1108 = vmatprep.subr.bf16.mxu0 0
  %1109 = vmatpush1.bf16.msra.mxu0 %v844
  %1110 = vmatprep.subr.bf16.mxu0 0
  %1111 = vmatpush1.bf16.msra.mxu0 %v847
  %1112 = vmatprep.subr.bf16.mxu0 0
  %1113 = vmatpush1.bf16.msra.mxu0 %v850
  %1114 = vmatprep.subr.bf16.mxu0 0
  %1115 = vmatpush1.bf16.msra.mxu0 %v853
  %1116 = vmatprep.mubr.bf16.mxu0 %v338
  %1117 = vmatmul.mubr.bf16.gmra.mrb[0].mxu0 %v337
  %v1118 = vpop.f32.mrb[0].mxu0
  %v1119 = vadd.f32 %v482, %v1118
  %v1120 = vpop.f32.mrb[0].mxu0
  %v1121 = vpop.f32.mrb[0].mxu0
  %v1122 = vadd.f32 %v482, %v1121
  %v1123 = vpop.f32.mrb[0].mxu0
  %1124 = vdwg.mxu0
  %1125 = vmatprep.subr.bf16.mxu0 0
  %1126 = vmatpush1.bf16.msra.mxu0 %v856
  %1127 = vmatprep.subr.bf16.mxu0 0
  %1128 = vmatpush1.bf16.msra.mxu0 %v859
  %1129 = vmatprep.subr.bf16.mxu0 0
  %1130 = vmatpush1.bf16.msra.mxu0 %v862
  %1131 = vmatprep.subr.bf16.mxu0 0
  %1132 = vmatpush1.bf16.msra.mxu0 %v865
  %1133 = vmatprep.subr.bf16.mxu0 0
  %1134 = vmatpush1.bf16.msra.mxu0 %v868
  %1135 = vmatprep.subr.bf16.mxu0 0
  %1136 = vmatpush1.bf16.msra.mxu0 %v871
  %1137 = vmatprep.subr.bf16.mxu0 0
  %1138 = vmatpush1.bf16.msra.mxu0 %v874
  %1139 = vmatprep.subr.bf16.mxu0 0
  %1140 = vmatpush1.bf16.msra.mxu0 %v877
  %1141 = vmatprep.subr.bf16.mxu0 0
  %1142 = vmatpush1.bf16.msra.mxu0 %v880
  %1143 = vmatprep.subr.bf16.mxu0 0
  %1144 = vmatpush1.bf16.msra.mxu0 %v883
  %1145 = vmatprep.subr.bf16.mxu0 0
  %1146 = vmatpush1.bf16.msra.mxu0 %v886
  %1147 = vmatprep.subr.bf16.mxu0 0
  %1148 = vmatpush1.bf16.msra.mxu0 %v889
  %1149 = vmatprep.subr.bf16.mxu0 0
  %1150 = vmatpush1.bf16.msra.mxu0 %v892
  %1151 = vmatprep.subr.bf16.mxu0 0
  %1152 = vmatpush1.bf16.msra.mxu0 %v895
  %1153 = vmatprep.subr.bf16.mxu0 0
  %1154 = vmatpush1.bf16.msra.mxu0 %v898
  %1155 = vmatprep.subr.bf16.mxu0 0
  %1156 = vmatpush1.bf16.msra.mxu0 %v901
  %1157 = vmatprep.mubr.bf16.mxu0 %v340
  %1158 = vmatmul.mubr.bf16.gmra.mrb[0].mxu0 %v339
  %v1159 = vpop.f32.mrb[0].mxu0
  %v1160 = vadd.f32 %v1119, %v1159
  %v1161 = vpop.f32.mrb[0].mxu0
  %v1162 = vpop.f32.mrb[0].mxu0
  %v1163 = vadd.f32 %v1122, %v1162
  %v1164 = vpop.f32.mrb[0].mxu0
  %1165 = vdwg.mxu0
  %1166 = vmax.xlane.f32.xlu0 %v1076
  %v1167 = vpop.xlane.xlu0 %1166
  %1168 = vmax.xlane.f32.xlu0 %v1080
  %v1169 = vpop.xlane.xlu0 %1168
  %v1170 = vsub.f32 %v1076, %v1167
  %v1171 = vsub.f32 %v1080, %v1169
  %v1172 = vmul.f32 %v1170, 1.442695
  %v1173 = vpow.pop %v1172
  %v1174 = vmul.f32 %v1171, 1.442695
  %v1175 = vpow.pop %v1174
  %1176 = vadd.xlane.f32.xlu0 %v1173
  %v1177 = vpop.xlane.xlu0 %1176
  %1178 = vadd.xlane.f32.xlu0 %v1175
  %v1179 = vpop.xlane.xlu0 %1178
  %v1180 = vrcp.pop %v1177
  %v1181 = vmul.f32 %v1173, %v1180
  %v1182 = vrcp.pop %v1179
  %v1183 = vmul.f32 %v1175, %v1182
  %1184 = vst [vmem:[%s5] sm:$0xff] %v1181
  %1185 = vst [vmem:[%s5 + $0x18] sm:$0xff] %v1183
  %1186 = vmax.xlane.f32.xlu0 %v1078
  %v1187 = vpop.xlane.xlu0 %1186
  %1188 = vmax.xlane.f32.xlu0 %v1082
  %v1189 = vpop.xlane.xlu0 %1188
  %v1190 = vsub.f32 %v1078, %v1187
  %v1191 = vsub.f32 %v1082, %v1189
  %v1192 = vmul.f32 %v1190, 1.442695
  %v1193 = vpow.pop %v1192
  %v1194 = vmul.f32 %v1191, 1.442695
  %v1195 = vpow.pop %v1194
  %1196 = vadd.xlane.f32.xlu0 %v1193
  %v1197 = vpop.xlane.xlu0 %1196
  %1198 = vadd.xlane.f32.xlu0 %v1195
  %v1199 = vpop.xlane.xlu0 %1198
  %v1200 = vrcp.pop %v1197
  %v1201 = vmul.f32 %v1193, %v1200
  %v1202 = vrcp.pop %v1199
  %v1203 = vmul.f32 %v1195, %v1202
  %1204 = vst [vmem:[%s5 + $0x8] sm:$0xff] %v1201
  %1205 = vst [vmem:[%s5 + $0x20] sm:$0xff] %v1203
  %1206 = vmax.xlane.f32.xlu0 %v1160
  %v1207 = vpop.xlane.xlu0 %1206
  %1208 = vmax.xlane.f32.xlu0 %v1163
  %v1209 = vpop.xlane.xlu0 %1208
  %v1210 = vsub.f32 %v1160, %v1207
  %v1211 = vsub.f32 %v1163, %v1209
  %v1212 = vmul.f32 %v1210, 1.442695
  %v1213 = vpow.pop %v1212
  %v1214 = vmul.f32 %v1211, 1.442695
  %v1215 = vpow.pop %v1214
  %1216 = vadd.xlane.f32.xlu0 %v1213
  %v1217 = vpop.xlane.xlu0 %1216
  %1218 = vadd.xlane.f32.xlu0 %v1215
  %v1219 = vpop.xlane.xlu0 %1218
  %v1220 = vrcp.pop %v1217
  %v1221 = vmul.f32 %v1213, %v1220
  %v1222 = vrcp.pop %v1219
  %v1223 = vmul.f32 %v1215, %v1222
  %1224 = vst [vmem:[%s5 + $0x10] sm:$0xff] %v1221
  %1225 = vst [vmem:[%s5 + $0x28] sm:$0xff] %v1223
  // Predicated region
  $region22: #{dqn_distributional_forward.7} parent=0 // pred_check
    _
  $region23: #{dqn_distributional_forward.7} parent=0 // pred_check_branch
    %1227 = sbr.rel (0) target = $region25
  $region24: #{dqn_distributional_forward.7} parent=0 // pred_region
    _
  $region25: #{dqn_distributional_forward.7} parent=0 // pred_fallthru
    _
  // Predicated region
  $region26: #{dqn_distributional_forward.7} parent=0 // pred_check
    _
  $region27: #{dqn_distributional_forward.7} parent=0 // pred_check_branch
    %1229 = sbr.rel (0) target = $region29
  $region28: #{dqn_distributional_forward.7} parent=0 // pred_region
    _
  $region29: #{dqn_distributional_forward.7} parent=0 // pred_fallthru
    _

</llo_original>
